<compile_context>
chip_gen: v7x
topology: tpu7x:2x2x1
jax: 0.10.0
libtpu: 0.0.40
codegen_flags: <defaults>
</compile_context>

<pallas_src>
import functools

import jax
import jax.numpy as jnp
from jax import lax
from jax.experimental import pallas as pl
from jax.experimental.pallas import tpu as pltpu


# --------------------------------------------------------------------------
# Small helpers
# --------------------------------------------------------------------------
def _round_up(x, m):
    return ((x + m - 1) // m) * m


def _vmem_budget_bytes():
    """~75% of this generation's VMEM (conservative fallback if query fails)."""
    try:
        cap = int(pltpu.get_tpu_info().vmem_capacity_bytes)
    except Exception:
        cap = 64 * 1024 * 1024
    return min(int(cap * 0.75), 100 * 1024 * 1024)


def _choose_time_chunk(S, Bp, d_in, Hp, itemsize, budget_bytes, cap=64):
    """Pick timesteps-per-grid-step T (and padded S) under the VMEM budget.

    Per-chunk VMEM (double-buffered pipelined blocks + scratch):
      x in        2 * T*Bp*d_in*itemsize
      hidden out  2 * T*Bp*Hp*itemsize
      gates slab      T*Bp*4Hp*4          (f32 scratch)
    plus T-independent weights / bias / h / c.
    """
    per_t = Bp * (2 * d_in * itemsize + 2 * Hp * itemsize + 4 * Hp * 4)
    fixed = (2 * (d_in + Hp) * 4 * Hp * itemsize      # W_ih^T + W_hh^T (x2 buf)
             + 2 * Bp * Hp * 4                        # h, c state
             + 4 * Hp * 4                             # bias
             + 2 * (Hp + 1) * 128 * itemsize)         # fc weight/bias bound
    avail = max(budget_bytes - fixed, per_t)
    t_max = int(max(1, min(cap, avail // per_t)))
    n_chunks = max(1, -(-S // t_max))                 # ceil(S / t_max)
    T = -(-S // n_chunks)                             # minimal tail padding
    return T, n_chunks * T


# --------------------------------------------------------------------------
# Kernel bodies
# --------------------------------------------------------------------------
def _project_chunk(x_ref, wih_ref, b_ref, gin_sc):
    """Hoisted input projection for one chunk: (T*Bp, Din)@(Din, 4Hp) + bias."""
    gin_sc[...] = (
        jnp.dot(x_ref[...], wih_ref[...], preferred_element_type=jnp.float32)
        + b_ref[...]
    )


def _run_recurrence(gin_sc, whh_ref, h_sc, c_sc, out_ref, t_chunk, n_valid):
    """T recurrent LSTM steps on one chunk (input gates precomputed in VMEM).

    gin_sc : (T*Bp, 4Hp) f32 gates slab (x-projection + bias)
    whh_ref: (Hp, 4Hp)   hidden->gates weight (transposed, padded)
    h_sc/c_sc: (Bp, Hp)  f32 persistent state (VMEM scratch)
    out_ref: (T*Bp, Hp)  hidden slab for this chunk, or None (last layer)
    n_valid: true sequence length (mask padded tail steps) or None
    """
    Bp, Hp = h_sc.shape
    # Keep <= ~8 live (Bp, 4Hp) gate tiles when unrolling -> no vreg spills.
    unroll = max(1, min(8, t_chunk, (8 * 512) // (4 * Hp)))
    base = pl.program_id(0) * t_chunk

    def step(t, carry):
        row = pl.multiple_of(t * Bp, 8)
        h_prev = h_sc[...]
        c_prev = c_sc[...]
        gates = gin_sc[pl.ds(row, Bp), :] + jnp.dot(
            h_prev.astype(whh_ref.dtype), whh_ref[...],
            preferred_element_type=jnp.float32)
        # Gate order is [i, f, o, g]: one sigmoid over 3Hp lanes, one tanh.
        ifo = jax.nn.sigmoid(gates[:, : 3 * Hp])
        g = jnp.tanh(gates[:, 3 * Hp:])
        i, f, o = ifo[:, :Hp], ifo[:, Hp:2 * Hp], ifo[:, 2 * Hp:]
        c_new = f * c_prev + i * g
        h_new = o * jnp.tanh(c_new)
        if n_valid is not None:
            # Padded tail timesteps: freeze the state (keep == 0 -> no update).
            keep = ((base + t) < n_valid).astype(jnp.float32)
            c_new = keep * c_new + (1.0 - keep) * c_prev
            h_new = keep * h_new + (1.0 - keep) * h_prev
        c_sc[...] = c_new
        h_sc[...] = h_new
        if out_ref is not None:
            out_ref[pl.ds(row, Bp), :] = h_new.astype(out_ref.dtype)
        return carry

    lax.fori_loop(0, t_chunk, step, 0, unroll=unroll)


def _make_layer_kernel(t_chunk, n_valid, is_last):
    """Build the fused per-layer kernel (projection + recurrence [+ FC])."""
    if is_last:
        def kernel(x_ref, wih_ref, whh_ref, b_ref, fcw_ref, fcb_ref, out_ref,
                   gin_sc, h_sc, c_sc):
            c_idx = pl.program_id(0)

            @pl.when(c_idx == 0)
            def _():
                h_sc[...] = jnp.zeros_like(h_sc)
                c_sc[...] = jnp.zeros_like(c_sc)
                out_ref[...] = jnp.zeros_like(out_ref)   # defensive init

            _project_chunk(x_ref, wih_ref, b_ref, gin_sc)
            _run_recurrence(gin_sc, whh_ref, h_sc, c_sc, None, t_chunk, n_valid)

            @pl.when(c_idx == pl.num_programs(0) - 1)
            def _():
                out_ref[...] = (
                    jnp.dot(h_sc[...].astype(fcw_ref.dtype), fcw_ref[...],
                            preferred_element_type=jnp.float32)
                    + fcb_ref[...]
                ).astype(out_ref.dtype)

        return kernel

    def kernel(x_ref, wih_ref, whh_ref, b_ref, out_ref, gin_sc, h_sc, c_sc):
        @pl.when(pl.program_id(0) == 0)
        def _():
            h_sc[...] = jnp.zeros_like(h_sc)
            c_sc[...] = jnp.zeros_like(c_sc)

        _project_chunk(x_ref, wih_ref, b_ref, gin_sc)
        _run_recurrence(gin_sc, whh_ref, h_sc, c_sc, out_ref, t_chunk, n_valid)

    return kernel


# --------------------------------------------------------------------------
# pallas_call wrappers
# --------------------------------------------------------------------------
def _lstm_layer(x_seq, wih_t, whh_t, bias, t_chunk, n_valid, vmem_limit):
    """One LSTM layer: (S_pad*Bp, Din) -> (S_pad*Bp, Hp) time-major hidden."""
    rows, d_in = x_seq.shape
    g4 = whh_t.shape[1]
    Hp = g4 // 4
    Bp = whh_t.shape[0] if False else None  # (unused placeholder removed below)
    Bp = rows // (rows // (t_chunk and 1) if False else 1)  # noqa (see below)
    # Bp recovered from the grid arithmetic:
    #   rows == S_pad * Bp and blocks are (t_chunk * Bp, ...)
    # We pass Bp explicitly via closure-free arithmetic:
    del Bp
    # rows = S_pad * Bp ; grid = S_pad // t_chunk ; block rows = t_chunk * Bp
    # => Bp = rows // S_pad, and S_pad = grid * t_chunk.
    # Compute from n-of-chunks implied by the caller:
    raise_if = None  # (kept minimal; real computation below)


# NOTE: the helper above is replaced by the explicit-parameter versions below.
def lstm_layer(x_seq, wih_t, whh_t, bias, t_chunk, batch_p, n_valid,
               vmem_limit):
    """One LSTM layer: (S_pad*Bp, Din) -> (S_pad*Bp, Hp) time-major hidden."""
    rows, d_in = x_seq.shape
    g4 = whh_t.shape[1]
    Hp = g4 // 4
    n_chunks = rows // (t_chunk * batch_p)
    blk = t_chunk * batch_p
    kernel = _make_layer_kernel(t_chunk, n_valid, is_last=False)
    return pl.pallas_call(
        kernel,
        out_shape=jax.ShapeDtypeStruct((rows, Hp), x_seq.dtype),
        grid_spec=pltpu.PrefetchScalarGridSpec(
            num_scalar_prefetch=0,
            grid=(n_chunks,),
            in_specs=[
                pl.BlockSpec((blk, d_in), lambda c: (c, 0)),
                pl.BlockSpec((d_in, g4), lambda c: (0, 0)),
                pl.BlockSpec((Hp, g4), lambda c: (0, 0)),
                pl.BlockSpec((1, g4), lambda c: (0, 0)),
            ],
            out_specs=pl.BlockSpec((blk, Hp), lambda c: (c, 0)),
            scratch_shapes=[
                pltpu.VMEM((blk, g4), jnp.float32),        # gates slab
                pltpu.VMEM((batch_p, Hp), jnp.float32),    # h state
                pltpu.VMEM((batch_p, Hp), jnp.float32),    # c state
            ],
        ),
        compiler_params=pltpu.CompilerParams(
            dimension_semantics=("arbitrary",),            # recurrence is serial
            vmem_limit_bytes=vmem_limit),
    )(x_seq, wih_t, whh_t, bias)


def lstm_last_layer_fused_fc(x_seq, wih_t, whh_t, bias, fcw_t, fcb,
                             t_chunk, batch_p, n_valid, vmem_limit):
    """Last LSTM layer + Linear on the final hidden state -> (Bp, Op)."""
    rows, d_in = x_seq.shape
    g4 = whh_t.shape[1]
    Hp = g4 // 4
    Op = fcw_t.shape[1]
    n_chunks = rows // (t_chunk * batch_p)
    blk = t_chunk * batch_p
    kernel = _make_layer_kernel(t_chunk, n_valid, is_last=True)
    return pl.pallas_call(
        kernel,
        out_shape=jax.ShapeDtypeStruct((batch_p, Op), jnp.float32),
        grid_spec=pltpu.PrefetchScalarGridSpec(
            num_scalar_prefetch=0,
            grid=(n_chunks,),
            in_specs=[
                pl.BlockSpec((blk, d_in), lambda c: (c, 0)),
                pl.BlockSpec((d_in, g4), lambda c: (0, 0)),
                pl.BlockSpec((Hp, g4), lambda c: (0, 0)),
                pl.BlockSpec((1, g4), lambda c: (0, 0)),
                pl.BlockSpec((Hp, Op), lambda c: (0, 0)),
                pl.BlockSpec((1, Op), lambda c: (0, 0)),
            ],
            out_specs=pl.BlockSpec((batch_p, Op), lambda c: (0, 0)),
            scratch_shapes=[
                pltpu.VMEM((blk, g4), jnp.float32),
                pltpu.VMEM((batch_p, Hp), jnp.float32),
                pltpu.VMEM((batch_p, Hp), jnp.float32),
            ],
        ),
        compiler_params=pltpu.CompilerParams(
            dimension_semantics=("arbitrary",),
            vmem_limit_bytes=vmem_limit),
    )(x_seq, wih_t, whh_t, bias, fcw_t, fcb)


# --------------------------------------------------------------------------
# Parameter preparation (PyTorch layout -> padded / transposed kernel layout)
# --------------------------------------------------------------------------
_GATE_PERM = (0, 1, 3, 2)     # PyTorch [i, f, g, o] -> kernel [i, f, o, g]


def _pad_gate_rows(w, H, Hp):
    """(4H, X) -> (4Hp, X): reorder gate blocks to [i,f,o,g], zero-pad H->Hp."""
    X = w.shape[1]
    w4 = w.reshape(4, H, X)[jnp.array(_GATE_PERM)]
    w4 = jnp.pad(w4, ((0, 0), (0, Hp - H), (0, 0)))
    return w4.reshape(4 * Hp, X)


def _pad_gate_vec(b, H, Hp):
    b4 = b.reshape(4, H)[jnp.array(_GATE_PERM)]
    return jnp.pad(b4, ((0, 0), (0, Hp - H))).reshape(4 * Hp)


def prepare_params(raw, hidden_dim, output_dim, compute_dtype=jnp.bfloat16):
    """Pad hidden/FC dims to 128 lanes, pre-transpose, cast MXU operands."""
    Hp = _round_up(hidden_dim, 128)
    Op = _round_up(output_dim, 128)
    layers = []
    for li, (w_ih, w_hh, b_ih, b_hh) in enumerate(raw["lstm"]):
        d_in = w_ih.shape[1]
        d_in_p = d_in if li == 0 else Hp     # layer > 0 consumes padded hidden
        wih = _pad_gate_rows(w_ih, hidden_dim, Hp)
        wih = jnp.pad(wih, ((0, 0), (0, d_in_p - d_in)))
        whh = _pad_gate_rows(w_hh, hidden_dim, Hp)
        whh = jnp.pad(whh, ((0, 0), (0, Hp - hidden_dim)))
        bias = _pad_gate_vec(b_ih + b_hh, hidden_dim, Hp).reshape(1, 4 * Hp)
        layers.append((
            jnp.transpose(wih).astype(compute_dtype),     # (d_in_p, 4Hp)
            jnp.transpose(whh).astype(compute_dtype),     # (Hp, 4Hp)
            bias.astype(jnp.float32),                     # (1, 4Hp) f32
        ))
    fcw_t = jnp.pad(jnp.transpose(raw["fc_w"]),
                    ((0, Hp - hidden_dim), (0, Op - output_dim)))
    fcb = jnp.pad(raw["fc_b"], (0, Op - output_dim)).reshape(1, Op)
    return {"layers": layers,
            "fc_w_t": fcw_t.astype(compute_dtype),
            "fc_b": fcb.astype(jnp.float32)}


# --------------------------------------------------------------------------
# Forward pass (equivalent of LSTM.forward)
# --------------------------------------------------------------------------
@functools.partial(jax.jit, static_argnames=("output_dim", "time_chunk_cap"))
def lstm_forward(x_bsd, params, output_dim, time_chunk_cap=64):
    """x (B, S, input_dim) -> (B, output_dim); matches nn.LSTM + Linear."""
    B, S, d_in0 = x_bsd.shape
    layers = params["layers"]
    cdt = layers[0][0].dtype                 # MXU compute dtype (bf16 or f32)
    Hp = layers[0][1].shape[0]
    Bp = _round_up(B, 8)                     # fill the 8 sublanes of a vreg

    budget = _vmem_budget_bytes()
    T, S_pad = _choose_time_chunk(S, Bp, max(d_in0, Hp), Hp, cdt.itemsize,
                                  budget, cap=time_chunk_cap)
    n_valid = S if S_pad > S else None       # mask padded tail steps

    # Time-major, batch/time padded, compute-dtype input slab (tiny, layer-0
    # only; later layers stay time-major & 2-D inside the kernels).
    h_seq = jnp.transpose(x_bsd, (1, 0, 2)).astype(cdt)
    h_seq = jnp.pad(h_seq, ((0, S_pad - S), (0, Bp - B), (0, 0)))
    h_seq = h_seq.reshape(S_pad * Bp, d_in0)

    for wih_t, whh_t, bias in layers[:-1]:
        h_seq = lstm_layer(h_seq, wih_t, whh_t, bias, T, Bp, n_valid, budget)
    wih_t, whh_t, bias = layers[-1]
    out = lstm_last_layer_fused_fc(h_seq, wih_t, whh_t, bias,
                                   params["fc_w_t"], params["fc_b"],
                                   T, Bp, n_valid, budget)
    return out[:B, :output_dim]


# --------------------------------------------------------------------------
# Deterministic PyTorch-style init and a pure-JAX reference
# --------------------------------------------------------------------------
def init_params(key, input_dim, hidden_dim, num_layers, output_dim):
    k = 1.0 / (hidden_dim ** 0.5)
    lstm_params = []
    for layer in range(num_layers):
        d_in = input_dim if layer == 0 else hidden_dim
        key, k1, k2, k3, k4 = jax.random.split(key, 5)
        w_ih = jax.random.uniform(k1, (4 * hidden_dim, d_in), jnp.float32, -k, k)
        w_hh = jax.random.uniform(k2, (4 * hidden_dim, hidden_dim), jnp.float32, -k, k)
        b_ih = jax.random.uniform(k3, (4 * hidden_dim,), jnp.float32, -k, k)
        b_hh = jax.random.uniform(k4, (4 * hidden_dim,), jnp.float32, -k, k)
        lstm_params.append((w_ih, w_hh, b_ih, b_hh))
    key, k5, k6 = jax.random.split(key, 3)
    fc_w = jax.random.uniform(k5, (output_dim, hidden_dim), jnp.float32, -k, k)
    fc_b = jax.random.uniform(k6, (output_dim,), jnp.float32, -k, k)
    return {"lstm": lstm_params, "fc_w": fc_w, "fc_b": fc_b}


def _mm(a, b):
    return jnp.matmul(a, b, precision=jax.lax.Precision.HIGHEST)


def lstm_reference(x_bsd, raw):
    """Plain-JAX reference of the PyTorch module's forward (full f32)."""
    B, S, _ = x_bsd.shape
    h_seq = x_bsd
    for (w_ih, w_hh, b_ih, b_hh) in raw["lstm"]:
        H = w_hh.shape[1]
        h = jnp.zeros((B, H), jnp.float32)
        c = jnp.zeros((B, H), jnp.float32)
        outs = []
        for t in range(S):
            gates = _mm(h_seq[:, t], w_ih.T) + _mm(h, w_hh.T) + b_ih + b_hh
            i = jax.nn.sigmoid(gates[:, 0 * H:1 * H])
            f = jax.nn.sigmoid(gates[:, 1 * H:2 * H])
            g = jnp.tanh(gates[:, 2 * H:3 * H])
            o = jax.nn.sigmoid(gates[:, 3 * H:4 * H])
            c = f * c + i * g
            h = o * jnp.tanh(c)
            outs.append(h)
        h_seq = jnp.stack(outs, axis=1)
    return _mm(h_seq[:, -1], raw["fc_w"].T) + raw["fc_b"]


# --------------------------------------------------------------------------
if __name__ == "__main__":
    batch, seq = 2, 8
    input_dim, hidden_dim, num_layers, output_dim = 4, 32, 2, 3

    key = jax.random.PRNGKey(0)
    key, kx, kp = jax.random.split(key, 3)
    x = jax.random.normal(kx, (batch, seq, input_dim), jnp.float32)
    raw = init_params(kp, input_dim, hidden_dim, num_layers, output_dim)
    ref = lstm_reference(x, raw)

    # 1) f32 MXU path: tight structural-correctness check.
    p32 = prepare_params(raw, hidden_dim, output_dim, compute_dtype=jnp.float32)
    out32 = lstm_forward(x, p32, output_dim)
    jax.block_until_ready(out32)
    assert out32.shape == (batch, output_dim)
    err32 = float(jnp.max(jnp.abs(out32 - ref)))
    assert err32 < 1e-3, f"f32 path mismatch vs reference: {err32}"

    # 2) f32 path with a small time-chunk cap: exercises multi-chunk state
    #    carry + padded/masked tail timesteps (S=8 -> T=3, S_pad=9).
    out_ck = lstm_forward(x, p32, output_dim, time_chunk_cap=3)
    jax.block_until_ready(out_ck)
    err_ck = float(jnp.max(jnp.abs(out_ck - ref)))
    assert err_ck < 1e-3, f"chunked path mismatch vs reference: {err_ck}"

    # 3) bf16 MXU operands (default performance configuration).
    pbf = prepare_params(raw, hidden_dim, output_dim, compute_dtype=jnp.bfloat16)
    outbf = lstm_forward(x, pbf, output_dim)
    jax.block_until_ready(outbf)
    errbf = float(jnp.max(jnp.abs(outbf - ref)))
    assert errbf < 5e-2, f"bf16 path mismatch vs reference: {errbf}"

    print("KERNEL_OK")
</pallas_src>

<mosaic_0001>
module attributes {stable_mosaic.version = 11 : i64} {
  func.func @kernel(%arg0: i32, %arg1: memref<64x128xf32, #tpu.memory_space<vmem>>, %arg2: memref<128x512xf32, #tpu.memory_space<vmem>>, %arg3: memref<128x512xf32, #tpu.memory_space<vmem>>, %arg4: memref<1x512xf32, #tpu.memory_space<vmem>>, %arg5: memref<128x128xf32, #tpu.memory_space<vmem>>, %arg6: memref<1x128xf32, #tpu.memory_space<vmem>>, %arg7: memref<8x128xf32, #tpu.memory_space<vmem>>, %arg8: memref<64x512xf32, #tpu.memory_space<vmem>>, %arg9: memref<8x128xf32, #tpu.memory_space<vmem>>, %arg10: memref<8x128xf32, #tpu.memory_space<vmem>>) attributes {dimension_semantics = [#tpu.dimension_semantics<arbitrary>], iteration_bounds = array<i64: 1>, scalar_prefetch = 0 : i64, scratch_operands = 3 : i64, tpu.core_type = #tpu.core_type<tc>, window_params = [{transform_indices = @transform_0, window_bounds = array<i64: 64, 128>}, {pipeline_mode = #tpu.pipeline_mode<synchronous>, transform_indices = @transform_1, window_bounds = array<i64: 128, 512>}, {pipeline_mode = #tpu.pipeline_mode<synchronous>, transform_indices = @transform_2, window_bounds = array<i64: 128, 512>}, {pipeline_mode = #tpu.pipeline_mode<synchronous>, transform_indices = @transform_3, window_bounds = array<i64: 1, 512>}, {pipeline_mode = #tpu.pipeline_mode<synchronous>, transform_indices = @transform_4, window_bounds = array<i64: 128, 128>}, {pipeline_mode = #tpu.pipeline_mode<synchronous>, transform_indices = @transform_5, window_bounds = array<i64: 1, 128>}, {pipeline_mode = #tpu.pipeline_mode<synchronous>, transform_indices = @transform_6, window_bounds = array<i64: 8, 128>}]} {
    %c0_i32 = arith.constant 0 : i32
    %0 = arith.cmpi eq, %arg0, %c0_i32 : i32
    %1 = arith.extui %0 : i1 to i32
    %c0_i32_0 = arith.constant 0 : i32
    %2 = arith.cmpi ne, %1, %c0_i32_0 : i32
    scf.if %2 {
      %cst_123 = arith.constant 0.000000e+00 : f32
      %229 = vector.broadcast %cst_123 : f32 to vector<8x128xf32>
      %c0_124 = arith.constant 0 : index
      %c0_125 = arith.constant 0 : index
      %230 = vector.load %arg9[%c0_124, %c0_125] : memref<8x128xf32, #tpu.memory_space<vmem>>, vector<8x128xf32>
      tpu.vector_store %arg9[%c0_124, %c0_125], %229 {strides = array<i32>} : memref<8x128xf32, #tpu.memory_space<vmem>>, vector<8x128xf32>,
      %cst_126 = arith.constant 0.000000e+00 : f32
      %231 = vector.broadcast %cst_126 : f32 to vector<8x128xf32>
      %c0_127 = arith.constant 0 : index
      %c0_128 = arith.constant 0 : index
      %232 = vector.load %arg10[%c0_127, %c0_128] : memref<8x128xf32, #tpu.memory_space<vmem>>, vector<8x128xf32>
      tpu.vector_store %arg10[%c0_127, %c0_128], %231 {strides = array<i32>} : memref<8x128xf32, #tpu.memory_space<vmem>>, vector<8x128xf32>,
      %cst_129 = arith.constant 0.000000e+00 : f32
      %233 = vector.broadcast %cst_129 : f32 to vector<8x128xf32>
      %c0_130 = arith.constant 0 : index
      %c0_131 = arith.constant 0 : index
      %234 = vector.load %arg7[%c0_130, %c0_131] : memref<8x128xf32, #tpu.memory_space<vmem>>, vector<8x128xf32>
      tpu.vector_store %arg7[%c0_130, %c0_131], %233 {strides = array<i32>} : memref<8x128xf32, #tpu.memory_space<vmem>>, vector<8x128xf32>,
    } else {
    }
    %c0 = arith.constant 0 : index
    %c0_1 = arith.constant 0 : index
    %3 = vector.load %arg1[%c0, %c0_1] : memref<64x128xf32, #tpu.memory_space<vmem>>, vector<64x128xf32>
    %c0_2 = arith.constant 0 : index
    %c0_3 = arith.constant 0 : index
    %4 = vector.load %arg2[%c0_2, %c0_3] : memref<128x512xf32, #tpu.memory_space<vmem>>, vector<128x512xf32>
    %cst = arith.constant dense<0.000000e+00> : vector<64x512xf32>
    %5 = tpu.matmul %3, %4, %cst {dimension_numbers = #tpu.dot_dimension_numbers<[1], [0], [0], [1], [0, 0, 1, 1], [], []>} : vector<64x128xf32>, vector<128x512xf32>, vector<64x512xf32> -> vector<64x512xf32>
    %c0_4 = arith.constant 0 : index
    %c0_5 = arith.constant 0 : index
    %6 = vector.load %arg4[%c0_4, %c0_5] : memref<1x512xf32, #tpu.memory_space<vmem>>, vector<1x512xf32>
    %7 = vector.broadcast %6 : vector<1x512xf32> to vector<64x512xf32>
    %8 = arith.addf %5, %7 : vector<64x512xf32>
    %c0_6 = arith.constant 0 : index
    %c0_7 = arith.constant 0 : index
    %9 = vector.load %arg8[%c0_6, %c0_7] : memref<64x512xf32, #tpu.memory_space<vmem>>, vector<64x512xf32>
    tpu.vector_store %arg8[%c0_6, %c0_7], %8 {strides = array<i32>} : memref<64x512xf32, #tpu.memory_space<vmem>>, vector<64x512xf32>,
    %c0_i32_8 = arith.constant 0 : i32
    %c8_i32 = arith.constant 8 : i32
    %10 = arith.muli %c0_i32_8, %c8_i32 : i32
    %11 = tpu.assume_multiple %10, 8 : i32
    %c0_9 = arith.constant 0 : index
    %c0_10 = arith.constant 0 : index
    %12 = vector.load %arg9[%c0_9, %c0_10] : memref<8x128xf32, #tpu.memory_space<vmem>>, vector<8x128xf32>
    %c0_11 = arith.constant 0 : index
    %c0_12 = arith.constant 0 : index
    %13 = vector.load %arg10[%c0_11, %c0_12] : memref<8x128xf32, #tpu.memory_space<vmem>>, vector<8x128xf32>
    %14 = arith.index_cast %11 : i32 to index
    %c0_13 = arith.constant 0 : index
    %15 = vector.load %arg8[%14, %c0_13] : memref<64x512xf32, #tpu.memory_space<vmem>>, vector<8x512xf32>
    %c0_14 = arith.constant 0 : index
    %c0_15 = arith.constant 0 : index
    %16 = vector.load %arg3[%c0_14, %c0_15] : memref<128x512xf32, #tpu.memory_space<vmem>>, vector<128x512xf32>
    %cst_16 = arith.constant dense<0.000000e+00> : vector<8x512xf32>
    %17 = tpu.matmul %12, %16, %cst_16 {dimension_numbers = #tpu.dot_dimension_numbers<[1], [0], [0], [1], [0, 0, 1, 1], [], []>} : vector<8x128xf32>, vector<128x512xf32>, vector<8x512xf32> -> vector<8x512xf32>
    %18 = arith.addf %15, %17 : vector<8x512xf32>
    %19 = vector.extract_strided_slice %18 {offsets = [0, 0], sizes = [8, 384], strides = [1, 1]} : vector<8x512xf32> to vector<8x384xf32>
    %20 = arith.negf %19 : vector<8x384xf32>
    %21 = math.exp %20 : vector<8x384xf32>
    %cst_17 = arith.constant 1.000000e+00 : f32
    %22 = vector.broadcast %cst_17 : f32 to vector<8x384xf32>
    %23 = arith.addf %22, %21 : vector<8x384xf32>
    %24 = arith.divf %22, %23 : vector<8x384xf32>
    %25 = vector.extract_strided_slice %18 {offsets = [0, 384], sizes = [8, 128], strides = [1, 1]} : vector<8x512xf32> to vector<8x128xf32>
    %26 = math.tanh %25 : vector<8x128xf32>
    %27 = vector.extract_strided_slice %24 {offsets = [0, 0], sizes = [8, 128], strides = [1, 1]} : vector<8x384xf32> to vector<8x128xf32>
    %28 = vector.extract_strided_slice %24 {offsets = [0, 128], sizes = [8, 128], strides = [1, 1]} : vector<8x384xf32> to vector<8x128xf32>
    %29 = vector.extract_strided_slice %24 {offsets = [0, 256], sizes = [8, 128], strides = [1, 1]} : vector<8x384xf32> to vector<8x128xf32>
    %30 = arith.mulf %28, %13 : vector<8x128xf32>
    %31 = arith.mulf %27, %26 : vector<8x128xf32>
    %32 = arith.addf %30, %31 : vector<8x128xf32>
    %33 = math.tanh %32 : vector<8x128xf32>
    %34 = arith.mulf %29, %33 : vector<8x128xf32>
    %c0_18 = arith.constant 0 : index
    %c0_19 = arith.constant 0 : index
    %35 = vector.load %arg10[%c0_18, %c0_19] : memref<8x128xf32, #tpu.memory_space<vmem>>, vector<8x128xf32>
    tpu.vector_store %arg10[%c0_18, %c0_19], %32 {strides = array<i32>} : memref<8x128xf32, #tpu.memory_space<vmem>>, vector<8x128xf32>,
    %c0_20 = arith.constant 0 : index
    %c0_21 = arith.constant 0 : index
    %36 = vector.load %arg9[%c0_20, %c0_21] : memref<8x128xf32, #tpu.memory_space<vmem>>, vector<8x128xf32>
    tpu.vector_store %arg9[%c0_20, %c0_21], %34 {strides = array<i32>} : memref<8x128xf32, #tpu.memory_space<vmem>>, vector<8x128xf32>,
    %c1_i32 = arith.constant 1 : i32
    %c8_i32_22 = arith.constant 8 : i32
    %37 = arith.muli %c1_i32, %c8_i32_22 : i32
    %38 = tpu.assume_multiple %37, 8 : i32
    %c0_23 = arith.constant 0 : index
    %c0_24 = arith.constant 0 : index
    %39 = vector.load %arg9[%c0_23, %c0_24] : memref<8x128xf32, #tpu.memory_space<vmem>>, vector<8x128xf32>
    %c0_25 = arith.constant 0 : index
    %c0_26 = arith.constant 0 : index
    %40 = vector.load %arg10[%c0_25, %c0_26] : memref<8x128xf32, #tpu.memory_space<vmem>>, vector<8x128xf32>
    %41 = arith.index_cast %38 : i32 to index
    %c0_27 = arith.constant 0 : index
    %42 = vector.load %arg8[%41, %c0_27] : memref<64x512xf32, #tpu.memory_space<vmem>>, vector<8x512xf32>
    %c0_28 = arith.constant 0 : index
    %c0_29 = arith.constant 0 : index
    %43 = vector.load %arg3[%c0_28, %c0_29] : memref<128x512xf32, #tpu.memory_space<vmem>>, vector<128x512xf32>
    %cst_30 = arith.constant dense<0.000000e+00> : vector<8x512xf32>
    %44 = tpu.matmul %39, %43, %cst_30 {dimension_numbers = #tpu.dot_dimension_numbers<[1], [0], [0], [1], [0, 0, 1, 1], [], []>} : vector<8x128xf32>, vector<128x512xf32>, vector<8x512xf32> -> vector<8x512xf32>
    %45 = arith.addf %42, %44 : vector<8x512xf32>
    %46 = vector.extract_strided_slice %45 {offsets = [0, 0], sizes = [8, 384], strides = [1, 1]} : vector<8x512xf32> to vector<8x384xf32>
    %47 = arith.negf %46 : vector<8x384xf32>
    %48 = math.exp %47 : vector<8x384xf32>
    %cst_31 = arith.constant 1.000000e+00 : f32
    %49 = vector.broadcast %cst_31 : f32 to vector<8x384xf32>
    %50 = arith.addf %49, %48 : vector<8x384xf32>
    %51 = arith.divf %49, %50 : vector<8x384xf32>
    %52 = vector.extract_strided_slice %45 {offsets = [0, 384], sizes = [8, 128], strides = [1, 1]} : vector<8x512xf32> to vector<8x128xf32>
    %53 = math.tanh %52 : vector<8x128xf32>
    %54 = vector.extract_strided_slice %51 {offsets = [0, 0], sizes = [8, 128], strides = [1, 1]} : vector<8x384xf32> to vector<8x128xf32>
    %55 = vector.extract_strided_slice %51 {offsets = [0, 128], sizes = [8, 128], strides = [1, 1]} : vector<8x384xf32> to vector<8x128xf32>
    %56 = vector.extract_strided_slice %51 {offsets = [0, 256], sizes = [8, 128], strides = [1, 1]} : vector<8x384xf32> to vector<8x128xf32>
    %57 = arith.mulf %55, %40 : vector<8x128xf32>
    %58 = arith.mulf %54, %53 : vector<8x128xf32>
    %59 = arith.addf %57, %58 : vector<8x128xf32>
    %60 = math.tanh %59 : vector<8x128xf32>
    %61 = arith.mulf %56, %60 : vector<8x128xf32>
    %c0_32 = arith.constant 0 : index
    %c0_33 = arith.constant 0 : index
    %62 = vector.load %arg10[%c0_32, %c0_33] : memref<8x128xf32, #tpu.memory_space<vmem>>, vector<8x128xf32>
    tpu.vector_store %arg10[%c0_32, %c0_33], %59 {strides = array<i32>} : memref<8x128xf32, #tpu.memory_space<vmem>>, vector<8x128xf32>,
    %c0_34 = arith.constant 0 : index
    %c0_35 = arith.constant 0 : index
    %63 = vector.load %arg9[%c0_34, %c0_35] : memref<8x128xf32, #tpu.memory_space<vmem>>, vector<8x128xf32>
    tpu.vector_store %arg9[%c0_34, %c0_35], %61 {strides = array<i32>} : memref<8x128xf32, #tpu.memory_space<vmem>>, vector<8x128xf32>,
    %c2_i32 = arith.constant 2 : i32
    %c8_i32_36 = arith.constant 8 : i32
    %64 = arith.muli %c2_i32, %c8_i32_36 : i32
    %65 = tpu.assume_multiple %64, 8 : i32
    %c0_37 = arith.constant 0 : index
    %c0_38 = arith.constant 0 : index
    %66 = vector.load %arg9[%c0_37, %c0_38] : memref<8x128xf32, #tpu.memory_space<vmem>>, vector<8x128xf32>
    %c0_39 = arith.constant 0 : index
    %c0_40 = arith.constant 0 : index
    %67 = vector.load %arg10[%c0_39, %c0_40] : memref<8x128xf32, #tpu.memory_space<vmem>>, vector<8x128xf32>
    %68 = arith.index_cast %65 : i32 to index
    %c0_41 = arith.constant 0 : index
    %69 = vector.load %arg8[%68, %c0_41] : memref<64x512xf32, #tpu.memory_space<vmem>>, vector<8x512xf32>
    %c0_42 = arith.constant 0 : index
    %c0_43 = arith.constant 0 : index
    %70 = vector.load %arg3[%c0_42, %c0_43] : memref<128x512xf32, #tpu.memory_space<vmem>>, vector<128x512xf32>
    %cst_44 = arith.constant dense<0.000000e+00> : vector<8x512xf32>
    %71 = tpu.matmul %66, %70, %cst_44 {dimension_numbers = #tpu.dot_dimension_numbers<[1], [0], [0], [1], [0, 0, 1, 1], [], []>} : vector<8x128xf32>, vector<128x512xf32>, vector<8x512xf32> -> vector<8x512xf32>
    %72 = arith.addf %69, %71 : vector<8x512xf32>
    %73 = vector.extract_strided_slice %72 {offsets = [0, 0], sizes = [8, 384], strides = [1, 1]} : vector<8x512xf32> to vector<8x384xf32>
    %74 = arith.negf %73 : vector<8x384xf32>
    %75 = math.exp %74 : vector<8x384xf32>
    %cst_45 = arith.constant 1.000000e+00 : f32
    %76 = vector.broadcast %cst_45 : f32 to vector<8x384xf32>
    %77 = arith.addf %76, %75 : vector<8x384xf32>
    %78 = arith.divf %76, %77 : vector<8x384xf32>
    %79 = vector.extract_strided_slice %72 {offsets = [0, 384], sizes = [8, 128], strides = [1, 1]} : vector<8x512xf32> to vector<8x128xf32>
    %80 = math.tanh %79 : vector<8x128xf32>
    %81 = vector.extract_strided_slice %78 {offsets = [0, 0], sizes = [8, 128], strides = [1, 1]} : vector<8x384xf32> to vector<8x128xf32>
    %82 = vector.extract_strided_slice %78 {offsets = [0, 128], sizes = [8, 128], strides = [1, 1]} : vector<8x384xf32> to vector<8x128xf32>
    %83 = vector.extract_strided_slice %78 {offsets = [0, 256], sizes = [8, 128], strides = [1, 1]} : vector<8x384xf32> to vector<8x128xf32>
    %84 = arith.mulf %82, %67 : vector<8x128xf32>
    %85 = arith.mulf %81, %80 : vector<8x128xf32>
    %86 = arith.addf %84, %85 : vector<8x128xf32>
    %87 = math.tanh %86 : vector<8x128xf32>
    %88 = arith.mulf %83, %87 : vector<8x128xf32>
    %c0_46 = arith.constant 0 : index
    %c0_47 = arith.constant 0 : index
    %89 = vector.load %arg10[%c0_46, %c0_47] : memref<8x128xf32, #tpu.memory_space<vmem>>, vector<8x128xf32>
    tpu.vector_store %arg10[%c0_46, %c0_47], %86 {strides = array<i32>} : memref<8x128xf32, #tpu.memory_space<vmem>>, vector<8x128xf32>,
    %c0_48 = arith.constant 0 : index
    %c0_49 = arith.constant 0 : index
    %90 = vector.load %arg9[%c0_48, %c0_49] : memref<8x128xf32, #tpu.memory_space<vmem>>, vector<8x128xf32>
    tpu.vector_store %arg9[%c0_48, %c0_49], %88 {strides = array<i32>} : memref<8x128xf32, #tpu.memory_space<vmem>>, vector<8x128xf32>,
    %c3_i32 = arith.constant 3 : i32
    %c8_i32_50 = arith.constant 8 : i32
    %91 = arith.muli %c3_i32, %c8_i32_50 : i32
    %92 = tpu.assume_multiple %91, 8 : i32
    %c0_51 = arith.constant 0 : index
    %c0_52 = arith.constant 0 : index
    %93 = vector.load %arg9[%c0_51, %c0_52] : memref<8x128xf32, #tpu.memory_space<vmem>>, vector<8x128xf32>
    %c0_53 = arith.constant 0 : index
    %c0_54 = arith.constant 0 : index
    %94 = vector.load %arg10[%c0_53, %c0_54] : memref<8x128xf32, #tpu.memory_space<vmem>>, vector<8x128xf32>
    %95 = arith.index_cast %92 : i32 to index
    %c0_55 = arith.constant 0 : index
    %96 = vector.load %arg8[%95, %c0_55] : memref<64x512xf32, #tpu.memory_space<vmem>>, vector<8x512xf32>
    %c0_56 = arith.constant 0 : index
    %c0_57 = arith.constant 0 : index
    %97 = vector.load %arg3[%c0_56, %c0_57] : memref<128x512xf32, #tpu.memory_space<vmem>>, vector<128x512xf32>
    %cst_58 = arith.constant dense<0.000000e+00> : vector<8x512xf32>
    %98 = tpu.matmul %93, %97, %cst_58 {dimension_numbers = #tpu.dot_dimension_numbers<[1], [0], [0], [1], [0, 0, 1, 1], [], []>} : vector<8x128xf32>, vector<128x512xf32>, vector<8x512xf32> -> vector<8x512xf32>
    %99 = arith.addf %96, %98 : vector<8x512xf32>
    %100 = vector.extract_strided_slice %99 {offsets = [0, 0], sizes = [8, 384], strides = [1, 1]} : vector<8x512xf32> to vector<8x384xf32>
    %101 = arith.negf %100 : vector<8x384xf32>
    %102 = math.exp %101 : vector<8x384xf32>
    %cst_59 = arith.constant 1.000000e+00 : f32
    %103 = vector.broadcast %cst_59 : f32 to vector<8x384xf32>
    %104 = arith.addf %103, %102 : vector<8x384xf32>
    %105 = arith.divf %103, %104 : vector<8x384xf32>
    %106 = vector.extract_strided_slice %99 {offsets = [0, 384], sizes = [8, 128], strides = [1, 1]} : vector<8x512xf32> to vector<8x128xf32>
    %107 = math.tanh %106 : vector<8x128xf32>
    %108 = vector.extract_strided_slice %105 {offsets = [0, 0], sizes = [8, 128], strides = [1, 1]} : vector<8x384xf32> to vector<8x128xf32>
    %109 = vector.extract_strided_slice %105 {offsets = [0, 128], sizes = [8, 128], strides = [1, 1]} : vector<8x384xf32> to vector<8x128xf32>
    %110 = vector.extract_strided_slice %105 {offsets = [0, 256], sizes = [8, 128], strides = [1, 1]} : vector<8x384xf32> to vector<8x128xf32>
    %111 = arith.mulf %109, %94 : vector<8x128xf32>
    %112 = arith.mulf %108, %107 : vector<8x128xf32>
    %113 = arith.addf %111, %112 : vector<8x128xf32>
    %114 = math.tanh %113 : vector<8x128xf32>
    %115 = arith.mulf %110, %114 : vector<8x128xf32>
    %c0_60 = arith.constant 0 : index
    %c0_61 = arith.constant 0 : index
    %116 = vector.load %arg10[%c0_60, %c0_61] : memref<8x128xf32, #tpu.memory_space<vmem>>, vector<8x128xf32>
    tpu.vector_store %arg10[%c0_60, %c0_61], %113 {strides = array<i32>} : memref<8x128xf32, #tpu.memory_space<vmem>>, vector<8x128xf32>,
    %c0_62 = arith.constant 0 : index
    %c0_63 = arith.constant 0 : index
    %117 = vector.load %arg9[%c0_62, %c0_63] : memref<8x128xf32, #tpu.memory_space<vmem>>, vector<8x128xf32>
    tpu.vector_store %arg9[%c0_62, %c0_63], %115 {strides = array<i32>} : memref<8x128xf32, #tpu.memory_space<vmem>>, vector<8x128xf32>,
    %c4_i32 = arith.constant 4 : i32
    %c8_i32_64 = arith.constant 8 : i32
    %118 = arith.muli %c4_i32, %c8_i32_64 : i32
    %119 = tpu.assume_multiple %118, 8 : i32
    %c0_65 = arith.constant 0 : index
    %c0_66 = arith.constant 0 : index
    %120 = vector.load %arg9[%c0_65, %c0_66] : memref<8x128xf32, #tpu.memory_space<vmem>>, vector<8x128xf32>
    %c0_67 = arith.constant 0 : index
    %c0_68 = arith.constant 0 : index
    %121 = vector.load %arg10[%c0_67, %c0_68] : memref<8x128xf32, #tpu.memory_space<vmem>>, vector<8x128xf32>
    %122 = arith.index_cast %119 : i32 to index
    %c0_69 = arith.constant 0 : index
    %123 = vector.load %arg8[%122, %c0_69] : memref<64x512xf32, #tpu.memory_space<vmem>>, vector<8x512xf32>
    %c0_70 = arith.constant 0 : index
    %c0_71 = arith.constant 0 : index
    %124 = vector.load %arg3[%c0_70, %c0_71] : memref<128x512xf32, #tpu.memory_space<vmem>>, vector<128x512xf32>
    %cst_72 = arith.constant dense<0.000000e+00> : vector<8x512xf32>
    %125 = tpu.matmul %120, %124, %cst_72 {dimension_numbers = #tpu.dot_dimension_numbers<[1], [0], [0], [1], [0, 0, 1, 1], [], []>} : vector<8x128xf32>, vector<128x512xf32>, vector<8x512xf32> -> vector<8x512xf32>
    %126 = arith.addf %123, %125 : vector<8x512xf32>
    %127 = vector.extract_strided_slice %126 {offsets = [0, 0], sizes = [8, 384], strides = [1, 1]} : vector<8x512xf32> to vector<8x384xf32>
    %128 = arith.negf %127 : vector<8x384xf32>
    %129 = math.exp %128 : vector<8x384xf32>
    %cst_73 = arith.constant 1.000000e+00 : f32
    %130 = vector.broadcast %cst_73 : f32 to vector<8x384xf32>
    %131 = arith.addf %130, %129 : vector<8x384xf32>
    %132 = arith.divf %130, %131 : vector<8x384xf32>
    %133 = vector.extract_strided_slice %126 {offsets = [0, 384], sizes = [8, 128], strides = [1, 1]} : vector<8x512xf32> to vector<8x128xf32>
    %134 = math.tanh %133 : vector<8x128xf32>
    %135 = vector.extract_strided_slice %132 {offsets = [0, 0], sizes = [8, 128], strides = [1, 1]} : vector<8x384xf32> to vector<8x128xf32>
    %136 = vector.extract_strided_slice %132 {offsets = [0, 128], sizes = [8, 128], strides = [1, 1]} : vector<8x384xf32> to vector<8x128xf32>
    %137 = vector.extract_strided_slice %132 {offsets = [0, 256], sizes = [8, 128], strides = [1, 1]} : vector<8x384xf32> to vector<8x128xf32>
    %138 = arith.mulf %136, %121 : vector<8x128xf32>
    %139 = arith.mulf %135, %134 : vector<8x128xf32>
    %140 = arith.addf %138, %139 : vector<8x128xf32>
    %141 = math.tanh %140 : vector<8x128xf32>
    %142 = arith.mulf %137, %141 : vector<8x128xf32>
    %c0_74 = arith.constant 0 : index
    %c0_75 = arith.constant 0 : index
    %143 = vector.load %arg10[%c0_74, %c0_75] : memref<8x128xf32, #tpu.memory_space<vmem>>, vector<8x128xf32>
    tpu.vector_store %arg10[%c0_74, %c0_75], %140 {strides = array<i32>} : memref<8x128xf32, #tpu.memory_space<vmem>>, vector<8x128xf32>,
    %c0_76 = arith.constant 0 : index
    %c0_77 = arith.constant 0 : index
    %144 = vector.load %arg9[%c0_76, %c0_77] : memref<8x128xf32, #tpu.memory_space<vmem>>, vector<8x128xf32>
    tpu.vector_store %arg9[%c0_76, %c0_77], %142 {strides = array<i32>} : memref<8x128xf32, #tpu.memory_space<vmem>>, vector<8x128xf32>,
    %c5_i32 = arith.constant 5 : i32
    %c8_i32_78 = arith.constant 8 : i32
    %145 = arith.muli %c5_i32, %c8_i32_78 : i32
    %146 = tpu.assume_multiple %145, 8 : i32
    %c0_79 = arith.constant 0 : index
    %c0_80 = arith.constant 0 : index
    %147 = vector.load %arg9[%c0_79, %c0_80] : memref<8x128xf32, #tpu.memory_space<vmem>>, vector<8x128xf32>
    %c0_81 = arith.constant 0 : index
    %c0_82 = arith.constant 0 : index
    %148 = vector.load %arg10[%c0_81, %c0_82] : memref<8x128xf32, #tpu.memory_space<vmem>>, vector<8x128xf32>
    %149 = arith.index_cast %146 : i32 to index
    %c0_83 = arith.constant 0 : index
    %150 = vector.load %arg8[%149, %c0_83] : memref<64x512xf32, #tpu.memory_space<vmem>>, vector<8x512xf32>
    %c0_84 = arith.constant 0 : index
    %c0_85 = arith.constant 0 : index
    %151 = vector.load %arg3[%c0_84, %c0_85] : memref<128x512xf32, #tpu.memory_space<vmem>>, vector<128x512xf32>
    %cst_86 = arith.constant dense<0.000000e+00> : vector<8x512xf32>
    %152 = tpu.matmul %147, %151, %cst_86 {dimension_numbers = #tpu.dot_dimension_numbers<[1], [0], [0], [1], [0, 0, 1, 1], [], []>} : vector<8x128xf32>, vector<128x512xf32>, vector<8x512xf32> -> vector<8x512xf32>
    %153 = arith.addf %150, %152 : vector<8x512xf32>
    %154 = vector.extract_strided_slice %153 {offsets = [0, 0], sizes = [8, 384], strides = [1, 1]} : vector<8x512xf32> to vector<8x384xf32>
    %155 = arith.negf %154 : vector<8x384xf32>
    %156 = math.exp %155 : vector<8x384xf32>
    %cst_87 = arith.constant 1.000000e+00 : f32
    %157 = vector.broadcast %cst_87 : f32 to vector<8x384xf32>
    %158 = arith.addf %157, %156 : vector<8x384xf32>
    %159 = arith.divf %157, %158 : vector<8x384xf32>
    %160 = vector.extract_strided_slice %153 {offsets = [0, 384], sizes = [8, 128], strides = [1, 1]} : vector<8x512xf32> to vector<8x128xf32>
    %161 = math.tanh %160 : vector<8x128xf32>
    %162 = vector.extract_strided_slice %159 {offsets = [0, 0], sizes = [8, 128], strides = [1, 1]} : vector<8x384xf32> to vector<8x128xf32>
    %163 = vector.extract_strided_slice %159 {offsets = [0, 128], sizes = [8, 128], strides = [1, 1]} : vector<8x384xf32> to vector<8x128xf32>
    %164 = vector.extract_strided_slice %159 {offsets = [0, 256], sizes = [8, 128], strides = [1, 1]} : vector<8x384xf32> to vector<8x128xf32>
    %165 = arith.mulf %163, %148 : vector<8x128xf32>
    %166 = arith.mulf %162, %161 : vector<8x128xf32>
    %167 = arith.addf %165, %166 : vector<8x128xf32>
    %168 = math.tanh %167 : vector<8x128xf32>
    %169 = arith.mulf %164, %168 : vector<8x128xf32>
    %c0_88 = arith.constant 0 : index
    %c0_89 = arith.constant 0 : index
    %170 = vector.load %arg10[%c0_88, %c0_89] : memref<8x128xf32, #tpu.memory_space<vmem>>, vector<8x128xf32>
    tpu.vector_store %arg10[%c0_88, %c0_89], %167 {strides = array<i32>} : memref<8x128xf32, #tpu.memory_space<vmem>>, vector<8x128xf32>,
    %c0_90 = arith.constant 0 : index
    %c0_91 = arith.constant 0 : index
    %171 = vector.load %arg9[%c0_90, %c0_91] : memref<8x128xf32, #tpu.memory_space<vmem>>, vector<8x128xf32>
    tpu.vector_store %arg9[%c0_90, %c0_91], %169 {strides = array<i32>} : memref<8x128xf32, #tpu.memory_space<vmem>>, vector<8x128xf32>,
    %c6_i32 = arith.constant 6 : i32
    %c8_i32_92 = arith.constant 8 : i32
    %172 = arith.muli %c6_i32, %c8_i32_92 : i32
    %173 = tpu.assume_multiple %172, 8 : i32
    %c0_93 = arith.constant 0 : index
    %c0_94 = arith.constant 0 : index
    %174 = vector.load %arg9[%c0_93, %c0_94] : memref<8x128xf32, #tpu.memory_space<vmem>>, vector<8x128xf32>
    %c0_95 = arith.constant 0 : index
    %c0_96 = arith.constant 0 : index
    %175 = vector.load %arg10[%c0_95, %c0_96] : memref<8x128xf32, #tpu.memory_space<vmem>>, vector<8x128xf32>
    %176 = arith.index_cast %173 : i32 to index
    %c0_97 = arith.constant 0 : index
    %177 = vector.load %arg8[%176, %c0_97] : memref<64x512xf32, #tpu.memory_space<vmem>>, vector<8x512xf32>
    %c0_98 = arith.constant 0 : index
    %c0_99 = arith.constant 0 : index
    %178 = vector.load %arg3[%c0_98, %c0_99] : memref<128x512xf32, #tpu.memory_space<vmem>>, vector<128x512xf32>
    %cst_100 = arith.constant dense<0.000000e+00> : vector<8x512xf32>
    %179 = tpu.matmul %174, %178, %cst_100 {dimension_numbers = #tpu.dot_dimension_numbers<[1], [0], [0], [1], [0, 0, 1, 1], [], []>} : vector<8x128xf32>, vector<128x512xf32>, vector<8x512xf32> -> vector<8x512xf32>
    %180 = arith.addf %177, %179 : vector<8x512xf32>
    %181 = vector.extract_strided_slice %180 {offsets = [0, 0], sizes = [8, 384], strides = [1, 1]} : vector<8x512xf32> to vector<8x384xf32>
    %182 = arith.negf %181 : vector<8x384xf32>
    %183 = math.exp %182 : vector<8x384xf32>
    %cst_101 = arith.constant 1.000000e+00 : f32
    %184 = vector.broadcast %cst_101 : f32 to vector<8x384xf32>
    %185 = arith.addf %184, %183 : vector<8x384xf32>
    %186 = arith.divf %184, %185 : vector<8x384xf32>
    %187 = vector.extract_strided_slice %180 {offsets = [0, 384], sizes = [8, 128], strides = [1, 1]} : vector<8x512xf32> to vector<8x128xf32>
    %188 = math.tanh %187 : vector<8x128xf32>
    %189 = vector.extract_strided_slice %186 {offsets = [0, 0], sizes = [8, 128], strides = [1, 1]} : vector<8x384xf32> to vector<8x128xf32>
    %190 = vector.extract_strided_slice %186 {offsets = [0, 128], sizes = [8, 128], strides = [1, 1]} : vector<8x384xf32> to vector<8x128xf32>
    %191 = vector.extract_strided_slice %186 {offsets = [0, 256], sizes = [8, 128], strides = [1, 1]} : vector<8x384xf32> to vector<8x128xf32>
    %192 = arith.mulf %190, %175 : vector<8x128xf32>
    %193 = arith.mulf %189, %188 : vector<8x128xf32>
    %194 = arith.addf %192, %193 : vector<8x128xf32>
    %195 = math.tanh %194 : vector<8x128xf32>
    %196 = arith.mulf %191, %195 : vector<8x128xf32>
    %c0_102 = arith.constant 0 : index
    %c0_103 = arith.constant 0 : index
    %197 = vector.load %arg10[%c0_102, %c0_103] : memref<8x128xf32, #tpu.memory_space<vmem>>, vector<8x128xf32>
    tpu.vector_store %arg10[%c0_102, %c0_103], %194 {strides = array<i32>} : memref<8x128xf32, #tpu.memory_space<vmem>>, vector<8x128xf32>,
    %c0_104 = arith.constant 0 : index
    %c0_105 = arith.constant 0 : index
    %198 = vector.load %arg9[%c0_104, %c0_105] : memref<8x128xf32, #tpu.memory_space<vmem>>, vector<8x128xf32>
    tpu.vector_store %arg9[%c0_104, %c0_105], %196 {strides = array<i32>} : memref<8x128xf32, #tpu.memory_space<vmem>>, vector<8x128xf32>,
    %c7_i32 = arith.constant 7 : i32
    %c8_i32_106 = arith.constant 8 : i32
    %199 = arith.muli %c7_i32, %c8_i32_106 : i32
    %200 = tpu.assume_multiple %199, 8 : i32
    %c0_107 = arith.constant 0 : index
    %c0_108 = arith.constant 0 : index
    %201 = vector.load %arg9[%c0_107, %c0_108] : memref<8x128xf32, #tpu.memory_space<vmem>>, vector<8x128xf32>
    %c0_109 = arith.constant 0 : index
    %c0_110 = arith.constant 0 : index
    %202 = vector.load %arg10[%c0_109, %c0_110] : memref<8x128xf32, #tpu.memory_space<vmem>>, vector<8x128xf32>
    %203 = arith.index_cast %200 : i32 to index
    %c0_111 = arith.constant 0 : index
    %204 = vector.load %arg8[%203, %c0_111] : memref<64x512xf32, #tpu.memory_space<vmem>>, vector<8x512xf32>
    %c0_112 = arith.constant 0 : index
    %c0_113 = arith.constant 0 : index
    %205 = vector.load %arg3[%c0_112, %c0_113] : memref<128x512xf32, #tpu.memory_space<vmem>>, vector<128x512xf32>
    %cst_114 = arith.constant dense<0.000000e+00> : vector<8x512xf32>
    %206 = tpu.matmul %201, %205, %cst_114 {dimension_numbers = #tpu.dot_dimension_numbers<[1], [0], [0], [1], [0, 0, 1, 1], [], []>} : vector<8x128xf32>, vector<128x512xf32>, vector<8x512xf32> -> vector<8x512xf32>
    %207 = arith.addf %204, %206 : vector<8x512xf32>
    %208 = vector.extract_strided_slice %207 {offsets = [0, 0], sizes = [8, 384], strides = [1, 1]} : vector<8x512xf32> to vector<8x384xf32>
    %209 = arith.negf %208 : vector<8x384xf32>
    %210 = math.exp %209 : vector<8x384xf32>
    %cst_115 = arith.constant 1.000000e+00 : f32
    %211 = vector.broadcast %cst_115 : f32 to vector<8x384xf32>
    %212 = arith.addf %211, %210 : vector<8x384xf32>
    %213 = arith.divf %211, %212 : vector<8x384xf32>
    %214 = vector.extract_strided_slice %207 {offsets = [0, 384], sizes = [8, 128], strides = [1, 1]} : vector<8x512xf32> to vector<8x128xf32>
    %215 = math.tanh %214 : vector<8x128xf32>
    %216 = vector.extract_strided_slice %213 {offsets = [0, 0], sizes = [8, 128], strides = [1, 1]} : vector<8x384xf32> to vector<8x128xf32>
    %217 = vector.extract_strided_slice %213 {offsets = [0, 128], sizes = [8, 128], strides = [1, 1]} : vector<8x384xf32> to vector<8x128xf32>
    %218 = vector.extract_strided_slice %213 {offsets = [0, 256], sizes = [8, 128], strides = [1, 1]} : vector<8x384xf32> to vector<8x128xf32>
    %219 = arith.mulf %217, %202 : vector<8x128xf32>
    %220 = arith.mulf %216, %215 : vector<8x128xf32>
    %221 = arith.addf %219, %220 : vector<8x128xf32>
    %222 = math.tanh %221 : vector<8x128xf32>
    %223 = arith.mulf %218, %222 : vector<8x128xf32>
    %c0_116 = arith.constant 0 : index
    %c0_117 = arith.constant 0 : index
    %224 = vector.load %arg10[%c0_116, %c0_117] : memref<8x128xf32, #tpu.memory_space<vmem>>, vector<8x128xf32>
    tpu.vector_store %arg10[%c0_116, %c0_117], %221 {strides = array<i32>} : memref<8x128xf32, #tpu.memory_space<vmem>>, vector<8x128xf32>,
    %c0_118 = arith.constant 0 : index
    %c0_119 = arith.constant 0 : index
    %225 = vector.load %arg9[%c0_118, %c0_119] : memref<8x128xf32, #tpu.memory_space<vmem>>, vector<8x128xf32>
    tpu.vector_store %arg9[%c0_118, %c0_119], %223 {strides = array<i32>} : memref<8x128xf32, #tpu.memory_space<vmem>>, vector<8x128xf32>,
    %c8_i32_120 = arith.constant 8 : i32
    %c0_i32_121 = arith.constant 0 : i32
    %226 = arith.cmpi eq, %arg0, %c0_i32_121 : i32
    %227 = arith.extui %226 : i1 to i32
    %c0_i32_122 = arith.constant 0 : i32
    %228 = arith.cmpi ne, %227, %c0_i32_122 : i32
    scf.if %228 {
      %c0_123 = arith.constant 0 : index
      %c0_124 = arith.constant 0 : index
      %229 = vector.load %arg9[%c0_123, %c0_124] : memref<8x128xf32, #tpu.memory_space<vmem>>, vector<8x128xf32>
      %c0_125 = arith.constant 0 : index
      %c0_126 = arith.constant 0 : index
      %230 = vector.load %arg5[%c0_125, %c0_126] : memref<128x128xf32, #tpu.memory_space<vmem>>, vector<128x128xf32>
      %cst_127 = arith.constant dense<0.000000e+00> : vector<8x128xf32>
      %231 = tpu.matmul %229, %230, %cst_127 {dimension_numbers = #tpu.dot_dimension_numbers<[1], [0], [0], [1], [0, 0, 1, 1], [], []>} : vector<8x128xf32>, vector<128x128xf32>, vector<8x128xf32> -> vector<8x128xf32>
      %c0_128 = arith.constant 0 : index
      %c0_129 = arith.constant 0 : index
      %232 = vector.load %arg6[%c0_128, %c0_129] : memref<1x128xf32, #tpu.memory_space<vmem>>, vector<1x128xf32>
      %233 = vector.broadcast %232 : vector<1x128xf32> to vector<8x128xf32>
      %234 = arith.addf %231, %233 : vector<8x128xf32>
      %c0_130 = arith.constant 0 : index
      %c0_131 = arith.constant 0 : index
      %235 = vector.load %arg7[%c0_130, %c0_131] : memref<8x128xf32, #tpu.memory_space<vmem>>, vector<8x128xf32>
      tpu.vector_store %arg7[%c0_130, %c0_131], %234 {strides = array<i32>} : memref<8x128xf32, #tpu.memory_space<vmem>>, vector<8x128xf32>,
    } else {
    }
    return
  }
  func.func @transform_0(%arg0: i32) -> (i32, i32) {
    %c0_i32 = arith.constant 0 : i32
    %c0_i32_0 = arith.constant 0 : i32
    return %arg0, %c0_i32 : i32, i32
  }
  func.func @transform_1(%arg0: i32) -> (i32, i32) {
    %c0_i32 = arith.constant 0 : i32
    %c0_i32_0 = arith.constant 0 : i32
    %c0_i32_1 = arith.constant 0 : i32
    return %c0_i32, %c0_i32_0 : i32, i32
  }
  func.func @transform_2(%arg0: i32) -> (i32, i32) {
    %c0_i32 = arith.constant 0 : i32
    %c0_i32_0 = arith.constant 0 : i32
    %c0_i32_1 = arith.constant 0 : i32
    return %c0_i32, %c0_i32_0 : i32, i32
  }
  func.func @transform_3(%arg0: i32) -> (i32, i32) {
    %c0_i32 = arith.constant 0 : i32
    %c0_i32_0 = arith.constant 0 : i32
    %c0_i32_1 = arith.constant 0 : i32
    return %c0_i32, %c0_i32_0 : i32, i32
  }
  func.func @transform_4(%arg0: i32) -> (i32, i32) {
    %c0_i32 = arith.constant 0 : i32
    %c0_i32_0 = arith.constant 0 : i32
    %c0_i32_1 = arith.constant 0 : i32
    return %c0_i32, %c0_i32_0 : i32, i32
  }
  func.func @transform_5(%arg0: i32) -> (i32, i32) {
    %c0_i32 = arith.constant 0 : i32
    %c0_i32_0 = arith.constant 0 : i32
    %c0_i32_1 = arith.constant 0 : i32
    return %c0_i32, %c0_i32_0 : i32, i32
  }
  func.func @transform_6(%arg0: i32) -> (i32, i32) {
    %c0_i32 = arith.constant 0 : i32
    %c0_i32_0 = arith.constant 0 : i32
    %c0_i32_1 = arith.constant 0 : i32
    return %c0_i32, %c0_i32_0 : i32, i32
  }
}

module attributes {stable_mosaic.version = 11 : i64} {
  func.func @kernel(%arg0: i32, %arg1: memref<64x4xf32, #tpu.memory_space<vmem>>, %arg2: memref<4x512xf32, #tpu.memory_space<vmem>>, %arg3: memref<128x512xf32, #tpu.memory_space<vmem>>, %arg4: memref<1x512xf32, #tpu.memory_space<vmem>>, %arg5: memref<64x128xf32, #tpu.memory_space<vmem>>, %arg6: memref<64x512xf32, #tpu.memory_space<vmem>>, %arg7: memref<8x128xf32, #tpu.memory_space<vmem>>, %arg8: memref<8x128xf32, #tpu.memory_space<vmem>>) attributes {dimension_semantics = [#tpu.dimension_semantics<arbitrary>], iteration_bounds = array<i64: 1>, scalar_prefetch = 0 : i64, scratch_operands = 3 : i64, tpu.core_type = #tpu.core_type<tc>, window_params = [{transform_indices = @transform_0, window_bounds = array<i64: 64, 4>}, {pipeline_mode = #tpu.pipeline_mode<synchronous>, transform_indices = @transform_1, window_bounds = array<i64: 4, 512>}, {pipeline_mode = #tpu.pipeline_mode<synchronous>, transform_indices = @transform_2, window_bounds = array<i64: 128, 512>}, {pipeline_mode = #tpu.pipeline_mode<synchronous>, transform_indices = @transform_3, window_bounds = array<i64: 1, 512>}, {transform_indices = @transform_4, window_bounds = array<i64: 64, 128>}]} {
    %c0_i32 = arith.constant 0 : i32
    %0 = arith.cmpi eq, %arg0, %c0_i32 : i32
    %1 = arith.extui %0 : i1 to i32
    %c0_i32_0 = arith.constant 0 : i32
    %2 = arith.cmpi ne, %1, %c0_i32_0 : i32
    scf.if %2 {
      %cst_129 = arith.constant 0.000000e+00 : f32
      %242 = vector.broadcast %cst_129 : f32 to vector<8x128xf32>
      %c0_130 = arith.constant 0 : index
      %c0_131 = arith.constant 0 : index
      %243 = vector.load %arg7[%c0_130, %c0_131] : memref<8x128xf32, #tpu.memory_space<vmem>>, vector<8x128xf32>
      tpu.vector_store %arg7[%c0_130, %c0_131], %242 {strides = array<i32>} : memref<8x128xf32, #tpu.memory_space<vmem>>, vector<8x128xf32>,
      %cst_132 = arith.constant 0.000000e+00 : f32
      %244 = vector.broadcast %cst_132 : f32 to vector<8x128xf32>
      %c0_133 = arith.constant 0 : index
      %c0_134 = arith.constant 0 : index
      %245 = vector.load %arg8[%c0_133, %c0_134] : memref<8x128xf32, #tpu.memory_space<vmem>>, vector<8x128xf32>
      tpu.vector_store %arg8[%c0_133, %c0_134], %244 {strides = array<i32>} : memref<8x128xf32, #tpu.memory_space<vmem>>, vector<8x128xf32>,
    } else {
    }
    %c0 = arith.constant 0 : index
    %c0_1 = arith.constant 0 : index
    %3 = vector.load %arg1[%c0, %c0_1] : memref<64x4xf32, #tpu.memory_space<vmem>>, vector<64x4xf32>
    %c0_2 = arith.constant 0 : index
    %c0_3 = arith.constant 0 : index
    %4 = vector.load %arg2[%c0_2, %c0_3] : memref<4x512xf32, #tpu.memory_space<vmem>>, vector<4x512xf32>
    %cst = arith.constant dense<0.000000e+00> : vector<64x512xf32>
    %5 = tpu.matmul %3, %4, %cst {dimension_numbers = #tpu.dot_dimension_numbers<[1], [0], [0], [1], [0, 0, 1, 1], [], []>} : vector<64x4xf32>, vector<4x512xf32>, vector<64x512xf32> -> vector<64x512xf32>
    %c0_4 = arith.constant 0 : index
    %c0_5 = arith.constant 0 : index
    %6 = vector.load %arg4[%c0_4, %c0_5] : memref<1x512xf32, #tpu.memory_space<vmem>>, vector<1x512xf32>
    %7 = vector.broadcast %6 : vector<1x512xf32> to vector<64x512xf32>
    %8 = arith.addf %5, %7 : vector<64x512xf32>
    %c0_6 = arith.constant 0 : index
    %c0_7 = arith.constant 0 : index
    %9 = vector.load %arg6[%c0_6, %c0_7] : memref<64x512xf32, #tpu.memory_space<vmem>>, vector<64x512xf32>
    tpu.vector_store %arg6[%c0_6, %c0_7], %8 {strides = array<i32>} : memref<64x512xf32, #tpu.memory_space<vmem>>, vector<64x512xf32>,
    %c0_i32_8 = arith.constant 0 : i32
    %c8_i32 = arith.constant 8 : i32
    %10 = arith.muli %c0_i32_8, %c8_i32 : i32
    %11 = tpu.assume_multiple %10, 8 : i32
    %c0_9 = arith.constant 0 : index
    %c0_10 = arith.constant 0 : index
    %12 = vector.load %arg7[%c0_9, %c0_10] : memref<8x128xf32, #tpu.memory_space<vmem>>, vector<8x128xf32>
    %c0_11 = arith.constant 0 : index
    %c0_12 = arith.constant 0 : index
    %13 = vector.load %arg8[%c0_11, %c0_12] : memref<8x128xf32, #tpu.memory_space<vmem>>, vector<8x128xf32>
    %14 = arith.index_cast %11 : i32 to index
    %c0_13 = arith.constant 0 : index
    %15 = vector.load %arg6[%14, %c0_13] : memref<64x512xf32, #tpu.memory_space<vmem>>, vector<8x512xf32>
    %c0_14 = arith.constant 0 : index
    %c0_15 = arith.constant 0 : index
    %16 = vector.load %arg3[%c0_14, %c0_15] : memref<128x512xf32, #tpu.memory_space<vmem>>, vector<128x512xf32>
    %cst_16 = arith.constant dense<0.000000e+00> : vector<8x512xf32>
    %17 = tpu.matmul %12, %16, %cst_16 {dimension_numbers = #tpu.dot_dimension_numbers<[1], [0], [0], [1], [0, 0, 1, 1], [], []>} : vector<8x128xf32>, vector<128x512xf32>, vector<8x512xf32> -> vector<8x512xf32>
    %18 = arith.addf %15, %17 : vector<8x512xf32>
    %19 = vector.extract_strided_slice %18 {offsets = [0, 0], sizes = [8, 384], strides = [1, 1]} : vector<8x512xf32> to vector<8x384xf32>
    %20 = arith.negf %19 : vector<8x384xf32>
    %21 = math.exp %20 : vector<8x384xf32>
    %cst_17 = arith.constant 1.000000e+00 : f32
    %22 = vector.broadcast %cst_17 : f32 to vector<8x384xf32>
    %23 = arith.addf %22, %21 : vector<8x384xf32>
    %24 = arith.divf %22, %23 : vector<8x384xf32>
    %25 = vector.extract_strided_slice %18 {offsets = [0, 384], sizes = [8, 128], strides = [1, 1]} : vector<8x512xf32> to vector<8x128xf32>
    %26 = math.tanh %25 : vector<8x128xf32>
    %27 = vector.extract_strided_slice %24 {offsets = [0, 0], sizes = [8, 128], strides = [1, 1]} : vector<8x384xf32> to vector<8x128xf32>
    %28 = vector.extract_strided_slice %24 {offsets = [0, 128], sizes = [8, 128], strides = [1, 1]} : vector<8x384xf32> to vector<8x128xf32>
    %29 = vector.extract_strided_slice %24 {offsets = [0, 256], sizes = [8, 128], strides = [1, 1]} : vector<8x384xf32> to vector<8x128xf32>
    %30 = arith.mulf %28, %13 : vector<8x128xf32>
    %31 = arith.mulf %27, %26 : vector<8x128xf32>
    %32 = arith.addf %30, %31 : vector<8x128xf32>
    %33 = math.tanh %32 : vector<8x128xf32>
    %34 = arith.mulf %29, %33 : vector<8x128xf32>
    %c0_18 = arith.constant 0 : index
    %c0_19 = arith.constant 0 : index
    %35 = vector.load %arg8[%c0_18, %c0_19] : memref<8x128xf32, #tpu.memory_space<vmem>>, vector<8x128xf32>
    tpu.vector_store %arg8[%c0_18, %c0_19], %32 {strides = array<i32>} : memref<8x128xf32, #tpu.memory_space<vmem>>, vector<8x128xf32>,
    %c0_20 = arith.constant 0 : index
    %c0_21 = arith.constant 0 : index
    %36 = vector.load %arg7[%c0_20, %c0_21] : memref<8x128xf32, #tpu.memory_space<vmem>>, vector<8x128xf32>
    tpu.vector_store %arg7[%c0_20, %c0_21], %34 {strides = array<i32>} : memref<8x128xf32, #tpu.memory_space<vmem>>, vector<8x128xf32>,
    %37 = arith.index_cast %11 : i32 to index
    %c0_22 = arith.constant 0 : index
    %38 = vector.load %arg5[%37, %c0_22] : memref<64x128xf32, #tpu.memory_space<vmem>>, vector<8x128xf32>
    tpu.vector_store %arg5[%37, %c0_22], %34 {strides = array<i32>} : memref<64x128xf32, #tpu.memory_space<vmem>>, vector<8x128xf32>,
    %c1_i32 = arith.constant 1 : i32
    %c8_i32_23 = arith.constant 8 : i32
    %39 = arith.muli %c1_i32, %c8_i32_23 : i32
    %40 = tpu.assume_multiple %39, 8 : i32
    %c0_24 = arith.constant 0 : index
    %c0_25 = arith.constant 0 : index
    %41 = vector.load %arg7[%c0_24, %c0_25] : memref<8x128xf32, #tpu.memory_space<vmem>>, vector<8x128xf32>
    %c0_26 = arith.constant 0 : index
    %c0_27 = arith.constant 0 : index
    %42 = vector.load %arg8[%c0_26, %c0_27] : memref<8x128xf32, #tpu.memory_space<vmem>>, vector<8x128xf32>
    %43 = arith.index_cast %40 : i32 to index
    %c0_28 = arith.constant 0 : index
    %44 = vector.load %arg6[%43, %c0_28] : memref<64x512xf32, #tpu.memory_space<vmem>>, vector<8x512xf32>
    %c0_29 = arith.constant 0 : index
    %c0_30 = arith.constant 0 : index
    %45 = vector.load %arg3[%c0_29, %c0_30] : memref<128x512xf32, #tpu.memory_space<vmem>>, vector<128x512xf32>
    %cst_31 = arith.constant dense<0.000000e+00> : vector<8x512xf32>
    %46 = tpu.matmul %41, %45, %cst_31 {dimension_numbers = #tpu.dot_dimension_numbers<[1], [0], [0], [1], [0, 0, 1, 1], [], []>} : vector<8x128xf32>, vector<128x512xf32>, vector<8x512xf32> -> vector<8x512xf32>
    %47 = arith.addf %44, %46 : vector<8x512xf32>
    %48 = vector.extract_strided_slice %47 {offsets = [0, 0], sizes = [8, 384], strides = [1, 1]} : vector<8x512xf32> to vector<8x384xf32>
    %49 = arith.negf %48 : vector<8x384xf32>
    %50 = math.exp %49 : vector<8x384xf32>
    %cst_32 = arith.constant 1.000000e+00 : f32
    %51 = vector.broadcast %cst_32 : f32 to vector<8x384xf32>
    %52 = arith.addf %51, %50 : vector<8x384xf32>
    %53 = arith.divf %51, %52 : vector<8x384xf32>
    %54 = vector.extract_strided_slice %47 {offsets = [0, 384], sizes = [8, 128], strides = [1, 1]} : vector<8x512xf32> to vector<8x128xf32>
    %55 = math.tanh %54 : vector<8x128xf32>
    %56 = vector.extract_strided_slice %53 {offsets = [0, 0], sizes = [8, 128], strides = [1, 1]} : vector<8x384xf32> to vector<8x128xf32>
    %57 = vector.extract_strided_slice %53 {offsets = [0, 128], sizes = [8, 128], strides = [1, 1]} : vector<8x384xf32> to vector<8x128xf32>
    %58 = vector.extract_strided_slice %53 {offsets = [0, 256], sizes = [8, 128], strides = [1, 1]} : vector<8x384xf32> to vector<8x128xf32>
    %59 = arith.mulf %57, %42 : vector<8x128xf32>
    %60 = arith.mulf %56, %55 : vector<8x128xf32>
    %61 = arith.addf %59, %60 : vector<8x128xf32>
    %62 = math.tanh %61 : vector<8x128xf32>
    %63 = arith.mulf %58, %62 : vector<8x128xf32>
    %c0_33 = arith.constant 0 : index
    %c0_34 = arith.constant 0 : index
    %64 = vector.load %arg8[%c0_33, %c0_34] : memref<8x128xf32, #tpu.memory_space<vmem>>, vector<8x128xf32>
    tpu.vector_store %arg8[%c0_33, %c0_34], %61 {strides = array<i32>} : memref<8x128xf32, #tpu.memory_space<vmem>>, vector<8x128xf32>,
    %c0_35 = arith.constant 0 : index
    %c0_36 = arith.constant 0 : index
    %65 = vector.load %arg7[%c0_35, %c0_36] : memref<8x128xf32, #tpu.memory_space<vmem>>, vector<8x128xf32>
    tpu.vector_store %arg7[%c0_35, %c0_36], %63 {strides = array<i32>} : memref<8x128xf32, #tpu.memory_space<vmem>>, vector<8x128xf32>,
    %66 = arith.index_cast %40 : i32 to index
    %c0_37 = arith.constant 0 : index
    %67 = vector.load %arg5[%66, %c0_37] : memref<64x128xf32, #tpu.memory_space<vmem>>, vector<8x128xf32>
    tpu.vector_store %arg5[%66, %c0_37], %63 {strides = array<i32>} : memref<64x128xf32, #tpu.memory_space<vmem>>, vector<8x128xf32>,
    %c2_i32 = arith.constant 2 : i32
    %c8_i32_38 = arith.constant 8 : i32
    %68 = arith.muli %c2_i32, %c8_i32_38 : i32
    %69 = tpu.assume_multiple %68, 8 : i32
    %c0_39 = arith.constant 0 : index
    %c0_40 = arith.constant 0 : index
    %70 = vector.load %arg7[%c0_39, %c0_40] : memref<8x128xf32, #tpu.memory_space<vmem>>, vector<8x128xf32>
    %c0_41 = arith.constant 0 : index
    %c0_42 = arith.constant 0 : index
    %71 = vector.load %arg8[%c0_41, %c0_42] : memref<8x128xf32, #tpu.memory_space<vmem>>, vector<8x128xf32>
    %72 = arith.index_cast %69 : i32 to index
    %c0_43 = arith.constant 0 : index
    %73 = vector.load %arg6[%72, %c0_43] : memref<64x512xf32, #tpu.memory_space<vmem>>, vector<8x512xf32>
    %c0_44 = arith.constant 0 : index
    %c0_45 = arith.constant 0 : index
    %74 = vector.load %arg3[%c0_44, %c0_45] : memref<128x512xf32, #tpu.memory_space<vmem>>, vector<128x512xf32>
    %cst_46 = arith.constant dense<0.000000e+00> : vector<8x512xf32>
    %75 = tpu.matmul %70, %74, %cst_46 {dimension_numbers = #tpu.dot_dimension_numbers<[1], [0], [0], [1], [0, 0, 1, 1], [], []>} : vector<8x128xf32>, vector<128x512xf32>, vector<8x512xf32> -> vector<8x512xf32>
    %76 = arith.addf %73, %75 : vector<8x512xf32>
    %77 = vector.extract_strided_slice %76 {offsets = [0, 0], sizes = [8, 384], strides = [1, 1]} : vector<8x512xf32> to vector<8x384xf32>
    %78 = arith.negf %77 : vector<8x384xf32>
    %79 = math.exp %78 : vector<8x384xf32>
    %cst_47 = arith.constant 1.000000e+00 : f32
    %80 = vector.broadcast %cst_47 : f32 to vector<8x384xf32>
    %81 = arith.addf %80, %79 : vector<8x384xf32>
    %82 = arith.divf %80, %81 : vector<8x384xf32>
    %83 = vector.extract_strided_slice %76 {offsets = [0, 384], sizes = [8, 128], strides = [1, 1]} : vector<8x512xf32> to vector<8x128xf32>
    %84 = math.tanh %83 : vector<8x128xf32>
    %85 = vector.extract_strided_slice %82 {offsets = [0, 0], sizes = [8, 128], strides = [1, 1]} : vector<8x384xf32> to vector<8x128xf32>
    %86 = vector.extract_strided_slice %82 {offsets = [0, 128], sizes = [8, 128], strides = [1, 1]} : vector<8x384xf32> to vector<8x128xf32>
    %87 = vector.extract_strided_slice %82 {offsets = [0, 256], sizes = [8, 128], strides = [1, 1]} : vector<8x384xf32> to vector<8x128xf32>
    %88 = arith.mulf %86, %71 : vector<8x128xf32>
    %89 = arith.mulf %85, %84 : vector<8x128xf32>
    %90 = arith.addf %88, %89 : vector<8x128xf32>
    %91 = math.tanh %90 : vector<8x128xf32>
    %92 = arith.mulf %87, %91 : vector<8x128xf32>
    %c0_48 = arith.constant 0 : index
    %c0_49 = arith.constant 0 : index
    %93 = vector.load %arg8[%c0_48, %c0_49] : memref<8x128xf32, #tpu.memory_space<vmem>>, vector<8x128xf32>
    tpu.vector_store %arg8[%c0_48, %c0_49], %90 {strides = array<i32>} : memref<8x128xf32, #tpu.memory_space<vmem>>, vector<8x128xf32>,
    %c0_50 = arith.constant 0 : index
    %c0_51 = arith.constant 0 : index
    %94 = vector.load %arg7[%c0_50, %c0_51] : memref<8x128xf32, #tpu.memory_space<vmem>>, vector<8x128xf32>
    tpu.vector_store %arg7[%c0_50, %c0_51], %92 {strides = array<i32>} : memref<8x128xf32, #tpu.memory_space<vmem>>, vector<8x128xf32>,
    %95 = arith.index_cast %69 : i32 to index
    %c0_52 = arith.constant 0 : index
    %96 = vector.load %arg5[%95, %c0_52] : memref<64x128xf32, #tpu.memory_space<vmem>>, vector<8x128xf32>
    tpu.vector_store %arg5[%95, %c0_52], %92 {strides = array<i32>} : memref<64x128xf32, #tpu.memory_space<vmem>>, vector<8x128xf32>,
    %c3_i32 = arith.constant 3 : i32
    %c8_i32_53 = arith.constant 8 : i32
    %97 = arith.muli %c3_i32, %c8_i32_53 : i32
    %98 = tpu.assume_multiple %97, 8 : i32
    %c0_54 = arith.constant 0 : index
    %c0_55 = arith.constant 0 : index
    %99 = vector.load %arg7[%c0_54, %c0_55] : memref<8x128xf32, #tpu.memory_space<vmem>>, vector<8x128xf32>
    %c0_56 = arith.constant 0 : index
    %c0_57 = arith.constant 0 : index
    %100 = vector.load %arg8[%c0_56, %c0_57] : memref<8x128xf32, #tpu.memory_space<vmem>>, vector<8x128xf32>
    %101 = arith.index_cast %98 : i32 to index
    %c0_58 = arith.constant 0 : index
    %102 = vector.load %arg6[%101, %c0_58] : memref<64x512xf32, #tpu.memory_space<vmem>>, vector<8x512xf32>
    %c0_59 = arith.constant 0 : index
    %c0_60 = arith.constant 0 : index
    %103 = vector.load %arg3[%c0_59, %c0_60] : memref<128x512xf32, #tpu.memory_space<vmem>>, vector<128x512xf32>
    %cst_61 = arith.constant dense<0.000000e+00> : vector<8x512xf32>
    %104 = tpu.matmul %99, %103, %cst_61 {dimension_numbers = #tpu.dot_dimension_numbers<[1], [0], [0], [1], [0, 0, 1, 1], [], []>} : vector<8x128xf32>, vector<128x512xf32>, vector<8x512xf32> -> vector<8x512xf32>
    %105 = arith.addf %102, %104 : vector<8x512xf32>
    %106 = vector.extract_strided_slice %105 {offsets = [0, 0], sizes = [8, 384], strides = [1, 1]} : vector<8x512xf32> to vector<8x384xf32>
    %107 = arith.negf %106 : vector<8x384xf32>
    %108 = math.exp %107 : vector<8x384xf32>
    %cst_62 = arith.constant 1.000000e+00 : f32
    %109 = vector.broadcast %cst_62 : f32 to vector<8x384xf32>
    %110 = arith.addf %109, %108 : vector<8x384xf32>
    %111 = arith.divf %109, %110 : vector<8x384xf32>
    %112 = vector.extract_strided_slice %105 {offsets = [0, 384], sizes = [8, 128], strides = [1, 1]} : vector<8x512xf32> to vector<8x128xf32>
    %113 = math.tanh %112 : vector<8x128xf32>
    %114 = vector.extract_strided_slice %111 {offsets = [0, 0], sizes = [8, 128], strides = [1, 1]} : vector<8x384xf32> to vector<8x128xf32>
    %115 = vector.extract_strided_slice %111 {offsets = [0, 128], sizes = [8, 128], strides = [1, 1]} : vector<8x384xf32> to vector<8x128xf32>
    %116 = vector.extract_strided_slice %111 {offsets = [0, 256], sizes = [8, 128], strides = [1, 1]} : vector<8x384xf32> to vector<8x128xf32>
    %117 = arith.mulf %115, %100 : vector<8x128xf32>
    %118 = arith.mulf %114, %113 : vector<8x128xf32>
    %119 = arith.addf %117, %118 : vector<8x128xf32>
    %120 = math.tanh %119 : vector<8x128xf32>
    %121 = arith.mulf %116, %120 : vector<8x128xf32>
    %c0_63 = arith.constant 0 : index
    %c0_64 = arith.constant 0 : index
    %122 = vector.load %arg8[%c0_63, %c0_64] : memref<8x128xf32, #tpu.memory_space<vmem>>, vector<8x128xf32>
    tpu.vector_store %arg8[%c0_63, %c0_64], %119 {strides = array<i32>} : memref<8x128xf32, #tpu.memory_space<vmem>>, vector<8x128xf32>,
    %c0_65 = arith.constant 0 : index
    %c0_66 = arith.constant 0 : index
    %123 = vector.load %arg7[%c0_65, %c0_66] : memref<8x128xf32, #tpu.memory_space<vmem>>, vector<8x128xf32>
    tpu.vector_store %arg7[%c0_65, %c0_66], %121 {strides = array<i32>} : memref<8x128xf32, #tpu.memory_space<vmem>>, vector<8x128xf32>,
    %124 = arith.index_cast %98 : i32 to index
    %c0_67 = arith.constant 0 : index
    %125 = vector.load %arg5[%124, %c0_67] : memref<64x128xf32, #tpu.memory_space<vmem>>, vector<8x128xf32>
    tpu.vector_store %arg5[%124, %c0_67], %121 {strides = array<i32>} : memref<64x128xf32, #tpu.memory_space<vmem>>, vector<8x128xf32>,
    %c4_i32 = arith.constant 4 : i32
    %c8_i32_68 = arith.constant 8 : i32
    %126 = arith.muli %c4_i32, %c8_i32_68 : i32
    %127 = tpu.assume_multiple %126, 8 : i32
    %c0_69 = arith.constant 0 : index
    %c0_70 = arith.constant 0 : index
    %128 = vector.load %arg7[%c0_69, %c0_70] : memref<8x128xf32, #tpu.memory_space<vmem>>, vector<8x128xf32>
    %c0_71 = arith.constant 0 : index
    %c0_72 = arith.constant 0 : index
    %129 = vector.load %arg8[%c0_71, %c0_72] : memref<8x128xf32, #tpu.memory_space<vmem>>, vector<8x128xf32>
    %130 = arith.index_cast %127 : i32 to index
    %c0_73 = arith.constant 0 : index
    %131 = vector.load %arg6[%130, %c0_73] : memref<64x512xf32, #tpu.memory_space<vmem>>, vector<8x512xf32>
    %c0_74 = arith.constant 0 : index
    %c0_75 = arith.constant 0 : index
    %132 = vector.load %arg3[%c0_74, %c0_75] : memref<128x512xf32, #tpu.memory_space<vmem>>, vector<128x512xf32>
    %cst_76 = arith.constant dense<0.000000e+00> : vector<8x512xf32>
    %133 = tpu.matmul %128, %132, %cst_76 {dimension_numbers = #tpu.dot_dimension_numbers<[1], [0], [0], [1], [0, 0, 1, 1], [], []>} : vector<8x128xf32>, vector<128x512xf32>, vector<8x512xf32> -> vector<8x512xf32>
    %134 = arith.addf %131, %133 : vector<8x512xf32>
    %135 = vector.extract_strided_slice %134 {offsets = [0, 0], sizes = [8, 384], strides = [1, 1]} : vector<8x512xf32> to vector<8x384xf32>
    %136 = arith.negf %135 : vector<8x384xf32>
    %137 = math.exp %136 : vector<8x384xf32>
    %cst_77 = arith.constant 1.000000e+00 : f32
    %138 = vector.broadcast %cst_77 : f32 to vector<8x384xf32>
    %139 = arith.addf %138, %137 : vector<8x384xf32>
    %140 = arith.divf %138, %139 : vector<8x384xf32>
    %141 = vector.extract_strided_slice %134 {offsets = [0, 384], sizes = [8, 128], strides = [1, 1]} : vector<8x512xf32> to vector<8x128xf32>
    %142 = math.tanh %141 : vector<8x128xf32>
    %143 = vector.extract_strided_slice %140 {offsets = [0, 0], sizes = [8, 128], strides = [1, 1]} : vector<8x384xf32> to vector<8x128xf32>
    %144 = vector.extract_strided_slice %140 {offsets = [0, 128], sizes = [8, 128], strides = [1, 1]} : vector<8x384xf32> to vector<8x128xf32>
    %145 = vector.extract_strided_slice %140 {offsets = [0, 256], sizes = [8, 128], strides = [1, 1]} : vector<8x384xf32> to vector<8x128xf32>
    %146 = arith.mulf %144, %129 : vector<8x128xf32>
    %147 = arith.mulf %143, %142 : vector<8x128xf32>
    %148 = arith.addf %146, %147 : vector<8x128xf32>
    %149 = math.tanh %148 : vector<8x128xf32>
    %150 = arith.mulf %145, %149 : vector<8x128xf32>
    %c0_78 = arith.constant 0 : index
    %c0_79 = arith.constant 0 : index
    %151 = vector.load %arg8[%c0_78, %c0_79] : memref<8x128xf32, #tpu.memory_space<vmem>>, vector<8x128xf32>
    tpu.vector_store %arg8[%c0_78, %c0_79], %148 {strides = array<i32>} : memref<8x128xf32, #tpu.memory_space<vmem>>, vector<8x128xf32>,
    %c0_80 = arith.constant 0 : index
    %c0_81 = arith.constant 0 : index
    %152 = vector.load %arg7[%c0_80, %c0_81] : memref<8x128xf32, #tpu.memory_space<vmem>>, vector<8x128xf32>
    tpu.vector_store %arg7[%c0_80, %c0_81], %150 {strides = array<i32>} : memref<8x128xf32, #tpu.memory_space<vmem>>, vector<8x128xf32>,
    %153 = arith.index_cast %127 : i32 to index
    %c0_82 = arith.constant 0 : index
    %154 = vector.load %arg5[%153, %c0_82] : memref<64x128xf32, #tpu.memory_space<vmem>>, vector<8x128xf32>
    tpu.vector_store %arg5[%153, %c0_82], %150 {strides = array<i32>} : memref<64x128xf32, #tpu.memory_space<vmem>>, vector<8x128xf32>,
    %c5_i32 = arith.constant 5 : i32
    %c8_i32_83 = arith.constant 8 : i32
    %155 = arith.muli %c5_i32, %c8_i32_83 : i32
    %156 = tpu.assume_multiple %155, 8 : i32
    %c0_84 = arith.constant 0 : index
    %c0_85 = arith.constant 0 : index
    %157 = vector.load %arg7[%c0_84, %c0_85] : memref<8x128xf32, #tpu.memory_space<vmem>>, vector<8x128xf32>
    %c0_86 = arith.constant 0 : index
    %c0_87 = arith.constant 0 : index
    %158 = vector.load %arg8[%c0_86, %c0_87] : memref<8x128xf32, #tpu.memory_space<vmem>>, vector<8x128xf32>
    %159 = arith.index_cast %156 : i32 to index
    %c0_88 = arith.constant 0 : index
    %160 = vector.load %arg6[%159, %c0_88] : memref<64x512xf32, #tpu.memory_space<vmem>>, vector<8x512xf32>
    %c0_89 = arith.constant 0 : index
    %c0_90 = arith.constant 0 : index
    %161 = vector.load %arg3[%c0_89, %c0_90] : memref<128x512xf32, #tpu.memory_space<vmem>>, vector<128x512xf32>
    %cst_91 = arith.constant dense<0.000000e+00> : vector<8x512xf32>
    %162 = tpu.matmul %157, %161, %cst_91 {dimension_numbers = #tpu.dot_dimension_numbers<[1], [0], [0], [1], [0, 0, 1, 1], [], []>} : vector<8x128xf32>, vector<128x512xf32>, vector<8x512xf32> -> vector<8x512xf32>
    %163 = arith.addf %160, %162 : vector<8x512xf32>
    %164 = vector.extract_strided_slice %163 {offsets = [0, 0], sizes = [8, 384], strides = [1, 1]} : vector<8x512xf32> to vector<8x384xf32>
    %165 = arith.negf %164 : vector<8x384xf32>
    %166 = math.exp %165 : vector<8x384xf32>
    %cst_92 = arith.constant 1.000000e+00 : f32
    %167 = vector.broadcast %cst_92 : f32 to vector<8x384xf32>
    %168 = arith.addf %167, %166 : vector<8x384xf32>
    %169 = arith.divf %167, %168 : vector<8x384xf32>
    %170 = vector.extract_strided_slice %163 {offsets = [0, 384], sizes = [8, 128], strides = [1, 1]} : vector<8x512xf32> to vector<8x128xf32>
    %171 = math.tanh %170 : vector<8x128xf32>
    %172 = vector.extract_strided_slice %169 {offsets = [0, 0], sizes = [8, 128], strides = [1, 1]} : vector<8x384xf32> to vector<8x128xf32>
    %173 = vector.extract_strided_slice %169 {offsets = [0, 128], sizes = [8, 128], strides = [1, 1]} : vector<8x384xf32> to vector<8x128xf32>
    %174 = vector.extract_strided_slice %169 {offsets = [0, 256], sizes = [8, 128], strides = [1, 1]} : vector<8x384xf32> to vector<8x128xf32>
    %175 = arith.mulf %173, %158 : vector<8x128xf32>
    %176 = arith.mulf %172, %171 : vector<8x128xf32>
    %177 = arith.addf %175, %176 : vector<8x128xf32>
    %178 = math.tanh %177 : vector<8x128xf32>
    %179 = arith.mulf %174, %178 : vector<8x128xf32>
    %c0_93 = arith.constant 0 : index
    %c0_94 = arith.constant 0 : index
    %180 = vector.load %arg8[%c0_93, %c0_94] : memref<8x128xf32, #tpu.memory_space<vmem>>, vector<8x128xf32>
    tpu.vector_store %arg8[%c0_93, %c0_94], %177 {strides = array<i32>} : memref<8x128xf32, #tpu.memory_space<vmem>>, vector<8x128xf32>,
    %c0_95 = arith.constant 0 : index
    %c0_96 = arith.constant 0 : index
    %181 = vector.load %arg7[%c0_95, %c0_96] : memref<8x128xf32, #tpu.memory_space<vmem>>, vector<8x128xf32>
    tpu.vector_store %arg7[%c0_95, %c0_96], %179 {strides = array<i32>} : memref<8x128xf32, #tpu.memory_space<vmem>>, vector<8x128xf32>,
    %182 = arith.index_cast %156 : i32 to index
    %c0_97 = arith.constant 0 : index
    %183 = vector.load %arg5[%182, %c0_97] : memref<64x128xf32, #tpu.memory_space<vmem>>, vector<8x128xf32>
    tpu.vector_store %arg5[%182, %c0_97], %179 {strides = array<i32>} : memref<64x128xf32, #tpu.memory_space<vmem>>, vector<8x128xf32>,
    %c6_i32 = arith.constant 6 : i32
    %c8_i32_98 = arith.constant 8 : i32
    %184 = arith.muli %c6_i32, %c8_i32_98 : i32
    %185 = tpu.assume_multiple %184, 8 : i32
    %c0_99 = arith.constant 0 : index
    %c0_100 = arith.constant 0 : index
    %186 = vector.load %arg7[%c0_99, %c0_100] : memref<8x128xf32, #tpu.memory_space<vmem>>, vector<8x128xf32>
    %c0_101 = arith.constant 0 : index
    %c0_102 = arith.constant 0 : index
    %187 = vector.load %arg8[%c0_101, %c0_102] : memref<8x128xf32, #tpu.memory_space<vmem>>, vector<8x128xf32>
    %188 = arith.index_cast %185 : i32 to index
    %c0_103 = arith.constant 0 : index
    %189 = vector.load %arg6[%188, %c0_103] : memref<64x512xf32, #tpu.memory_space<vmem>>, vector<8x512xf32>
    %c0_104 = arith.constant 0 : index
    %c0_105 = arith.constant 0 : index
    %190 = vector.load %arg3[%c0_104, %c0_105] : memref<128x512xf32, #tpu.memory_space<vmem>>, vector<128x512xf32>
    %cst_106 = arith.constant dense<0.000000e+00> : vector<8x512xf32>
    %191 = tpu.matmul %186, %190, %cst_106 {dimension_numbers = #tpu.dot_dimension_numbers<[1], [0], [0], [1], [0, 0, 1, 1], [], []>} : vector<8x128xf32>, vector<128x512xf32>, vector<8x512xf32> -> vector<8x512xf32>
    %192 = arith.addf %189, %191 : vector<8x512xf32>
    %193 = vector.extract_strided_slice %192 {offsets = [0, 0], sizes = [8, 384], strides = [1, 1]} : vector<8x512xf32> to vector<8x384xf32>
    %194 = arith.negf %193 : vector<8x384xf32>
    %195 = math.exp %194 : vector<8x384xf32>
    %cst_107 = arith.constant 1.000000e+00 : f32
    %196 = vector.broadcast %cst_107 : f32 to vector<8x384xf32>
    %197 = arith.addf %196, %195 : vector<8x384xf32>
    %198 = arith.divf %196, %197 : vector<8x384xf32>
    %199 = vector.extract_strided_slice %192 {offsets = [0, 384], sizes = [8, 128], strides = [1, 1]} : vector<8x512xf32> to vector<8x128xf32>
    %200 = math.tanh %199 : vector<8x128xf32>
    %201 = vector.extract_strided_slice %198 {offsets = [0, 0], sizes = [8, 128], strides = [1, 1]} : vector<8x384xf32> to vector<8x128xf32>
    %202 = vector.extract_strided_slice %198 {offsets = [0, 128], sizes = [8, 128], strides = [1, 1]} : vector<8x384xf32> to vector<8x128xf32>
    %203 = vector.extract_strided_slice %198 {offsets = [0, 256], sizes = [8, 128], strides = [1, 1]} : vector<8x384xf32> to vector<8x128xf32>
    %204 = arith.mulf %202, %187 : vector<8x128xf32>
    %205 = arith.mulf %201, %200 : vector<8x128xf32>
    %206 = arith.addf %204, %205 : vector<8x128xf32>
    %207 = math.tanh %206 : vector<8x128xf32>
    %208 = arith.mulf %203, %207 : vector<8x128xf32>
    %c0_108 = arith.constant 0 : index
    %c0_109 = arith.constant 0 : index
    %209 = vector.load %arg8[%c0_108, %c0_109] : memref<8x128xf32, #tpu.memory_space<vmem>>, vector<8x128xf32>
    tpu.vector_store %arg8[%c0_108, %c0_109], %206 {strides = array<i32>} : memref<8x128xf32, #tpu.memory_space<vmem>>, vector<8x128xf32>,
    %c0_110 = arith.constant 0 : index
    %c0_111 = arith.constant 0 : index
    %210 = vector.load %arg7[%c0_110, %c0_111] : memref<8x128xf32, #tpu.memory_space<vmem>>, vector<8x128xf32>
    tpu.vector_store %arg7[%c0_110, %c0_111], %208 {strides = array<i32>} : memref<8x128xf32, #tpu.memory_space<vmem>>, vector<8x128xf32>,
    %211 = arith.index_cast %185 : i32 to index
    %c0_112 = arith.constant 0 : index
    %212 = vector.load %arg5[%211, %c0_112] : memref<64x128xf32, #tpu.memory_space<vmem>>, vector<8x128xf32>
    tpu.vector_store %arg5[%211, %c0_112], %208 {strides = array<i32>} : memref<64x128xf32, #tpu.memory_space<vmem>>, vector<8x128xf32>,
    %c7_i32 = arith.constant 7 : i32
    %c8_i32_113 = arith.constant 8 : i32
    %213 = arith.muli %c7_i32, %c8_i32_113 : i32
    %214 = tpu.assume_multiple %213, 8 : i32
    %c0_114 = arith.constant 0 : index
    %c0_115 = arith.constant 0 : index
    %215 = vector.load %arg7[%c0_114, %c0_115] : memref<8x128xf32, #tpu.memory_space<vmem>>, vector<8x128xf32>
    %c0_116 = arith.constant 0 : index
    %c0_117 = arith.constant 0 : index
    %216 = vector.load %arg8[%c0_116, %c0_117] : memref<8x128xf32, #tpu.memory_space<vmem>>, vector<8x128xf32>
    %217 = arith.index_cast %214 : i32 to index
    %c0_118 = arith.constant 0 : index
    %218 = vector.load %arg6[%217, %c0_118] : memref<64x512xf32, #tpu.memory_space<vmem>>, vector<8x512xf32>
    %c0_119 = arith.constant 0 : index
    %c0_120 = arith.constant 0 : index
    %219 = vector.load %arg3[%c0_119, %c0_120] : memref<128x512xf32, #tpu.memory_space<vmem>>, vector<128x512xf32>
    %cst_121 = arith.constant dense<0.000000e+00> : vector<8x512xf32>
    %220 = tpu.matmul %215, %219, %cst_121 {dimension_numbers = #tpu.dot_dimension_numbers<[1], [0], [0], [1], [0, 0, 1, 1], [], []>} : vector<8x128xf32>, vector<128x512xf32>, vector<8x512xf32> -> vector<8x512xf32>
    %221 = arith.addf %218, %220 : vector<8x512xf32>
    %222 = vector.extract_strided_slice %221 {offsets = [0, 0], sizes = [8, 384], strides = [1, 1]} : vector<8x512xf32> to vector<8x384xf32>
    %223 = arith.negf %222 : vector<8x384xf32>
    %224 = math.exp %223 : vector<8x384xf32>
    %cst_122 = arith.constant 1.000000e+00 : f32
    %225 = vector.broadcast %cst_122 : f32 to vector<8x384xf32>
    %226 = arith.addf %225, %224 : vector<8x384xf32>
    %227 = arith.divf %225, %226 : vector<8x384xf32>
    %228 = vector.extract_strided_slice %221 {offsets = [0, 384], sizes = [8, 128], strides = [1, 1]} : vector<8x512xf32> to vector<8x128xf32>
    %229 = math.tanh %228 : vector<8x128xf32>
    %230 = vector.extract_strided_slice %227 {offsets = [0, 0], sizes = [8, 128], strides = [1, 1]} : vector<8x384xf32> to vector<8x128xf32>
    %231 = vector.extract_strided_slice %227 {offsets = [0, 128], sizes = [8, 128], strides = [1, 1]} : vector<8x384xf32> to vector<8x128xf32>
    %232 = vector.extract_strided_slice %227 {offsets = [0, 256], sizes = [8, 128], strides = [1, 1]} : vector<8x384xf32> to vector<8x128xf32>
    %233 = arith.mulf %231, %216 : vector<8x128xf32>
    %234 = arith.mulf %230, %229 : vector<8x128xf32>
    %235 = arith.addf %233, %234 : vector<8x128xf32>
    %236 = math.tanh %235 : vector<8x128xf32>
    %237 = arith.mulf %232, %236 : vector<8x128xf32>
    %c0_123 = arith.constant 0 : index
    %c0_124 = arith.constant 0 : index
    %238 = vector.load %arg8[%c0_123, %c0_124] : memref<8x128xf32, #tpu.memory_space<vmem>>, vector<8x128xf32>
    tpu.vector_store %arg8[%c0_123, %c0_124], %235 {strides = array<i32>} : memref<8x128xf32, #tpu.memory_space<vmem>>, vector<8x128xf32>,
    %c0_125 = arith.constant 0 : index
    %c0_126 = arith.constant 0 : index
    %239 = vector.load %arg7[%c0_125, %c0_126] : memref<8x128xf32, #tpu.memory_space<vmem>>, vector<8x128xf32>
    tpu.vector_store %arg7[%c0_125, %c0_126], %237 {strides = array<i32>} : memref<8x128xf32, #tpu.memory_space<vmem>>, vector<8x128xf32>,
    %240 = arith.index_cast %214 : i32 to index
    %c0_127 = arith.constant 0 : index
    %241 = vector.load %arg5[%240, %c0_127] : memref<64x128xf32, #tpu.memory_space<vmem>>, vector<8x128xf32>
    tpu.vector_store %arg5[%240, %c0_127], %237 {strides = array<i32>} : memref<64x128xf32, #tpu.memory_space<vmem>>, vector<8x128xf32>,
    %c8_i32_128 = arith.constant 8 : i32
    return
  }
  func.func @transform_0(%arg0: i32) -> (i32, i32) {
    %c0_i32 = arith.constant 0 : i32
    %c0_i32_0 = arith.constant 0 : i32
    return %arg0, %c0_i32 : i32, i32
  }
  func.func @transform_1(%arg0: i32) -> (i32, i32) {
    %c0_i32 = arith.constant 0 : i32
    %c0_i32_0 = arith.constant 0 : i32
    %c0_i32_1 = arith.constant 0 : i32
    return %c0_i32, %c0_i32_0 : i32, i32
  }
  func.func @transform_2(%arg0: i32) -> (i32, i32) {
    %c0_i32 = arith.constant 0 : i32
    %c0_i32_0 = arith.constant 0 : i32
    %c0_i32_1 = arith.constant 0 : i32
    return %c0_i32, %c0_i32_0 : i32, i32
  }
  func.func @transform_3(%arg0: i32) -> (i32, i32) {
    %c0_i32 = arith.constant 0 : i32
    %c0_i32_0 = arith.constant 0 : i32
    %c0_i32_1 = arith.constant 0 : i32
    return %c0_i32, %c0_i32_0 : i32, i32
  }
  func.func @transform_4(%arg0: i32) -> (i32, i32) {
    %c0_i32 = arith.constant 0 : i32
    %c0_i32_0 = arith.constant 0 : i32
    return %arg0, %c0_i32 : i32, i32
  }
}

</mosaic_0001>

<llo_original>
// kernel: lstm_forward.3
$region0: #{lstm_forward.3}
  #allocation0 [shape = 'u32[]', space=smem, size = 0x4, offset = 0x4, fixed_abs, tag = 'smem constant byte address 0x4 - core index']
  #allocation1 [shape = 'u32[144,128]{1,0:T(1,128)}', space=vmem, size = 0x12000, scoped, tag = 'internal scratch']
  #allocation2 [shape = 'f32[64,512]{1,0:T(8,128)}', space=vmem, size = 0x20000, scoped, tag = 'scratch operand']
  #allocation3 [shape = 'f32[8,128]{1,0:T(8,128)}', space=vmem, size = 0x1000, scoped, tag = 'scratch operand']
  #allocation4 [shape = 'f32[8,128]{1,0:T(8,128)}', space=vmem, size = 0x1000, scoped, tag = 'scratch operand']
  %s0 = inlined_call_operand.vmem [shape: f32[64,128], index: 0, kind: input, shape index: {}]
  %s1 = inlined_call_operand.vmem [shape: f32[128,512], index: 1, kind: input, shape index: {}]
  %s2 = inlined_call_operand.hbm [shape: f32[128,512], index: 2, kind: input, shape index: {}]
  %s3 = inlined_call_operand.vmem [shape: f32[1,512], index: 3, kind: input, shape index: {}]
  %s4 = inlined_call_operand.vmem [shape: f32[128,128], index: 4, kind: input, shape index: {}]
  %s5 = inlined_call_operand.vmem [shape: f32[1,128], index: 5, kind: input, shape index: {}]
  %s6 = inlined_call_operand.vmem [shape: f32[8,128], index: 6, kind: output, shape index: {}]
  %s7 = sld [smem:[#allocation0]]
  $region46: #{lstm_forward.3} parent=0
    _
  %s9 = ssub.s32 1, %s7
  %s10 = scalar_select 0, %s9, %s7
  $region1: #{lstm_forward.3} parent=0
    #allocation5 [shape = 'u8[262144]{0}', space=vmem, size = 0x40000, scoped, tag = 'input window, operand 2, single buffered']
    #allocation6 [shape = 's32[1]{0}', space=sflag, size = 0x4, scoped, tag = 'scoped memory for lstm_forward.3']
    %11 = vsyncpa [#allocation6], 0
    // Predicated region
    $region2: #{lstm_forward.3} parent=1 // pred_check
      _
    $region3: #{lstm_forward.3} parent=1 // pred_check_branch
      %13 = sbr.rel (0) target = $region5
    $region4: #{lstm_forward.3} parent=1 // pred_region
      _
    $region5: #{lstm_forward.3} parent=1 // pred_fallthru
      _
    // Predicated region
    $region6: #{lstm_forward.3} parent=1 // pred_check
      _
    $region7: #{lstm_forward.3} parent=1 // pred_check_branch
      %15 = sbr.rel (0) target = $region9
    $region8: #{lstm_forward.3} parent=1 // pred_region
      _
    $region9: #{lstm_forward.3} parent=1 // pred_fallthru
      _
    // Predicated region
    $region10: #{lstm_forward.3} parent=1 // pred_check
      _
    $region11: #{lstm_forward.3} parent=1 // pred_check_branch
      %17 = sbr.rel (0) target = $region13
    $region12: #{lstm_forward.3} parent=1 // pred_region
      %s19 = ssub.s32 8192, 8192
      %20 = vsyncadd [#allocation6], %s19
      %s21 = sshll.u32 [#allocation5], 4
      %s22 = int_to_ptr.vmem [resolvable:$true] %s21
      %27 = dma.hbm_to_vmem [thread:$0]  %s2, 8192, %s22, [#allocation6], 512, 512, 32
    $region13: #{lstm_forward.3} parent=1 // pred_fallthru
      _
    // Predicated region
    $region14: #{lstm_forward.3} parent=1 // pred_check
      _
    $region15: #{lstm_forward.3} parent=1 // pred_check_branch
      %29 = sbr.rel (0) target = $region17
    $region16: #{lstm_forward.3} parent=1 // pred_region
      _
    $region17: #{lstm_forward.3} parent=1 // pred_fallthru
      _
    // Predicated region
    $region18: #{lstm_forward.3} parent=1 // pred_check
      _
    $region19: #{lstm_forward.3} parent=1 // pred_check_branch
      %31 = sbr.rel (0) target = $region21
    $region20: #{lstm_forward.3} parent=1 // pred_region
      _
    $region21: #{lstm_forward.3} parent=1 // pred_fallthru
      _
    // Predicated region
    $region22: #{lstm_forward.3} parent=1 // pred_check
      _
    $region23: #{lstm_forward.3} parent=1 // pred_check_branch
      %33 = sbr.rel (0) target = $region25
    $region24: #{lstm_forward.3} parent=1 // pred_region
      _
    $region25: #{lstm_forward.3} parent=1 // pred_fallthru
      _
    // Predicated region
    $region26: #{lstm_forward.3} parent=1 // pred_check
      _
    $region27: #{lstm_forward.3} parent=1 // pred_check_branch
      %35 = sbr.rel (0) target = $region29
    $region28: #{lstm_forward.3} parent=1 // pred_region
      %36 = dma.done [#allocation6], 8192
    $region29: #{lstm_forward.3} parent=1 // pred_fallthru
      _
    %p37 = scmp.eq.s32.totalorder 0, 0
    // Predicated region
    $region30: #{lstm_forward.3} parent=1 // pred_check
      %p38 = pneg %p37
    $region31: #{lstm_forward.3} parent=1 // pred_check_branch
      %40 = sbr.rel (%p38) target = $region33
    $region32: #{lstm_forward.3} parent=1 // pred_region
      %41 = vst [vmem:[#allocation3] sm:$0xff] 0.0
      %42 = vst [vmem:[#allocation4] sm:$0xff] 0.0
      %43 = vst [vmem:[%s6] sm:$0xff] 0.0
    $region33: #{lstm_forward.3} parent=1 // pred_fallthru
      _
    %v44 = vld [vmem:[%s0] sm:$0xff]
    %v45 = vld [vmem:[%s0 + $0x8] sm:$0xff]
    %v46 = vld [vmem:[%s0 + $0x10] sm:$0xff]
    %v47 = vld [vmem:[%s0 + $0x18] sm:$0xff]
    %v48 = vld [vmem:[%s0 + $0x20] sm:$0xff]
    %v49 = vld [vmem:[%s0 + $0x28] sm:$0xff]
    %v50 = vld [vmem:[%s0 + $0x30] sm:$0xff]
    %v51 = vld [vmem:[%s0 + $0x38] sm:$0xff]
    %v52 = vld [vmem:[%s1] sm:$0xff]
    %v53 = vld [vmem:[%s1 + $0x8] sm:$0xff]
    %v54 = vld [vmem:[%s1 + $0x10] sm:$0xff]
    %v55 = vld [vmem:[%s1 + $0x18] sm:$0xff]
    %v56 = vld [vmem:[%s1 + $0x20] sm:$0xff]
    %v57 = vld [vmem:[%s1 + $0x28] sm:$0xff]
    %v58 = vld [vmem:[%s1 + $0x30] sm:$0xff]
    %v59 = vld [vmem:[%s1 + $0x38] sm:$0xff]
    %v60 = vld [vmem:[%s1 + $0x40] sm:$0xff]
    %v61 = vld [vmem:[%s1 + $0x48] sm:$0xff]
    %v62 = vld [vmem:[%s1 + $0x50] sm:$0xff]
    %v63 = vld [vmem:[%s1 + $0x58] sm:$0xff]
    %v64 = vld [vmem:[%s1 + $0x60] sm:$0xff]
    %v65 = vld [vmem:[%s1 + $0x68] sm:$0xff]
    %v66 = vld [vmem:[%s1 + $0x70] sm:$0xff]
    %v67 = vld [vmem:[%s1 + $0x78] sm:$0xff]
    %v68 = vld [vmem:[%s1 + $0x80] sm:$0xff]
    %v69 = vld [vmem:[%s1 + $0x88] sm:$0xff]
    %v70 = vld [vmem:[%s1 + $0x90] sm:$0xff]
    %v71 = vld [vmem:[%s1 + $0x98] sm:$0xff]
    %v72 = vld [vmem:[%s1 + $0xa0] sm:$0xff]
    %v73 = vld [vmem:[%s1 + $0xa8] sm:$0xff]
    %v74 = vld [vmem:[%s1 + $0xb0] sm:$0xff]
    %v75 = vld [vmem:[%s1 + $0xb8] sm:$0xff]
    %v76 = vld [vmem:[%s1 + $0xc0] sm:$0xff]
    %v77 = vld [vmem:[%s1 + $0xc8] sm:$0xff]
    %v78 = vld [vmem:[%s1 + $0xd0] sm:$0xff]
    %v79 = vld [vmem:[%s1 + $0xd8] sm:$0xff]
    %v80 = vld [vmem:[%s1 + $0xe0] sm:$0xff]
    %v81 = vld [vmem:[%s1 + $0xe8] sm:$0xff]
    %v82 = vld [vmem:[%s1 + $0xf0] sm:$0xff]
    %v83 = vld [vmem:[%s1 + $0xf8] sm:$0xff]
    %v84 = vld [vmem:[%s1 + $0x100] sm:$0xff]
    %v85 = vld [vmem:[%s1 + $0x108] sm:$0xff]
    %v86 = vld [vmem:[%s1 + $0x110] sm:$0xff]
    %v87 = vld [vmem:[%s1 + $0x118] sm:$0xff]
    %v88 = vld [vmem:[%s1 + $0x120] sm:$0xff]
    %v89 = vld [vmem:[%s1 + $0x128] sm:$0xff]
    %v90 = vld [vmem:[%s1 + $0x130] sm:$0xff]
    %v91 = vld [vmem:[%s1 + $0x138] sm:$0xff]
    %v92 = vld [vmem:[%s1 + $0x140] sm:$0xff]
    %v93 = vld [vmem:[%s1 + $0x148] sm:$0xff]
    %v94 = vld [vmem:[%s1 + $0x150] sm:$0xff]
    %v95 = vld [vmem:[%s1 + $0x158] sm:$0xff]
    %v96 = vld [vmem:[%s1 + $0x160] sm:$0xff]
    %v97 = vld [vmem:[%s1 + $0x168] sm:$0xff]
    %v98 = vld [vmem:[%s1 + $0x170] sm:$0xff]
    %v99 = vld [vmem:[%s1 + $0x178] sm:$0xff]
    %v100 = vld [vmem:[%s1 + $0x180] sm:$0xff]
    %v101 = vld [vmem:[%s1 + $0x188] sm:$0xff]
    %v102 = vld [vmem:[%s1 + $0x190] sm:$0xff]
    %v103 = vld [vmem:[%s1 + $0x198] sm:$0xff]
    %v104 = vld [vmem:[%s1 + $0x1a0] sm:$0xff]
    %v105 = vld [vmem:[%s1 + $0x1a8] sm:$0xff]
    %v106 = vld [vmem:[%s1 + $0x1b0] sm:$0xff]
    %v107 = vld [vmem:[%s1 + $0x1b8] sm:$0xff]
    %v108 = vld [vmem:[%s1 + $0x1c0] sm:$0xff]
    %v109 = vld [vmem:[%s1 + $0x1c8] sm:$0xff]
    %v110 = vld [vmem:[%s1 + $0x1d0] sm:$0xff]
    %v111 = vld [vmem:[%s1 + $0x1d8] sm:$0xff]
    %v112 = vld [vmem:[%s1 + $0x1e0] sm:$0xff]
    %v113 = vld [vmem:[%s1 + $0x1e8] sm:$0xff]
    %v114 = vld [vmem:[%s1 + $0x1f0] sm:$0xff]
    %v115 = vld [vmem:[%s1 + $0x1f8] sm:$0xff]
    %v116 = vld [vmem:[%s3] sm:$0xf]
    %v118 = vlaneseq
    %v119 = vshrl.u32 %v118, 7
    %v120 = vsub.s32 0, %v119
    %v121 = vrot.slane %v116, %v120
    %v122 = vlaneseq
    %v123 = vshrl.u32 %v122, 7
    %v124 = vsub.s32 1, %v123
    %v125 = vrot.slane %v116, %v124
    %v126 = vlaneseq
    %v127 = vshrl.u32 %v126, 7
    %v128 = vsub.s32 2, %v127
    %v129 = vrot.slane %v116, %v128
    %v130 = vlaneseq
    %v131 = vshrl.u32 %v130, 7
    %v132 = vsub.s32 3, %v131
    %v133 = vrot.slane %v116, %v132
    %138 = vmatprep.subr.mxu0 %v53
    %139 = vmatpush1.msra.mxu0 %v52
    %140 = vmatprep.subr.mxu0 %v57
    %141 = vmatpush1.msra.mxu0 %v56
    %142 = vmatprep.subr.mxu0 %v61
    %143 = vmatpush1.msra.mxu0 %v60
    %144 = vmatprep.subr.mxu0 %v65
    %145 = vmatpush1.msra.mxu0 %v64
    %146 = vmatprep.subr.mxu0 %v69
    %147 = vmatpush1.msra.mxu0 %v68
    %148 = vmatprep.subr.mxu0 %v73
    %149 = vmatpush1.msra.mxu0 %v72
    %150 = vmatprep.subr.mxu0 %v77
    %151 = vmatpush1.msra.mxu0 %v76
    %152 = vmatprep.subr.mxu0 %v81
    %153 = vmatpush1.msra.mxu0 %v80
    %154 = vmatprep.subr.mxu0 %v85
    %155 = vmatpush1.msra.mxu0 %v84
    %156 = vmatprep.subr.mxu0 %v89
    %157 = vmatpush1.msra.mxu0 %v88
    %158 = vmatprep.subr.mxu0 %v93
    %159 = vmatpush1.msra.mxu0 %v92
    %160 = vmatprep.subr.mxu0 %v97
    %161 = vmatpush1.msra.mxu0 %v96
    %162 = vmatprep.subr.mxu0 %v101
    %163 = vmatpush1.msra.mxu0 %v100
    %164 = vmatprep.subr.mxu0 %v105
    %165 = vmatpush1.msra.mxu0 %v104
    %166 = vmatprep.subr.mxu0 %v109
    %167 = vmatpush1.msra.mxu0 %v108
    %168 = vmatprep.subr.mxu0 %v113
    %169 = vmatpush1.msra.mxu0 %v112
    %170 = vmatprep.subr.mxu0 0.0
    %171 = vmatpush1.msra.mxu0 0.0
    %172 = vmatprep.subr.mxu0 0.0
    %173 = vmatpush1.msra.mxu0 0.0
    %174 = vmatprep.subr.mxu0 0.0
    %175 = vmatpush1.msra.mxu0 0.0
    %176 = vmatprep.subr.mxu0 0.0
    %177 = vmatpush1.msra.mxu0 0.0
    %178 = vmatprep.subr.mxu0 0.0
    %179 = vmatpush1.msra.mxu0 0.0
    %180 = vmatprep.subr.mxu0 0.0
    %181 = vmatpush1.msra.mxu0 0.0
    %182 = vmatprep.subr.mxu0 0.0
    %183 = vmatpush1.msra.mxu0 0.0
    %184 = vmatprep.subr.mxu0 0.0
    %185 = vmatpush1.msra.mxu0 0.0
    %186 = vmatprep.subr.mxu0 0.0
    %187 = vmatpush1.msra.mxu0 0.0
    %188 = vmatprep.subr.mxu0 0.0
    %189 = vmatpush1.msra.mxu0 0.0
    %190 = vmatprep.subr.mxu0 0.0
    %191 = vmatpush1.msra.mxu0 0.0
    %192 = vmatprep.subr.mxu0 0.0
    %193 = vmatpush1.msra.mxu0 0.0
    %194 = vmatprep.subr.mxu0 0.0
    %195 = vmatpush1.msra.mxu0 0.0
    %196 = vmatprep.subr.mxu0 0.0
    %197 = vmatpush1.msra.mxu0 0.0
    %198 = vmatprep.subr.mxu0 0.0
    %199 = vmatpush1.msra.mxu0 0.0
    %200 = vmatprep.subr.mxu0 0.0
    %201 = vmatpush1.msra.mxu0 0.0
    %202 = vmatprep.mubr.f32.mxu0 0.0
    %203 = vmatmul.mubr.f32.gmra.mrb[0].mxu0 %v44
    %v204 = vpop.f32.mrb[0].mxu0
    %v205 = vadd.f32 %v121, %v204
    %v206 = vpop.f32.mrb[0].mxu0
    %v207 = vadd.f32 %v125, %v206
    %208 = vmatprep.mubr.f32.mxu0 0.0
    %209 = vmatmul.mubr.f32.gmra.mrb[0].mxu0 %v45
    %v210 = vpop.f32.mrb[0].mxu0
    %v211 = vadd.f32 %v121, %v210
    %v212 = vpop.f32.mrb[0].mxu0
    %v213 = vadd.f32 %v125, %v212
    %214 = vmatprep.mubr.f32.mxu0 0.0
    %215 = vmatmul.mubr.f32.gmra.mrb[0].mxu0 %v46
    %v216 = vpop.f32.mrb[0].mxu0
    %v217 = vadd.f32 %v121, %v216
    %v218 = vpop.f32.mrb[0].mxu0
    %v219 = vadd.f32 %v125, %v218
    %220 = vmatprep.mubr.f32.mxu0 0.0
    %221 = vmatmul.mubr.f32.gmra.mrb[0].mxu0 %v47
    %v222 = vpop.f32.mrb[0].mxu0
    %v223 = vadd.f32 %v121, %v222
    %v224 = vpop.f32.mrb[0].mxu0
    %v225 = vadd.f32 %v125, %v224
    %226 = vmatprep.mubr.f32.mxu0 0.0
    %227 = vmatmul.mubr.f32.gmra.mrb[0].mxu0 %v48
    %v228 = vpop.f32.mrb[0].mxu0
    %v229 = vadd.f32 %v121, %v228
    %v230 = vpop.f32.mrb[0].mxu0
    %v231 = vadd.f32 %v125, %v230
    %232 = vmatprep.mubr.f32.mxu0 0.0
    %233 = vmatmul.mubr.f32.gmra.mrb[0].mxu0 %v49
    %v234 = vpop.f32.mrb[0].mxu0
    %v235 = vadd.f32 %v121, %v234
    %v236 = vpop.f32.mrb[0].mxu0
    %v237 = vadd.f32 %v125, %v236
    %238 = vmatprep.mubr.f32.mxu0 0.0
    %239 = vmatmul.mubr.f32.gmra.mrb[0].mxu0 %v50
    %v240 = vpop.f32.mrb[0].mxu0
    %v241 = vadd.f32 %v121, %v240
    %v242 = vpop.f32.mrb[0].mxu0
    %v243 = vadd.f32 %v125, %v242
    %244 = vmatprep.mubr.f32.mxu0 0.0
    %245 = vmatmul.mubr.f32.gmra.mrb[0].mxu0 %v51
    %v246 = vpop.f32.mrb[0].mxu0
    %v247 = vadd.f32 %v121, %v246
    %v248 = vpop.f32.mrb[0].mxu0
    %v249 = vadd.f32 %v125, %v248
    %250 = vdwg.mxu0
    %251 = vmatprep.subr.mxu0 %v55
    %252 = vmatpush1.msra.mxu0 %v54
    %253 = vmatprep.subr.mxu0 %v59
    %254 = vmatpush1.msra.mxu0 %v58
    %255 = vmatprep.subr.mxu0 %v63
    %256 = vmatpush1.msra.mxu0 %v62
    %257 = vmatprep.subr.mxu0 %v67
    %258 = vmatpush1.msra.mxu0 %v66
    %259 = vmatprep.subr.mxu0 %v71
    %260 = vmatpush1.msra.mxu0 %v70
    %261 = vmatprep.subr.mxu0 %v75
    %262 = vmatpush1.msra.mxu0 %v74
    %263 = vmatprep.subr.mxu0 %v79
    %264 = vmatpush1.msra.mxu0 %v78
    %265 = vmatprep.subr.mxu0 %v83
    %266 = vmatpush1.msra.mxu0 %v82
    %267 = vmatprep.subr.mxu0 %v87
    %268 = vmatpush1.msra.mxu0 %v86
    %269 = vmatprep.subr.mxu0 %v91
    %270 = vmatpush1.msra.mxu0 %v90
    %271 = vmatprep.subr.mxu0 %v95
    %272 = vmatpush1.msra.mxu0 %v94
    %273 = vmatprep.subr.mxu0 %v99
    %274 = vmatpush1.msra.mxu0 %v98
    %275 = vmatprep.subr.mxu0 %v103
    %276 = vmatpush1.msra.mxu0 %v102
    %277 = vmatprep.subr.mxu0 %v107
    %278 = vmatpush1.msra.mxu0 %v106
    %279 = vmatprep.subr.mxu0 %v111
    %280 = vmatpush1.msra.mxu0 %v110
    %281 = vmatprep.subr.mxu0 %v115
    %282 = vmatpush1.msra.mxu0 %v114
    %283 = vmatprep.subr.mxu0 0.0
    %284 = vmatpush1.msra.mxu0 0.0
    %285 = vmatprep.subr.mxu0 0.0
    %286 = vmatpush1.msra.mxu0 0.0
    %287 = vmatprep.subr.mxu0 0.0
    %288 = vmatpush1.msra.mxu0 0.0
    %289 = vmatprep.subr.mxu0 0.0
    %290 = vmatpush1.msra.mxu0 0.0
    %291 = vmatprep.subr.mxu0 0.0
    %292 = vmatpush1.msra.mxu0 0.0
    %293 = vmatprep.subr.mxu0 0.0
    %294 = vmatpush1.msra.mxu0 0.0
    %295 = vmatprep.subr.mxu0 0.0
    %296 = vmatpush1.msra.mxu0 0.0
    %297 = vmatprep.subr.mxu0 0.0
    %298 = vmatpush1.msra.mxu0 0.0
    %299 = vmatprep.subr.mxu0 0.0
    %300 = vmatpush1.msra.mxu0 0.0
    %301 = vmatprep.subr.mxu0 0.0
    %302 = vmatpush1.msra.mxu0 0.0
    %303 = vmatprep.subr.mxu0 0.0
    %304 = vmatpush1.msra.mxu0 0.0
    %305 = vmatprep.subr.mxu0 0.0
    %306 = vmatpush1.msra.mxu0 0.0
    %307 = vmatprep.subr.mxu0 0.0
    %308 = vmatpush1.msra.mxu0 0.0
    %309 = vmatprep.subr.mxu0 0.0
    %310 = vmatpush1.msra.mxu0 0.0
    %311 = vmatprep.subr.mxu0 0.0
    %312 = vmatpush1.msra.mxu0 0.0
    %313 = vmatprep.subr.mxu0 0.0
    %314 = vmatpush1.msra.mxu0 0.0
    %315 = vmatprep.mubr.f32.mxu0 0.0
    %316 = vmatmul.mubr.f32.gmra.mrb[0].mxu0 %v44
    %v317 = vpop.f32.mrb[0].mxu0
    %v318 = vadd.f32 %v129, %v317
    %v319 = vpop.f32.mrb[0].mxu0
    %v320 = vadd.f32 %v133, %v319
    %321 = vmatprep.mubr.f32.mxu0 0.0
    %322 = vmatmul.mubr.f32.gmra.mrb[0].mxu0 %v45
    %v323 = vpop.f32.mrb[0].mxu0
    %v324 = vadd.f32 %v129, %v323
    %v325 = vpop.f32.mrb[0].mxu0
    %v326 = vadd.f32 %v133, %v325
    %327 = vmatprep.mubr.f32.mxu0 0.0
    %328 = vmatmul.mubr.f32.gmra.mrb[0].mxu0 %v46
    %v329 = vpop.f32.mrb[0].mxu0
    %v330 = vadd.f32 %v129, %v329
    %v331 = vpop.f32.mrb[0].mxu0
    %v332 = vadd.f32 %v133, %v331
    %333 = vmatprep.mubr.f32.mxu0 0.0
    %334 = vmatmul.mubr.f32.gmra.mrb[0].mxu0 %v47
    %v335 = vpop.f32.mrb[0].mxu0
    %v336 = vadd.f32 %v129, %v335
    %v337 = vpop.f32.mrb[0].mxu0
    %v338 = vadd.f32 %v133, %v337
    %339 = vmatprep.mubr.f32.mxu0 0.0
    %340 = vmatmul.mubr.f32.gmra.mrb[0].mxu0 %v48
    %v341 = vpop.f32.mrb[0].mxu0
    %v342 = vadd.f32 %v129, %v341
    %v343 = vpop.f32.mrb[0].mxu0
    %v344 = vadd.f32 %v133, %v343
    %345 = vmatprep.mubr.f32.mxu0 0.0
    %346 = vmatmul.mubr.f32.gmra.mrb[0].mxu0 %v49
    %v347 = vpop.f32.mrb[0].mxu0
    %v348 = vadd.f32 %v129, %v347
    %v349 = vpop.f32.mrb[0].mxu0
    %v350 = vadd.f32 %v133, %v349
    %351 = vmatprep.mubr.f32.mxu0 0.0
    %352 = vmatmul.mubr.f32.gmra.mrb[0].mxu0 %v50
    %v353 = vpop.f32.mrb[0].mxu0
    %v354 = vadd.f32 %v129, %v353
    %v355 = vpop.f32.mrb[0].mxu0
    %v356 = vadd.f32 %v133, %v355
    %357 = vmatprep.mubr.f32.mxu0 0.0
    %358 = vmatmul.mubr.f32.gmra.mrb[0].mxu0 %v51
    %v359 = vpop.f32.mrb[0].mxu0
    %v360 = vadd.f32 %v129, %v359
    %v361 = vpop.f32.mrb[0].mxu0
    %v362 = vadd.f32 %v133, %v361
    %363 = vdwg.mxu0
    %364 = vst [vmem:[#allocation2] sm:$0xff] %v205
    %365 = vst [vmem:[#allocation2 + $0x8] sm:$0xff] %v207
    %366 = vst [vmem:[#allocation2 + $0x10] sm:$0xff] %v318
    %367 = vst [vmem:[#allocation2 + $0x18] sm:$0xff] %v320
    %368 = vst [vmem:[#allocation2 + $0x20] sm:$0xff] %v211
    %369 = vst [vmem:[#allocation2 + $0x28] sm:$0xff] %v213
    %370 = vst [vmem:[#allocation2 + $0x30] sm:$0xff] %v324
    %371 = vst [vmem:[#allocation2 + $0x38] sm:$0xff] %v326
    %372 = vst [vmem:[#allocation2 + $0x40] sm:$0xff] %v217
    %373 = vst [vmem:[#allocation2 + $0x48] sm:$0xff] %v219
    %374 = vst [vmem:[#allocation2 + $0x50] sm:$0xff] %v330
    %375 = vst [vmem:[#allocation2 + $0x58] sm:$0xff] %v332
    %376 = vst [vmem:[#allocation2 + $0x60] sm:$0xff] %v223
    %377 = vst [vmem:[#allocation2 + $0x68] sm:$0xff] %v225
    %378 = vst [vmem:[#allocation2 + $0x70] sm:$0xff] %v336
    %379 = vst [vmem:[#allocation2 + $0x78] sm:$0xff] %v338
    %380 = vst [vmem:[#allocation2 + $0x80] sm:$0xff] %v229
    %381 = vst [vmem:[#allocation2 + $0x88] sm:$0xff] %v231
    %382 = vst [vmem:[#allocation2 + $0x90] sm:$0xff] %v342
    %383 = vst [vmem:[#allocation2 + $0x98] sm:$0xff] %v344
    %384 = vst [vmem:[#allocation2 + $0xa0] sm:$0xff] %v235
    %385 = vst [vmem:[#allocation2 + $0xa8] sm:$0xff] %v237
    %386 = vst [vmem:[#allocation2 + $0xb0] sm:$0xff] %v348
    %387 = vst [vmem:[#allocation2 + $0xb8] sm:$0xff] %v350
    %388 = vst [vmem:[#allocation2 + $0xc0] sm:$0xff] %v241
    %389 = vst [vmem:[#allocation2 + $0xc8] sm:$0xff] %v243
    %390 = vst [vmem:[#allocation2 + $0xd0] sm:$0xff] %v354
    %391 = vst [vmem:[#allocation2 + $0xd8] sm:$0xff] %v356
    %392 = vst [vmem:[#allocation2 + $0xe0] sm:$0xff] %v247
    %393 = vst [vmem:[#allocation2 + $0xe8] sm:$0xff] %v249
    %394 = vst [vmem:[#allocation2 + $0xf0] sm:$0xff] %v360
    %395 = vst [vmem:[#allocation2 + $0xf8] sm:$0xff] %v362
    %v396 = vld [vmem:[#allocation3] sm:$0xff]
    %v397 = vld [vmem:[#allocation4] sm:$0xff]
    %s398 = smul.u32 0, 4
    %s399 = smul.addr %s398, 8
    %s400 = scalar_lea.vmem [#allocation2], %s399
    %v401 = vld [vmem:[%s400] sm:$0xff]
    %v402 = vld [vmem:[%s400 + $0x8] sm:$0xff]
    %v403 = vld [vmem:[%s400 + $0x10] sm:$0xff]
    %v404 = vld [vmem:[%s400 + $0x18] sm:$0xff]
    %v405 = vld [vmem:[#allocation5] sm:$0xff]
    %v406 = vld [vmem:[#allocation5 + $0x8] sm:$0xff]
    %v407 = vld [vmem:[#allocation5 + $0x10] sm:$0xff]
    %v408 = vld [vmem:[#allocation5 + $0x18] sm:$0xff]
    %v409 = vld [vmem:[#allocation5 + $0x20] sm:$0xff]
    %v410 = vld [vmem:[#allocation5 + $0x28] sm:$0xff]
    %v411 = vld [vmem:[#allocation5 + $0x30] sm:$0xff]
    %v412 = vld [vmem:[#allocation5 + $0x38] sm:$0xff]
    %v413 = vld [vmem:[#allocation5 + $0x40] sm:$0xff]
    %v414 = vld [vmem:[#allocation5 + $0x48] sm:$0xff]
    %v415 = vld [vmem:[#allocation5 + $0x50] sm:$0xff]
    %v416 = vld [vmem:[#allocation5 + $0x58] sm:$0xff]
    %v417 = vld [vmem:[#allocation5 + $0x60] sm:$0xff]
    %v418 = vld [vmem:[#allocation5 + $0x68] sm:$0xff]
    %v419 = vld [vmem:[#allocation5 + $0x70] sm:$0xff]
    %v420 = vld [vmem:[#allocation5 + $0x78] sm:$0xff]
    %v421 = vld [vmem:[#allocation5 + $0x80] sm:$0xff]
    %v422 = vld [vmem:[#allocation5 + $0x88] sm:$0xff]
    %v423 = vld [vmem:[#allocation5 + $0x90] sm:$0xff]
    %v424 = vld [vmem:[#allocation5 + $0x98] sm:$0xff]
    %v425 = vld [vmem:[#allocation5 + $0xa0] sm:$0xff]
    %v426 = vld [vmem:[#allocation5 + $0xa8] sm:$0xff]
    %v427 = vld [vmem:[#allocation5 + $0xb0] sm:$0xff]
    %v428 = vld [vmem:[#allocation5 + $0xb8] sm:$0xff]
    %v429 = vld [vmem:[#allocation5 + $0xc0] sm:$0xff]
    %v430 = vld [vmem:[#allocation5 + $0xc8] sm:$0xff]
    %v431 = vld [vmem:[#allocation5 + $0xd0] sm:$0xff]
    %v432 = vld [vmem:[#allocation5 + $0xd8] sm:$0xff]
    %v433 = vld [vmem:[#allocation5 + $0xe0] sm:$0xff]
    %v434 = vld [vmem:[#allocation5 + $0xe8] sm:$0xff]
    %v435 = vld [vmem:[#allocation5 + $0xf0] sm:$0xff]
    %v436 = vld [vmem:[#allocation5 + $0xf8] sm:$0xff]
    %v437 = vld [vmem:[#allocation5 + $0x100] sm:$0xff]
    %v438 = vld [vmem:[#allocation5 + $0x108] sm:$0xff]
    %v439 = vld [vmem:[#allocation5 + $0x110] sm:$0xff]
    %v440 = vld [vmem:[#allocation5 + $0x118] sm:$0xff]
    %v441 = vld [vmem:[#allocation5 + $0x120] sm:$0xff]
    %v442 = vld [vmem:[#allocation5 + $0x128] sm:$0xff]
    %v443 = vld [vmem:[#allocation5 + $0x130] sm:$0xff]
    %v444 = vld [vmem:[#allocation5 + $0x138] sm:$0xff]
    %v445 = vld [vmem:[#allocation5 + $0x140] sm:$0xff]
    %v446 = vld [vmem:[#allocation5 + $0x148] sm:$0xff]
    %v447 = vld [vmem:[#allocation5 + $0x150] sm:$0xff]
    %v448 = vld [vmem:[#allocation5 + $0x158] sm:$0xff]
    %v449 = vld [vmem:[#allocation5 + $0x160] sm:$0xff]
    %v450 = vld [vmem:[#allocation5 + $0x168] sm:$0xff]
    %v451 = vld [vmem:[#allocation5 + $0x170] sm:$0xff]
    %v452 = vld [vmem:[#allocation5 + $0x178] sm:$0xff]
    %v453 = vld [vmem:[#allocation5 + $0x180] sm:$0xff]
    %v454 = vld [vmem:[#allocation5 + $0x188] sm:$0xff]
    %v455 = vld [vmem:[#allocation5 + $0x190] sm:$0xff]
    %v456 = vld [vmem:[#allocation5 + $0x198] sm:$0xff]
    %v457 = vld [vmem:[#allocation5 + $0x1a0] sm:$0xff]
    %v458 = vld [vmem:[#allocation5 + $0x1a8] sm:$0xff]
    %v459 = vld [vmem:[#allocation5 + $0x1b0] sm:$0xff]
    %v460 = vld [vmem:[#allocation5 + $0x1b8] sm:$0xff]
    %v461 = vld [vmem:[#allocation5 + $0x1c0] sm:$0xff]
    %v462 = vld [vmem:[#allocation5 + $0x1c8] sm:$0xff]
    %v463 = vld [vmem:[#allocation5 + $0x1d0] sm:$0xff]
    %v464 = vld [vmem:[#allocation5 + $0x1d8] sm:$0xff]
    %v465 = vld [vmem:[#allocation5 + $0x1e0] sm:$0xff]
    %v466 = vld [vmem:[#allocation5 + $0x1e8] sm:$0xff]
    %v467 = vld [vmem:[#allocation5 + $0x1f0] sm:$0xff]
    %v468 = vld [vmem:[#allocation5 + $0x1f8] sm:$0xff]
    %469 = vmatprep.subr.mxu0 %v406
    %470 = vmatpush1.msra.mxu0 %v405
    %471 = vmatprep.subr.mxu0 %v410
    %472 = vmatpush1.msra.mxu0 %v409
    %473 = vmatprep.subr.mxu0 %v414
    %474 = vmatpush1.msra.mxu0 %v413
    %475 = vmatprep.subr.mxu0 %v418
    %476 = vmatpush1.msra.mxu0 %v417
    %477 = vmatprep.subr.mxu0 %v422
    %478 = vmatpush1.msra.mxu0 %v421
    %479 = vmatprep.subr.mxu0 %v426
    %480 = vmatpush1.msra.mxu0 %v425
    %481 = vmatprep.subr.mxu0 %v430
    %482 = vmatpush1.msra.mxu0 %v429
    %483 = vmatprep.subr.mxu0 %v434
    %484 = vmatpush1.msra.mxu0 %v433
    %485 = vmatprep.subr.mxu0 %v438
    %486 = vmatpush1.msra.mxu0 %v437
    %487 = vmatprep.subr.mxu0 %v442
    %488 = vmatpush1.msra.mxu0 %v441
    %489 = vmatprep.subr.mxu0 %v446
    %490 = vmatpush1.msra.mxu0 %v445
    %491 = vmatprep.subr.mxu0 %v450
    %492 = vmatpush1.msra.mxu0 %v449
    %493 = vmatprep.subr.mxu0 %v454
    %494 = vmatpush1.msra.mxu0 %v453
    %495 = vmatprep.subr.mxu0 %v458
    %496 = vmatpush1.msra.mxu0 %v457
    %497 = vmatprep.subr.mxu0 %v462
    %498 = vmatpush1.msra.mxu0 %v461
    %499 = vmatprep.subr.mxu0 %v466
    %500 = vmatpush1.msra.mxu0 %v465
    %501 = vmatprep.subr.mxu0 0.0
    %502 = vmatpush1.msra.mxu0 0.0
    %503 = vmatprep.subr.mxu0 0.0
    %504 = vmatpush1.msra.mxu0 0.0
    %505 = vmatprep.subr.mxu0 0.0
    %506 = vmatpush1.msra.mxu0 0.0
    %507 = vmatprep.subr.mxu0 0.0
    %508 = vmatpush1.msra.mxu0 0.0
    %509 = vmatprep.subr.mxu0 0.0
    %510 = vmatpush1.msra.mxu0 0.0
    %511 = vmatprep.subr.mxu0 0.0
    %512 = vmatpush1.msra.mxu0 0.0
    %513 = vmatprep.subr.mxu0 0.0
    %514 = vmatpush1.msra.mxu0 0.0
    %515 = vmatprep.subr.mxu0 0.0
    %516 = vmatpush1.msra.mxu0 0.0
    %517 = vmatprep.subr.mxu0 0.0
    %518 = vmatpush1.msra.mxu0 0.0
    %519 = vmatprep.subr.mxu0 0.0
    %520 = vmatpush1.msra.mxu0 0.0
    %521 = vmatprep.subr.mxu0 0.0
    %522 = vmatpush1.msra.mxu0 0.0
    %523 = vmatprep.subr.mxu0 0.0
    %524 = vmatpush1.msra.mxu0 0.0
    %525 = vmatprep.subr.mxu0 0.0
    %526 = vmatpush1.msra.mxu0 0.0
    %527 = vmatprep.subr.mxu0 0.0
    %528 = vmatpush1.msra.mxu0 0.0
    %529 = vmatprep.subr.mxu0 0.0
    %530 = vmatpush1.msra.mxu0 0.0
    %531 = vmatprep.subr.mxu0 0.0
    %532 = vmatpush1.msra.mxu0 0.0
    %533 = vmatprep.mubr.f32.mxu0 0.0
    %534 = vmatmul.mubr.f32.gmra.mrb[0].mxu0 %v396
    %v535 = vpop.f32.mrb[0].mxu0
    %v536 = vadd.f32 0.0, %v535
    %v537 = vpop.f32.mrb[0].mxu0
    %v538 = vadd.f32 0.0, %v537
    %539 = vdwg.mxu0
    %540 = vmatprep.subr.mxu0 %v408
    %541 = vmatpush1.msra.mxu0 %v407
    %542 = vmatprep.subr.mxu0 %v412
    %543 = vmatpush1.msra.mxu0 %v411
    %544 = vmatprep.subr.mxu0 %v416
    %545 = vmatpush1.msra.mxu0 %v415
    %546 = vmatprep.subr.mxu0 %v420
    %547 = vmatpush1.msra.mxu0 %v419
    %548 = vmatprep.subr.mxu0 %v424
    %549 = vmatpush1.msra.mxu0 %v423
    %550 = vmatprep.subr.mxu0 %v428
    %551 = vmatpush1.msra.mxu0 %v427
    %552 = vmatprep.subr.mxu0 %v432
    %553 = vmatpush1.msra.mxu0 %v431
    %554 = vmatprep.subr.mxu0 %v436
    %555 = vmatpush1.msra.mxu0 %v435
    %556 = vmatprep.subr.mxu0 %v440
    %557 = vmatpush1.msra.mxu0 %v439
    %558 = vmatprep.subr.mxu0 %v444
    %559 = vmatpush1.msra.mxu0 %v443
    %560 = vmatprep.subr.mxu0 %v448
    %561 = vmatpush1.msra.mxu0 %v447
    %562 = vmatprep.subr.mxu0 %v452
    %563 = vmatpush1.msra.mxu0 %v451
    %564 = vmatprep.subr.mxu0 %v456
    %565 = vmatpush1.msra.mxu0 %v455
    %566 = vmatprep.subr.mxu0 %v460
    %567 = vmatpush1.msra.mxu0 %v459
    %568 = vmatprep.subr.mxu0 %v464
    %569 = vmatpush1.msra.mxu0 %v463
    %570 = vmatprep.subr.mxu0 %v468
    %571 = vmatpush1.msra.mxu0 %v467
    %572 = vmatprep.subr.mxu0 0.0
    %573 = vmatpush1.msra.mxu0 0.0
    %574 = vmatprep.subr.mxu0 0.0
    %575 = vmatpush1.msra.mxu0 0.0
    %576 = vmatprep.subr.mxu0 0.0
    %577 = vmatpush1.msra.mxu0 0.0
    %578 = vmatprep.subr.mxu0 0.0
    %579 = vmatpush1.msra.mxu0 0.0
    %580 = vmatprep.subr.mxu0 0.0
    %581 = vmatpush1.msra.mxu0 0.0
    %582 = vmatprep.subr.mxu0 0.0
    %583 = vmatpush1.msra.mxu0 0.0
    %584 = vmatprep.subr.mxu0 0.0
    %585 = vmatpush1.msra.mxu0 0.0
    %586 = vmatprep.subr.mxu0 0.0
    %587 = vmatpush1.msra.mxu0 0.0
    %588 = vmatprep.subr.mxu0 0.0
    %589 = vmatpush1.msra.mxu0 0.0
    %590 = vmatprep.subr.mxu0 0.0
    %591 = vmatpush1.msra.mxu0 0.0
    %592 = vmatprep.subr.mxu0 0.0
    %593 = vmatpush1.msra.mxu0 0.0
    %594 = vmatprep.subr.mxu0 0.0
    %595 = vmatpush1.msra.mxu0 0.0
    %596 = vmatprep.subr.mxu0 0.0
    %597 = vmatpush1.msra.mxu0 0.0
    %598 = vmatprep.subr.mxu0 0.0
    %599 = vmatpush1.msra.mxu0 0.0
    %600 = vmatprep.subr.mxu0 0.0
    %601 = vmatpush1.msra.mxu0 0.0
    %602 = vmatprep.subr.mxu0 0.0
    %603 = vmatpush1.msra.mxu0 0.0
    %604 = vmatprep.mubr.f32.mxu0 0.0
    %605 = vmatmul.mubr.f32.gmra.mrb[0].mxu0 %v396
    %v606 = vpop.f32.mrb[0].mxu0
    %v607 = vadd.f32 0.0, %v606
    %v608 = vpop.f32.mrb[0].mxu0
    %v609 = vadd.f32 0.0, %v608
    %610 = vdwg.mxu0
    %v611 = vadd.f32 %v401, %v536
    %v612 = vadd.f32 %v402, %v538
    %v613 = vadd.f32 %v403, %v607
    %v614 = vadd.f32 %v404, %v609
    %v615 = vxor.u32 %v611, 2147483648
    %v616 = vxor.u32 %v612, 2147483648
    %v617 = vxor.u32 %v613, 2147483648
    %v618 = vmul.f32 %v615, 1.442695
    %v619 = vpow.pop %v618
    %v620 = vmul.f32 %v616, 1.442695
    %v621 = vpow.pop %v620
    %v622 = vmul.f32 %v617, 1.442695
    %v623 = vpow.pop %v622
    %v624 = vadd.f32 %v619, 1.0
    %v625 = vadd.f32 %v621, 1.0
    %v626 = vadd.f32 %v623, 1.0
    %v627 = vrcp.pop %v624
    %v628 = vmul.f32 1.0, %v627
    %v629 = vrcp.pop %v625
    %v630 = vmul.f32 1.0, %v629
    %v631 = vrcp.pop %v626
    %v632 = vmul.f32 1.0, %v631
    %v633 = vtanh.pop %v614
    %v634 = vmul.f32 %v630, %v397
    %v635 = vmul.f32 %v628, %v633
    %v636 = vadd.f32 %v634, %v635
    %v637 = vtanh.pop %v636
    %v638 = vmul.f32 %v632, %v637
    %639 = vst [vmem:[#allocation4] sm:$0xff] %v636
    %640 = vst [vmem:[#allocation3] sm:$0xff] %v638
    %v641 = vld [vmem:[#allocation3] sm:$0xff]
    %v642 = vld [vmem:[#allocation4] sm:$0xff]
    %s643 = smul.u32 1, 4
    %s644 = smul.addr %s643, 8
    %s645 = scalar_lea.vmem [#allocation2], %s644
    %v646 = vld [vmem:[%s645] sm:$0xff]
    %v647 = vld [vmem:[%s645 + $0x8] sm:$0xff]
    %v648 = vld [vmem:[%s645 + $0x10] sm:$0xff]
    %v649 = vld [vmem:[%s645 + $0x18] sm:$0xff]
    %v650 = vld [vmem:[#allocation5] sm:$0xff]
    %v651 = vld [vmem:[#allocation5 + $0x8] sm:$0xff]
    %v652 = vld [vmem:[#allocation5 + $0x10] sm:$0xff]
    %v653 = vld [vmem:[#allocation5 + $0x18] sm:$0xff]
    %v654 = vld [vmem:[#allocation5 + $0x20] sm:$0xff]
    %v655 = vld [vmem:[#allocation5 + $0x28] sm:$0xff]
    %v656 = vld [vmem:[#allocation5 + $0x30] sm:$0xff]
    %v657 = vld [vmem:[#allocation5 + $0x38] sm:$0xff]
    %v658 = vld [vmem:[#allocation5 + $0x40] sm:$0xff]
    %v659 = vld [vmem:[#allocation5 + $0x48] sm:$0xff]
    %v660 = vld [vmem:[#allocation5 + $0x50] sm:$0xff]
    %v661 = vld [vmem:[#allocation5 + $0x58] sm:$0xff]
    %v662 = vld [vmem:[#allocation5 + $0x60] sm:$0xff]
    %v663 = vld [vmem:[#allocation5 + $0x68] sm:$0xff]
    %v664 = vld [vmem:[#allocation5 + $0x70] sm:$0xff]
    %v665 = vld [vmem:[#allocation5 + $0x78] sm:$0xff]
    %v666 = vld [vmem:[#allocation5 + $0x80] sm:$0xff]
    %v667 = vld [vmem:[#allocation5 + $0x88] sm:$0xff]
    %v668 = vld [vmem:[#allocation5 + $0x90] sm:$0xff]
    %v669 = vld [vmem:[#allocation5 + $0x98] sm:$0xff]
    %v670 = vld [vmem:[#allocation5 + $0xa0] sm:$0xff]
    %v671 = vld [vmem:[#allocation5 + $0xa8] sm:$0xff]
    %v672 = vld [vmem:[#allocation5 + $0xb0] sm:$0xff]
    %v673 = vld [vmem:[#allocation5 + $0xb8] sm:$0xff]
    %v674 = vld [vmem:[#allocation5 + $0xc0] sm:$0xff]
    %v675 = vld [vmem:[#allocation5 + $0xc8] sm:$0xff]
    %v676 = vld [vmem:[#allocation5 + $0xd0] sm:$0xff]
    %v677 = vld [vmem:[#allocation5 + $0xd8] sm:$0xff]
    %v678 = vld [vmem:[#allocation5 + $0xe0] sm:$0xff]
    %v679 = vld [vmem:[#allocation5 + $0xe8] sm:$0xff]
    %v680 = vld [vmem:[#allocation5 + $0xf0] sm:$0xff]
    %v681 = vld [vmem:[#allocation5 + $0xf8] sm:$0xff]
    %v682 = vld [vmem:[#allocation5 + $0x100] sm:$0xff]
    %v683 = vld [vmem:[#allocation5 + $0x108] sm:$0xff]
    %v684 = vld [vmem:[#allocation5 + $0x110] sm:$0xff]
    %v685 = vld [vmem:[#allocation5 + $0x118] sm:$0xff]
    %v686 = vld [vmem:[#allocation5 + $0x120] sm:$0xff]
    %v687 = vld [vmem:[#allocation5 + $0x128] sm:$0xff]
    %v688 = vld [vmem:[#allocation5 + $0x130] sm:$0xff]
    %v689 = vld [vmem:[#allocation5 + $0x138] sm:$0xff]
    %v690 = vld [vmem:[#allocation5 + $0x140] sm:$0xff]
    %v691 = vld [vmem:[#allocation5 + $0x148] sm:$0xff]
    %v692 = vld [vmem:[#allocation5 + $0x150] sm:$0xff]
    %v693 = vld [vmem:[#allocation5 + $0x158] sm:$0xff]
    %v694 = vld [vmem:[#allocation5 + $0x160] sm:$0xff]
    %v695 = vld [vmem:[#allocation5 + $0x168] sm:$0xff]
    %v696 = vld [vmem:[#allocation5 + $0x170] sm:$0xff]
    %v697 = vld [vmem:[#allocation5 + $0x178] sm:$0xff]
    %v698 = vld [vmem:[#allocation5 + $0x180] sm:$0xff]
    %v699 = vld [vmem:[#allocation5 + $0x188] sm:$0xff]
    %v700 = vld [vmem:[#allocation5 + $0x190] sm:$0xff]
    %v701 = vld [vmem:[#allocation5 + $0x198] sm:$0xff]
    %v702 = vld [vmem:[#allocation5 + $0x1a0] sm:$0xff]
    %v703 = vld [vmem:[#allocation5 + $0x1a8] sm:$0xff]
    %v704 = vld [vmem:[#allocation5 + $0x1b0] sm:$0xff]
    %v705 = vld [vmem:[#allocation5 + $0x1b8] sm:$0xff]
    %v706 = vld [vmem:[#allocation5 + $0x1c0] sm:$0xff]
    %v707 = vld [vmem:[#allocation5 + $0x1c8] sm:$0xff]
    %v708 = vld [vmem:[#allocation5 + $0x1d0] sm:$0xff]
    %v709 = vld [vmem:[#allocation5 + $0x1d8] sm:$0xff]
    %v710 = vld [vmem:[#allocation5 + $0x1e0] sm:$0xff]
    %v711 = vld [vmem:[#allocation5 + $0x1e8] sm:$0xff]
    %v712 = vld [vmem:[#allocation5 + $0x1f0] sm:$0xff]
    %v713 = vld [vmem:[#allocation5 + $0x1f8] sm:$0xff]
    %714 = vmatprep.subr.mxu0 %v651
    %715 = vmatpush1.msra.mxu0 %v650
    %716 = vmatprep.subr.mxu0 %v655
    %717 = vmatpush1.msra.mxu0 %v654
    %718 = vmatprep.subr.mxu0 %v659
    %719 = vmatpush1.msra.mxu0 %v658
    %720 = vmatprep.subr.mxu0 %v663
    %721 = vmatpush1.msra.mxu0 %v662
    %722 = vmatprep.subr.mxu0 %v667
    %723 = vmatpush1.msra.mxu0 %v666
    %724 = vmatprep.subr.mxu0 %v671
    %725 = vmatpush1.msra.mxu0 %v670
    %726 = vmatprep.subr.mxu0 %v675
    %727 = vmatpush1.msra.mxu0 %v674
    %728 = vmatprep.subr.mxu0 %v679
    %729 = vmatpush1.msra.mxu0 %v678
    %730 = vmatprep.subr.mxu0 %v683
    %731 = vmatpush1.msra.mxu0 %v682
    %732 = vmatprep.subr.mxu0 %v687
    %733 = vmatpush1.msra.mxu0 %v686
    %734 = vmatprep.subr.mxu0 %v691
    %735 = vmatpush1.msra.mxu0 %v690
    %736 = vmatprep.subr.mxu0 %v695
    %737 = vmatpush1.msra.mxu0 %v694
    %738 = vmatprep.subr.mxu0 %v699
    %739 = vmatpush1.msra.mxu0 %v698
    %740 = vmatprep.subr.mxu0 %v703
    %741 = vmatpush1.msra.mxu0 %v702
    %742 = vmatprep.subr.mxu0 %v707
    %743 = vmatpush1.msra.mxu0 %v706
    %744 = vmatprep.subr.mxu0 %v711
    %745 = vmatpush1.msra.mxu0 %v710
    %746 = vmatprep.subr.mxu0 0.0
    %747 = vmatpush1.msra.mxu0 0.0
    %748 = vmatprep.subr.mxu0 0.0
    %749 = vmatpush1.msra.mxu0 0.0
    %750 = vmatprep.subr.mxu0 0.0
    %751 = vmatpush1.msra.mxu0 0.0
    %752 = vmatprep.subr.mxu0 0.0
    %753 = vmatpush1.msra.mxu0 0.0
    %754 = vmatprep.subr.mxu0 0.0
    %755 = vmatpush1.msra.mxu0 0.0
    %756 = vmatprep.subr.mxu0 0.0
    %757 = vmatpush1.msra.mxu0 0.0
    %758 = vmatprep.subr.mxu0 0.0
    %759 = vmatpush1.msra.mxu0 0.0
    %760 = vmatprep.subr.mxu0 0.0
    %761 = vmatpush1.msra.mxu0 0.0
    %762 = vmatprep.subr.mxu0 0.0
    %763 = vmatpush1.msra.mxu0 0.0
    %764 = vmatprep.subr.mxu0 0.0
    %765 = vmatpush1.msra.mxu0 0.0
    %766 = vmatprep.subr.mxu0 0.0
    %767 = vmatpush1.msra.mxu0 0.0
    %768 = vmatprep.subr.mxu0 0.0
    %769 = vmatpush1.msra.mxu0 0.0
    %770 = vmatprep.subr.mxu0 0.0
    %771 = vmatpush1.msra.mxu0 0.0
    %772 = vmatprep.subr.mxu0 0.0
    %773 = vmatpush1.msra.mxu0 0.0
    %774 = vmatprep.subr.mxu0 0.0
    %775 = vmatpush1.msra.mxu0 0.0
    %776 = vmatprep.subr.mxu0 0.0
    %777 = vmatpush1.msra.mxu0 0.0
    %778 = vmatprep.mubr.f32.mxu0 0.0
    %779 = vmatmul.mubr.f32.gmra.mrb[0].mxu0 %v641
    %v780 = vpop.f32.mrb[0].mxu0
    %v781 = vadd.f32 0.0, %v780
    %v782 = vpop.f32.mrb[0].mxu0
    %v783 = vadd.f32 0.0, %v782
    %784 = vdwg.mxu0
    %785 = vmatprep.subr.mxu0 %v653
    %786 = vmatpush1.msra.mxu0 %v652
    %787 = vmatprep.subr.mxu0 %v657
    %788 = vmatpush1.msra.mxu0 %v656
    %789 = vmatprep.subr.mxu0 %v661
    %790 = vmatpush1.msra.mxu0 %v660
    %791 = vmatprep.subr.mxu0 %v665
    %792 = vmatpush1.msra.mxu0 %v664
    %793 = vmatprep.subr.mxu0 %v669
    %794 = vmatpush1.msra.mxu0 %v668
    %795 = vmatprep.subr.mxu0 %v673
    %796 = vmatpush1.msra.mxu0 %v672
    %797 = vmatprep.subr.mxu0 %v677
    %798 = vmatpush1.msra.mxu0 %v676
    %799 = vmatprep.subr.mxu0 %v681
    %800 = vmatpush1.msra.mxu0 %v680
    %801 = vmatprep.subr.mxu0 %v685
    %802 = vmatpush1.msra.mxu0 %v684
    %803 = vmatprep.subr.mxu0 %v689
    %804 = vmatpush1.msra.mxu0 %v688
    %805 = vmatprep.subr.mxu0 %v693
    %806 = vmatpush1.msra.mxu0 %v692
    %807 = vmatprep.subr.mxu0 %v697
    %808 = vmatpush1.msra.mxu0 %v696
    %809 = vmatprep.subr.mxu0 %v701
    %810 = vmatpush1.msra.mxu0 %v700
    %811 = vmatprep.subr.mxu0 %v705
    %812 = vmatpush1.msra.mxu0 %v704
    %813 = vmatprep.subr.mxu0 %v709
    %814 = vmatpush1.msra.mxu0 %v708
    %815 = vmatprep.subr.mxu0 %v713
    %816 = vmatpush1.msra.mxu0 %v712
    %817 = vmatprep.subr.mxu0 0.0
    %818 = vmatpush1.msra.mxu0 0.0
    %819 = vmatprep.subr.mxu0 0.0
    %820 = vmatpush1.msra.mxu0 0.0
    %821 = vmatprep.subr.mxu0 0.0
    %822 = vmatpush1.msra.mxu0 0.0
    %823 = vmatprep.subr.mxu0 0.0
    %824 = vmatpush1.msra.mxu0 0.0
    %825 = vmatprep.subr.mxu0 0.0
    %826 = vmatpush1.msra.mxu0 0.0
    %827 = vmatprep.subr.mxu0 0.0
    %828 = vmatpush1.msra.mxu0 0.0
    %829 = vmatprep.subr.mxu0 0.0
    %830 = vmatpush1.msra.mxu0 0.0
    %831 = vmatprep.subr.mxu0 0.0
    %832 = vmatpush1.msra.mxu0 0.0
    %833 = vmatprep.subr.mxu0 0.0
    %834 = vmatpush1.msra.mxu0 0.0
    %835 = vmatprep.subr.mxu0 0.0
    %836 = vmatpush1.msra.mxu0 0.0
    %837 = vmatprep.subr.mxu0 0.0
    %838 = vmatpush1.msra.mxu0 0.0
    %839 = vmatprep.subr.mxu0 0.0
    %840 = vmatpush1.msra.mxu0 0.0
    %841 = vmatprep.subr.mxu0 0.0
    %842 = vmatpush1.msra.mxu0 0.0
    %843 = vmatprep.subr.mxu0 0.0
    %844 = vmatpush1.msra.mxu0 0.0
    %845 = vmatprep.subr.mxu0 0.0
    %846 = vmatpush1.msra.mxu0 0.0
    %847 = vmatprep.subr.mxu0 0.0
    %848 = vmatpush1.msra.mxu0 0.0
    %849 = vmatprep.mubr.f32.mxu0 0.0
    %850 = vmatmul.mubr.f32.gmra.mrb[0].mxu0 %v641
    %v851 = vpop.f32.mrb[0].mxu0
    %v852 = vadd.f32 0.0, %v851
    %v853 = vpop.f32.mrb[0].mxu0
    %v854 = vadd.f32 0.0, %v853
    %855 = vdwg.mxu0
    %v856 = vadd.f32 %v646, %v781
    %v857 = vadd.f32 %v647, %v783
    %v858 = vadd.f32 %v648, %v852
    %v859 = vadd.f32 %v649, %v854
    %v860 = vxor.u32 %v856, 2147483648
    %v861 = vxor.u32 %v857, 2147483648
    %v862 = vxor.u32 %v858, 2147483648
    %v863 = vmul.f32 %v860, 1.442695
    %v864 = vpow.pop %v863
    %v865 = vmul.f32 %v861, 1.442695
    %v866 = vpow.pop %v865
    %v867 = vmul.f32 %v862, 1.442695
    %v868 = vpow.pop %v867
    %v869 = vadd.f32 %v864, 1.0
    %v870 = vadd.f32 %v866, 1.0
    %v871 = vadd.f32 %v868, 1.0
    %v872 = vrcp.pop %v869
    %v873 = vmul.f32 1.0, %v872
    %v874 = vrcp.pop %v870
    %v875 = vmul.f32 1.0, %v874
    %v876 = vrcp.pop %v871
    %v877 = vmul.f32 1.0, %v876
    %v878 = vtanh.pop %v859
    %v879 = vmul.f32 %v875, %v642
    %v880 = vmul.f32 %v873, %v878
    %v881 = vadd.f32 %v879, %v880
    %v882 = vtanh.pop %v881
    %v883 = vmul.f32 %v877, %v882
    %884 = vst [vmem:[#allocation4] sm:$0xff] %v881
    %885 = vst [vmem:[#allocation3] sm:$0xff] %v883
    %v886 = vld [vmem:[#allocation3] sm:$0xff]
    %v887 = vld [vmem:[#allocation4] sm:$0xff]
    %s888 = smul.u32 2, 4
    %s889 = smul.addr %s888, 8
    %s890 = scalar_lea.vmem [#allocation2], %s889
    %v891 = vld [vmem:[%s890] sm:$0xff]
    %v892 = vld [vmem:[%s890 + $0x8] sm:$0xff]
    %v893 = vld [vmem:[%s890 + $0x10] sm:$0xff]
    %v894 = vld [vmem:[%s890 + $0x18] sm:$0xff]
    %v895 = vld [vmem:[#allocation5] sm:$0xff]
    %v896 = vld [vmem:[#allocation5 + $0x8] sm:$0xff]
    %v897 = vld [vmem:[#allocation5 + $0x10] sm:$0xff]
    %v898 = vld [vmem:[#allocation5 + $0x18] sm:$0xff]
    %v899 = vld [vmem:[#allocation5 + $0x20] sm:$0xff]
    %v900 = vld [vmem:[#allocation5 + $0x28] sm:$0xff]
    %v901 = vld [vmem:[#allocation5 + $0x30] sm:$0xff]
    %v902 = vld [vmem:[#allocation5 + $0x38] sm:$0xff]
    %v903 = vld [vmem:[#allocation5 + $0x40] sm:$0xff]
    %v904 = vld [vmem:[#allocation5 + $0x48] sm:$0xff]
    %v905 = vld [vmem:[#allocation5 + $0x50] sm:$0xff]
    %v906 = vld [vmem:[#allocation5 + $0x58] sm:$0xff]
    %v907 = vld [vmem:[#allocation5 + $0x60] sm:$0xff]
    %v908 = vld [vmem:[#allocation5 + $0x68] sm:$0xff]
    %v909 = vld [vmem:[#allocation5 + $0x70] sm:$0xff]
    %v910 = vld [vmem:[#allocation5 + $0x78] sm:$0xff]
    %v911 = vld [vmem:[#allocation5 + $0x80] sm:$0xff]
    %v912 = vld [vmem:[#allocation5 + $0x88] sm:$0xff]
    %v913 = vld [vmem:[#allocation5 + $0x90] sm:$0xff]
    %v914 = vld [vmem:[#allocation5 + $0x98] sm:$0xff]
    %v915 = vld [vmem:[#allocation5 + $0xa0] sm:$0xff]
    %v916 = vld [vmem:[#allocation5 + $0xa8] sm:$0xff]
    %v917 = vld [vmem:[#allocation5 + $0xb0] sm:$0xff]
    %v918 = vld [vmem:[#allocation5 + $0xb8] sm:$0xff]
    %v919 = vld [vmem:[#allocation5 + $0xc0] sm:$0xff]
    %v920 = vld [vmem:[#allocation5 + $0xc8] sm:$0xff]
    %v921 = vld [vmem:[#allocation5 + $0xd0] sm:$0xff]
    %v922 = vld [vmem:[#allocation5 + $0xd8] sm:$0xff]
    %v923 = vld [vmem:[#allocation5 + $0xe0] sm:$0xff]
    %v924 = vld [vmem:[#allocation5 + $0xe8] sm:$0xff]
    %v925 = vld [vmem:[#allocation5 + $0xf0] sm:$0xff]
    %v926 = vld [vmem:[#allocation5 + $0xf8] sm:$0xff]
    %v927 = vld [vmem:[#allocation5 + $0x100] sm:$0xff]
    %v928 = vld [vmem:[#allocation5 + $0x108] sm:$0xff]
    %v929 = vld [vmem:[#allocation5 + $0x110] sm:$0xff]
    %v930 = vld [vmem:[#allocation5 + $0x118] sm:$0xff]
    %v931 = vld [vmem:[#allocation5 + $0x120] sm:$0xff]
    %v932 = vld [vmem:[#allocation5 + $0x128] sm:$0xff]
    %v933 = vld [vmem:[#allocation5 + $0x130] sm:$0xff]
    %v934 = vld [vmem:[#allocation5 + $0x138] sm:$0xff]
    %v935 = vld [vmem:[#allocation5 + $0x140] sm:$0xff]
    %v936 = vld [vmem:[#allocation5 + $0x148] sm:$0xff]
    %v937 = vld [vmem:[#allocation5 + $0x150] sm:$0xff]
    %v938 = vld [vmem:[#allocation5 + $0x158] sm:$0xff]
    %v939 = vld [vmem:[#allocation5 + $0x160] sm:$0xff]
    %v940 = vld [vmem:[#allocation5 + $0x168] sm:$0xff]
    %v941 = vld [vmem:[#allocation5 + $0x170] sm:$0xff]
    %v942 = vld [vmem:[#allocation5 + $0x178] sm:$0xff]
    %v943 = vld [vmem:[#allocation5 + $0x180] sm:$0xff]
    %v944 = vld [vmem:[#allocation5 + $0x188] sm:$0xff]
    %v945 = vld [vmem:[#allocation5 + $0x190] sm:$0xff]
    %v946 = vld [vmem:[#allocation5 + $0x198] sm:$0xff]
    %v947 = vld [vmem:[#allocation5 + $0x1a0] sm:$0xff]
    %v948 = vld [vmem:[#allocation5 + $0x1a8] sm:$0xff]
    %v949 = vld [vmem:[#allocation5 + $0x1b0] sm:$0xff]
    %v950 = vld [vmem:[#allocation5 + $0x1b8] sm:$0xff]
    %v951 = vld [vmem:[#allocation5 + $0x1c0] sm:$0xff]
    %v952 = vld [vmem:[#allocation5 + $0x1c8] sm:$0xff]
    %v953 = vld [vmem:[#allocation5 + $0x1d0] sm:$0xff]
    %v954 = vld [vmem:[#allocation5 + $0x1d8] sm:$0xff]
    %v955 = vld [vmem:[#allocation5 + $0x1e0] sm:$0xff]
    %v956 = vld [vmem:[#allocation5 + $0x1e8] sm:$0xff]
    %v957 = vld [vmem:[#allocation5 + $0x1f0] sm:$0xff]
    %v958 = vld [vmem:[#allocation5 + $0x1f8] sm:$0xff]
    %959 = vmatprep.subr.mxu0 %v896
    %960 = vmatpush1.msra.mxu0 %v895
    %961 = vmatprep.subr.mxu0 %v900
    %962 = vmatpush1.msra.mxu0 %v899
    %963 = vmatprep.subr.mxu0 %v904
    %964 = vmatpush1.msra.mxu0 %v903
    %965 = vmatprep.subr.mxu0 %v908
    %966 = vmatpush1.msra.mxu0 %v907
    %967 = vmatprep.subr.mxu0 %v912
    %968 = vmatpush1.msra.mxu0 %v911
    %969 = vmatprep.subr.mxu0 %v916
    %970 = vmatpush1.msra.mxu0 %v915
    %971 = vmatprep.subr.mxu0 %v920
    %972 = vmatpush1.msra.mxu0 %v919
    %973 = vmatprep.subr.mxu0 %v924
    %974 = vmatpush1.msra.mxu0 %v923
    %975 = vmatprep.subr.mxu0 %v928
    %976 = vmatpush1.msra.mxu0 %v927
    %977 = vmatprep.subr.mxu0 %v932
    %978 = vmatpush1.msra.mxu0 %v931
    %979 = vmatprep.subr.mxu0 %v936
    %980 = vmatpush1.msra.mxu0 %v935
    %981 = vmatprep.subr.mxu0 %v940
    %982 = vmatpush1.msra.mxu0 %v939
    %983 = vmatprep.subr.mxu0 %v944
    %984 = vmatpush1.msra.mxu0 %v943
    %985 = vmatprep.subr.mxu0 %v948
    %986 = vmatpush1.msra.mxu0 %v947
    %987 = vmatprep.subr.mxu0 %v952
    %988 = vmatpush1.msra.mxu0 %v951
    %989 = vmatprep.subr.mxu0 %v956
    %990 = vmatpush1.msra.mxu0 %v955
    %991 = vmatprep.subr.mxu0 0.0
    %992 = vmatpush1.msra.mxu0 0.0
    %993 = vmatprep.subr.mxu0 0.0
    %994 = vmatpush1.msra.mxu0 0.0
    %995 = vmatprep.subr.mxu0 0.0
    %996 = vmatpush1.msra.mxu0 0.0
    %997 = vmatprep.subr.mxu0 0.0
    %998 = vmatpush1.msra.mxu0 0.0
    %999 = vmatprep.subr.mxu0 0.0
    %1000 = vmatpush1.msra.mxu0 0.0
    %1001 = vmatprep.subr.mxu0 0.0
    %1002 = vmatpush1.msra.mxu0 0.0
    %1003 = vmatprep.subr.mxu0 0.0
    %1004 = vmatpush1.msra.mxu0 0.0
    %1005 = vmatprep.subr.mxu0 0.0
    %1006 = vmatpush1.msra.mxu0 0.0
    %1007 = vmatprep.subr.mxu0 0.0
    %1008 = vmatpush1.msra.mxu0 0.0
    %1009 = vmatprep.subr.mxu0 0.0
    %1010 = vmatpush1.msra.mxu0 0.0
    %1011 = vmatprep.subr.mxu0 0.0
    %1012 = vmatpush1.msra.mxu0 0.0
    %1013 = vmatprep.subr.mxu0 0.0
    %1014 = vmatpush1.msra.mxu0 0.0
    %1015 = vmatprep.subr.mxu0 0.0
    %1016 = vmatpush1.msra.mxu0 0.0
    %1017 = vmatprep.subr.mxu0 0.0
    %1018 = vmatpush1.msra.mxu0 0.0
    %1019 = vmatprep.subr.mxu0 0.0
    %1020 = vmatpush1.msra.mxu0 0.0
    %1021 = vmatprep.subr.mxu0 0.0
    %1022 = vmatpush1.msra.mxu0 0.0
    %1023 = vmatprep.mubr.f32.mxu0 0.0
    %1024 = vmatmul.mubr.f32.gmra.mrb[0].mxu0 %v886
    %v1025 = vpop.f32.mrb[0].mxu0
    %v1026 = vadd.f32 0.0, %v1025
    %v1027 = vpop.f32.mrb[0].mxu0
    %v1028 = vadd.f32 0.0, %v1027
    %1029 = vdwg.mxu0
    %1030 = vmatprep.subr.mxu0 %v898
    %1031 = vmatpush1.msra.mxu0 %v897
    %1032 = vmatprep.subr.mxu0 %v902
    %1033 = vmatpush1.msra.mxu0 %v901
    %1034 = vmatprep.subr.mxu0 %v906
    %1035 = vmatpush1.msra.mxu0 %v905
    %1036 = vmatprep.subr.mxu0 %v910
    %1037 = vmatpush1.msra.mxu0 %v909
    %1038 = vmatprep.subr.mxu0 %v914
    %1039 = vmatpush1.msra.mxu0 %v913
    %1040 = vmatprep.subr.mxu0 %v918
    %1041 = vmatpush1.msra.mxu0 %v917
    %1042 = vmatprep.subr.mxu0 %v922
    %1043 = vmatpush1.msra.mxu0 %v921
    %1044 = vmatprep.subr.mxu0 %v926
    %1045 = vmatpush1.msra.mxu0 %v925
    %1046 = vmatprep.subr.mxu0 %v930
    %1047 = vmatpush1.msra.mxu0 %v929
    %1048 = vmatprep.subr.mxu0 %v934
    %1049 = vmatpush1.msra.mxu0 %v933
    %1050 = vmatprep.subr.mxu0 %v938
    %1051 = vmatpush1.msra.mxu0 %v937
    %1052 = vmatprep.subr.mxu0 %v942
    %1053 = vmatpush1.msra.mxu0 %v941
    %1054 = vmatprep.subr.mxu0 %v946
    %1055 = vmatpush1.msra.mxu0 %v945
    %1056 = vmatprep.subr.mxu0 %v950
    %1057 = vmatpush1.msra.mxu0 %v949
    %1058 = vmatprep.subr.mxu0 %v954
    %1059 = vmatpush1.msra.mxu0 %v953
    %1060 = vmatprep.subr.mxu0 %v958
    %1061 = vmatpush1.msra.mxu0 %v957
    %1062 = vmatprep.subr.mxu0 0.0
    %1063 = vmatpush1.msra.mxu0 0.0
    %1064 = vmatprep.subr.mxu0 0.0
    %1065 = vmatpush1.msra.mxu0 0.0
    %1066 = vmatprep.subr.mxu0 0.0
    %1067 = vmatpush1.msra.mxu0 0.0
    %1068 = vmatprep.subr.mxu0 0.0
    %1069 = vmatpush1.msra.mxu0 0.0
    %1070 = vmatprep.subr.mxu0 0.0
    %1071 = vmatpush1.msra.mxu0 0.0
    %1072 = vmatprep.subr.mxu0 0.0
    %1073 = vmatpush1.msra.mxu0 0.0
    %1074 = vmatprep.subr.mxu0 0.0
    %1075 = vmatpush1.msra.mxu0 0.0
    %1076 = vmatprep.subr.mxu0 0.0
    %1077 = vmatpush1.msra.mxu0 0.0
    %1078 = vmatprep.subr.mxu0 0.0
    %1079 = vmatpush1.msra.mxu0 0.0
    %1080 = vmatprep.subr.mxu0 0.0
    %1081 = vmatpush1.msra.mxu0 0.0
    %1082 = vmatprep.subr.mxu0 0.0
    %1083 = vmatpush1.msra.mxu0 0.0
    %1084 = vmatprep.subr.mxu0 0.0
    %1085 = vmatpush1.msra.mxu0 0.0
    %1086 = vmatprep.subr.mxu0 0.0
    %1087 = vmatpush1.msra.mxu0 0.0
    %1088 = vmatprep.subr.mxu0 0.0
    %1089 = vmatpush1.msra.mxu0 0.0
    %1090 = vmatprep.subr.mxu0 0.0
    %1091 = vmatpush1.msra.mxu0 0.0
    %1092 = vmatprep.subr.mxu0 0.0
    %1093 = vmatpush1.msra.mxu0 0.0
    %1094 = vmatprep.mubr.f32.mxu0 0.0
    %1095 = vmatmul.mubr.f32.gmra.mrb[0].mxu0 %v886
    %v1096 = vpop.f32.mrb[0].mxu0
    %v1097 = vadd.f32 0.0, %v1096
    %v1098 = vpop.f32.mrb[0].mxu0
    %v1099 = vadd.f32 0.0, %v1098
    %1100 = vdwg.mxu0
    %v1101 = vadd.f32 %v891, %v1026
    %v1102 = vadd.f32 %v892, %v1028
    %v1103 = vadd.f32 %v893, %v1097
    %v1104 = vadd.f32 %v894, %v1099
    %v1105 = vxor.u32 %v1101, 2147483648
    %v1106 = vxor.u32 %v1102, 2147483648
    %v1107 = vxor.u32 %v1103, 2147483648
    %v1108 = vmul.f32 %v1105, 1.442695
    %v1109 = vpow.pop %v1108
    %v1110 = vmul.f32 %v1106, 1.442695
    %v1111 = vpow.pop %v1110
    %v1112 = vmul.f32 %v1107, 1.442695
    %v1113 = vpow.pop %v1112
    %v1114 = vadd.f32 %v1109, 1.0
    %v1115 = vadd.f32 %v1111, 1.0
    %v1116 = vadd.f32 %v1113, 1.0
    %v1117 = vrcp.pop %v1114
    %v1118 = vmul.f32 1.0, %v1117
    %v1119 = vrcp.pop %v1115
    %v1120 = vmul.f32 1.0, %v1119
    %v1121 = vrcp.pop %v1116
    %v1122 = vmul.f32 1.0, %v1121
    %v1123 = vtanh.pop %v1104
    %v1124 = vmul.f32 %v1120, %v887
    %v1125 = vmul.f32 %v1118, %v1123
    %v1126 = vadd.f32 %v1124, %v1125
    %v1127 = vtanh.pop %v1126
    %v1128 = vmul.f32 %v1122, %v1127
    %1129 = vst [vmem:[#allocation4] sm:$0xff] %v1126
    %1130 = vst [vmem:[#allocation3] sm:$0xff] %v1128
    %v1131 = vld [vmem:[#allocation3] sm:$0xff]
    %v1132 = vld [vmem:[#allocation4] sm:$0xff]
    %s1133 = smul.u32 3, 4
    %s1134 = smul.addr %s1133, 8
    %s1135 = scalar_lea.vmem [#allocation2], %s1134
    %v1136 = vld [vmem:[%s1135] sm:$0xff]
    %v1137 = vld [vmem:[%s1135 + $0x8] sm:$0xff]
    %v1138 = vld [vmem:[%s1135 + $0x10] sm:$0xff]
    %v1139 = vld [vmem:[%s1135 + $0x18] sm:$0xff]
    %v1140 = vld [vmem:[#allocation5] sm:$0xff]
    %v1141 = vld [vmem:[#allocation5 + $0x8] sm:$0xff]
    %v1142 = vld [vmem:[#allocation5 + $0x10] sm:$0xff]
    %v1143 = vld [vmem:[#allocation5 + $0x18] sm:$0xff]
    %v1144 = vld [vmem:[#allocation5 + $0x20] sm:$0xff]
    %v1145 = vld [vmem:[#allocation5 + $0x28] sm:$0xff]
    %v1146 = vld [vmem:[#allocation5 + $0x30] sm:$0xff]
    %v1147 = vld [vmem:[#allocation5 + $0x38] sm:$0xff]
    %v1148 = vld [vmem:[#allocation5 + $0x40] sm:$0xff]
    %v1149 = vld [vmem:[#allocation5 + $0x48] sm:$0xff]
    %v1150 = vld [vmem:[#allocation5 + $0x50] sm:$0xff]
    %v1151 = vld [vmem:[#allocation5 + $0x58] sm:$0xff]
    %v1152 = vld [vmem:[#allocation5 + $0x60] sm:$0xff]
    %v1153 = vld [vmem:[#allocation5 + $0x68] sm:$0xff]
    %v1154 = vld [vmem:[#allocation5 + $0x70] sm:$0xff]
    %v1155 = vld [vmem:[#allocation5 + $0x78] sm:$0xff]
    %v1156 = vld [vmem:[#allocation5 + $0x80] sm:$0xff]
    %v1157 = vld [vmem:[#allocation5 + $0x88] sm:$0xff]
    %v1158 = vld [vmem:[#allocation5 + $0x90] sm:$0xff]
    %v1159 = vld [vmem:[#allocation5 + $0x98] sm:$0xff]
    %v1160 = vld [vmem:[#allocation5 + $0xa0] sm:$0xff]
    %v1161 = vld [vmem:[#allocation5 + $0xa8] sm:$0xff]
    %v1162 = vld [vmem:[#allocation5 + $0xb0] sm:$0xff]
    %v1163 = vld [vmem:[#allocation5 + $0xb8] sm:$0xff]
    %v1164 = vld [vmem:[#allocation5 + $0xc0] sm:$0xff]
    %v1165 = vld [vmem:[#allocation5 + $0xc8] sm:$0xff]
    %v1166 = vld [vmem:[#allocation5 + $0xd0] sm:$0xff]
    %v1167 = vld [vmem:[#allocation5 + $0xd8] sm:$0xff]
    %v1168 = vld [vmem:[#allocation5 + $0xe0] sm:$0xff]
    %v1169 = vld [vmem:[#allocation5 + $0xe8] sm:$0xff]
    %v1170 = vld [vmem:[#allocation5 + $0xf0] sm:$0xff]
    %v1171 = vld [vmem:[#allocation5 + $0xf8] sm:$0xff]
    %v1172 = vld [vmem:[#allocation5 + $0x100] sm:$0xff]
    %v1173 = vld [vmem:[#allocation5 + $0x108] sm:$0xff]
    %v1174 = vld [vmem:[#allocation5 + $0x110] sm:$0xff]
    %v1175 = vld [vmem:[#allocation5 + $0x118] sm:$0xff]
    %v1176 = vld [vmem:[#allocation5 + $0x120] sm:$0xff]
    %v1177 = vld [vmem:[#allocation5 + $0x128] sm:$0xff]
    %v1178 = vld [vmem:[#allocation5 + $0x130] sm:$0xff]
    %v1179 = vld [vmem:[#allocation5 + $0x138] sm:$0xff]
    %v1180 = vld [vmem:[#allocation5 + $0x140] sm:$0xff]
    %v1181 = vld [vmem:[#allocation5 + $0x148] sm:$0xff]
    %v1182 = vld [vmem:[#allocation5 + $0x150] sm:$0xff]
    %v1183 = vld [vmem:[#allocation5 + $0x158] sm:$0xff]
    %v1184 = vld [vmem:[#allocation5 + $0x160] sm:$0xff]
    %v1185 = vld [vmem:[#allocation5 + $0x168] sm:$0xff]
    %v1186 = vld [vmem:[#allocation5 + $0x170] sm:$0xff]
    %v1187 = vld [vmem:[#allocation5 + $0x178] sm:$0xff]
    %v1188 = vld [vmem:[#allocation5 + $0x180] sm:$0xff]
    %v1189 = vld [vmem:[#allocation5 + $0x188] sm:$0xff]
    %v1190 = vld [vmem:[#allocation5 + $0x190] sm:$0xff]
    %v1191 = vld [vmem:[#allocation5 + $0x198] sm:$0xff]
    %v1192 = vld [vmem:[#allocation5 + $0x1a0] sm:$0xff]
    %v1193 = vld [vmem:[#allocation5 + $0x1a8] sm:$0xff]
    %v1194 = vld [vmem:[#allocation5 + $0x1b0] sm:$0xff]
    %v1195 = vld [vmem:[#allocation5 + $0x1b8] sm:$0xff]
    %v1196 = vld [vmem:[#allocation5 + $0x1c0] sm:$0xff]
    %v1197 = vld [vmem:[#allocation5 + $0x1c8] sm:$0xff]
    %v1198 = vld [vmem:[#allocation5 + $0x1d0] sm:$0xff]
    %v1199 = vld [vmem:[#allocation5 + $0x1d8] sm:$0xff]
    %v1200 = vld [vmem:[#allocation5 + $0x1e0] sm:$0xff]
    %v1201 = vld [vmem:[#allocation5 + $0x1e8] sm:$0xff]
    %v1202 = vld [vmem:[#allocation5 + $0x1f0] sm:$0xff]
    %v1203 = vld [vmem:[#allocation5 + $0x1f8] sm:$0xff]
    %1204 = vmatprep.subr.mxu0 %v1141
    %1205 = vmatpush1.msra.mxu0 %v1140
    %1206 = vmatprep.subr.mxu0 %v1145
    %1207 = vmatpush1.msra.mxu0 %v1144
    %1208 = vmatprep.subr.mxu0 %v1149
    %1209 = vmatpush1.msra.mxu0 %v1148
    %1210 = vmatprep.subr.mxu0 %v1153
    %1211 = vmatpush1.msra.mxu0 %v1152
    %1212 = vmatprep.subr.mxu0 %v1157
    %1213 = vmatpush1.msra.mxu0 %v1156
    %1214 = vmatprep.subr.mxu0 %v1161
    %1215 = vmatpush1.msra.mxu0 %v1160
    %1216 = vmatprep.subr.mxu0 %v1165
    %1217 = vmatpush1.msra.mxu0 %v1164
    %1218 = vmatprep.subr.mxu0 %v1169
    %1219 = vmatpush1.msra.mxu0 %v1168
    %1220 = vmatprep.subr.mxu0 %v1173
    %1221 = vmatpush1.msra.mxu0 %v1172
    %1222 = vmatprep.subr.mxu0 %v1177
    %1223 = vmatpush1.msra.mxu0 %v1176
    %1224 = vmatprep.subr.mxu0 %v1181
    %1225 = vmatpush1.msra.mxu0 %v1180
    %1226 = vmatprep.subr.mxu0 %v1185
    %1227 = vmatpush1.msra.mxu0 %v1184
    %1228 = vmatprep.subr.mxu0 %v1189
    %1229 = vmatpush1.msra.mxu0 %v1188
    %1230 = vmatprep.subr.mxu0 %v1193
    %1231 = vmatpush1.msra.mxu0 %v1192
    %1232 = vmatprep.subr.mxu0 %v1197
    %1233 = vmatpush1.msra.mxu0 %v1196
    %1234 = vmatprep.subr.mxu0 %v1201
    %1235 = vmatpush1.msra.mxu0 %v1200
    %1236 = vmatprep.subr.mxu0 0.0
    %1237 = vmatpush1.msra.mxu0 0.0
    %1238 = vmatprep.subr.mxu0 0.0
    %1239 = vmatpush1.msra.mxu0 0.0
    %1240 = vmatprep.subr.mxu0 0.0
    %1241 = vmatpush1.msra.mxu0 0.0
    %1242 = vmatprep.subr.mxu0 0.0
    %1243 = vmatpush1.msra.mxu0 0.0
    %1244 = vmatprep.subr.mxu0 0.0
    %1245 = vmatpush1.msra.mxu0 0.0
    %1246 = vmatprep.subr.mxu0 0.0
    %1247 = vmatpush1.msra.mxu0 0.0
    %1248 = vmatprep.subr.mxu0 0.0
    %1249 = vmatpush1.msra.mxu0 0.0
    %1250 = vmatprep.subr.mxu0 0.0
    %1251 = vmatpush1.msra.mxu0 0.0
    %1252 = vmatprep.subr.mxu0 0.0
    %1253 = vmatpush1.msra.mxu0 0.0
    %1254 = vmatprep.subr.mxu0 0.0
    %1255 = vmatpush1.msra.mxu0 0.0
    %1256 = vmatprep.subr.mxu0 0.0
    %1257 = vmatpush1.msra.mxu0 0.0
    %1258 = vmatprep.subr.mxu0 0.0
    %1259 = vmatpush1.msra.mxu0 0.0
    %1260 = vmatprep.subr.mxu0 0.0
    %1261 = vmatpush1.msra.mxu0 0.0
    %1262 = vmatprep.subr.mxu0 0.0
    %1263 = vmatpush1.msra.mxu0 0.0
    %1264 = vmatprep.subr.mxu0 0.0
    %1265 = vmatpush1.msra.mxu0 0.0
    %1266 = vmatprep.subr.mxu0 0.0
    %1267 = vmatpush1.msra.mxu0 0.0
    %1268 = vmatprep.mubr.f32.mxu0 0.0
    %1269 = vmatmul.mubr.f32.gmra.mrb[0].mxu0 %v1131
    %v1270 = vpop.f32.mrb[0].mxu0
    %v1271 = vadd.f32 0.0, %v1270
    %v1272 = vpop.f32.mrb[0].mxu0
    %v1273 = vadd.f32 0.0, %v1272
    %1274 = vdwg.mxu0
    %1275 = vmatprep.subr.mxu0 %v1143
    %1276 = vmatpush1.msra.mxu0 %v1142
    %1277 = vmatprep.subr.mxu0 %v1147
    %1278 = vmatpush1.msra.mxu0 %v1146
    %1279 = vmatprep.subr.mxu0 %v1151
    %1280 = vmatpush1.msra.mxu0 %v1150
    %1281 = vmatprep.subr.mxu0 %v1155
    %1282 = vmatpush1.msra.mxu0 %v1154
    %1283 = vmatprep.subr.mxu0 %v1159
    %1284 = vmatpush1.msra.mxu0 %v1158
    %1285 = vmatprep.subr.mxu0 %v1163
    %1286 = vmatpush1.msra.mxu0 %v1162
    %1287 = vmatprep.subr.mxu0 %v1167
    %1288 = vmatpush1.msra.mxu0 %v1166
    %1289 = vmatprep.subr.mxu0 %v1171
    %1290 = vmatpush1.msra.mxu0 %v1170
    %1291 = vmatprep.subr.mxu0 %v1175
    %1292 = vmatpush1.msra.mxu0 %v1174
    %1293 = vmatprep.subr.mxu0 %v1179
    %1294 = vmatpush1.msra.mxu0 %v1178
    %1295 = vmatprep.subr.mxu0 %v1183
    %1296 = vmatpush1.msra.mxu0 %v1182
    %1297 = vmatprep.subr.mxu0 %v1187
    %1298 = vmatpush1.msra.mxu0 %v1186
    %1299 = vmatprep.subr.mxu0 %v1191
    %1300 = vmatpush1.msra.mxu0 %v1190
    %1301 = vmatprep.subr.mxu0 %v1195
    %1302 = vmatpush1.msra.mxu0 %v1194
    %1303 = vmatprep.subr.mxu0 %v1199
    %1304 = vmatpush1.msra.mxu0 %v1198
    %1305 = vmatprep.subr.mxu0 %v1203
    %1306 = vmatpush1.msra.mxu0 %v1202
    %1307 = vmatprep.subr.mxu0 0.0
    %1308 = vmatpush1.msra.mxu0 0.0
    %1309 = vmatprep.subr.mxu0 0.0
    %1310 = vmatpush1.msra.mxu0 0.0
    %1311 = vmatprep.subr.mxu0 0.0
    %1312 = vmatpush1.msra.mxu0 0.0
    %1313 = vmatprep.subr.mxu0 0.0
    %1314 = vmatpush1.msra.mxu0 0.0
    %1315 = vmatprep.subr.mxu0 0.0
    %1316 = vmatpush1.msra.mxu0 0.0
    %1317 = vmatprep.subr.mxu0 0.0
    %1318 = vmatpush1.msra.mxu0 0.0
    %1319 = vmatprep.subr.mxu0 0.0
    %1320 = vmatpush1.msra.mxu0 0.0
    %1321 = vmatprep.subr.mxu0 0.0
    %1322 = vmatpush1.msra.mxu0 0.0
    %1323 = vmatprep.subr.mxu0 0.0
    %1324 = vmatpush1.msra.mxu0 0.0
    %1325 = vmatprep.subr.mxu0 0.0
    %1326 = vmatpush1.msra.mxu0 0.0
    %1327 = vmatprep.subr.mxu0 0.0
    %1328 = vmatpush1.msra.mxu0 0.0
    %1329 = vmatprep.subr.mxu0 0.0
    %1330 = vmatpush1.msra.mxu0 0.0
    %1331 = vmatprep.subr.mxu0 0.0
    %1332 = vmatpush1.msra.mxu0 0.0
    %1333 = vmatprep.subr.mxu0 0.0
    %1334 = vmatpush1.msra.mxu0 0.0
    %1335 = vmatprep.subr.mxu0 0.0
    %1336 = vmatpush1.msra.mxu0 0.0
    %1337 = vmatprep.subr.mxu0 0.0
    %1338 = vmatpush1.msra.mxu0 0.0
    %1339 = vmatprep.mubr.f32.mxu0 0.0
    %1340 = vmatmul.mubr.f32.gmra.mrb[0].mxu0 %v1131
    %v1341 = vpop.f32.mrb[0].mxu0
    %v1342 = vadd.f32 0.0, %v1341
    %v1343 = vpop.f32.mrb[0].mxu0
    %v1344 = vadd.f32 0.0, %v1343
    %1345 = vdwg.mxu0
    %v1346 = vadd.f32 %v1136, %v1271
    %v1347 = vadd.f32 %v1137, %v1273
    %v1348 = vadd.f32 %v1138, %v1342
    %v1349 = vadd.f32 %v1139, %v1344
    %v1350 = vxor.u32 %v1346, 2147483648
    %v1351 = vxor.u32 %v1347, 2147483648
    %v1352 = vxor.u32 %v1348, 2147483648
    %v1353 = vmul.f32 %v1350, 1.442695
    %v1354 = vpow.pop %v1353
    %v1355 = vmul.f32 %v1351, 1.442695
    %v1356 = vpow.pop %v1355
    %v1357 = vmul.f32 %v1352, 1.442695
    %v1358 = vpow.pop %v1357
    %v1359 = vadd.f32 %v1354, 1.0
    %v1360 = vadd.f32 %v1356, 1.0
    %v1361 = vadd.f32 %v1358, 1.0
    %v1362 = vrcp.pop %v1359
    %v1363 = vmul.f32 1.0, %v1362
    %v1364 = vrcp.pop %v1360
    %v1365 = vmul.f32 1.0, %v1364
    %v1366 = vrcp.pop %v1361
    %v1367 = vmul.f32 1.0, %v1366
    %v1368 = vtanh.pop %v1349
    %v1369 = vmul.f32 %v1365, %v1132
    %v1370 = vmul.f32 %v1363, %v1368
    %v1371 = vadd.f32 %v1369, %v1370
    %v1372 = vtanh.pop %v1371
    %v1373 = vmul.f32 %v1367, %v1372
    %1374 = vst [vmem:[#allocation4] sm:$0xff] %v1371
    %1375 = vst [vmem:[#allocation3] sm:$0xff] %v1373
    %v1376 = vld [vmem:[#allocation3] sm:$0xff]
    %v1377 = vld [vmem:[#allocation4] sm:$0xff]
    %s1378 = smul.u32 4, 4
    %s1379 = smul.addr %s1378, 8
    %s1380 = scalar_lea.vmem [#allocation2], %s1379
    %v1381 = vld [vmem:[%s1380] sm:$0xff]
    %v1382 = vld [vmem:[%s1380 + $0x8] sm:$0xff]
    %v1383 = vld [vmem:[%s1380 + $0x10] sm:$0xff]
    %v1384 = vld [vmem:[%s1380 + $0x18] sm:$0xff]
    %v1385 = vld [vmem:[#allocation5] sm:$0xff]
    %v1386 = vld [vmem:[#allocation5 + $0x8] sm:$0xff]
    %v1387 = vld [vmem:[#allocation5 + $0x10] sm:$0xff]
    %v1388 = vld [vmem:[#allocation5 + $0x18] sm:$0xff]
    %v1389 = vld [vmem:[#allocation5 + $0x20] sm:$0xff]
    %v1390 = vld [vmem:[#allocation5 + $0x28] sm:$0xff]
    %v1391 = vld [vmem:[#allocation5 + $0x30] sm:$0xff]
    %v1392 = vld [vmem:[#allocation5 + $0x38] sm:$0xff]
    %v1393 = vld [vmem:[#allocation5 + $0x40] sm:$0xff]
    %v1394 = vld [vmem:[#allocation5 + $0x48] sm:$0xff]
    %v1395 = vld [vmem:[#allocation5 + $0x50] sm:$0xff]
    %v1396 = vld [vmem:[#allocation5 + $0x58] sm:$0xff]
    %v1397 = vld [vmem:[#allocation5 + $0x60] sm:$0xff]
    %v1398 = vld [vmem:[#allocation5 + $0x68] sm:$0xff]
    %v1399 = vld [vmem:[#allocation5 + $0x70] sm:$0xff]
    %v1400 = vld [vmem:[#allocation5 + $0x78] sm:$0xff]
    %v1401 = vld [vmem:[#allocation5 + $0x80] sm:$0xff]
    %v1402 = vld [vmem:[#allocation5 + $0x88] sm:$0xff]
    %v1403 = vld [vmem:[#allocation5 + $0x90] sm:$0xff]
    %v1404 = vld [vmem:[#allocation5 + $0x98] sm:$0xff]
    %v1405 = vld [vmem:[#allocation5 + $0xa0] sm:$0xff]
    %v1406 = vld [vmem:[#allocation5 + $0xa8] sm:$0xff]
    %v1407 = vld [vmem:[#allocation5 + $0xb0] sm:$0xff]
    %v1408 = vld [vmem:[#allocation5 + $0xb8] sm:$0xff]
    %v1409 = vld [vmem:[#allocation5 + $0xc0] sm:$0xff]
    %v1410 = vld [vmem:[#allocation5 + $0xc8] sm:$0xff]
    %v1411 = vld [vmem:[#allocation5 + $0xd0] sm:$0xff]
    %v1412 = vld [vmem:[#allocation5 + $0xd8] sm:$0xff]
    %v1413 = vld [vmem:[#allocation5 + $0xe0] sm:$0xff]
    %v1414 = vld [vmem:[#allocation5 + $0xe8] sm:$0xff]
    %v1415 = vld [vmem:[#allocation5 + $0xf0] sm:$0xff]
    %v1416 = vld [vmem:[#allocation5 + $0xf8] sm:$0xff]
    %v1417 = vld [vmem:[#allocation5 + $0x100] sm:$0xff]
    %v1418 = vld [vmem:[#allocation5 + $0x108] sm:$0xff]
    %v1419 = vld [vmem:[#allocation5 + $0x110] sm:$0xff]
    %v1420 = vld [vmem:[#allocation5 + $0x118] sm:$0xff]
    %v1421 = vld [vmem:[#allocation5 + $0x120] sm:$0xff]
    %v1422 = vld [vmem:[#allocation5 + $0x128] sm:$0xff]
    %v1423 = vld [vmem:[#allocation5 + $0x130] sm:$0xff]
    %v1424 = vld [vmem:[#allocation5 + $0x138] sm:$0xff]
    %v1425 = vld [vmem:[#allocation5 + $0x140] sm:$0xff]
    %v1426 = vld [vmem:[#allocation5 + $0x148] sm:$0xff]
    %v1427 = vld [vmem:[#allocation5 + $0x150] sm:$0xff]
    %v1428 = vld [vmem:[#allocation5 + $0x158] sm:$0xff]
    %v1429 = vld [vmem:[#allocation5 + $0x160] sm:$0xff]
    %v1430 = vld [vmem:[#allocation5 + $0x168] sm:$0xff]
    %v1431 = vld [vmem:[#allocation5 + $0x170] sm:$0xff]
    %v1432 = vld [vmem:[#allocation5 + $0x178] sm:$0xff]
    %v1433 = vld [vmem:[#allocation5 + $0x180] sm:$0xff]
    %v1434 = vld [vmem:[#allocation5 + $0x188] sm:$0xff]
    %v1435 = vld [vmem:[#allocation5 + $0x190] sm:$0xff]
    %v1436 = vld [vmem:[#allocation5 + $0x198] sm:$0xff]
    %v1437 = vld [vmem:[#allocation5 + $0x1a0] sm:$0xff]
    %v1438 = vld [vmem:[#allocation5 + $0x1a8] sm:$0xff]
    %v1439 = vld [vmem:[#allocation5 + $0x1b0] sm:$0xff]
    %v1440 = vld [vmem:[#allocation5 + $0x1b8] sm:$0xff]
    %v1441 = vld [vmem:[#allocation5 + $0x1c0] sm:$0xff]
    %v1442 = vld [vmem:[#allocation5 + $0x1c8] sm:$0xff]
    %v1443 = vld [vmem:[#allocation5 + $0x1d0] sm:$0xff]
    %v1444 = vld [vmem:[#allocation5 + $0x1d8] sm:$0xff]
    %v1445 = vld [vmem:[#allocation5 + $0x1e0] sm:$0xff]
    %v1446 = vld [vmem:[#allocation5 + $0x1e8] sm:$0xff]
    %v1447 = vld [vmem:[#allocation5 + $0x1f0] sm:$0xff]
    %v1448 = vld [vmem:[#allocation5 + $0x1f8] sm:$0xff]
    %1449 = vmatprep.subr.mxu0 %v1386
    %1450 = vmatpush1.msra.mxu0 %v1385
    %1451 = vmatprep.subr.mxu0 %v1390
    %1452 = vmatpush1.msra.mxu0 %v1389
    %1453 = vmatprep.subr.mxu0 %v1394
    %1454 = vmatpush1.msra.mxu0 %v1393
    %1455 = vmatprep.subr.mxu0 %v1398
    %1456 = vmatpush1.msra.mxu0 %v1397
    %1457 = vmatprep.subr.mxu0 %v1402
    %1458 = vmatpush1.msra.mxu0 %v1401
    %1459 = vmatprep.subr.mxu0 %v1406
    %1460 = vmatpush1.msra.mxu0 %v1405
    %1461 = vmatprep.subr.mxu0 %v1410
    %1462 = vmatpush1.msra.mxu0 %v1409
    %1463 = vmatprep.subr.mxu0 %v1414
    %1464 = vmatpush1.msra.mxu0 %v1413
    %1465 = vmatprep.subr.mxu0 %v1418
    %1466 = vmatpush1.msra.mxu0 %v1417
    %1467 = vmatprep.subr.mxu0 %v1422
    %1468 = vmatpush1.msra.mxu0 %v1421
    %1469 = vmatprep.subr.mxu0 %v1426
    %1470 = vmatpush1.msra.mxu0 %v1425
    %1471 = vmatprep.subr.mxu0 %v1430
    %1472 = vmatpush1.msra.mxu0 %v1429
    %1473 = vmatprep.subr.mxu0 %v1434
    %1474 = vmatpush1.msra.mxu0 %v1433
    %1475 = vmatprep.subr.mxu0 %v1438
    %1476 = vmatpush1.msra.mxu0 %v1437
    %1477 = vmatprep.subr.mxu0 %v1442
    %1478 = vmatpush1.msra.mxu0 %v1441
    %1479 = vmatprep.subr.mxu0 %v1446
    %1480 = vmatpush1.msra.mxu0 %v1445
    %1481 = vmatprep.subr.mxu0 0.0
    %1482 = vmatpush1.msra.mxu0 0.0
    %1483 = vmatprep.subr.mxu0 0.0
    %1484 = vmatpush1.msra.mxu0 0.0
    %1485 = vmatprep.subr.mxu0 0.0
    %1486 = vmatpush1.msra.mxu0 0.0
    %1487 = vmatprep.subr.mxu0 0.0
    %1488 = vmatpush1.msra.mxu0 0.0
    %1489 = vmatprep.subr.mxu0 0.0
    %1490 = vmatpush1.msra.mxu0 0.0
    %1491 = vmatprep.subr.mxu0 0.0
    %1492 = vmatpush1.msra.mxu0 0.0
    %1493 = vmatprep.subr.mxu0 0.0
    %1494 = vmatpush1.msra.mxu0 0.0
    %1495 = vmatprep.subr.mxu0 0.0
    %1496 = vmatpush1.msra.mxu0 0.0
    %1497 = vmatprep.subr.mxu0 0.0
    %1498 = vmatpush1.msra.mxu0 0.0
    %1499 = vmatprep.subr.mxu0 0.0
    %1500 = vmatpush1.msra.mxu0 0.0
    %1501 = vmatprep.subr.mxu0 0.0
    %1502 = vmatpush1.msra.mxu0 0.0
    %1503 = vmatprep.subr.mxu0 0.0
    %1504 = vmatpush1.msra.mxu0 0.0
    %1505 = vmatprep.subr.mxu0 0.0
    %1506 = vmatpush1.msra.mxu0 0.0
    %1507 = vmatprep.subr.mxu0 0.0
    %1508 = vmatpush1.msra.mxu0 0.0
    %1509 = vmatprep.subr.mxu0 0.0
    %1510 = vmatpush1.msra.mxu0 0.0
    %1511 = vmatprep.subr.mxu0 0.0
    %1512 = vmatpush1.msra.mxu0 0.0
    %1513 = vmatprep.mubr.f32.mxu0 0.0
    %1514 = vmatmul.mubr.f32.gmra.mrb[0].mxu0 %v1376
    %v1515 = vpop.f32.mrb[0].mxu0
    %v1516 = vadd.f32 0.0, %v1515
    %v1517 = vpop.f32.mrb[0].mxu0
    %v1518 = vadd.f32 0.0, %v1517
    %1519 = vdwg.mxu0
    %1520 = vmatprep.subr.mxu0 %v1388
    %1521 = vmatpush1.msra.mxu0 %v1387
    %1522 = vmatprep.subr.mxu0 %v1392
    %1523 = vmatpush1.msra.mxu0 %v1391
    %1524 = vmatprep.subr.mxu0 %v1396
    %1525 = vmatpush1.msra.mxu0 %v1395
    %1526 = vmatprep.subr.mxu0 %v1400
    %1527 = vmatpush1.msra.mxu0 %v1399
    %1528 = vmatprep.subr.mxu0 %v1404
    %1529 = vmatpush1.msra.mxu0 %v1403
    %1530 = vmatprep.subr.mxu0 %v1408
    %1531 = vmatpush1.msra.mxu0 %v1407
    %1532 = vmatprep.subr.mxu0 %v1412
    %1533 = vmatpush1.msra.mxu0 %v1411
    %1534 = vmatprep.subr.mxu0 %v1416
    %1535 = vmatpush1.msra.mxu0 %v1415
    %1536 = vmatprep.subr.mxu0 %v1420
    %1537 = vmatpush1.msra.mxu0 %v1419
    %1538 = vmatprep.subr.mxu0 %v1424
    %1539 = vmatpush1.msra.mxu0 %v1423
    %1540 = vmatprep.subr.mxu0 %v1428
    %1541 = vmatpush1.msra.mxu0 %v1427
    %1542 = vmatprep.subr.mxu0 %v1432
    %1543 = vmatpush1.msra.mxu0 %v1431
    %1544 = vmatprep.subr.mxu0 %v1436
    %1545 = vmatpush1.msra.mxu0 %v1435
    %1546 = vmatprep.subr.mxu0 %v1440
    %1547 = vmatpush1.msra.mxu0 %v1439
    %1548 = vmatprep.subr.mxu0 %v1444
    %1549 = vmatpush1.msra.mxu0 %v1443
    %1550 = vmatprep.subr.mxu0 %v1448
    %1551 = vmatpush1.msra.mxu0 %v1447
    %1552 = vmatprep.subr.mxu0 0.0
    %1553 = vmatpush1.msra.mxu0 0.0
    %1554 = vmatprep.subr.mxu0 0.0
    %1555 = vmatpush1.msra.mxu0 0.0
    %1556 = vmatprep.subr.mxu0 0.0
    %1557 = vmatpush1.msra.mxu0 0.0
    %1558 = vmatprep.subr.mxu0 0.0
    %1559 = vmatpush1.msra.mxu0 0.0
    %1560 = vmatprep.subr.mxu0 0.0
    %1561 = vmatpush1.msra.mxu0 0.0
    %1562 = vmatprep.subr.mxu0 0.0
    %1563 = vmatpush1.msra.mxu0 0.0
    %1564 = vmatprep.subr.mxu0 0.0
    %1565 = vmatpush1.msra.mxu0 0.0
    %1566 = vmatprep.subr.mxu0 0.0
    %1567 = vmatpush1.msra.mxu0 0.0
    %1568 = vmatprep.subr.mxu0 0.0
    %1569 = vmatpush1.msra.mxu0 0.0
    %1570 = vmatprep.subr.mxu0 0.0
    %1571 = vmatpush1.msra.mxu0 0.0
    %1572 = vmatprep.subr.mxu0 0.0
    %1573 = vmatpush1.msra.mxu0 0.0
    %1574 = vmatprep.subr.mxu0 0.0
    %1575 = vmatpush1.msra.mxu0 0.0
    %1576 = vmatprep.subr.mxu0 0.0
    %1577 = vmatpush1.msra.mxu0 0.0
    %1578 = vmatprep.subr.mxu0 0.0
    %1579 = vmatpush1.msra.mxu0 0.0
    %1580 = vmatprep.subr.mxu0 0.0
    %1581 = vmatpush1.msra.mxu0 0.0
    %1582 = vmatprep.subr.mxu0 0.0
    %1583 = vmatpush1.msra.mxu0 0.0
    %1584 = vmatprep.mubr.f32.mxu0 0.0
    %1585 = vmatmul.mubr.f32.gmra.mrb[0].mxu0 %v1376
    %v1586 = vpop.f32.mrb[0].mxu0
    %v1587 = vadd.f32 0.0, %v1586
    %v1588 = vpop.f32.mrb[0].mxu0
    %v1589 = vadd.f32 0.0, %v1588
    %1590 = vdwg.mxu0
    %v1591 = vadd.f32 %v1381, %v1516
    %v1592 = vadd.f32 %v1382, %v1518
    %v1593 = vadd.f32 %v1383, %v1587
    %v1594 = vadd.f32 %v1384, %v1589
    %v1595 = vxor.u32 %v1591, 2147483648
    %v1596 = vxor.u32 %v1592, 2147483648
    %v1597 = vxor.u32 %v1593, 2147483648
    %v1598 = vmul.f32 %v1595, 1.442695
    %v1599 = vpow.pop %v1598
    %v1600 = vmul.f32 %v1596, 1.442695
    %v1601 = vpow.pop %v1600
    %v1602 = vmul.f32 %v1597, 1.442695
    %v1603 = vpow.pop %v1602
    %v1604 = vadd.f32 %v1599, 1.0
    %v1605 = vadd.f32 %v1601, 1.0
    %v1606 = vadd.f32 %v1603, 1.0
    %v1607 = vrcp.pop %v1604
    %v1608 = vmul.f32 1.0, %v1607
    %v1609 = vrcp.pop %v1605
    %v1610 = vmul.f32 1.0, %v1609
    %v1611 = vrcp.pop %v1606
    %v1612 = vmul.f32 1.0, %v1611
    %v1613 = vtanh.pop %v1594
    %v1614 = vmul.f32 %v1610, %v1377
    %v1615 = vmul.f32 %v1608, %v1613
    %v1616 = vadd.f32 %v1614, %v1615
    %v1617 = vtanh.pop %v1616
    %v1618 = vmul.f32 %v1612, %v1617
    %1619 = vst [vmem:[#allocation4] sm:$0xff] %v1616
    %1620 = vst [vmem:[#allocation3] sm:$0xff] %v1618
    %v1621 = vld [vmem:[#allocation3] sm:$0xff]
    %v1622 = vld [vmem:[#allocation4] sm:$0xff]
    %s1623 = smul.u32 5, 4
    %s1624 = smul.addr %s1623, 8
    %s1625 = scalar_lea.vmem [#allocation2], %s1624
    %v1626 = vld [vmem:[%s1625] sm:$0xff]
    %v1627 = vld [vmem:[%s1625 + $0x8] sm:$0xff]
    %v1628 = vld [vmem:[%s1625 + $0x10] sm:$0xff]
    %v1629 = vld [vmem:[%s1625 + $0x18] sm:$0xff]
    %v1630 = vld [vmem:[#allocation5] sm:$0xff]
    %v1631 = vld [vmem:[#allocation5 + $0x8] sm:$0xff]
    %v1632 = vld [vmem:[#allocation5 + $0x10] sm:$0xff]
    %v1633 = vld [vmem:[#allocation5 + $0x18] sm:$0xff]
    %v1634 = vld [vmem:[#allocation5 + $0x20] sm:$0xff]
    %v1635 = vld [vmem:[#allocation5 + $0x28] sm:$0xff]
    %v1636 = vld [vmem:[#allocation5 + $0x30] sm:$0xff]
    %v1637 = vld [vmem:[#allocation5 + $0x38] sm:$0xff]
    %v1638 = vld [vmem:[#allocation5 + $0x40] sm:$0xff]
    %v1639 = vld [vmem:[#allocation5 + $0x48] sm:$0xff]
    %v1640 = vld [vmem:[#allocation5 + $0x50] sm:$0xff]
    %v1641 = vld [vmem:[#allocation5 + $0x58] sm:$0xff]
    %v1642 = vld [vmem:[#allocation5 + $0x60] sm:$0xff]
    %v1643 = vld [vmem:[#allocation5 + $0x68] sm:$0xff]
    %v1644 = vld [vmem:[#allocation5 + $0x70] sm:$0xff]
    %v1645 = vld [vmem:[#allocation5 + $0x78] sm:$0xff]
    %v1646 = vld [vmem:[#allocation5 + $0x80] sm:$0xff]
    %v1647 = vld [vmem:[#allocation5 + $0x88] sm:$0xff]
    %v1648 = vld [vmem:[#allocation5 + $0x90] sm:$0xff]
    %v1649 = vld [vmem:[#allocation5 + $0x98] sm:$0xff]
    %v1650 = vld [vmem:[#allocation5 + $0xa0] sm:$0xff]
    %v1651 = vld [vmem:[#allocation5 + $0xa8] sm:$0xff]
    %v1652 = vld [vmem:[#allocation5 + $0xb0] sm:$0xff]
    %v1653 = vld [vmem:[#allocation5 + $0xb8] sm:$0xff]
    %v1654 = vld [vmem:[#allocation5 + $0xc0] sm:$0xff]
    %v1655 = vld [vmem:[#allocation5 + $0xc8] sm:$0xff]
    %v1656 = vld [vmem:[#allocation5 + $0xd0] sm:$0xff]
    %v1657 = vld [vmem:[#allocation5 + $0xd8] sm:$0xff]
    %v1658 = vld [vmem:[#allocation5 + $0xe0] sm:$0xff]
    %v1659 = vld [vmem:[#allocation5 + $0xe8] sm:$0xff]
    %v1660 = vld [vmem:[#allocation5 + $0xf0] sm:$0xff]
    %v1661 = vld [vmem:[#allocation5 + $0xf8] sm:$0xff]
    %v1662 = vld [vmem:[#allocation5 + $0x100] sm:$0xff]
    %v1663 = vld [vmem:[#allocation5 + $0x108] sm:$0xff]
    %v1664 = vld [vmem:[#allocation5 + $0x110] sm:$0xff]
    %v1665 = vld [vmem:[#allocation5 + $0x118] sm:$0xff]
    %v1666 = vld [vmem:[#allocation5 + $0x120] sm:$0xff]
    %v1667 = vld [vmem:[#allocation5 + $0x128] sm:$0xff]
    %v1668 = vld [vmem:[#allocation5 + $0x130] sm:$0xff]
    %v1669 = vld [vmem:[#allocation5 + $0x138] sm:$0xff]
    %v1670 = vld [vmem:[#allocation5 + $0x140] sm:$0xff]
    %v1671 = vld [vmem:[#allocation5 + $0x148] sm:$0xff]
    %v1672 = vld [vmem:[#allocation5 + $0x150] sm:$0xff]
    %v1673 = vld [vmem:[#allocation5 + $0x158] sm:$0xff]
    %v1674 = vld [vmem:[#allocation5 + $0x160] sm:$0xff]
    %v1675 = vld [vmem:[#allocation5 + $0x168] sm:$0xff]
    %v1676 = vld [vmem:[#allocation5 + $0x170] sm:$0xff]
    %v1677 = vld [vmem:[#allocation5 + $0x178] sm:$0xff]
    %v1678 = vld [vmem:[#allocation5 + $0x180] sm:$0xff]
    %v1679 = vld [vmem:[#allocation5 + $0x188] sm:$0xff]
    %v1680 = vld [vmem:[#allocation5 + $0x190] sm:$0xff]
    %v1681 = vld [vmem:[#allocation5 + $0x198] sm:$0xff]
    %v1682 = vld [vmem:[#allocation5 + $0x1a0] sm:$0xff]
    %v1683 = vld [vmem:[#allocation5 + $0x1a8] sm:$0xff]
    %v1684 = vld [vmem:[#allocation5 + $0x1b0] sm:$0xff]
    %v1685 = vld [vmem:[#allocation5 + $0x1b8] sm:$0xff]
    %v1686 = vld [vmem:[#allocation5 + $0x1c0] sm:$0xff]
    %v1687 = vld [vmem:[#allocation5 + $0x1c8] sm:$0xff]
    %v1688 = vld [vmem:[#allocation5 + $0x1d0] sm:$0xff]
    %v1689 = vld [vmem:[#allocation5 + $0x1d8] sm:$0xff]
    %v1690 = vld [vmem:[#allocation5 + $0x1e0] sm:$0xff]
    %v1691 = vld [vmem:[#allocation5 + $0x1e8] sm:$0xff]
    %v1692 = vld [vmem:[#allocation5 + $0x1f0] sm:$0xff]
    %v1693 = vld [vmem:[#allocation5 + $0x1f8] sm:$0xff]
    %1694 = vmatprep.subr.mxu0 %v1631
    %1695 = vmatpush1.msra.mxu0 %v1630
    %1696 = vmatprep.subr.mxu0 %v1635
    %1697 = vmatpush1.msra.mxu0 %v1634
    %1698 = vmatprep.subr.mxu0 %v1639
    %1699 = vmatpush1.msra.mxu0 %v1638
    %1700 = vmatprep.subr.mxu0 %v1643
    %1701 = vmatpush1.msra.mxu0 %v1642
    %1702 = vmatprep.subr.mxu0 %v1647
    %1703 = vmatpush1.msra.mxu0 %v1646
    %1704 = vmatprep.subr.mxu0 %v1651
    %1705 = vmatpush1.msra.mxu0 %v1650
    %1706 = vmatprep.subr.mxu0 %v1655
    %1707 = vmatpush1.msra.mxu0 %v1654
    %1708 = vmatprep.subr.mxu0 %v1659
    %1709 = vmatpush1.msra.mxu0 %v1658
    %1710 = vmatprep.subr.mxu0 %v1663
    %1711 = vmatpush1.msra.mxu0 %v1662
    %1712 = vmatprep.subr.mxu0 %v1667
    %1713 = vmatpush1.msra.mxu0 %v1666
    %1714 = vmatprep.subr.mxu0 %v1671
    %1715 = vmatpush1.msra.mxu0 %v1670
    %1716 = vmatprep.subr.mxu0 %v1675
    %1717 = vmatpush1.msra.mxu0 %v1674
    %1718 = vmatprep.subr.mxu0 %v1679
    %1719 = vmatpush1.msra.mxu0 %v1678
    %1720 = vmatprep.subr.mxu0 %v1683
    %1721 = vmatpush1.msra.mxu0 %v1682
    %1722 = vmatprep.subr.mxu0 %v1687
    %1723 = vmatpush1.msra.mxu0 %v1686
    %1724 = vmatprep.subr.mxu0 %v1691
    %1725 = vmatpush1.msra.mxu0 %v1690
    %1726 = vmatprep.subr.mxu0 0.0
    %1727 = vmatpush1.msra.mxu0 0.0
    %1728 = vmatprep.subr.mxu0 0.0
    %1729 = vmatpush1.msra.mxu0 0.0
    %1730 = vmatprep.subr.mxu0 0.0
    %1731 = vmatpush1.msra.mxu0 0.0
    %1732 = vmatprep.subr.mxu0 0.0
    %1733 = vmatpush1.msra.mxu0 0.0
    %1734 = vmatprep.subr.mxu0 0.0
    %1735 = vmatpush1.msra.mxu0 0.0
    %1736 = vmatprep.subr.mxu0 0.0
    %1737 = vmatpush1.msra.mxu0 0.0
    %1738 = vmatprep.subr.mxu0 0.0
    %1739 = vmatpush1.msra.mxu0 0.0
    %1740 = vmatprep.subr.mxu0 0.0
    %1741 = vmatpush1.msra.mxu0 0.0
    %1742 = vmatprep.subr.mxu0 0.0
    %1743 = vmatpush1.msra.mxu0 0.0
    %1744 = vmatprep.subr.mxu0 0.0
    %1745 = vmatpush1.msra.mxu0 0.0
    %1746 = vmatprep.subr.mxu0 0.0
    %1747 = vmatpush1.msra.mxu0 0.0
    %1748 = vmatprep.subr.mxu0 0.0
    %1749 = vmatpush1.msra.mxu0 0.0
    %1750 = vmatprep.subr.mxu0 0.0
    %1751 = vmatpush1.msra.mxu0 0.0
    %1752 = vmatprep.subr.mxu0 0.0
    %1753 = vmatpush1.msra.mxu0 0.0
    %1754 = vmatprep.subr.mxu0 0.0
    %1755 = vmatpush1.msra.mxu0 0.0
    %1756 = vmatprep.subr.mxu0 0.0
    %1757 = vmatpush1.msra.mxu0 0.0
    %1758 = vmatprep.mubr.f32.mxu0 0.0
    %1759 = vmatmul.mubr.f32.gmra.mrb[0].mxu0 %v1621
    %v1760 = vpop.f32.mrb[0].mxu0
    %v1761 = vadd.f32 0.0, %v1760
    %v1762 = vpop.f32.mrb[0].mxu0
    %v1763 = vadd.f32 0.0, %v1762
    %1764 = vdwg.mxu0
    %1765 = vmatprep.subr.mxu0 %v1633
    %1766 = vmatpush1.msra.mxu0 %v1632
    %1767 = vmatprep.subr.mxu0 %v1637
    %1768 = vmatpush1.msra.mxu0 %v1636
    %1769 = vmatprep.subr.mxu0 %v1641
    %1770 = vmatpush1.msra.mxu0 %v1640
    %1771 = vmatprep.subr.mxu0 %v1645
    %1772 = vmatpush1.msra.mxu0 %v1644
    %1773 = vmatprep.subr.mxu0 %v1649
    %1774 = vmatpush1.msra.mxu0 %v1648
    %1775 = vmatprep.subr.mxu0 %v1653
    %1776 = vmatpush1.msra.mxu0 %v1652
    %1777 = vmatprep.subr.mxu0 %v1657
    %1778 = vmatpush1.msra.mxu0 %v1656
    %1779 = vmatprep.subr.mxu0 %v1661
    %1780 = vmatpush1.msra.mxu0 %v1660
    %1781 = vmatprep.subr.mxu0 %v1665
    %1782 = vmatpush1.msra.mxu0 %v1664
    %1783 = vmatprep.subr.mxu0 %v1669
    %1784 = vmatpush1.msra.mxu0 %v1668
    %1785 = vmatprep.subr.mxu0 %v1673
    %1786 = vmatpush1.msra.mxu0 %v1672
    %1787 = vmatprep.subr.mxu0 %v1677
    %1788 = vmatpush1.msra.mxu0 %v1676
    %1789 = vmatprep.subr.mxu0 %v1681
    %1790 = vmatpush1.msra.mxu0 %v1680
    %1791 = vmatprep.subr.mxu0 %v1685
    %1792 = vmatpush1.msra.mxu0 %v1684
    %1793 = vmatprep.subr.mxu0 %v1689
    %1794 = vmatpush1.msra.mxu0 %v1688
    %1795 = vmatprep.subr.mxu0 %v1693
    %1796 = vmatpush1.msra.mxu0 %v1692
    %1797 = vmatprep.subr.mxu0 0.0
    %1798 = vmatpush1.msra.mxu0 0.0
    %1799 = vmatprep.subr.mxu0 0.0
    %1800 = vmatpush1.msra.mxu0 0.0
    %1801 = vmatprep.subr.mxu0 0.0
    %1802 = vmatpush1.msra.mxu0 0.0
    %1803 = vmatprep.subr.mxu0 0.0
    %1804 = vmatpush1.msra.mxu0 0.0
    %1805 = vmatprep.subr.mxu0 0.0
    %1806 = vmatpush1.msra.mxu0 0.0
    %1807 = vmatprep.subr.mxu0 0.0
    %1808 = vmatpush1.msra.mxu0 0.0
    %1809 = vmatprep.subr.mxu0 0.0
    %1810 = vmatpush1.msra.mxu0 0.0
    %1811 = vmatprep.subr.mxu0 0.0
    %1812 = vmatpush1.msra.mxu0 0.0
    %1813 = vmatprep.subr.mxu0 0.0
    %1814 = vmatpush1.msra.mxu0 0.0
    %1815 = vmatprep.subr.mxu0 0.0
    %1816 = vmatpush1.msra.mxu0 0.0
    %1817 = vmatprep.subr.mxu0 0.0
    %1818 = vmatpush1.msra.mxu0 0.0
    %1819 = vmatprep.subr.mxu0 0.0
    %1820 = vmatpush1.msra.mxu0 0.0
    %1821 = vmatprep.subr.mxu0 0.0
    %1822 = vmatpush1.msra.mxu0 0.0
    %1823 = vmatprep.subr.mxu0 0.0
    %1824 = vmatpush1.msra.mxu0 0.0
    %1825 = vmatprep.subr.mxu0 0.0
    %1826 = vmatpush1.msra.mxu0 0.0
    %1827 = vmatprep.subr.mxu0 0.0
    %1828 = vmatpush1.msra.mxu0 0.0
    %1829 = vmatprep.mubr.f32.mxu0 0.0
    %1830 = vmatmul.mubr.f32.gmra.mrb[0].mxu0 %v1621
    %v1831 = vpop.f32.mrb[0].mxu0
    %v1832 = vadd.f32 0.0, %v1831
    %v1833 = vpop.f32.mrb[0].mxu0
    %v1834 = vadd.f32 0.0, %v1833
    %1835 = vdwg.mxu0
    %v1836 = vadd.f32 %v1626, %v1761
    %v1837 = vadd.f32 %v1627, %v1763
    %v1838 = vadd.f32 %v1628, %v1832
    %v1839 = vadd.f32 %v1629, %v1834
    %v1840 = vxor.u32 %v1836, 2147483648
    %v1841 = vxor.u32 %v1837, 2147483648
    %v1842 = vxor.u32 %v1838, 2147483648
    %v1843 = vmul.f32 %v1840, 1.442695
    %v1844 = vpow.pop %v1843
    %v1845 = vmul.f32 %v1841, 1.442695
    %v1846 = vpow.pop %v1845
    %v1847 = vmul.f32 %v1842, 1.442695
    %v1848 = vpow.pop %v1847
    %v1849 = vadd.f32 %v1844, 1.0
    %v1850 = vadd.f32 %v1846, 1.0
    %v1851 = vadd.f32 %v1848, 1.0
    %v1852 = vrcp.pop %v1849
    %v1853 = vmul.f32 1.0, %v1852
    %v1854 = vrcp.pop %v1850
    %v1855 = vmul.f32 1.0, %v1854
    %v1856 = vrcp.pop %v1851
    %v1857 = vmul.f32 1.0, %v1856
    %v1858 = vtanh.pop %v1839
    %v1859 = vmul.f32 %v1855, %v1622
    %v1860 = vmul.f32 %v1853, %v1858
    %v1861 = vadd.f32 %v1859, %v1860
    %v1862 = vtanh.pop %v1861
    %v1863 = vmul.f32 %v1857, %v1862
    %1864 = vst [vmem:[#allocation4] sm:$0xff] %v1861
    %1865 = vst [vmem:[#allocation3] sm:$0xff] %v1863
    %v1866 = vld [vmem:[#allocation3] sm:$0xff]
    %v1867 = vld [vmem:[#allocation4] sm:$0xff]
    %s1868 = smul.u32 6, 4
    %s1869 = smul.addr %s1868, 8
    %s1870 = scalar_lea.vmem [#allocation2], %s1869
    %v1871 = vld [vmem:[%s1870] sm:$0xff]
    %v1872 = vld [vmem:[%s1870 + $0x8] sm:$0xff]
    %v1873 = vld [vmem:[%s1870 + $0x10] sm:$0xff]
    %v1874 = vld [vmem:[%s1870 + $0x18] sm:$0xff]
    %v1875 = vld [vmem:[#allocation5] sm:$0xff]
    %v1876 = vld [vmem:[#allocation5 + $0x8] sm:$0xff]
    %v1877 = vld [vmem:[#allocation5 + $0x10] sm:$0xff]
    %v1878 = vld [vmem:[#allocation5 + $0x18] sm:$0xff]
    %v1879 = vld [vmem:[#allocation5 + $0x20] sm:$0xff]
    %v1880 = vld [vmem:[#allocation5 + $0x28] sm:$0xff]
    %v1881 = vld [vmem:[#allocation5 + $0x30] sm:$0xff]
    %v1882 = vld [vmem:[#allocation5 + $0x38] sm:$0xff]
    %v1883 = vld [vmem:[#allocation5 + $0x40] sm:$0xff]
    %v1884 = vld [vmem:[#allocation5 + $0x48] sm:$0xff]
    %v1885 = vld [vmem:[#allocation5 + $0x50] sm:$0xff]
    %v1886 = vld [vmem:[#allocation5 + $0x58] sm:$0xff]
    %v1887 = vld [vmem:[#allocation5 + $0x60] sm:$0xff]
    %v1888 = vld [vmem:[#allocation5 + $0x68] sm:$0xff]
    %v1889 = vld [vmem:[#allocation5 + $0x70] sm:$0xff]
    %v1890 = vld [vmem:[#allocation5 + $0x78] sm:$0xff]
    %v1891 = vld [vmem:[#allocation5 + $0x80] sm:$0xff]
    %v1892 = vld [vmem:[#allocation5 + $0x88] sm:$0xff]
    %v1893 = vld [vmem:[#allocation5 + $0x90] sm:$0xff]
    %v1894 = vld [vmem:[#allocation5 + $0x98] sm:$0xff]
    %v1895 = vld [vmem:[#allocation5 + $0xa0] sm:$0xff]
    %v1896 = vld [vmem:[#allocation5 + $0xa8] sm:$0xff]
    %v1897 = vld [vmem:[#allocation5 + $0xb0] sm:$0xff]
    %v1898 = vld [vmem:[#allocation5 + $0xb8] sm:$0xff]
    %v1899 = vld [vmem:[#allocation5 + $0xc0] sm:$0xff]
    %v1900 = vld [vmem:[#allocation5 + $0xc8] sm:$0xff]
    %v1901 = vld [vmem:[#allocation5 + $0xd0] sm:$0xff]
    %v1902 = vld [vmem:[#allocation5 + $0xd8] sm:$0xff]
    %v1903 = vld [vmem:[#allocation5 + $0xe0] sm:$0xff]
    %v1904 = vld [vmem:[#allocation5 + $0xe8] sm:$0xff]
    %v1905 = vld [vmem:[#allocation5 + $0xf0] sm:$0xff]
    %v1906 = vld [vmem:[#allocation5 + $0xf8] sm:$0xff]
    %v1907 = vld [vmem:[#allocation5 + $0x100] sm:$0xff]
    %v1908 = vld [vmem:[#allocation5 + $0x108] sm:$0xff]
    %v1909 = vld [vmem:[#allocation5 + $0x110] sm:$0xff]
    %v1910 = vld [vmem:[#allocation5 + $0x118] sm:$0xff]
    %v1911 = vld [vmem:[#allocation5 + $0x120] sm:$0xff]
    %v1912 = vld [vmem:[#allocation5 + $0x128] sm:$0xff]
    %v1913 = vld [vmem:[#allocation5 + $0x130] sm:$0xff]
    %v1914 = vld [vmem:[#allocation5 + $0x138] sm:$0xff]
    %v1915 = vld [vmem:[#allocation5 + $0x140] sm:$0xff]
    %v1916 = vld [vmem:[#allocation5 + $0x148] sm:$0xff]
    %v1917 = vld [vmem:[#allocation5 + $0x150] sm:$0xff]
    %v1918 = vld [vmem:[#allocation5 + $0x158] sm:$0xff]
    %v1919 = vld [vmem:[#allocation5 + $0x160] sm:$0xff]
    %v1920 = vld [vmem:[#allocation5 + $0x168] sm:$0xff]
    %v1921 = vld [vmem:[#allocation5 + $0x170] sm:$0xff]
    %v1922 = vld [vmem:[#allocation5 + $0x178] sm:$0xff]
    %v1923 = vld [vmem:[#allocation5 + $0x180] sm:$0xff]
    %v1924 = vld [vmem:[#allocation5 + $0x188] sm:$0xff]
    %v1925 = vld [vmem:[#allocation5 + $0x190] sm:$0xff]
    %v1926 = vld [vmem:[#allocation5 + $0x198] sm:$0xff]
    %v1927 = vld [vmem:[#allocation5 + $0x1a0] sm:$0xff]
    %v1928 = vld [vmem:[#allocation5 + $0x1a8] sm:$0xff]
    %v1929 = vld [vmem:[#allocation5 + $0x1b0] sm:$0xff]
    %v1930 = vld [vmem:[#allocation5 + $0x1b8] sm:$0xff]
    %v1931 = vld [vmem:[#allocation5 + $0x1c0] sm:$0xff]
    %v1932 = vld [vmem:[#allocation5 + $0x1c8] sm:$0xff]
    %v1933 = vld [vmem:[#allocation5 + $0x1d0] sm:$0xff]
    %v1934 = vld [vmem:[#allocation5 + $0x1d8] sm:$0xff]
    %v1935 = vld [vmem:[#allocation5 + $0x1e0] sm:$0xff]
    %v1936 = vld [vmem:[#allocation5 + $0x1e8] sm:$0xff]
    %v1937 = vld [vmem:[#allocation5 + $0x1f0] sm:$0xff]
    %v1938 = vld [vmem:[#allocation5 + $0x1f8] sm:$0xff]
    %1939 = vmatprep.subr.mxu0 %v1876
    %1940 = vmatpush1.msra.mxu0 %v1875
    %1941 = vmatprep.subr.mxu0 %v1880
    %1942 = vmatpush1.msra.mxu0 %v1879
    %1943 = vmatprep.subr.mxu0 %v1884
    %1944 = vmatpush1.msra.mxu0 %v1883
    %1945 = vmatprep.subr.mxu0 %v1888
    %1946 = vmatpush1.msra.mxu0 %v1887
    %1947 = vmatprep.subr.mxu0 %v1892
    %1948 = vmatpush1.msra.mxu0 %v1891
    %1949 = vmatprep.subr.mxu0 %v1896
    %1950 = vmatpush1.msra.mxu0 %v1895
    %1951 = vmatprep.subr.mxu0 %v1900
    %1952 = vmatpush1.msra.mxu0 %v1899
    %1953 = vmatprep.subr.mxu0 %v1904
    %1954 = vmatpush1.msra.mxu0 %v1903
    %1955 = vmatprep.subr.mxu0 %v1908
    %1956 = vmatpush1.msra.mxu0 %v1907
    %1957 = vmatprep.subr.mxu0 %v1912
    %1958 = vmatpush1.msra.mxu0 %v1911
    %1959 = vmatprep.subr.mxu0 %v1916
    %1960 = vmatpush1.msra.mxu0 %v1915
    %1961 = vmatprep.subr.mxu0 %v1920
    %1962 = vmatpush1.msra.mxu0 %v1919
    %1963 = vmatprep.subr.mxu0 %v1924
    %1964 = vmatpush1.msra.mxu0 %v1923
    %1965 = vmatprep.subr.mxu0 %v1928
    %1966 = vmatpush1.msra.mxu0 %v1927
    %1967 = vmatprep.subr.mxu0 %v1932
    %1968 = vmatpush1.msra.mxu0 %v1931
    %1969 = vmatprep.subr.mxu0 %v1936
    %1970 = vmatpush1.msra.mxu0 %v1935
    %1971 = vmatprep.subr.mxu0 0.0
    %1972 = vmatpush1.msra.mxu0 0.0
    %1973 = vmatprep.subr.mxu0 0.0
    %1974 = vmatpush1.msra.mxu0 0.0
    %1975 = vmatprep.subr.mxu0 0.0
    %1976 = vmatpush1.msra.mxu0 0.0
    %1977 = vmatprep.subr.mxu0 0.0
    %1978 = vmatpush1.msra.mxu0 0.0
    %1979 = vmatprep.subr.mxu0 0.0
    %1980 = vmatpush1.msra.mxu0 0.0
    %1981 = vmatprep.subr.mxu0 0.0
    %1982 = vmatpush1.msra.mxu0 0.0
    %1983 = vmatprep.subr.mxu0 0.0
    %1984 = vmatpush1.msra.mxu0 0.0
    %1985 = vmatprep.subr.mxu0 0.0
    %1986 = vmatpush1.msra.mxu0 0.0
    %1987 = vmatprep.subr.mxu0 0.0
    %1988 = vmatpush1.msra.mxu0 0.0
    %1989 = vmatprep.subr.mxu0 0.0
    %1990 = vmatpush1.msra.mxu0 0.0
    %1991 = vmatprep.subr.mxu0 0.0
    %1992 = vmatpush1.msra.mxu0 0.0
    %1993 = vmatprep.subr.mxu0 0.0
    %1994 = vmatpush1.msra.mxu0 0.0
    %1995 = vmatprep.subr.mxu0 0.0
    %1996 = vmatpush1.msra.mxu0 0.0
    %1997 = vmatprep.subr.mxu0 0.0
    %1998 = vmatpush1.msra.mxu0 0.0
    %1999 = vmatprep.subr.mxu0 0.0
    %2000 = vmatpush1.msra.mxu0 0.0
    %2001 = vmatprep.subr.mxu0 0.0
    %2002 = vmatpush1.msra.mxu0 0.0
    %2003 = vmatprep.mubr.f32.mxu0 0.0
    %2004 = vmatmul.mubr.f32.gmra.mrb[0].mxu0 %v1866
    %v2005 = vpop.f32.mrb[0].mxu0
    %v2006 = vadd.f32 0.0, %v2005
    %v2007 = vpop.f32.mrb[0].mxu0
    %v2008 = vadd.f32 0.0, %v2007
    %2009 = vdwg.mxu0
    %2010 = vmatprep.subr.mxu0 %v1878
    %2011 = vmatpush1.msra.mxu0 %v1877
    %2012 = vmatprep.subr.mxu0 %v1882
    %2013 = vmatpush1.msra.mxu0 %v1881
    %2014 = vmatprep.subr.mxu0 %v1886
    %2015 = vmatpush1.msra.mxu0 %v1885
    %2016 = vmatprep.subr.mxu0 %v1890
    %2017 = vmatpush1.msra.mxu0 %v1889
    %2018 = vmatprep.subr.mxu0 %v1894
    %2019 = vmatpush1.msra.mxu0 %v1893
    %2020 = vmatprep.subr.mxu0 %v1898
    %2021 = vmatpush1.msra.mxu0 %v1897
    %2022 = vmatprep.subr.mxu0 %v1902
    %2023 = vmatpush1.msra.mxu0 %v1901
    %2024 = vmatprep.subr.mxu0 %v1906
    %2025 = vmatpush1.msra.mxu0 %v1905
    %2026 = vmatprep.subr.mxu0 %v1910
    %2027 = vmatpush1.msra.mxu0 %v1909
    %2028 = vmatprep.subr.mxu0 %v1914
    %2029 = vmatpush1.msra.mxu0 %v1913
    %2030 = vmatprep.subr.mxu0 %v1918
    %2031 = vmatpush1.msra.mxu0 %v1917
    %2032 = vmatprep.subr.mxu0 %v1922
    %2033 = vmatpush1.msra.mxu0 %v1921
    %2034 = vmatprep.subr.mxu0 %v1926
    %2035 = vmatpush1.msra.mxu0 %v1925
    %2036 = vmatprep.subr.mxu0 %v1930
    %2037 = vmatpush1.msra.mxu0 %v1929
    %2038 = vmatprep.subr.mxu0 %v1934
    %2039 = vmatpush1.msra.mxu0 %v1933
    %2040 = vmatprep.subr.mxu0 %v1938
    %2041 = vmatpush1.msra.mxu0 %v1937
    %2042 = vmatprep.subr.mxu0 0.0
    %2043 = vmatpush1.msra.mxu0 0.0
    %2044 = vmatprep.subr.mxu0 0.0
    %2045 = vmatpush1.msra.mxu0 0.0
    %2046 = vmatprep.subr.mxu0 0.0
    %2047 = vmatpush1.msra.mxu0 0.0
    %2048 = vmatprep.subr.mxu0 0.0
    %2049 = vmatpush1.msra.mxu0 0.0
    %2050 = vmatprep.subr.mxu0 0.0
    %2051 = vmatpush1.msra.mxu0 0.0
    %2052 = vmatprep.subr.mxu0 0.0
    %2053 = vmatpush1.msra.mxu0 0.0
    %2054 = vmatprep.subr.mxu0 0.0
    %2055 = vmatpush1.msra.mxu0 0.0
    %2056 = vmatprep.subr.mxu0 0.0
    %2057 = vmatpush1.msra.mxu0 0.0
    %2058 = vmatprep.subr.mxu0 0.0
    %2059 = vmatpush1.msra.mxu0 0.0
    %2060 = vmatprep.subr.mxu0 0.0
    %2061 = vmatpush1.msra.mxu0 0.0
    %2062 = vmatprep.subr.mxu0 0.0
    %2063 = vmatpush1.msra.mxu0 0.0
    %2064 = vmatprep.subr.mxu0 0.0
    %2065 = vmatpush1.msra.mxu0 0.0
    %2066 = vmatprep.subr.mxu0 0.0
    %2067 = vmatpush1.msra.mxu0 0.0
    %2068 = vmatprep.subr.mxu0 0.0
    %2069 = vmatpush1.msra.mxu0 0.0
    %2070 = vmatprep.subr.mxu0 0.0
    %2071 = vmatpush1.msra.mxu0 0.0
    %2072 = vmatprep.subr.mxu0 0.0
    %2073 = vmatpush1.msra.mxu0 0.0
    %2074 = vmatprep.mubr.f32.mxu0 0.0
    %2075 = vmatmul.mubr.f32.gmra.mrb[0].mxu0 %v1866
    %v2076 = vpop.f32.mrb[0].mxu0
    %v2077 = vadd.f32 0.0, %v2076
    %v2078 = vpop.f32.mrb[0].mxu0
    %v2079 = vadd.f32 0.0, %v2078
    %2080 = vdwg.mxu0
    %v2081 = vadd.f32 %v1871, %v2006
    %v2082 = vadd.f32 %v1872, %v2008
    %v2083 = vadd.f32 %v1873, %v2077
    %v2084 = vadd.f32 %v1874, %v2079
    %v2085 = vxor.u32 %v2081, 2147483648
    %v2086 = vxor.u32 %v2082, 2147483648
    %v2087 = vxor.u32 %v2083, 2147483648
    %v2088 = vmul.f32 %v2085, 1.442695
    %v2089 = vpow.pop %v2088
    %v2090 = vmul.f32 %v2086, 1.442695
    %v2091 = vpow.pop %v2090
    %v2092 = vmul.f32 %v2087, 1.442695
    %v2093 = vpow.pop %v2092
    %v2094 = vadd.f32 %v2089, 1.0
    %v2095 = vadd.f32 %v2091, 1.0
    %v2096 = vadd.f32 %v2093, 1.0
    %v2097 = vrcp.pop %v2094
    %v2098 = vmul.f32 1.0, %v2097
    %v2099 = vrcp.pop %v2095
    %v2100 = vmul.f32 1.0, %v2099
    %v2101 = vrcp.pop %v2096
    %v2102 = vmul.f32 1.0, %v2101
    %v2103 = vtanh.pop %v2084
    %v2104 = vmul.f32 %v2100, %v1867
    %v2105 = vmul.f32 %v2098, %v2103
    %v2106 = vadd.f32 %v2104, %v2105
    %v2107 = vtanh.pop %v2106
    %v2108 = vmul.f32 %v2102, %v2107
    %2109 = vst [vmem:[#allocation4] sm:$0xff] %v2106
    %2110 = vst [vmem:[#allocation3] sm:$0xff] %v2108
    %v2111 = vld [vmem:[#allocation3] sm:$0xff]
    %v2112 = vld [vmem:[#allocation4] sm:$0xff]
    %s2113 = smul.u32 7, 4
    %s2114 = smul.addr %s2113, 8
    %s2115 = scalar_lea.vmem [#allocation2], %s2114
    %v2116 = vld [vmem:[%s2115] sm:$0xff]
    %v2117 = vld [vmem:[%s2115 + $0x8] sm:$0xff]
    %v2118 = vld [vmem:[%s2115 + $0x10] sm:$0xff]
    %v2119 = vld [vmem:[%s2115 + $0x18] sm:$0xff]
    %v2120 = vld [vmem:[#allocation5] sm:$0xff]
    %v2121 = vld [vmem:[#allocation5 + $0x8] sm:$0xff]
    %v2122 = vld [vmem:[#allocation5 + $0x10] sm:$0xff]
    %v2123 = vld [vmem:[#allocation5 + $0x18] sm:$0xff]
    %v2124 = vld [vmem:[#allocation5 + $0x20] sm:$0xff]
    %v2125 = vld [vmem:[#allocation5 + $0x28] sm:$0xff]
    %v2126 = vld [vmem:[#allocation5 + $0x30] sm:$0xff]
    %v2127 = vld [vmem:[#allocation5 + $0x38] sm:$0xff]
    %v2128 = vld [vmem:[#allocation5 + $0x40] sm:$0xff]
    %v2129 = vld [vmem:[#allocation5 + $0x48] sm:$0xff]
    %v2130 = vld [vmem:[#allocation5 + $0x50] sm:$0xff]
    %v2131 = vld [vmem:[#allocation5 + $0x58] sm:$0xff]
    %v2132 = vld [vmem:[#allocation5 + $0x60] sm:$0xff]
    %v2133 = vld [vmem:[#allocation5 + $0x68] sm:$0xff]
    %v2134 = vld [vmem:[#allocation5 + $0x70] sm:$0xff]
    %v2135 = vld [vmem:[#allocation5 + $0x78] sm:$0xff]
    %v2136 = vld [vmem:[#allocation5 + $0x80] sm:$0xff]
    %v2137 = vld [vmem:[#allocation5 + $0x88] sm:$0xff]
    %v2138 = vld [vmem:[#allocation5 + $0x90] sm:$0xff]
    %v2139 = vld [vmem:[#allocation5 + $0x98] sm:$0xff]
    %v2140 = vld [vmem:[#allocation5 + $0xa0] sm:$0xff]
    %v2141 = vld [vmem:[#allocation5 + $0xa8] sm:$0xff]
    %v2142 = vld [vmem:[#allocation5 + $0xb0] sm:$0xff]
    %v2143 = vld [vmem:[#allocation5 + $0xb8] sm:$0xff]
    %v2144 = vld [vmem:[#allocation5 + $0xc0] sm:$0xff]
    %v2145 = vld [vmem:[#allocation5 + $0xc8] sm:$0xff]
    %v2146 = vld [vmem:[#allocation5 + $0xd0] sm:$0xff]
    %v2147 = vld [vmem:[#allocation5 + $0xd8] sm:$0xff]
    %v2148 = vld [vmem:[#allocation5 + $0xe0] sm:$0xff]
    %v2149 = vld [vmem:[#allocation5 + $0xe8] sm:$0xff]
    %v2150 = vld [vmem:[#allocation5 + $0xf0] sm:$0xff]
    %v2151 = vld [vmem:[#allocation5 + $0xf8] sm:$0xff]
    %v2152 = vld [vmem:[#allocation5 + $0x100] sm:$0xff]
    %v2153 = vld [vmem:[#allocation5 + $0x108] sm:$0xff]
    %v2154 = vld [vmem:[#allocation5 + $0x110] sm:$0xff]
    %v2155 = vld [vmem:[#allocation5 + $0x118] sm:$0xff]
    %v2156 = vld [vmem:[#allocation5 + $0x120] sm:$0xff]
    %v2157 = vld [vmem:[#allocation5 + $0x128] sm:$0xff]
    %v2158 = vld [vmem:[#allocation5 + $0x130] sm:$0xff]
    %v2159 = vld [vmem:[#allocation5 + $0x138] sm:$0xff]
    %v2160 = vld [vmem:[#allocation5 + $0x140] sm:$0xff]
    %v2161 = vld [vmem:[#allocation5 + $0x148] sm:$0xff]
    %v2162 = vld [vmem:[#allocation5 + $0x150] sm:$0xff]
    %v2163 = vld [vmem:[#allocation5 + $0x158] sm:$0xff]
    %v2164 = vld [vmem:[#allocation5 + $0x160] sm:$0xff]
    %v2165 = vld [vmem:[#allocation5 + $0x168] sm:$0xff]
    %v2166 = vld [vmem:[#allocation5 + $0x170] sm:$0xff]
    %v2167 = vld [vmem:[#allocation5 + $0x178] sm:$0xff]
    %v2168 = vld [vmem:[#allocation5 + $0x180] sm:$0xff]
    %v2169 = vld [vmem:[#allocation5 + $0x188] sm:$0xff]
    %v2170 = vld [vmem:[#allocation5 + $0x190] sm:$0xff]
    %v2171 = vld [vmem:[#allocation5 + $0x198] sm:$0xff]
    %v2172 = vld [vmem:[#allocation5 + $0x1a0] sm:$0xff]
    %v2173 = vld [vmem:[#allocation5 + $0x1a8] sm:$0xff]
    %v2174 = vld [vmem:[#allocation5 + $0x1b0] sm:$0xff]
    %v2175 = vld [vmem:[#allocation5 + $0x1b8] sm:$0xff]
    %v2176 = vld [vmem:[#allocation5 + $0x1c0] sm:$0xff]
    %v2177 = vld [vmem:[#allocation5 + $0x1c8] sm:$0xff]
    %v2178 = vld [vmem:[#allocation5 + $0x1d0] sm:$0xff]
    %v2179 = vld [vmem:[#allocation5 + $0x1d8] sm:$0xff]
    %v2180 = vld [vmem:[#allocation5 + $0x1e0] sm:$0xff]
    %v2181 = vld [vmem:[#allocation5 + $0x1e8] sm:$0xff]
    %v2182 = vld [vmem:[#allocation5 + $0x1f0] sm:$0xff]
    %v2183 = vld [vmem:[#allocation5 + $0x1f8] sm:$0xff]
    %2184 = vmatprep.subr.mxu0 %v2121
    %2185 = vmatpush1.msra.mxu0 %v2120
    %2186 = vmatprep.subr.mxu0 %v2125
    %2187 = vmatpush1.msra.mxu0 %v2124
    %2188 = vmatprep.subr.mxu0 %v2129
    %2189 = vmatpush1.msra.mxu0 %v2128
    %2190 = vmatprep.subr.mxu0 %v2133
    %2191 = vmatpush1.msra.mxu0 %v2132
    %2192 = vmatprep.subr.mxu0 %v2137
    %2193 = vmatpush1.msra.mxu0 %v2136
    %2194 = vmatprep.subr.mxu0 %v2141
    %2195 = vmatpush1.msra.mxu0 %v2140
    %2196 = vmatprep.subr.mxu0 %v2145
    %2197 = vmatpush1.msra.mxu0 %v2144
    %2198 = vmatprep.subr.mxu0 %v2149
    %2199 = vmatpush1.msra.mxu0 %v2148
    %2200 = vmatprep.subr.mxu0 %v2153
    %2201 = vmatpush1.msra.mxu0 %v2152
    %2202 = vmatprep.subr.mxu0 %v2157
    %2203 = vmatpush1.msra.mxu0 %v2156
    %2204 = vmatprep.subr.mxu0 %v2161
    %2205 = vmatpush1.msra.mxu0 %v2160
    %2206 = vmatprep.subr.mxu0 %v2165
    %2207 = vmatpush1.msra.mxu0 %v2164
    %2208 = vmatprep.subr.mxu0 %v2169
    %2209 = vmatpush1.msra.mxu0 %v2168
    %2210 = vmatprep.subr.mxu0 %v2173
    %2211 = vmatpush1.msra.mxu0 %v2172
    %2212 = vmatprep.subr.mxu0 %v2177
    %2213 = vmatpush1.msra.mxu0 %v2176
    %2214 = vmatprep.subr.mxu0 %v2181
    %2215 = vmatpush1.msra.mxu0 %v2180
    %2216 = vmatprep.subr.mxu0 0.0
    %2217 = vmatpush1.msra.mxu0 0.0
    %2218 = vmatprep.subr.mxu0 0.0
    %2219 = vmatpush1.msra.mxu0 0.0
    %2220 = vmatprep.subr.mxu0 0.0
    %2221 = vmatpush1.msra.mxu0 0.0
    %2222 = vmatprep.subr.mxu0 0.0
    %2223 = vmatpush1.msra.mxu0 0.0
    %2224 = vmatprep.subr.mxu0 0.0
    %2225 = vmatpush1.msra.mxu0 0.0
    %2226 = vmatprep.subr.mxu0 0.0
    %2227 = vmatpush1.msra.mxu0 0.0
    %2228 = vmatprep.subr.mxu0 0.0
    %2229 = vmatpush1.msra.mxu0 0.0
    %2230 = vmatprep.subr.mxu0 0.0
    %2231 = vmatpush1.msra.mxu0 0.0
    %2232 = vmatprep.subr.mxu0 0.0
    %2233 = vmatpush1.msra.mxu0 0.0
    %2234 = vmatprep.subr.mxu0 0.0
    %2235 = vmatpush1.msra.mxu0 0.0
    %2236 = vmatprep.subr.mxu0 0.0
    %2237 = vmatpush1.msra.mxu0 0.0
    %2238 = vmatprep.subr.mxu0 0.0
    %2239 = vmatpush1.msra.mxu0 0.0
    %2240 = vmatprep.subr.mxu0 0.0
    %2241 = vmatpush1.msra.mxu0 0.0
    %2242 = vmatprep.subr.mxu0 0.0
    %2243 = vmatpush1.msra.mxu0 0.0
    %2244 = vmatprep.subr.mxu0 0.0
    %2245 = vmatpush1.msra.mxu0 0.0
    %2246 = vmatprep.subr.mxu0 0.0
    %2247 = vmatpush1.msra.mxu0 0.0
    %2248 = vmatprep.mubr.f32.mxu0 0.0
    %2249 = vmatmul.mubr.f32.gmra.mrb[0].mxu0 %v2111
    %v2250 = vpop.f32.mrb[0].mxu0
    %v2251 = vadd.f32 0.0, %v2250
    %v2252 = vpop.f32.mrb[0].mxu0
    %v2253 = vadd.f32 0.0, %v2252
    %2254 = vdwg.mxu0
    %2255 = vmatprep.subr.mxu0 %v2123
    %2256 = vmatpush1.msra.mxu0 %v2122
    %2257 = vmatprep.subr.mxu0 %v2127
    %2258 = vmatpush1.msra.mxu0 %v2126
    %2259 = vmatprep.subr.mxu0 %v2131
    %2260 = vmatpush1.msra.mxu0 %v2130
    %2261 = vmatprep.subr.mxu0 %v2135
    %2262 = vmatpush1.msra.mxu0 %v2134
    %2263 = vmatprep.subr.mxu0 %v2139
    %2264 = vmatpush1.msra.mxu0 %v2138
    %2265 = vmatprep.subr.mxu0 %v2143
    %2266 = vmatpush1.msra.mxu0 %v2142
    %2267 = vmatprep.subr.mxu0 %v2147
    %2268 = vmatpush1.msra.mxu0 %v2146
    %2269 = vmatprep.subr.mxu0 %v2151
    %2270 = vmatpush1.msra.mxu0 %v2150
    %2271 = vmatprep.subr.mxu0 %v2155
    %2272 = vmatpush1.msra.mxu0 %v2154
    %2273 = vmatprep.subr.mxu0 %v2159
    %2274 = vmatpush1.msra.mxu0 %v2158
    %2275 = vmatprep.subr.mxu0 %v2163
    %2276 = vmatpush1.msra.mxu0 %v2162
    %2277 = vmatprep.subr.mxu0 %v2167
    %2278 = vmatpush1.msra.mxu0 %v2166
    %2279 = vmatprep.subr.mxu0 %v2171
    %2280 = vmatpush1.msra.mxu0 %v2170
    %2281 = vmatprep.subr.mxu0 %v2175
    %2282 = vmatpush1.msra.mxu0 %v2174
    %2283 = vmatprep.subr.mxu0 %v2179
    %2284 = vmatpush1.msra.mxu0 %v2178
    %2285 = vmatprep.subr.mxu0 %v2183
    %2286 = vmatpush1.msra.mxu0 %v2182
    %2287 = vmatprep.subr.mxu0 0.0
    %2288 = vmatpush1.msra.mxu0 0.0
    %2289 = vmatprep.subr.mxu0 0.0
    %2290 = vmatpush1.msra.mxu0 0.0
    %2291 = vmatprep.subr.mxu0 0.0
    %2292 = vmatpush1.msra.mxu0 0.0
    %2293 = vmatprep.subr.mxu0 0.0
    %2294 = vmatpush1.msra.mxu0 0.0
    %2295 = vmatprep.subr.mxu0 0.0
    %2296 = vmatpush1.msra.mxu0 0.0
    %2297 = vmatprep.subr.mxu0 0.0
    %2298 = vmatpush1.msra.mxu0 0.0
    %2299 = vmatprep.subr.mxu0 0.0
    %2300 = vmatpush1.msra.mxu0 0.0
    %2301 = vmatprep.subr.mxu0 0.0
    %2302 = vmatpush1.msra.mxu0 0.0
    %2303 = vmatprep.subr.mxu0 0.0
    %2304 = vmatpush1.msra.mxu0 0.0
    %2305 = vmatprep.subr.mxu0 0.0
    %2306 = vmatpush1.msra.mxu0 0.0
    %2307 = vmatprep.subr.mxu0 0.0
    %2308 = vmatpush1.msra.mxu0 0.0
    %2309 = vmatprep.subr.mxu0 0.0
    %2310 = vmatpush1.msra.mxu0 0.0
    %2311 = vmatprep.subr.mxu0 0.0
    %2312 = vmatpush1.msra.mxu0 0.0
    %2313 = vmatprep.subr.mxu0 0.0
    %2314 = vmatpush1.msra.mxu0 0.0
    %2315 = vmatprep.subr.mxu0 0.0
    %2316 = vmatpush1.msra.mxu0 0.0
    %2317 = vmatprep.subr.mxu0 0.0
    %2318 = vmatpush1.msra.mxu0 0.0
    %2319 = vmatprep.mubr.f32.mxu0 0.0
    %2320 = vmatmul.mubr.f32.gmra.mrb[0].mxu0 %v2111
    %v2321 = vpop.f32.mrb[0].mxu0
    %v2322 = vadd.f32 0.0, %v2321
    %v2323 = vpop.f32.mrb[0].mxu0
    %v2324 = vadd.f32 0.0, %v2323
    %2325 = vdwg.mxu0
    %v2326 = vadd.f32 %v2116, %v2251
    %v2327 = vadd.f32 %v2117, %v2253
    %v2328 = vadd.f32 %v2118, %v2322
    %v2329 = vadd.f32 %v2119, %v2324
    %v2330 = vxor.u32 %v2326, 2147483648
    %v2331 = vxor.u32 %v2327, 2147483648
    %v2332 = vxor.u32 %v2328, 2147483648
    %v2333 = vmul.f32 %v2330, 1.442695
    %v2334 = vpow.pop %v2333
    %v2335 = vmul.f32 %v2331, 1.442695
    %v2336 = vpow.pop %v2335
    %v2337 = vmul.f32 %v2332, 1.442695
    %v2338 = vpow.pop %v2337
    %v2339 = vadd.f32 %v2334, 1.0
    %v2340 = vadd.f32 %v2336, 1.0
    %v2341 = vadd.f32 %v2338, 1.0
    %v2342 = vrcp.pop %v2339
    %v2343 = vmul.f32 1.0, %v2342
    %v2344 = vrcp.pop %v2340
    %v2345 = vmul.f32 1.0, %v2344
    %v2346 = vrcp.pop %v2341
    %v2347 = vmul.f32 1.0, %v2346
    %v2348 = vtanh.pop %v2329
    %v2349 = vmul.f32 %v2345, %v2112
    %v2350 = vmul.f32 %v2343, %v2348
    %v2351 = vadd.f32 %v2349, %v2350
    %v2352 = vtanh.pop %v2351
    %v2353 = vmul.f32 %v2347, %v2352
    %2354 = vst [vmem:[#allocation4] sm:$0xff] %v2351
    %2355 = vst [vmem:[#allocation3] sm:$0xff] %v2353
    // Predicated region
    $region34: #{lstm_forward.3} parent=1 // pred_check
      %p2356 = pneg %p37
    $region35: #{lstm_forward.3} parent=1 // pred_check_branch
      %2358 = sbr.rel (%p2356) target = $region37
    $region36: #{lstm_forward.3} parent=1 // pred_region
      %v2359 = vld [vmem:[#allocation3] sm:$0xff]
      %v2360 = vld [vmem:[%s4] sm:$0xff]
      %v2361 = vld [vmem:[%s4 + $0x8] sm:$0xff]
      %v2362 = vld [vmem:[%s4 + $0x10] sm:$0xff]
      %v2363 = vld [vmem:[%s4 + $0x18] sm:$0xff]
      %v2364 = vld [vmem:[%s4 + $0x20] sm:$0xff]
      %v2365 = vld [vmem:[%s4 + $0x28] sm:$0xff]
      %v2366 = vld [vmem:[%s4 + $0x30] sm:$0xff]
      %v2367 = vld [vmem:[%s4 + $0x38] sm:$0xff]
      %v2368 = vld [vmem:[%s4 + $0x40] sm:$0xff]
      %v2369 = vld [vmem:[%s4 + $0x48] sm:$0xff]
      %v2370 = vld [vmem:[%s4 + $0x50] sm:$0xff]
      %v2371 = vld [vmem:[%s4 + $0x58] sm:$0xff]
      %v2372 = vld [vmem:[%s4 + $0x60] sm:$0xff]
      %v2373 = vld [vmem:[%s4 + $0x68] sm:$0xff]
      %v2374 = vld [vmem:[%s4 + $0x70] sm:$0xff]
      %v2375 = vld [vmem:[%s4 + $0x78] sm:$0xff]
      %v2376 = vld [vmem:[%s5] sm:$0x1]
      %v2378 = vlaneseq
      %v2379 = vshrl.u32 %v2378, 7
      %v2380 = vsub.s32 0, %v2379
      %v2381 = vrot.slane %v2376, %v2380
      %2383 = vmatprep.subr.mxu0 0.0
      %2384 = vmatpush1.msra.mxu0 %v2360
      %2385 = vmatprep.subr.mxu0 0.0
      %2386 = vmatpush1.msra.mxu0 %v2361
      %2387 = vmatprep.subr.mxu0 0.0
      %2388 = vmatpush1.msra.mxu0 %v2362
      %2389 = vmatprep.subr.mxu0 0.0
      %2390 = vmatpush1.msra.mxu0 %v2363
      %2391 = vmatprep.subr.mxu0 0.0
      %2392 = vmatpush1.msra.mxu0 %v2364
      %2393 = vmatprep.subr.mxu0 0.0
      %2394 = vmatpush1.msra.mxu0 %v2365
      %2395 = vmatprep.subr.mxu0 0.0
      %2396 = vmatpush1.msra.mxu0 %v2366
      %2397 = vmatprep.subr.mxu0 0.0
      %2398 = vmatpush1.msra.mxu0 %v2367
      %2399 = vmatprep.subr.mxu0 0.0
      %2400 = vmatpush1.msra.mxu0 %v2368
      %2401 = vmatprep.subr.mxu0 0.0
      %2402 = vmatpush1.msra.mxu0 %v2369
      %2403 = vmatprep.subr.mxu0 0.0
      %2404 = vmatpush1.msra.mxu0 %v2370
      %2405 = vmatprep.subr.mxu0 0.0
      %2406 = vmatpush1.msra.mxu0 %v2371
      %2407 = vmatprep.subr.mxu0 0.0
      %2408 = vmatpush1.msra.mxu0 %v2372
      %2409 = vmatprep.subr.mxu0 0.0
      %2410 = vmatpush1.msra.mxu0 %v2373
      %2411 = vmatprep.subr.mxu0 0.0
      %2412 = vmatpush1.msra.mxu0 %v2374
      %2413 = vmatprep.subr.mxu0 0.0
      %2414 = vmatpush1.msra.mxu0 %v2375
      %2415 = vmatprep.subr.mxu0 0.0
      %2416 = vmatpush1.msra.mxu0 0.0
      %2417 = vmatprep.subr.mxu0 0.0
      %2418 = vmatpush1.msra.mxu0 0.0
      %2419 = vmatprep.subr.mxu0 0.0
      %2420 = vmatpush1.msra.mxu0 0.0
      %2421 = vmatprep.subr.mxu0 0.0
      %2422 = vmatpush1.msra.mxu0 0.0
      %2423 = vmatprep.subr.mxu0 0.0
      %2424 = vmatpush1.msra.mxu0 0.0
      %2425 = vmatprep.subr.mxu0 0.0
      %2426 = vmatpush1.msra.mxu0 0.0
      %2427 = vmatprep.subr.mxu0 0.0
      %2428 = vmatpush1.msra.mxu0 0.0
      %2429 = vmatprep.subr.mxu0 0.0
      %2430 = vmatpush1.msra.mxu0 0.0
      %2431 = vmatprep.subr.mxu0 0.0
      %2432 = vmatpush1.msra.mxu0 0.0
      %2433 = vmatprep.subr.mxu0 0.0
      %2434 = vmatpush1.msra.mxu0 0.0
      %2435 = vmatprep.subr.mxu0 0.0
      %2436 = vmatpush1.msra.mxu0 0.0
      %2437 = vmatprep.subr.mxu0 0.0
      %2438 = vmatpush1.msra.mxu0 0.0
      %2439 = vmatprep.subr.mxu0 0.0
      %2440 = vmatpush1.msra.mxu0 0.0
      %2441 = vmatprep.subr.mxu0 0.0
      %2442 = vmatpush1.msra.mxu0 0.0
      %2443 = vmatprep.subr.mxu0 0.0
      %2444 = vmatpush1.msra.mxu0 0.0
      %2445 = vmatprep.subr.mxu0 0.0
      %2446 = vmatpush1.msra.mxu0 0.0
      %2447 = vmatprep.mubr.f32.mxu0 0.0
      %2448 = vmatmul.mubr.f32.gmra.mrb[0].mxu0 %v2359
      %v2449 = vpop.f32.mrb[0].mxu0
      %v2450 = vadd.f32 %v2381, %v2449
      %v2451 = vpop.f32.mrb[0].mxu0
      %2452 = vdwg.mxu0
      %2453 = vst [vmem:[%s6] sm:$0xff] %v2450
    $region37: #{lstm_forward.3} parent=1 // pred_fallthru
      _
    // Predicated region
    $region38: #{lstm_forward.3} parent=1 // pred_check
      _
    $region39: #{lstm_forward.3} parent=1 // pred_check_branch
      %2455 = sbr.rel (0) target = $region41
    $region40: #{lstm_forward.3} parent=1 // pred_region
      _
    $region41: #{lstm_forward.3} parent=1 // pred_fallthru
      _
    // Predicated region
    $region42: #{lstm_forward.3} parent=1 // pred_check
      _
    $region43: #{lstm_forward.3} parent=1 // pred_check_branch
      %2457 = sbr.rel (0) target = $region45
    $region44: #{lstm_forward.3} parent=1 // pred_region
      _
    $region45: #{lstm_forward.3} parent=1 // pred_fallthru
      _
    %2458 = vsyncpa [#allocation6], 1

// kernel: lstm_forward.2
$region0: #{lstm_forward.2}
  #allocation0 [shape = 'u32[]', space=smem, size = 0x4, offset = 0x4, fixed_abs, tag = 'smem constant byte address 0x4 - core index']
  #allocation1 [shape = 'u32[144,128]{1,0:T(1,128)}', space=vmem, size = 0x12000, scoped, tag = 'internal scratch']
  #allocation2 [shape = 'f32[64,512]{1,0:T(8,128)}', space=vmem, size = 0x20000, scoped, tag = 'scratch operand']
  #allocation3 [shape = 'f32[8,128]{1,0:T(8,128)}', space=vmem, size = 0x1000, scoped, tag = 'scratch operand']
  #allocation4 [shape = 'f32[8,128]{1,0:T(8,128)}', space=vmem, size = 0x1000, scoped, tag = 'scratch operand']
  %s0 = inlined_call_operand.vmem [shape: f32[64,4], index: 0, kind: input, shape index: {}]
  %s1 = inlined_call_operand.hbm [shape: f32[4,512], index: 1, kind: input, shape index: {}]
  %s2 = inlined_call_operand.hbm [shape: f32[128,512], index: 2, kind: input, shape index: {}]
  %s3 = inlined_call_operand.hbm [shape: f32[1,512], index: 3, kind: input, shape index: {}]
  %s4 = inlined_call_operand.vmem [shape: f32[64,128], index: 4, kind: output, shape index: {}]
  %s5 = sld [smem:[#allocation0]]
  $region42: #{lstm_forward.2} parent=0
    _
  %s7 = ssub.s32 1, %s5
  %s8 = scalar_select 0, %s7, %s5
  $region1: #{lstm_forward.2} parent=0
    #allocation5 [shape = 'u8[8192]{0}', space=vmem, size = 0x2000, scoped, tag = 'input window, operand 1, single buffered']
    #allocation6 [shape = 's32[1]{0}', space=sflag, size = 0x4, scoped, tag = 'scoped memory for lstm_forward.2']
    #allocation7 [shape = 'u8[262144]{0}', space=vmem, size = 0x40000, scoped, tag = 'input window, operand 2, single buffered']
    #allocation8 [shape = 's32[1]{0}', space=sflag, size = 0x4, scoped, tag = 'scoped memory for lstm_forward.2']
    #allocation9 [shape = 'u8[2048]{0}', space=vmem, size = 0x800, scoped, tag = 'input window, operand 3, single buffered']
    %9 = vsyncpa [#allocation6], 0
    %10 = vsyncpa [#allocation8], 0
    // Predicated region
    $region2: #{lstm_forward.2} parent=1 // pred_check
      _
    $region3: #{lstm_forward.2} parent=1 // pred_check_branch
      %12 = sbr.rel (0) target = $region5
    $region4: #{lstm_forward.2} parent=1 // pred_region
      _
    $region5: #{lstm_forward.2} parent=1 // pred_fallthru
      _
    // Predicated region
    $region6: #{lstm_forward.2} parent=1 // pred_check
      _
    $region7: #{lstm_forward.2} parent=1 // pred_check_branch
      %14 = sbr.rel (0) target = $region9
    $region8: #{lstm_forward.2} parent=1 // pred_region
      %s16 = ssub.s32 256, 256
      %17 = vsyncadd [#allocation6], %s16
      %s19 = sshll.u32 [#allocation5], 4
      %s20 = int_to_ptr.vmem [resolvable:$true] %s19
      %22 = dma.hbm_to_vmem [thread:$0]  %s1, 256, %s20, [#allocation6]
    $region9: #{lstm_forward.2} parent=1 // pred_fallthru
      _
    // Predicated region
    $region10: #{lstm_forward.2} parent=1 // pred_check
      _
    $region11: #{lstm_forward.2} parent=1 // pred_check_branch
      %24 = sbr.rel (0) target = $region13
    $region12: #{lstm_forward.2} parent=1 // pred_region
      %s26 = ssub.s32 8192, 8192
      %27 = vsyncadd [#allocation8], %s26
      %s28 = sshll.u32 [#allocation7], 4
      %s29 = int_to_ptr.vmem [resolvable:$true] %s28
      %34 = dma.hbm_to_vmem [thread:$0]  %s2, 8192, %s29, [#allocation8], 512, 512, 32
    $region13: #{lstm_forward.2} parent=1 // pred_fallthru
      _
    // Predicated region
    $region14: #{lstm_forward.2} parent=1 // pred_check
      _
    $region15: #{lstm_forward.2} parent=1 // pred_check_branch
      %36 = sbr.rel (0) target = $region17
    $region16: #{lstm_forward.2} parent=1 // pred_region
      %s38 = ssub.s32 64, 64
      %39 = vsyncadd [#allocation8], %s38
      %s41 = sshll.u32 [#allocation9], 4
      %s42 = int_to_ptr.vmem [resolvable:$true] %s41
      %44 = dma.hbm_to_vmem [thread:$0]  %s3, 64, %s42, [#allocation8]
    $region17: #{lstm_forward.2} parent=1 // pred_fallthru
      _
    // Predicated region
    $region18: #{lstm_forward.2} parent=1 // pred_check
      _
    $region19: #{lstm_forward.2} parent=1 // pred_check_branch
      %46 = sbr.rel (0) target = $region21
    $region20: #{lstm_forward.2} parent=1 // pred_region
      %47 = dma.done [#allocation6], 256
    $region21: #{lstm_forward.2} parent=1 // pred_fallthru
      _
    // Predicated region
    $region22: #{lstm_forward.2} parent=1 // pred_check
      _
    $region23: #{lstm_forward.2} parent=1 // pred_check_branch
      %49 = sbr.rel (0) target = $region25
    $region24: #{lstm_forward.2} parent=1 // pred_region
      %50 = dma.done [#allocation8], 8192
    $region25: #{lstm_forward.2} parent=1 // pred_fallthru
      _
    // Predicated region
    $region26: #{lstm_forward.2} parent=1 // pred_check
      _
    $region27: #{lstm_forward.2} parent=1 // pred_check_branch
      %52 = sbr.rel (0) target = $region29
    $region28: #{lstm_forward.2} parent=1 // pred_region
      %53 = dma.done [#allocation8], 64
    $region29: #{lstm_forward.2} parent=1 // pred_fallthru
      _
    %p54 = scmp.eq.s32.totalorder 0, 0
    // Predicated region
    $region30: #{lstm_forward.2} parent=1 // pred_check
      %p55 = pneg %p54
    $region31: #{lstm_forward.2} parent=1 // pred_check_branch
      %57 = sbr.rel (%p55) target = $region33
    $region32: #{lstm_forward.2} parent=1 // pred_region
      %58 = vst [vmem:[#allocation3] sm:$0xff] 0.0
      %59 = vst [vmem:[#allocation4] sm:$0xff] 0.0
    $region33: #{lstm_forward.2} parent=1 // pred_fallthru
      _
    %v60 = vld [vmem:[%s0] sm:$0xff]
    %v61 = vld [vmem:[%s0 + $0x8] sm:$0xff]
    %v62 = vld [vmem:[%s0 + $0x10] sm:$0xff]
    %v63 = vld [vmem:[%s0 + $0x18] sm:$0xff]
    %v64 = vld [vmem:[%s0 + $0x20] sm:$0xff]
    %v65 = vld [vmem:[%s0 + $0x28] sm:$0xff]
    %v66 = vld [vmem:[%s0 + $0x30] sm:$0xff]
    %v67 = vld [vmem:[%s0 + $0x38] sm:$0xff]
    %v68 = vld [vmem:[#allocation5] sm:$0xff]
    %v69 = vld [vmem:[#allocation5 + $0x8] sm:$0xff]
    %v70 = vld [vmem:[#allocation9] sm:$0xf]
    %v72 = vlaneseq
    %v73 = vshrl.u32 %v72, 7
    %v74 = vsub.s32 0, %v73
    %v75 = vrot.slane %v70, %v74
    %v76 = vlaneseq
    %v77 = vshrl.u32 %v76, 7
    %v78 = vsub.s32 1, %v77
    %v79 = vrot.slane %v70, %v78
    %v80 = vlaneseq
    %v81 = vshrl.u32 %v80, 7
    %v82 = vsub.s32 2, %v81
    %v83 = vrot.slane %v70, %v82
    %v84 = vlaneseq
    %v85 = vshrl.u32 %v84, 7
    %v86 = vsub.s32 3, %v85
    %v87 = vrot.slane %v70, %v86
    %v94 = vcombine.high %v68, %v68
    %v95 = vcombine.high %v69, %v69
    %vm96 = vcmask 31744
    %v98 = vsel %vm96, %v60, 0
    %v101 = vsel %vm96, %v61, 0
    %v104 = vsel %vm96, %v62, 0
    %v107 = vsel %vm96, %v63, 0
    %v110 = vsel %vm96, %v64, 0
    %v113 = vsel %vm96, %v65, 0
    %v116 = vsel %vm96, %v66, 0
    %v119 = vsel %vm96, %v67, 0
    %vm121 = vcmask 1043456
    %v122 = vsel %vm121, %v68, 0
    %v124 = vsel %vm121, %v94, 0
    %v126 = vsel %vm121, %v69, 0
    %v128 = vsel %vm121, %v95, 0
    %130 = vmatprep.subr.mxu0 %v124
    %131 = vmatpush1.msra.mxu0 %v122
    %132 = vmatprep.subr.mxu0 0.0
    %133 = vmatpush1.msra.mxu0 0.0
    %134 = vmatprep.subr.mxu0 0.0
    %135 = vmatpush1.msra.mxu0 0.0
    %136 = vmatprep.subr.mxu0 0.0
    %137 = vmatpush1.msra.mxu0 0.0
    %138 = vmatprep.subr.mxu0 0.0
    %139 = vmatpush1.msra.mxu0 0.0
    %140 = vmatprep.subr.mxu0 0.0
    %141 = vmatpush1.msra.mxu0 0.0
    %142 = vmatprep.subr.mxu0 0.0
    %143 = vmatpush1.msra.mxu0 0.0
    %144 = vmatprep.subr.mxu0 0.0
    %145 = vmatpush1.msra.mxu0 0.0
    %146 = vmatprep.subr.mxu0 0.0
    %147 = vmatpush1.msra.mxu0 0.0
    %148 = vmatprep.subr.mxu0 0.0
    %149 = vmatpush1.msra.mxu0 0.0
    %150 = vmatprep.subr.mxu0 0.0
    %151 = vmatpush1.msra.mxu0 0.0
    %152 = vmatprep.subr.mxu0 0.0
    %153 = vmatpush1.msra.mxu0 0.0
    %154 = vmatprep.subr.mxu0 0.0
    %155 = vmatpush1.msra.mxu0 0.0
    %156 = vmatprep.subr.mxu0 0.0
    %157 = vmatpush1.msra.mxu0 0.0
    %158 = vmatprep.subr.mxu0 0.0
    %159 = vmatpush1.msra.mxu0 0.0
    %160 = vmatprep.subr.mxu0 0.0
    %161 = vmatpush1.msra.mxu0 0.0
    %162 = vmatprep.subr.mxu0 0.0
    %163 = vmatpush1.msra.mxu0 0.0
    %164 = vmatprep.subr.mxu0 0.0
    %165 = vmatpush1.msra.mxu0 0.0
    %166 = vmatprep.subr.mxu0 0.0
    %167 = vmatpush1.msra.mxu0 0.0
    %168 = vmatprep.subr.mxu0 0.0
    %169 = vmatpush1.msra.mxu0 0.0
    %170 = vmatprep.subr.mxu0 0.0
    %171 = vmatpush1.msra.mxu0 0.0
    %172 = vmatprep.subr.mxu0 0.0
    %173 = vmatpush1.msra.mxu0 0.0
    %174 = vmatprep.subr.mxu0 0.0
    %175 = vmatpush1.msra.mxu0 0.0
    %176 = vmatprep.subr.mxu0 0.0
    %177 = vmatpush1.msra.mxu0 0.0
    %178 = vmatprep.subr.mxu0 0.0
    %179 = vmatpush1.msra.mxu0 0.0
    %180 = vmatprep.subr.mxu0 0.0
    %181 = vmatpush1.msra.mxu0 0.0
    %182 = vmatprep.subr.mxu0 0.0
    %183 = vmatpush1.msra.mxu0 0.0
    %184 = vmatprep.subr.mxu0 0.0
    %185 = vmatpush1.msra.mxu0 0.0
    %186 = vmatprep.subr.mxu0 0.0
    %187 = vmatpush1.msra.mxu0 0.0
    %188 = vmatprep.subr.mxu0 0.0
    %189 = vmatpush1.msra.mxu0 0.0
    %190 = vmatprep.subr.mxu0 0.0
    %191 = vmatpush1.msra.mxu0 0.0
    %192 = vmatprep.subr.mxu0 0.0
    %193 = vmatpush1.msra.mxu0 0.0
    %194 = vmatprep.mubr.f32.mxu0 0.0
    %195 = vmatmul.mubr.f32.gmra.mrb[0].mxu0 %v98
    %v196 = vpop.f32.mrb[0].mxu0
    %v197 = vadd.f32 %v75, %v196
    %v198 = vpop.f32.mrb[0].mxu0
    %v199 = vadd.f32 %v79, %v198
    %200 = vmatprep.mubr.f32.mxu0 0.0
    %201 = vmatmul.mubr.f32.gmra.mrb[0].mxu0 %v101
    %v202 = vpop.f32.mrb[0].mxu0
    %v203 = vadd.f32 %v75, %v202
    %v204 = vpop.f32.mrb[0].mxu0
    %v205 = vadd.f32 %v79, %v204
    %206 = vmatprep.mubr.f32.mxu0 0.0
    %207 = vmatmul.mubr.f32.gmra.mrb[0].mxu0 %v104
    %v208 = vpop.f32.mrb[0].mxu0
    %v209 = vadd.f32 %v75, %v208
    %v210 = vpop.f32.mrb[0].mxu0
    %v211 = vadd.f32 %v79, %v210
    %212 = vmatprep.mubr.f32.mxu0 0.0
    %213 = vmatmul.mubr.f32.gmra.mrb[0].mxu0 %v107
    %v214 = vpop.f32.mrb[0].mxu0
    %v215 = vadd.f32 %v75, %v214
    %v216 = vpop.f32.mrb[0].mxu0
    %v217 = vadd.f32 %v79, %v216
    %218 = vmatprep.mubr.f32.mxu0 0.0
    %219 = vmatmul.mubr.f32.gmra.mrb[0].mxu0 %v110
    %v220 = vpop.f32.mrb[0].mxu0
    %v221 = vadd.f32 %v75, %v220
    %v222 = vpop.f32.mrb[0].mxu0
    %v223 = vadd.f32 %v79, %v222
    %224 = vmatprep.mubr.f32.mxu0 0.0
    %225 = vmatmul.mubr.f32.gmra.mrb[0].mxu0 %v113
    %v226 = vpop.f32.mrb[0].mxu0
    %v227 = vadd.f32 %v75, %v226
    %v228 = vpop.f32.mrb[0].mxu0
    %v229 = vadd.f32 %v79, %v228
    %230 = vmatprep.mubr.f32.mxu0 0.0
    %231 = vmatmul.mubr.f32.gmra.mrb[0].mxu0 %v116
    %v232 = vpop.f32.mrb[0].mxu0
    %v233 = vadd.f32 %v75, %v232
    %v234 = vpop.f32.mrb[0].mxu0
    %v235 = vadd.f32 %v79, %v234
    %236 = vmatprep.mubr.f32.mxu0 0.0
    %237 = vmatmul.mubr.f32.gmra.mrb[0].mxu0 %v119
    %v238 = vpop.f32.mrb[0].mxu0
    %v239 = vadd.f32 %v75, %v238
    %v240 = vpop.f32.mrb[0].mxu0
    %v241 = vadd.f32 %v79, %v240
    %242 = vdwg.mxu0
    %243 = vmatprep.subr.mxu0 %v128
    %244 = vmatpush1.msra.mxu0 %v126
    %245 = vmatprep.subr.mxu0 0.0
    %246 = vmatpush1.msra.mxu0 0.0
    %247 = vmatprep.subr.mxu0 0.0
    %248 = vmatpush1.msra.mxu0 0.0
    %249 = vmatprep.subr.mxu0 0.0
    %250 = vmatpush1.msra.mxu0 0.0
    %251 = vmatprep.subr.mxu0 0.0
    %252 = vmatpush1.msra.mxu0 0.0
    %253 = vmatprep.subr.mxu0 0.0
    %254 = vmatpush1.msra.mxu0 0.0
    %255 = vmatprep.subr.mxu0 0.0
    %256 = vmatpush1.msra.mxu0 0.0
    %257 = vmatprep.subr.mxu0 0.0
    %258 = vmatpush1.msra.mxu0 0.0
    %259 = vmatprep.subr.mxu0 0.0
    %260 = vmatpush1.msra.mxu0 0.0
    %261 = vmatprep.subr.mxu0 0.0
    %262 = vmatpush1.msra.mxu0 0.0
    %263 = vmatprep.subr.mxu0 0.0
    %264 = vmatpush1.msra.mxu0 0.0
    %265 = vmatprep.subr.mxu0 0.0
    %266 = vmatpush1.msra.mxu0 0.0
    %267 = vmatprep.subr.mxu0 0.0
    %268 = vmatpush1.msra.mxu0 0.0
    %269 = vmatprep.subr.mxu0 0.0
    %270 = vmatpush1.msra.mxu0 0.0
    %271 = vmatprep.subr.mxu0 0.0
    %272 = vmatpush1.msra.mxu0 0.0
    %273 = vmatprep.subr.mxu0 0.0
    %274 = vmatpush1.msra.mxu0 0.0
    %275 = vmatprep.subr.mxu0 0.0
    %276 = vmatpush1.msra.mxu0 0.0
    %277 = vmatprep.subr.mxu0 0.0
    %278 = vmatpush1.msra.mxu0 0.0
    %279 = vmatprep.subr.mxu0 0.0
    %280 = vmatpush1.msra.mxu0 0.0
    %281 = vmatprep.subr.mxu0 0.0
    %282 = vmatpush1.msra.mxu0 0.0
    %283 = vmatprep.subr.mxu0 0.0
    %284 = vmatpush1.msra.mxu0 0.0
    %285 = vmatprep.subr.mxu0 0.0
    %286 = vmatpush1.msra.mxu0 0.0
    %287 = vmatprep.subr.mxu0 0.0
    %288 = vmatpush1.msra.mxu0 0.0
    %289 = vmatprep.subr.mxu0 0.0
    %290 = vmatpush1.msra.mxu0 0.0
    %291 = vmatprep.subr.mxu0 0.0
    %292 = vmatpush1.msra.mxu0 0.0
    %293 = vmatprep.subr.mxu0 0.0
    %294 = vmatpush1.msra.mxu0 0.0
    %295 = vmatprep.subr.mxu0 0.0
    %296 = vmatpush1.msra.mxu0 0.0
    %297 = vmatprep.subr.mxu0 0.0
    %298 = vmatpush1.msra.mxu0 0.0
    %299 = vmatprep.subr.mxu0 0.0
    %300 = vmatpush1.msra.mxu0 0.0
    %301 = vmatprep.subr.mxu0 0.0
    %302 = vmatpush1.msra.mxu0 0.0
    %303 = vmatprep.subr.mxu0 0.0
    %304 = vmatpush1.msra.mxu0 0.0
    %305 = vmatprep.subr.mxu0 0.0
    %306 = vmatpush1.msra.mxu0 0.0
    %307 = vmatprep.mubr.f32.mxu0 0.0
    %308 = vmatmul.mubr.f32.gmra.mrb[0].mxu0 %v98
    %v309 = vpop.f32.mrb[0].mxu0
    %v310 = vadd.f32 %v83, %v309
    %v311 = vpop.f32.mrb[0].mxu0
    %v312 = vadd.f32 %v87, %v311
    %313 = vmatprep.mubr.f32.mxu0 0.0
    %314 = vmatmul.mubr.f32.gmra.mrb[0].mxu0 %v101
    %v315 = vpop.f32.mrb[0].mxu0
    %v316 = vadd.f32 %v83, %v315
    %v317 = vpop.f32.mrb[0].mxu0
    %v318 = vadd.f32 %v87, %v317
    %319 = vmatprep.mubr.f32.mxu0 0.0
    %320 = vmatmul.mubr.f32.gmra.mrb[0].mxu0 %v104
    %v321 = vpop.f32.mrb[0].mxu0
    %v322 = vadd.f32 %v83, %v321
    %v323 = vpop.f32.mrb[0].mxu0
    %v324 = vadd.f32 %v87, %v323
    %325 = vmatprep.mubr.f32.mxu0 0.0
    %326 = vmatmul.mubr.f32.gmra.mrb[0].mxu0 %v107
    %v327 = vpop.f32.mrb[0].mxu0
    %v328 = vadd.f32 %v83, %v327
    %v329 = vpop.f32.mrb[0].mxu0
    %v330 = vadd.f32 %v87, %v329
    %331 = vmatprep.mubr.f32.mxu0 0.0
    %332 = vmatmul.mubr.f32.gmra.mrb[0].mxu0 %v110
    %v333 = vpop.f32.mrb[0].mxu0
    %v334 = vadd.f32 %v83, %v333
    %v335 = vpop.f32.mrb[0].mxu0
    %v336 = vadd.f32 %v87, %v335
    %337 = vmatprep.mubr.f32.mxu0 0.0
    %338 = vmatmul.mubr.f32.gmra.mrb[0].mxu0 %v113
    %v339 = vpop.f32.mrb[0].mxu0
    %v340 = vadd.f32 %v83, %v339
    %v341 = vpop.f32.mrb[0].mxu0
    %v342 = vadd.f32 %v87, %v341
    %343 = vmatprep.mubr.f32.mxu0 0.0
    %344 = vmatmul.mubr.f32.gmra.mrb[0].mxu0 %v116
    %v345 = vpop.f32.mrb[0].mxu0
    %v346 = vadd.f32 %v83, %v345
    %v347 = vpop.f32.mrb[0].mxu0
    %v348 = vadd.f32 %v87, %v347
    %349 = vmatprep.mubr.f32.mxu0 0.0
    %350 = vmatmul.mubr.f32.gmra.mrb[0].mxu0 %v119
    %v351 = vpop.f32.mrb[0].mxu0
    %v352 = vadd.f32 %v83, %v351
    %v353 = vpop.f32.mrb[0].mxu0
    %v354 = vadd.f32 %v87, %v353
    %355 = vdwg.mxu0
    %356 = vst [vmem:[#allocation2] sm:$0xff] %v197
    %357 = vst [vmem:[#allocation2 + $0x8] sm:$0xff] %v199
    %358 = vst [vmem:[#allocation2 + $0x10] sm:$0xff] %v310
    %359 = vst [vmem:[#allocation2 + $0x18] sm:$0xff] %v312
    %360 = vst [vmem:[#allocation2 + $0x20] sm:$0xff] %v203
    %361 = vst [vmem:[#allocation2 + $0x28] sm:$0xff] %v205
    %362 = vst [vmem:[#allocation2 + $0x30] sm:$0xff] %v316
    %363 = vst [vmem:[#allocation2 + $0x38] sm:$0xff] %v318
    %364 = vst [vmem:[#allocation2 + $0x40] sm:$0xff] %v209
    %365 = vst [vmem:[#allocation2 + $0x48] sm:$0xff] %v211
    %366 = vst [vmem:[#allocation2 + $0x50] sm:$0xff] %v322
    %367 = vst [vmem:[#allocation2 + $0x58] sm:$0xff] %v324
    %368 = vst [vmem:[#allocation2 + $0x60] sm:$0xff] %v215
    %369 = vst [vmem:[#allocation2 + $0x68] sm:$0xff] %v217
    %370 = vst [vmem:[#allocation2 + $0x70] sm:$0xff] %v328
    %371 = vst [vmem:[#allocation2 + $0x78] sm:$0xff] %v330
    %372 = vst [vmem:[#allocation2 + $0x80] sm:$0xff] %v221
    %373 = vst [vmem:[#allocation2 + $0x88] sm:$0xff] %v223
    %374 = vst [vmem:[#allocation2 + $0x90] sm:$0xff] %v334
    %375 = vst [vmem:[#allocation2 + $0x98] sm:$0xff] %v336
    %376 = vst [vmem:[#allocation2 + $0xa0] sm:$0xff] %v227
    %377 = vst [vmem:[#allocation2 + $0xa8] sm:$0xff] %v229
    %378 = vst [vmem:[#allocation2 + $0xb0] sm:$0xff] %v340
    %379 = vst [vmem:[#allocation2 + $0xb8] sm:$0xff] %v342
    %380 = vst [vmem:[#allocation2 + $0xc0] sm:$0xff] %v233
    %381 = vst [vmem:[#allocation2 + $0xc8] sm:$0xff] %v235
    %382 = vst [vmem:[#allocation2 + $0xd0] sm:$0xff] %v346
    %383 = vst [vmem:[#allocation2 + $0xd8] sm:$0xff] %v348
    %384 = vst [vmem:[#allocation2 + $0xe0] sm:$0xff] %v239
    %385 = vst [vmem:[#allocation2 + $0xe8] sm:$0xff] %v241
    %386 = vst [vmem:[#allocation2 + $0xf0] sm:$0xff] %v352
    %387 = vst [vmem:[#allocation2 + $0xf8] sm:$0xff] %v354
    %v388 = vld [vmem:[#allocation3] sm:$0xff]
    %v389 = vld [vmem:[#allocation4] sm:$0xff]
    %s390 = smul.u32 0, 4
    %s391 = smul.addr %s390, 8
    %s392 = scalar_lea.vmem [#allocation2], %s391
    %v393 = vld [vmem:[%s392] sm:$0xff]
    %v394 = vld [vmem:[%s392 + $0x8] sm:$0xff]
    %v395 = vld [vmem:[%s392 + $0x10] sm:$0xff]
    %v396 = vld [vmem:[%s392 + $0x18] sm:$0xff]
    %v397 = vld [vmem:[#allocation7] sm:$0xff]
    %v398 = vld [vmem:[#allocation7 + $0x8] sm:$0xff]
    %v399 = vld [vmem:[#allocation7 + $0x10] sm:$0xff]
    %v400 = vld [vmem:[#allocation7 + $0x18] sm:$0xff]
    %v401 = vld [vmem:[#allocation7 + $0x20] sm:$0xff]
    %v402 = vld [vmem:[#allocation7 + $0x28] sm:$0xff]
    %v403 = vld [vmem:[#allocation7 + $0x30] sm:$0xff]
    %v404 = vld [vmem:[#allocation7 + $0x38] sm:$0xff]
    %v405 = vld [vmem:[#allocation7 + $0x40] sm:$0xff]
    %v406 = vld [vmem:[#allocation7 + $0x48] sm:$0xff]
    %v407 = vld [vmem:[#allocation7 + $0x50] sm:$0xff]
    %v408 = vld [vmem:[#allocation7 + $0x58] sm:$0xff]
    %v409 = vld [vmem:[#allocation7 + $0x60] sm:$0xff]
    %v410 = vld [vmem:[#allocation7 + $0x68] sm:$0xff]
    %v411 = vld [vmem:[#allocation7 + $0x70] sm:$0xff]
    %v412 = vld [vmem:[#allocation7 + $0x78] sm:$0xff]
    %v413 = vld [vmem:[#allocation7 + $0x80] sm:$0xff]
    %v414 = vld [vmem:[#allocation7 + $0x88] sm:$0xff]
    %v415 = vld [vmem:[#allocation7 + $0x90] sm:$0xff]
    %v416 = vld [vmem:[#allocation7 + $0x98] sm:$0xff]
    %v417 = vld [vmem:[#allocation7 + $0xa0] sm:$0xff]
    %v418 = vld [vmem:[#allocation7 + $0xa8] sm:$0xff]
    %v419 = vld [vmem:[#allocation7 + $0xb0] sm:$0xff]
    %v420 = vld [vmem:[#allocation7 + $0xb8] sm:$0xff]
    %v421 = vld [vmem:[#allocation7 + $0xc0] sm:$0xff]
    %v422 = vld [vmem:[#allocation7 + $0xc8] sm:$0xff]
    %v423 = vld [vmem:[#allocation7 + $0xd0] sm:$0xff]
    %v424 = vld [vmem:[#allocation7 + $0xd8] sm:$0xff]
    %v425 = vld [vmem:[#allocation7 + $0xe0] sm:$0xff]
    %v426 = vld [vmem:[#allocation7 + $0xe8] sm:$0xff]
    %v427 = vld [vmem:[#allocation7 + $0xf0] sm:$0xff]
    %v428 = vld [vmem:[#allocation7 + $0xf8] sm:$0xff]
    %v429 = vld [vmem:[#allocation7 + $0x100] sm:$0xff]
    %v430 = vld [vmem:[#allocation7 + $0x108] sm:$0xff]
    %v431 = vld [vmem:[#allocation7 + $0x110] sm:$0xff]
    %v432 = vld [vmem:[#allocation7 + $0x118] sm:$0xff]
    %v433 = vld [vmem:[#allocation7 + $0x120] sm:$0xff]
    %v434 = vld [vmem:[#allocation7 + $0x128] sm:$0xff]
    %v435 = vld [vmem:[#allocation7 + $0x130] sm:$0xff]
    %v436 = vld [vmem:[#allocation7 + $0x138] sm:$0xff]
    %v437 = vld [vmem:[#allocation7 + $0x140] sm:$0xff]
    %v438 = vld [vmem:[#allocation7 + $0x148] sm:$0xff]
    %v439 = vld [vmem:[#allocation7 + $0x150] sm:$0xff]
    %v440 = vld [vmem:[#allocation7 + $0x158] sm:$0xff]
    %v441 = vld [vmem:[#allocation7 + $0x160] sm:$0xff]
    %v442 = vld [vmem:[#allocation7 + $0x168] sm:$0xff]
    %v443 = vld [vmem:[#allocation7 + $0x170] sm:$0xff]
    %v444 = vld [vmem:[#allocation7 + $0x178] sm:$0xff]
    %v445 = vld [vmem:[#allocation7 + $0x180] sm:$0xff]
    %v446 = vld [vmem:[#allocation7 + $0x188] sm:$0xff]
    %v447 = vld [vmem:[#allocation7 + $0x190] sm:$0xff]
    %v448 = vld [vmem:[#allocation7 + $0x198] sm:$0xff]
    %v449 = vld [vmem:[#allocation7 + $0x1a0] sm:$0xff]
    %v450 = vld [vmem:[#allocation7 + $0x1a8] sm:$0xff]
    %v451 = vld [vmem:[#allocation7 + $0x1b0] sm:$0xff]
    %v452 = vld [vmem:[#allocation7 + $0x1b8] sm:$0xff]
    %v453 = vld [vmem:[#allocation7 + $0x1c0] sm:$0xff]
    %v454 = vld [vmem:[#allocation7 + $0x1c8] sm:$0xff]
    %v455 = vld [vmem:[#allocation7 + $0x1d0] sm:$0xff]
    %v456 = vld [vmem:[#allocation7 + $0x1d8] sm:$0xff]
    %v457 = vld [vmem:[#allocation7 + $0x1e0] sm:$0xff]
    %v458 = vld [vmem:[#allocation7 + $0x1e8] sm:$0xff]
    %v459 = vld [vmem:[#allocation7 + $0x1f0] sm:$0xff]
    %v460 = vld [vmem:[#allocation7 + $0x1f8] sm:$0xff]
    %461 = vmatprep.subr.mxu0 %v398
    %462 = vmatpush1.msra.mxu0 %v397
    %463 = vmatprep.subr.mxu0 %v402
    %464 = vmatpush1.msra.mxu0 %v401
    %465 = vmatprep.subr.mxu0 %v406
    %466 = vmatpush1.msra.mxu0 %v405
    %467 = vmatprep.subr.mxu0 %v410
    %468 = vmatpush1.msra.mxu0 %v409
    %469 = vmatprep.subr.mxu0 %v414
    %470 = vmatpush1.msra.mxu0 %v413
    %471 = vmatprep.subr.mxu0 %v418
    %472 = vmatpush1.msra.mxu0 %v417
    %473 = vmatprep.subr.mxu0 %v422
    %474 = vmatpush1.msra.mxu0 %v421
    %475 = vmatprep.subr.mxu0 %v426
    %476 = vmatpush1.msra.mxu0 %v425
    %477 = vmatprep.subr.mxu0 %v430
    %478 = vmatpush1.msra.mxu0 %v429
    %479 = vmatprep.subr.mxu0 %v434
    %480 = vmatpush1.msra.mxu0 %v433
    %481 = vmatprep.subr.mxu0 %v438
    %482 = vmatpush1.msra.mxu0 %v437
    %483 = vmatprep.subr.mxu0 %v442
    %484 = vmatpush1.msra.mxu0 %v441
    %485 = vmatprep.subr.mxu0 %v446
    %486 = vmatpush1.msra.mxu0 %v445
    %487 = vmatprep.subr.mxu0 %v450
    %488 = vmatpush1.msra.mxu0 %v449
    %489 = vmatprep.subr.mxu0 %v454
    %490 = vmatpush1.msra.mxu0 %v453
    %491 = vmatprep.subr.mxu0 %v458
    %492 = vmatpush1.msra.mxu0 %v457
    %493 = vmatprep.subr.mxu0 0.0
    %494 = vmatpush1.msra.mxu0 0.0
    %495 = vmatprep.subr.mxu0 0.0
    %496 = vmatpush1.msra.mxu0 0.0
    %497 = vmatprep.subr.mxu0 0.0
    %498 = vmatpush1.msra.mxu0 0.0
    %499 = vmatprep.subr.mxu0 0.0
    %500 = vmatpush1.msra.mxu0 0.0
    %501 = vmatprep.subr.mxu0 0.0
    %502 = vmatpush1.msra.mxu0 0.0
    %503 = vmatprep.subr.mxu0 0.0
    %504 = vmatpush1.msra.mxu0 0.0
    %505 = vmatprep.subr.mxu0 0.0
    %506 = vmatpush1.msra.mxu0 0.0
    %507 = vmatprep.subr.mxu0 0.0
    %508 = vmatpush1.msra.mxu0 0.0
    %509 = vmatprep.subr.mxu0 0.0
    %510 = vmatpush1.msra.mxu0 0.0
    %511 = vmatprep.subr.mxu0 0.0
    %512 = vmatpush1.msra.mxu0 0.0
    %513 = vmatprep.subr.mxu0 0.0
    %514 = vmatpush1.msra.mxu0 0.0
    %515 = vmatprep.subr.mxu0 0.0
    %516 = vmatpush1.msra.mxu0 0.0
    %517 = vmatprep.subr.mxu0 0.0
    %518 = vmatpush1.msra.mxu0 0.0
    %519 = vmatprep.subr.mxu0 0.0
    %520 = vmatpush1.msra.mxu0 0.0
    %521 = vmatprep.subr.mxu0 0.0
    %522 = vmatpush1.msra.mxu0 0.0
    %523 = vmatprep.subr.mxu0 0.0
    %524 = vmatpush1.msra.mxu0 0.0
    %525 = vmatprep.mubr.f32.mxu0 0.0
    %526 = vmatmul.mubr.f32.gmra.mrb[0].mxu0 %v388
    %v527 = vpop.f32.mrb[0].mxu0
    %v528 = vadd.f32 0.0, %v527
    %v529 = vpop.f32.mrb[0].mxu0
    %v530 = vadd.f32 0.0, %v529
    %531 = vdwg.mxu0
    %532 = vmatprep.subr.mxu0 %v400
    %533 = vmatpush1.msra.mxu0 %v399
    %534 = vmatprep.subr.mxu0 %v404
    %535 = vmatpush1.msra.mxu0 %v403
    %536 = vmatprep.subr.mxu0 %v408
    %537 = vmatpush1.msra.mxu0 %v407
    %538 = vmatprep.subr.mxu0 %v412
    %539 = vmatpush1.msra.mxu0 %v411
    %540 = vmatprep.subr.mxu0 %v416
    %541 = vmatpush1.msra.mxu0 %v415
    %542 = vmatprep.subr.mxu0 %v420
    %543 = vmatpush1.msra.mxu0 %v419
    %544 = vmatprep.subr.mxu0 %v424
    %545 = vmatpush1.msra.mxu0 %v423
    %546 = vmatprep.subr.mxu0 %v428
    %547 = vmatpush1.msra.mxu0 %v427
    %548 = vmatprep.subr.mxu0 %v432
    %549 = vmatpush1.msra.mxu0 %v431
    %550 = vmatprep.subr.mxu0 %v436
    %551 = vmatpush1.msra.mxu0 %v435
    %552 = vmatprep.subr.mxu0 %v440
    %553 = vmatpush1.msra.mxu0 %v439
    %554 = vmatprep.subr.mxu0 %v444
    %555 = vmatpush1.msra.mxu0 %v443
    %556 = vmatprep.subr.mxu0 %v448
    %557 = vmatpush1.msra.mxu0 %v447
    %558 = vmatprep.subr.mxu0 %v452
    %559 = vmatpush1.msra.mxu0 %v451
    %560 = vmatprep.subr.mxu0 %v456
    %561 = vmatpush1.msra.mxu0 %v455
    %562 = vmatprep.subr.mxu0 %v460
    %563 = vmatpush1.msra.mxu0 %v459
    %564 = vmatprep.subr.mxu0 0.0
    %565 = vmatpush1.msra.mxu0 0.0
    %566 = vmatprep.subr.mxu0 0.0
    %567 = vmatpush1.msra.mxu0 0.0
    %568 = vmatprep.subr.mxu0 0.0
    %569 = vmatpush1.msra.mxu0 0.0
    %570 = vmatprep.subr.mxu0 0.0
    %571 = vmatpush1.msra.mxu0 0.0
    %572 = vmatprep.subr.mxu0 0.0
    %573 = vmatpush1.msra.mxu0 0.0
    %574 = vmatprep.subr.mxu0 0.0
    %575 = vmatpush1.msra.mxu0 0.0
    %576 = vmatprep.subr.mxu0 0.0
    %577 = vmatpush1.msra.mxu0 0.0
    %578 = vmatprep.subr.mxu0 0.0
    %579 = vmatpush1.msra.mxu0 0.0
    %580 = vmatprep.subr.mxu0 0.0
    %581 = vmatpush1.msra.mxu0 0.0
    %582 = vmatprep.subr.mxu0 0.0
    %583 = vmatpush1.msra.mxu0 0.0
    %584 = vmatprep.subr.mxu0 0.0
    %585 = vmatpush1.msra.mxu0 0.0
    %586 = vmatprep.subr.mxu0 0.0
    %587 = vmatpush1.msra.mxu0 0.0
    %588 = vmatprep.subr.mxu0 0.0
    %589 = vmatpush1.msra.mxu0 0.0
    %590 = vmatprep.subr.mxu0 0.0
    %591 = vmatpush1.msra.mxu0 0.0
    %592 = vmatprep.subr.mxu0 0.0
    %593 = vmatpush1.msra.mxu0 0.0
    %594 = vmatprep.subr.mxu0 0.0
    %595 = vmatpush1.msra.mxu0 0.0
    %596 = vmatprep.mubr.f32.mxu0 0.0
    %597 = vmatmul.mubr.f32.gmra.mrb[0].mxu0 %v388
    %v598 = vpop.f32.mrb[0].mxu0
    %v599 = vadd.f32 0.0, %v598
    %v600 = vpop.f32.mrb[0].mxu0
    %v601 = vadd.f32 0.0, %v600
    %602 = vdwg.mxu0
    %v603 = vadd.f32 %v393, %v528
    %v604 = vadd.f32 %v394, %v530
    %v605 = vadd.f32 %v395, %v599
    %v606 = vadd.f32 %v396, %v601
    %v607 = vxor.u32 %v603, 2147483648
    %v608 = vxor.u32 %v604, 2147483648
    %v609 = vxor.u32 %v605, 2147483648
    %v610 = vmul.f32 %v607, 1.442695
    %v611 = vpow.pop %v610
    %v612 = vmul.f32 %v608, 1.442695
    %v613 = vpow.pop %v612
    %v614 = vmul.f32 %v609, 1.442695
    %v615 = vpow.pop %v614
    %v616 = vadd.f32 %v611, 1.0
    %v617 = vadd.f32 %v613, 1.0
    %v618 = vadd.f32 %v615, 1.0
    %v619 = vrcp.pop %v616
    %v620 = vmul.f32 1.0, %v619
    %v621 = vrcp.pop %v617
    %v622 = vmul.f32 1.0, %v621
    %v623 = vrcp.pop %v618
    %v624 = vmul.f32 1.0, %v623
    %v625 = vtanh.pop %v606
    %v626 = vmul.f32 %v622, %v389
    %v627 = vmul.f32 %v620, %v625
    %v628 = vadd.f32 %v626, %v627
    %v629 = vtanh.pop %v628
    %v630 = vmul.f32 %v624, %v629
    %631 = vst [vmem:[#allocation4] sm:$0xff] %v628
    %632 = vst [vmem:[#allocation3] sm:$0xff] %v630
    %633 = vst [vmem:[%s4] sm:$0xff] %v630
    %v634 = vld [vmem:[#allocation3] sm:$0xff]
    %v635 = vld [vmem:[#allocation4] sm:$0xff]
    %s636 = smul.u32 1, 4
    %s637 = smul.addr %s636, 8
    %s638 = scalar_lea.vmem [#allocation2], %s637
    %v639 = vld [vmem:[%s638] sm:$0xff]
    %v640 = vld [vmem:[%s638 + $0x8] sm:$0xff]
    %v641 = vld [vmem:[%s638 + $0x10] sm:$0xff]
    %v642 = vld [vmem:[%s638 + $0x18] sm:$0xff]
    %v643 = vld [vmem:[#allocation7] sm:$0xff]
    %v644 = vld [vmem:[#allocation7 + $0x8] sm:$0xff]
    %v645 = vld [vmem:[#allocation7 + $0x10] sm:$0xff]
    %v646 = vld [vmem:[#allocation7 + $0x18] sm:$0xff]
    %v647 = vld [vmem:[#allocation7 + $0x20] sm:$0xff]
    %v648 = vld [vmem:[#allocation7 + $0x28] sm:$0xff]
    %v649 = vld [vmem:[#allocation7 + $0x30] sm:$0xff]
    %v650 = vld [vmem:[#allocation7 + $0x38] sm:$0xff]
    %v651 = vld [vmem:[#allocation7 + $0x40] sm:$0xff]
    %v652 = vld [vmem:[#allocation7 + $0x48] sm:$0xff]
    %v653 = vld [vmem:[#allocation7 + $0x50] sm:$0xff]
    %v654 = vld [vmem:[#allocation7 + $0x58] sm:$0xff]
    %v655 = vld [vmem:[#allocation7 + $0x60] sm:$0xff]
    %v656 = vld [vmem:[#allocation7 + $0x68] sm:$0xff]
    %v657 = vld [vmem:[#allocation7 + $0x70] sm:$0xff]
    %v658 = vld [vmem:[#allocation7 + $0x78] sm:$0xff]
    %v659 = vld [vmem:[#allocation7 + $0x80] sm:$0xff]
    %v660 = vld [vmem:[#allocation7 + $0x88] sm:$0xff]
    %v661 = vld [vmem:[#allocation7 + $0x90] sm:$0xff]
    %v662 = vld [vmem:[#allocation7 + $0x98] sm:$0xff]
    %v663 = vld [vmem:[#allocation7 + $0xa0] sm:$0xff]
    %v664 = vld [vmem:[#allocation7 + $0xa8] sm:$0xff]
    %v665 = vld [vmem:[#allocation7 + $0xb0] sm:$0xff]
    %v666 = vld [vmem:[#allocation7 + $0xb8] sm:$0xff]
    %v667 = vld [vmem:[#allocation7 + $0xc0] sm:$0xff]
    %v668 = vld [vmem:[#allocation7 + $0xc8] sm:$0xff]
    %v669 = vld [vmem:[#allocation7 + $0xd0] sm:$0xff]
    %v670 = vld [vmem:[#allocation7 + $0xd8] sm:$0xff]
    %v671 = vld [vmem:[#allocation7 + $0xe0] sm:$0xff]
    %v672 = vld [vmem:[#allocation7 + $0xe8] sm:$0xff]
    %v673 = vld [vmem:[#allocation7 + $0xf0] sm:$0xff]
    %v674 = vld [vmem:[#allocation7 + $0xf8] sm:$0xff]
    %v675 = vld [vmem:[#allocation7 + $0x100] sm:$0xff]
    %v676 = vld [vmem:[#allocation7 + $0x108] sm:$0xff]
    %v677 = vld [vmem:[#allocation7 + $0x110] sm:$0xff]
    %v678 = vld [vmem:[#allocation7 + $0x118] sm:$0xff]
    %v679 = vld [vmem:[#allocation7 + $0x120] sm:$0xff]
    %v680 = vld [vmem:[#allocation7 + $0x128] sm:$0xff]
    %v681 = vld [vmem:[#allocation7 + $0x130] sm:$0xff]
    %v682 = vld [vmem:[#allocation7 + $0x138] sm:$0xff]
    %v683 = vld [vmem:[#allocation7 + $0x140] sm:$0xff]
    %v684 = vld [vmem:[#allocation7 + $0x148] sm:$0xff]
    %v685 = vld [vmem:[#allocation7 + $0x150] sm:$0xff]
    %v686 = vld [vmem:[#allocation7 + $0x158] sm:$0xff]
    %v687 = vld [vmem:[#allocation7 + $0x160] sm:$0xff]
    %v688 = vld [vmem:[#allocation7 + $0x168] sm:$0xff]
    %v689 = vld [vmem:[#allocation7 + $0x170] sm:$0xff]
    %v690 = vld [vmem:[#allocation7 + $0x178] sm:$0xff]
    %v691 = vld [vmem:[#allocation7 + $0x180] sm:$0xff]
    %v692 = vld [vmem:[#allocation7 + $0x188] sm:$0xff]
    %v693 = vld [vmem:[#allocation7 + $0x190] sm:$0xff]
    %v694 = vld [vmem:[#allocation7 + $0x198] sm:$0xff]
    %v695 = vld [vmem:[#allocation7 + $0x1a0] sm:$0xff]
    %v696 = vld [vmem:[#allocation7 + $0x1a8] sm:$0xff]
    %v697 = vld [vmem:[#allocation7 + $0x1b0] sm:$0xff]
    %v698 = vld [vmem:[#allocation7 + $0x1b8] sm:$0xff]
    %v699 = vld [vmem:[#allocation7 + $0x1c0] sm:$0xff]
    %v700 = vld [vmem:[#allocation7 + $0x1c8] sm:$0xff]
    %v701 = vld [vmem:[#allocation7 + $0x1d0] sm:$0xff]
    %v702 = vld [vmem:[#allocation7 + $0x1d8] sm:$0xff]
    %v703 = vld [vmem:[#allocation7 + $0x1e0] sm:$0xff]
    %v704 = vld [vmem:[#allocation7 + $0x1e8] sm:$0xff]
    %v705 = vld [vmem:[#allocation7 + $0x1f0] sm:$0xff]
    %v706 = vld [vmem:[#allocation7 + $0x1f8] sm:$0xff]
    %707 = vmatprep.subr.mxu0 %v644
    %708 = vmatpush1.msra.mxu0 %v643
    %709 = vmatprep.subr.mxu0 %v648
    %710 = vmatpush1.msra.mxu0 %v647
    %711 = vmatprep.subr.mxu0 %v652
    %712 = vmatpush1.msra.mxu0 %v651
    %713 = vmatprep.subr.mxu0 %v656
    %714 = vmatpush1.msra.mxu0 %v655
    %715 = vmatprep.subr.mxu0 %v660
    %716 = vmatpush1.msra.mxu0 %v659
    %717 = vmatprep.subr.mxu0 %v664
    %718 = vmatpush1.msra.mxu0 %v663
    %719 = vmatprep.subr.mxu0 %v668
    %720 = vmatpush1.msra.mxu0 %v667
    %721 = vmatprep.subr.mxu0 %v672
    %722 = vmatpush1.msra.mxu0 %v671
    %723 = vmatprep.subr.mxu0 %v676
    %724 = vmatpush1.msra.mxu0 %v675
    %725 = vmatprep.subr.mxu0 %v680
    %726 = vmatpush1.msra.mxu0 %v679
    %727 = vmatprep.subr.mxu0 %v684
    %728 = vmatpush1.msra.mxu0 %v683
    %729 = vmatprep.subr.mxu0 %v688
    %730 = vmatpush1.msra.mxu0 %v687
    %731 = vmatprep.subr.mxu0 %v692
    %732 = vmatpush1.msra.mxu0 %v691
    %733 = vmatprep.subr.mxu0 %v696
    %734 = vmatpush1.msra.mxu0 %v695
    %735 = vmatprep.subr.mxu0 %v700
    %736 = vmatpush1.msra.mxu0 %v699
    %737 = vmatprep.subr.mxu0 %v704
    %738 = vmatpush1.msra.mxu0 %v703
    %739 = vmatprep.subr.mxu0 0.0
    %740 = vmatpush1.msra.mxu0 0.0
    %741 = vmatprep.subr.mxu0 0.0
    %742 = vmatpush1.msra.mxu0 0.0
    %743 = vmatprep.subr.mxu0 0.0
    %744 = vmatpush1.msra.mxu0 0.0
    %745 = vmatprep.subr.mxu0 0.0
    %746 = vmatpush1.msra.mxu0 0.0
    %747 = vmatprep.subr.mxu0 0.0
    %748 = vmatpush1.msra.mxu0 0.0
    %749 = vmatprep.subr.mxu0 0.0
    %750 = vmatpush1.msra.mxu0 0.0
    %751 = vmatprep.subr.mxu0 0.0
    %752 = vmatpush1.msra.mxu0 0.0
    %753 = vmatprep.subr.mxu0 0.0
    %754 = vmatpush1.msra.mxu0 0.0
    %755 = vmatprep.subr.mxu0 0.0
    %756 = vmatpush1.msra.mxu0 0.0
    %757 = vmatprep.subr.mxu0 0.0
    %758 = vmatpush1.msra.mxu0 0.0
    %759 = vmatprep.subr.mxu0 0.0
    %760 = vmatpush1.msra.mxu0 0.0
    %761 = vmatprep.subr.mxu0 0.0
    %762 = vmatpush1.msra.mxu0 0.0
    %763 = vmatprep.subr.mxu0 0.0
    %764 = vmatpush1.msra.mxu0 0.0
    %765 = vmatprep.subr.mxu0 0.0
    %766 = vmatpush1.msra.mxu0 0.0
    %767 = vmatprep.subr.mxu0 0.0
    %768 = vmatpush1.msra.mxu0 0.0
    %769 = vmatprep.subr.mxu0 0.0
    %770 = vmatpush1.msra.mxu0 0.0
    %771 = vmatprep.mubr.f32.mxu0 0.0
    %772 = vmatmul.mubr.f32.gmra.mrb[0].mxu0 %v634
    %v773 = vpop.f32.mrb[0].mxu0
    %v774 = vadd.f32 0.0, %v773
    %v775 = vpop.f32.mrb[0].mxu0
    %v776 = vadd.f32 0.0, %v775
    %777 = vdwg.mxu0
    %778 = vmatprep.subr.mxu0 %v646
    %779 = vmatpush1.msra.mxu0 %v645
    %780 = vmatprep.subr.mxu0 %v650
    %781 = vmatpush1.msra.mxu0 %v649
    %782 = vmatprep.subr.mxu0 %v654
    %783 = vmatpush1.msra.mxu0 %v653
    %784 = vmatprep.subr.mxu0 %v658
    %785 = vmatpush1.msra.mxu0 %v657
    %786 = vmatprep.subr.mxu0 %v662
    %787 = vmatpush1.msra.mxu0 %v661
    %788 = vmatprep.subr.mxu0 %v666
    %789 = vmatpush1.msra.mxu0 %v665
    %790 = vmatprep.subr.mxu0 %v670
    %791 = vmatpush1.msra.mxu0 %v669
    %792 = vmatprep.subr.mxu0 %v674
    %793 = vmatpush1.msra.mxu0 %v673
    %794 = vmatprep.subr.mxu0 %v678
    %795 = vmatpush1.msra.mxu0 %v677
    %796 = vmatprep.subr.mxu0 %v682
    %797 = vmatpush1.msra.mxu0 %v681
    %798 = vmatprep.subr.mxu0 %v686
    %799 = vmatpush1.msra.mxu0 %v685
    %800 = vmatprep.subr.mxu0 %v690
    %801 = vmatpush1.msra.mxu0 %v689
    %802 = vmatprep.subr.mxu0 %v694
    %803 = vmatpush1.msra.mxu0 %v693
    %804 = vmatprep.subr.mxu0 %v698
    %805 = vmatpush1.msra.mxu0 %v697
    %806 = vmatprep.subr.mxu0 %v702
    %807 = vmatpush1.msra.mxu0 %v701
    %808 = vmatprep.subr.mxu0 %v706
    %809 = vmatpush1.msra.mxu0 %v705
    %810 = vmatprep.subr.mxu0 0.0
    %811 = vmatpush1.msra.mxu0 0.0
    %812 = vmatprep.subr.mxu0 0.0
    %813 = vmatpush1.msra.mxu0 0.0
    %814 = vmatprep.subr.mxu0 0.0
    %815 = vmatpush1.msra.mxu0 0.0
    %816 = vmatprep.subr.mxu0 0.0
    %817 = vmatpush1.msra.mxu0 0.0
    %818 = vmatprep.subr.mxu0 0.0
    %819 = vmatpush1.msra.mxu0 0.0
    %820 = vmatprep.subr.mxu0 0.0
    %821 = vmatpush1.msra.mxu0 0.0
    %822 = vmatprep.subr.mxu0 0.0
    %823 = vmatpush1.msra.mxu0 0.0
    %824 = vmatprep.subr.mxu0 0.0
    %825 = vmatpush1.msra.mxu0 0.0
    %826 = vmatprep.subr.mxu0 0.0
    %827 = vmatpush1.msra.mxu0 0.0
    %828 = vmatprep.subr.mxu0 0.0
    %829 = vmatpush1.msra.mxu0 0.0
    %830 = vmatprep.subr.mxu0 0.0
    %831 = vmatpush1.msra.mxu0 0.0
    %832 = vmatprep.subr.mxu0 0.0
    %833 = vmatpush1.msra.mxu0 0.0
    %834 = vmatprep.subr.mxu0 0.0
    %835 = vmatpush1.msra.mxu0 0.0
    %836 = vmatprep.subr.mxu0 0.0
    %837 = vmatpush1.msra.mxu0 0.0
    %838 = vmatprep.subr.mxu0 0.0
    %839 = vmatpush1.msra.mxu0 0.0
    %840 = vmatprep.subr.mxu0 0.0
    %841 = vmatpush1.msra.mxu0 0.0
    %842 = vmatprep.mubr.f32.mxu0 0.0
    %843 = vmatmul.mubr.f32.gmra.mrb[0].mxu0 %v634
    %v844 = vpop.f32.mrb[0].mxu0
    %v845 = vadd.f32 0.0, %v844
    %v846 = vpop.f32.mrb[0].mxu0
    %v847 = vadd.f32 0.0, %v846
    %848 = vdwg.mxu0
    %v849 = vadd.f32 %v639, %v774
    %v850 = vadd.f32 %v640, %v776
    %v851 = vadd.f32 %v641, %v845
    %v852 = vadd.f32 %v642, %v847
    %v853 = vxor.u32 %v849, 2147483648
    %v854 = vxor.u32 %v850, 2147483648
    %v855 = vxor.u32 %v851, 2147483648
    %v856 = vmul.f32 %v853, 1.442695
    %v857 = vpow.pop %v856
    %v858 = vmul.f32 %v854, 1.442695
    %v859 = vpow.pop %v858
    %v860 = vmul.f32 %v855, 1.442695
    %v861 = vpow.pop %v860
    %v862 = vadd.f32 %v857, 1.0
    %v863 = vadd.f32 %v859, 1.0
    %v864 = vadd.f32 %v861, 1.0
    %v865 = vrcp.pop %v862
    %v866 = vmul.f32 1.0, %v865
    %v867 = vrcp.pop %v863
    %v868 = vmul.f32 1.0, %v867
    %v869 = vrcp.pop %v864
    %v870 = vmul.f32 1.0, %v869
    %v871 = vtanh.pop %v852
    %v872 = vmul.f32 %v868, %v635
    %v873 = vmul.f32 %v866, %v871
    %v874 = vadd.f32 %v872, %v873
    %v875 = vtanh.pop %v874
    %v876 = vmul.f32 %v870, %v875
    %877 = vst [vmem:[#allocation4] sm:$0xff] %v874
    %878 = vst [vmem:[#allocation3] sm:$0xff] %v876
    %s879 = scalar_lea.vmem %s4, 8
    %880 = vst [vmem:[%s879] sm:$0xff] %v876
    %v881 = vld [vmem:[#allocation3] sm:$0xff]
    %v882 = vld [vmem:[#allocation4] sm:$0xff]
    %s883 = smul.u32 2, 4
    %s884 = smul.addr %s883, 8
    %s885 = scalar_lea.vmem [#allocation2], %s884
    %v886 = vld [vmem:[%s885] sm:$0xff]
    %v887 = vld [vmem:[%s885 + $0x8] sm:$0xff]
    %v888 = vld [vmem:[%s885 + $0x10] sm:$0xff]
    %v889 = vld [vmem:[%s885 + $0x18] sm:$0xff]
    %v890 = vld [vmem:[#allocation7] sm:$0xff]
    %v891 = vld [vmem:[#allocation7 + $0x8] sm:$0xff]
    %v892 = vld [vmem:[#allocation7 + $0x10] sm:$0xff]
    %v893 = vld [vmem:[#allocation7 + $0x18] sm:$0xff]
    %v894 = vld [vmem:[#allocation7 + $0x20] sm:$0xff]
    %v895 = vld [vmem:[#allocation7 + $0x28] sm:$0xff]
    %v896 = vld [vmem:[#allocation7 + $0x30] sm:$0xff]
    %v897 = vld [vmem:[#allocation7 + $0x38] sm:$0xff]
    %v898 = vld [vmem:[#allocation7 + $0x40] sm:$0xff]
    %v899 = vld [vmem:[#allocation7 + $0x48] sm:$0xff]
    %v900 = vld [vmem:[#allocation7 + $0x50] sm:$0xff]
    %v901 = vld [vmem:[#allocation7 + $0x58] sm:$0xff]
    %v902 = vld [vmem:[#allocation7 + $0x60] sm:$0xff]
    %v903 = vld [vmem:[#allocation7 + $0x68] sm:$0xff]
    %v904 = vld [vmem:[#allocation7 + $0x70] sm:$0xff]
    %v905 = vld [vmem:[#allocation7 + $0x78] sm:$0xff]
    %v906 = vld [vmem:[#allocation7 + $0x80] sm:$0xff]
    %v907 = vld [vmem:[#allocation7 + $0x88] sm:$0xff]
    %v908 = vld [vmem:[#allocation7 + $0x90] sm:$0xff]
    %v909 = vld [vmem:[#allocation7 + $0x98] sm:$0xff]
    %v910 = vld [vmem:[#allocation7 + $0xa0] sm:$0xff]
    %v911 = vld [vmem:[#allocation7 + $0xa8] sm:$0xff]
    %v912 = vld [vmem:[#allocation7 + $0xb0] sm:$0xff]
    %v913 = vld [vmem:[#allocation7 + $0xb8] sm:$0xff]
    %v914 = vld [vmem:[#allocation7 + $0xc0] sm:$0xff]
    %v915 = vld [vmem:[#allocation7 + $0xc8] sm:$0xff]
    %v916 = vld [vmem:[#allocation7 + $0xd0] sm:$0xff]
    %v917 = vld [vmem:[#allocation7 + $0xd8] sm:$0xff]
    %v918 = vld [vmem:[#allocation7 + $0xe0] sm:$0xff]
    %v919 = vld [vmem:[#allocation7 + $0xe8] sm:$0xff]
    %v920 = vld [vmem:[#allocation7 + $0xf0] sm:$0xff]
    %v921 = vld [vmem:[#allocation7 + $0xf8] sm:$0xff]
    %v922 = vld [vmem:[#allocation7 + $0x100] sm:$0xff]
    %v923 = vld [vmem:[#allocation7 + $0x108] sm:$0xff]
    %v924 = vld [vmem:[#allocation7 + $0x110] sm:$0xff]
    %v925 = vld [vmem:[#allocation7 + $0x118] sm:$0xff]
    %v926 = vld [vmem:[#allocation7 + $0x120] sm:$0xff]
    %v927 = vld [vmem:[#allocation7 + $0x128] sm:$0xff]
    %v928 = vld [vmem:[#allocation7 + $0x130] sm:$0xff]
    %v929 = vld [vmem:[#allocation7 + $0x138] sm:$0xff]
    %v930 = vld [vmem:[#allocation7 + $0x140] sm:$0xff]
    %v931 = vld [vmem:[#allocation7 + $0x148] sm:$0xff]
    %v932 = vld [vmem:[#allocation7 + $0x150] sm:$0xff]
    %v933 = vld [vmem:[#allocation7 + $0x158] sm:$0xff]
    %v934 = vld [vmem:[#allocation7 + $0x160] sm:$0xff]
    %v935 = vld [vmem:[#allocation7 + $0x168] sm:$0xff]
    %v936 = vld [vmem:[#allocation7 + $0x170] sm:$0xff]
    %v937 = vld [vmem:[#allocation7 + $0x178] sm:$0xff]
    %v938 = vld [vmem:[#allocation7 + $0x180] sm:$0xff]
    %v939 = vld [vmem:[#allocation7 + $0x188] sm:$0xff]
    %v940 = vld [vmem:[#allocation7 + $0x190] sm:$0xff]
    %v941 = vld [vmem:[#allocation7 + $0x198] sm:$0xff]
    %v942 = vld [vmem:[#allocation7 + $0x1a0] sm:$0xff]
    %v943 = vld [vmem:[#allocation7 + $0x1a8] sm:$0xff]
    %v944 = vld [vmem:[#allocation7 + $0x1b0] sm:$0xff]
    %v945 = vld [vmem:[#allocation7 + $0x1b8] sm:$0xff]
    %v946 = vld [vmem:[#allocation7 + $0x1c0] sm:$0xff]
    %v947 = vld [vmem:[#allocation7 + $0x1c8] sm:$0xff]
    %v948 = vld [vmem:[#allocation7 + $0x1d0] sm:$0xff]
    %v949 = vld [vmem:[#allocation7 + $0x1d8] sm:$0xff]
    %v950 = vld [vmem:[#allocation7 + $0x1e0] sm:$0xff]
    %v951 = vld [vmem:[#allocation7 + $0x1e8] sm:$0xff]
    %v952 = vld [vmem:[#allocation7 + $0x1f0] sm:$0xff]
    %v953 = vld [vmem:[#allocation7 + $0x1f8] sm:$0xff]
    %954 = vmatprep.subr.mxu0 %v891
    %955 = vmatpush1.msra.mxu0 %v890
    %956 = vmatprep.subr.mxu0 %v895
    %957 = vmatpush1.msra.mxu0 %v894
    %958 = vmatprep.subr.mxu0 %v899
    %959 = vmatpush1.msra.mxu0 %v898
    %960 = vmatprep.subr.mxu0 %v903
    %961 = vmatpush1.msra.mxu0 %v902
    %962 = vmatprep.subr.mxu0 %v907
    %963 = vmatpush1.msra.mxu0 %v906
    %964 = vmatprep.subr.mxu0 %v911
    %965 = vmatpush1.msra.mxu0 %v910
    %966 = vmatprep.subr.mxu0 %v915
    %967 = vmatpush1.msra.mxu0 %v914
    %968 = vmatprep.subr.mxu0 %v919
    %969 = vmatpush1.msra.mxu0 %v918
    %970 = vmatprep.subr.mxu0 %v923
    %971 = vmatpush1.msra.mxu0 %v922
    %972 = vmatprep.subr.mxu0 %v927
    %973 = vmatpush1.msra.mxu0 %v926
    %974 = vmatprep.subr.mxu0 %v931
    %975 = vmatpush1.msra.mxu0 %v930
    %976 = vmatprep.subr.mxu0 %v935
    %977 = vmatpush1.msra.mxu0 %v934
    %978 = vmatprep.subr.mxu0 %v939
    %979 = vmatpush1.msra.mxu0 %v938
    %980 = vmatprep.subr.mxu0 %v943
    %981 = vmatpush1.msra.mxu0 %v942
    %982 = vmatprep.subr.mxu0 %v947
    %983 = vmatpush1.msra.mxu0 %v946
    %984 = vmatprep.subr.mxu0 %v951
    %985 = vmatpush1.msra.mxu0 %v950
    %986 = vmatprep.subr.mxu0 0.0
    %987 = vmatpush1.msra.mxu0 0.0
    %988 = vmatprep.subr.mxu0 0.0
    %989 = vmatpush1.msra.mxu0 0.0
    %990 = vmatprep.subr.mxu0 0.0
    %991 = vmatpush1.msra.mxu0 0.0
    %992 = vmatprep.subr.mxu0 0.0
    %993 = vmatpush1.msra.mxu0 0.0
    %994 = vmatprep.subr.mxu0 0.0
    %995 = vmatpush1.msra.mxu0 0.0
    %996 = vmatprep.subr.mxu0 0.0
    %997 = vmatpush1.msra.mxu0 0.0
    %998 = vmatprep.subr.mxu0 0.0
    %999 = vmatpush1.msra.mxu0 0.0
    %1000 = vmatprep.subr.mxu0 0.0
    %1001 = vmatpush1.msra.mxu0 0.0
    %1002 = vmatprep.subr.mxu0 0.0
    %1003 = vmatpush1.msra.mxu0 0.0
    %1004 = vmatprep.subr.mxu0 0.0
    %1005 = vmatpush1.msra.mxu0 0.0
    %1006 = vmatprep.subr.mxu0 0.0
    %1007 = vmatpush1.msra.mxu0 0.0
    %1008 = vmatprep.subr.mxu0 0.0
    %1009 = vmatpush1.msra.mxu0 0.0
    %1010 = vmatprep.subr.mxu0 0.0
    %1011 = vmatpush1.msra.mxu0 0.0
    %1012 = vmatprep.subr.mxu0 0.0
    %1013 = vmatpush1.msra.mxu0 0.0
    %1014 = vmatprep.subr.mxu0 0.0
    %1015 = vmatpush1.msra.mxu0 0.0
    %1016 = vmatprep.subr.mxu0 0.0
    %1017 = vmatpush1.msra.mxu0 0.0
    %1018 = vmatprep.mubr.f32.mxu0 0.0
    %1019 = vmatmul.mubr.f32.gmra.mrb[0].mxu0 %v881
    %v1020 = vpop.f32.mrb[0].mxu0
    %v1021 = vadd.f32 0.0, %v1020
    %v1022 = vpop.f32.mrb[0].mxu0
    %v1023 = vadd.f32 0.0, %v1022
    %1024 = vdwg.mxu0
    %1025 = vmatprep.subr.mxu0 %v893
    %1026 = vmatpush1.msra.mxu0 %v892
    %1027 = vmatprep.subr.mxu0 %v897
    %1028 = vmatpush1.msra.mxu0 %v896
    %1029 = vmatprep.subr.mxu0 %v901
    %1030 = vmatpush1.msra.mxu0 %v900
    %1031 = vmatprep.subr.mxu0 %v905
    %1032 = vmatpush1.msra.mxu0 %v904
    %1033 = vmatprep.subr.mxu0 %v909
    %1034 = vmatpush1.msra.mxu0 %v908
    %1035 = vmatprep.subr.mxu0 %v913
    %1036 = vmatpush1.msra.mxu0 %v912
    %1037 = vmatprep.subr.mxu0 %v917
    %1038 = vmatpush1.msra.mxu0 %v916
    %1039 = vmatprep.subr.mxu0 %v921
    %1040 = vmatpush1.msra.mxu0 %v920
    %1041 = vmatprep.subr.mxu0 %v925
    %1042 = vmatpush1.msra.mxu0 %v924
    %1043 = vmatprep.subr.mxu0 %v929
    %1044 = vmatpush1.msra.mxu0 %v928
    %1045 = vmatprep.subr.mxu0 %v933
    %1046 = vmatpush1.msra.mxu0 %v932
    %1047 = vmatprep.subr.mxu0 %v937
    %1048 = vmatpush1.msra.mxu0 %v936
    %1049 = vmatprep.subr.mxu0 %v941
    %1050 = vmatpush1.msra.mxu0 %v940
    %1051 = vmatprep.subr.mxu0 %v945
    %1052 = vmatpush1.msra.mxu0 %v944
    %1053 = vmatprep.subr.mxu0 %v949
    %1054 = vmatpush1.msra.mxu0 %v948
    %1055 = vmatprep.subr.mxu0 %v953
    %1056 = vmatpush1.msra.mxu0 %v952
    %1057 = vmatprep.subr.mxu0 0.0
    %1058 = vmatpush1.msra.mxu0 0.0
    %1059 = vmatprep.subr.mxu0 0.0
    %1060 = vmatpush1.msra.mxu0 0.0
    %1061 = vmatprep.subr.mxu0 0.0
    %1062 = vmatpush1.msra.mxu0 0.0
    %1063 = vmatprep.subr.mxu0 0.0
    %1064 = vmatpush1.msra.mxu0 0.0
    %1065 = vmatprep.subr.mxu0 0.0
    %1066 = vmatpush1.msra.mxu0 0.0
    %1067 = vmatprep.subr.mxu0 0.0
    %1068 = vmatpush1.msra.mxu0 0.0
    %1069 = vmatprep.subr.mxu0 0.0
    %1070 = vmatpush1.msra.mxu0 0.0
    %1071 = vmatprep.subr.mxu0 0.0
    %1072 = vmatpush1.msra.mxu0 0.0
    %1073 = vmatprep.subr.mxu0 0.0
    %1074 = vmatpush1.msra.mxu0 0.0
    %1075 = vmatprep.subr.mxu0 0.0
    %1076 = vmatpush1.msra.mxu0 0.0
    %1077 = vmatprep.subr.mxu0 0.0
    %1078 = vmatpush1.msra.mxu0 0.0
    %1079 = vmatprep.subr.mxu0 0.0
    %1080 = vmatpush1.msra.mxu0 0.0
    %1081 = vmatprep.subr.mxu0 0.0
    %1082 = vmatpush1.msra.mxu0 0.0
    %1083 = vmatprep.subr.mxu0 0.0
    %1084 = vmatpush1.msra.mxu0 0.0
    %1085 = vmatprep.subr.mxu0 0.0
    %1086 = vmatpush1.msra.mxu0 0.0
    %1087 = vmatprep.subr.mxu0 0.0
    %1088 = vmatpush1.msra.mxu0 0.0
    %1089 = vmatprep.mubr.f32.mxu0 0.0
    %1090 = vmatmul.mubr.f32.gmra.mrb[0].mxu0 %v881
    %v1091 = vpop.f32.mrb[0].mxu0
    %v1092 = vadd.f32 0.0, %v1091
    %v1093 = vpop.f32.mrb[0].mxu0
    %v1094 = vadd.f32 0.0, %v1093
    %1095 = vdwg.mxu0
    %v1096 = vadd.f32 %v886, %v1021
    %v1097 = vadd.f32 %v887, %v1023
    %v1098 = vadd.f32 %v888, %v1092
    %v1099 = vadd.f32 %v889, %v1094
    %v1100 = vxor.u32 %v1096, 2147483648
    %v1101 = vxor.u32 %v1097, 2147483648
    %v1102 = vxor.u32 %v1098, 2147483648
    %v1103 = vmul.f32 %v1100, 1.442695
    %v1104 = vpow.pop %v1103
    %v1105 = vmul.f32 %v1101, 1.442695
    %v1106 = vpow.pop %v1105
    %v1107 = vmul.f32 %v1102, 1.442695
    %v1108 = vpow.pop %v1107
    %v1109 = vadd.f32 %v1104, 1.0
    %v1110 = vadd.f32 %v1106, 1.0
    %v1111 = vadd.f32 %v1108, 1.0
    %v1112 = vrcp.pop %v1109
    %v1113 = vmul.f32 1.0, %v1112
    %v1114 = vrcp.pop %v1110
    %v1115 = vmul.f32 1.0, %v1114
    %v1116 = vrcp.pop %v1111
    %v1117 = vmul.f32 1.0, %v1116
    %v1118 = vtanh.pop %v1099
    %v1119 = vmul.f32 %v1115, %v882
    %v1120 = vmul.f32 %v1113, %v1118
    %v1121 = vadd.f32 %v1119, %v1120
    %v1122 = vtanh.pop %v1121
    %v1123 = vmul.f32 %v1117, %v1122
    %1124 = vst [vmem:[#allocation4] sm:$0xff] %v1121
    %1125 = vst [vmem:[#allocation3] sm:$0xff] %v1123
    %s1126 = scalar_lea.vmem %s4, 16
    %1127 = vst [vmem:[%s1126] sm:$0xff] %v1123
    %v1128 = vld [vmem:[#allocation3] sm:$0xff]
    %v1129 = vld [vmem:[#allocation4] sm:$0xff]
    %s1130 = smul.u32 3, 4
    %s1131 = smul.addr %s1130, 8
    %s1132 = scalar_lea.vmem [#allocation2], %s1131
    %v1133 = vld [vmem:[%s1132] sm:$0xff]
    %v1134 = vld [vmem:[%s1132 + $0x8] sm:$0xff]
    %v1135 = vld [vmem:[%s1132 + $0x10] sm:$0xff]
    %v1136 = vld [vmem:[%s1132 + $0x18] sm:$0xff]
    %v1137 = vld [vmem:[#allocation7] sm:$0xff]
    %v1138 = vld [vmem:[#allocation7 + $0x8] sm:$0xff]
    %v1139 = vld [vmem:[#allocation7 + $0x10] sm:$0xff]
    %v1140 = vld [vmem:[#allocation7 + $0x18] sm:$0xff]
    %v1141 = vld [vmem:[#allocation7 + $0x20] sm:$0xff]
    %v1142 = vld [vmem:[#allocation7 + $0x28] sm:$0xff]
    %v1143 = vld [vmem:[#allocation7 + $0x30] sm:$0xff]
    %v1144 = vld [vmem:[#allocation7 + $0x38] sm:$0xff]
    %v1145 = vld [vmem:[#allocation7 + $0x40] sm:$0xff]
    %v1146 = vld [vmem:[#allocation7 + $0x48] sm:$0xff]
    %v1147 = vld [vmem:[#allocation7 + $0x50] sm:$0xff]
    %v1148 = vld [vmem:[#allocation7 + $0x58] sm:$0xff]
    %v1149 = vld [vmem:[#allocation7 + $0x60] sm:$0xff]
    %v1150 = vld [vmem:[#allocation7 + $0x68] sm:$0xff]
    %v1151 = vld [vmem:[#allocation7 + $0x70] sm:$0xff]
    %v1152 = vld [vmem:[#allocation7 + $0x78] sm:$0xff]
    %v1153 = vld [vmem:[#allocation7 + $0x80] sm:$0xff]
    %v1154 = vld [vmem:[#allocation7 + $0x88] sm:$0xff]
    %v1155 = vld [vmem:[#allocation7 + $0x90] sm:$0xff]
    %v1156 = vld [vmem:[#allocation7 + $0x98] sm:$0xff]
    %v1157 = vld [vmem:[#allocation7 + $0xa0] sm:$0xff]
    %v1158 = vld [vmem:[#allocation7 + $0xa8] sm:$0xff]
    %v1159 = vld [vmem:[#allocation7 + $0xb0] sm:$0xff]
    %v1160 = vld [vmem:[#allocation7 + $0xb8] sm:$0xff]
    %v1161 = vld [vmem:[#allocation7 + $0xc0] sm:$0xff]
    %v1162 = vld [vmem:[#allocation7 + $0xc8] sm:$0xff]
    %v1163 = vld [vmem:[#allocation7 + $0xd0] sm:$0xff]
    %v1164 = vld [vmem:[#allocation7 + $0xd8] sm:$0xff]
    %v1165 = vld [vmem:[#allocation7 + $0xe0] sm:$0xff]
    %v1166 = vld [vmem:[#allocation7 + $0xe8] sm:$0xff]
    %v1167 = vld [vmem:[#allocation7 + $0xf0] sm:$0xff]
    %v1168 = vld [vmem:[#allocation7 + $0xf8] sm:$0xff]
    %v1169 = vld [vmem:[#allocation7 + $0x100] sm:$0xff]
    %v1170 = vld [vmem:[#allocation7 + $0x108] sm:$0xff]
    %v1171 = vld [vmem:[#allocation7 + $0x110] sm:$0xff]
    %v1172 = vld [vmem:[#allocation7 + $0x118] sm:$0xff]
    %v1173 = vld [vmem:[#allocation7 + $0x120] sm:$0xff]
    %v1174 = vld [vmem:[#allocation7 + $0x128] sm:$0xff]
    %v1175 = vld [vmem:[#allocation7 + $0x130] sm:$0xff]
    %v1176 = vld [vmem:[#allocation7 + $0x138] sm:$0xff]
    %v1177 = vld [vmem:[#allocation7 + $0x140] sm:$0xff]
    %v1178 = vld [vmem:[#allocation7 + $0x148] sm:$0xff]
    %v1179 = vld [vmem:[#allocation7 + $0x150] sm:$0xff]
    %v1180 = vld [vmem:[#allocation7 + $0x158] sm:$0xff]
    %v1181 = vld [vmem:[#allocation7 + $0x160] sm:$0xff]
    %v1182 = vld [vmem:[#allocation7 + $0x168] sm:$0xff]
    %v1183 = vld [vmem:[#allocation7 + $0x170] sm:$0xff]
    %v1184 = vld [vmem:[#allocation7 + $0x178] sm:$0xff]
    %v1185 = vld [vmem:[#allocation7 + $0x180] sm:$0xff]
    %v1186 = vld [vmem:[#allocation7 + $0x188] sm:$0xff]
    %v1187 = vld [vmem:[#allocation7 + $0x190] sm:$0xff]
    %v1188 = vld [vmem:[#allocation7 + $0x198] sm:$0xff]
    %v1189 = vld [vmem:[#allocation7 + $0x1a0] sm:$0xff]
    %v1190 = vld [vmem:[#allocation7 + $0x1a8] sm:$0xff]
    %v1191 = vld [vmem:[#allocation7 + $0x1b0] sm:$0xff]
    %v1192 = vld [vmem:[#allocation7 + $0x1b8] sm:$0xff]
    %v1193 = vld [vmem:[#allocation7 + $0x1c0] sm:$0xff]
    %v1194 = vld [vmem:[#allocation7 + $0x1c8] sm:$0xff]
    %v1195 = vld [vmem:[#allocation7 + $0x1d0] sm:$0xff]
    %v1196 = vld [vmem:[#allocation7 + $0x1d8] sm:$0xff]
    %v1197 = vld [vmem:[#allocation7 + $0x1e0] sm:$0xff]
    %v1198 = vld [vmem:[#allocation7 + $0x1e8] sm:$0xff]
    %v1199 = vld [vmem:[#allocation7 + $0x1f0] sm:$0xff]
    %v1200 = vld [vmem:[#allocation7 + $0x1f8] sm:$0xff]
    %1201 = vmatprep.subr.mxu0 %v1138
    %1202 = vmatpush1.msra.mxu0 %v1137
    %1203 = vmatprep.subr.mxu0 %v1142
    %1204 = vmatpush1.msra.mxu0 %v1141
    %1205 = vmatprep.subr.mxu0 %v1146
    %1206 = vmatpush1.msra.mxu0 %v1145
    %1207 = vmatprep.subr.mxu0 %v1150
    %1208 = vmatpush1.msra.mxu0 %v1149
    %1209 = vmatprep.subr.mxu0 %v1154
    %1210 = vmatpush1.msra.mxu0 %v1153
    %1211 = vmatprep.subr.mxu0 %v1158
    %1212 = vmatpush1.msra.mxu0 %v1157
    %1213 = vmatprep.subr.mxu0 %v1162
    %1214 = vmatpush1.msra.mxu0 %v1161
    %1215 = vmatprep.subr.mxu0 %v1166
    %1216 = vmatpush1.msra.mxu0 %v1165
    %1217 = vmatprep.subr.mxu0 %v1170
    %1218 = vmatpush1.msra.mxu0 %v1169
    %1219 = vmatprep.subr.mxu0 %v1174
    %1220 = vmatpush1.msra.mxu0 %v1173
    %1221 = vmatprep.subr.mxu0 %v1178
    %1222 = vmatpush1.msra.mxu0 %v1177
    %1223 = vmatprep.subr.mxu0 %v1182
    %1224 = vmatpush1.msra.mxu0 %v1181
    %1225 = vmatprep.subr.mxu0 %v1186
    %1226 = vmatpush1.msra.mxu0 %v1185
    %1227 = vmatprep.subr.mxu0 %v1190
    %1228 = vmatpush1.msra.mxu0 %v1189
    %1229 = vmatprep.subr.mxu0 %v1194
    %1230 = vmatpush1.msra.mxu0 %v1193
    %1231 = vmatprep.subr.mxu0 %v1198
    %1232 = vmatpush1.msra.mxu0 %v1197
    %1233 = vmatprep.subr.mxu0 0.0
    %1234 = vmatpush1.msra.mxu0 0.0
    %1235 = vmatprep.subr.mxu0 0.0
    %1236 = vmatpush1.msra.mxu0 0.0
    %1237 = vmatprep.subr.mxu0 0.0
    %1238 = vmatpush1.msra.mxu0 0.0
    %1239 = vmatprep.subr.mxu0 0.0
    %1240 = vmatpush1.msra.mxu0 0.0
    %1241 = vmatprep.subr.mxu0 0.0
    %1242 = vmatpush1.msra.mxu0 0.0
    %1243 = vmatprep.subr.mxu0 0.0
    %1244 = vmatpush1.msra.mxu0 0.0
    %1245 = vmatprep.subr.mxu0 0.0
    %1246 = vmatpush1.msra.mxu0 0.0
    %1247 = vmatprep.subr.mxu0 0.0
    %1248 = vmatpush1.msra.mxu0 0.0
    %1249 = vmatprep.subr.mxu0 0.0
    %1250 = vmatpush1.msra.mxu0 0.0
    %1251 = vmatprep.subr.mxu0 0.0
    %1252 = vmatpush1.msra.mxu0 0.0
    %1253 = vmatprep.subr.mxu0 0.0
    %1254 = vmatpush1.msra.mxu0 0.0
    %1255 = vmatprep.subr.mxu0 0.0
    %1256 = vmatpush1.msra.mxu0 0.0
    %1257 = vmatprep.subr.mxu0 0.0
    %1258 = vmatpush1.msra.mxu0 0.0
    %1259 = vmatprep.subr.mxu0 0.0
    %1260 = vmatpush1.msra.mxu0 0.0
    %1261 = vmatprep.subr.mxu0 0.0
    %1262 = vmatpush1.msra.mxu0 0.0
    %1263 = vmatprep.subr.mxu0 0.0
    %1264 = vmatpush1.msra.mxu0 0.0
    %1265 = vmatprep.mubr.f32.mxu0 0.0
    %1266 = vmatmul.mubr.f32.gmra.mrb[0].mxu0 %v1128
    %v1267 = vpop.f32.mrb[0].mxu0
    %v1268 = vadd.f32 0.0, %v1267
    %v1269 = vpop.f32.mrb[0].mxu0
    %v1270 = vadd.f32 0.0, %v1269
    %1271 = vdwg.mxu0
    %1272 = vmatprep.subr.mxu0 %v1140
    %1273 = vmatpush1.msra.mxu0 %v1139
    %1274 = vmatprep.subr.mxu0 %v1144
    %1275 = vmatpush1.msra.mxu0 %v1143
    %1276 = vmatprep.subr.mxu0 %v1148
    %1277 = vmatpush1.msra.mxu0 %v1147
    %1278 = vmatprep.subr.mxu0 %v1152
    %1279 = vmatpush1.msra.mxu0 %v1151
    %1280 = vmatprep.subr.mxu0 %v1156
    %1281 = vmatpush1.msra.mxu0 %v1155
    %1282 = vmatprep.subr.mxu0 %v1160
    %1283 = vmatpush1.msra.mxu0 %v1159
    %1284 = vmatprep.subr.mxu0 %v1164
    %1285 = vmatpush1.msra.mxu0 %v1163
    %1286 = vmatprep.subr.mxu0 %v1168
    %1287 = vmatpush1.msra.mxu0 %v1167
    %1288 = vmatprep.subr.mxu0 %v1172
    %1289 = vmatpush1.msra.mxu0 %v1171
    %1290 = vmatprep.subr.mxu0 %v1176
    %1291 = vmatpush1.msra.mxu0 %v1175
    %1292 = vmatprep.subr.mxu0 %v1180
    %1293 = vmatpush1.msra.mxu0 %v1179
    %1294 = vmatprep.subr.mxu0 %v1184
    %1295 = vmatpush1.msra.mxu0 %v1183
    %1296 = vmatprep.subr.mxu0 %v1188
    %1297 = vmatpush1.msra.mxu0 %v1187
    %1298 = vmatprep.subr.mxu0 %v1192
    %1299 = vmatpush1.msra.mxu0 %v1191
    %1300 = vmatprep.subr.mxu0 %v1196
    %1301 = vmatpush1.msra.mxu0 %v1195
    %1302 = vmatprep.subr.mxu0 %v1200
    %1303 = vmatpush1.msra.mxu0 %v1199
    %1304 = vmatprep.subr.mxu0 0.0
    %1305 = vmatpush1.msra.mxu0 0.0
    %1306 = vmatprep.subr.mxu0 0.0
    %1307 = vmatpush1.msra.mxu0 0.0
    %1308 = vmatprep.subr.mxu0 0.0
    %1309 = vmatpush1.msra.mxu0 0.0
    %1310 = vmatprep.subr.mxu0 0.0
    %1311 = vmatpush1.msra.mxu0 0.0
    %1312 = vmatprep.subr.mxu0 0.0
    %1313 = vmatpush1.msra.mxu0 0.0
    %1314 = vmatprep.subr.mxu0 0.0
    %1315 = vmatpush1.msra.mxu0 0.0
    %1316 = vmatprep.subr.mxu0 0.0
    %1317 = vmatpush1.msra.mxu0 0.0
    %1318 = vmatprep.subr.mxu0 0.0
    %1319 = vmatpush1.msra.mxu0 0.0
    %1320 = vmatprep.subr.mxu0 0.0
    %1321 = vmatpush1.msra.mxu0 0.0
    %1322 = vmatprep.subr.mxu0 0.0
    %1323 = vmatpush1.msra.mxu0 0.0
    %1324 = vmatprep.subr.mxu0 0.0
    %1325 = vmatpush1.msra.mxu0 0.0
    %1326 = vmatprep.subr.mxu0 0.0
    %1327 = vmatpush1.msra.mxu0 0.0
    %1328 = vmatprep.subr.mxu0 0.0
    %1329 = vmatpush1.msra.mxu0 0.0
    %1330 = vmatprep.subr.mxu0 0.0
    %1331 = vmatpush1.msra.mxu0 0.0
    %1332 = vmatprep.subr.mxu0 0.0
    %1333 = vmatpush1.msra.mxu0 0.0
    %1334 = vmatprep.subr.mxu0 0.0
    %1335 = vmatpush1.msra.mxu0 0.0
    %1336 = vmatprep.mubr.f32.mxu0 0.0
    %1337 = vmatmul.mubr.f32.gmra.mrb[0].mxu0 %v1128
    %v1338 = vpop.f32.mrb[0].mxu0
    %v1339 = vadd.f32 0.0, %v1338
    %v1340 = vpop.f32.mrb[0].mxu0
    %v1341 = vadd.f32 0.0, %v1340
    %1342 = vdwg.mxu0
    %v1343 = vadd.f32 %v1133, %v1268
    %v1344 = vadd.f32 %v1134, %v1270
    %v1345 = vadd.f32 %v1135, %v1339
    %v1346 = vadd.f32 %v1136, %v1341
    %v1347 = vxor.u32 %v1343, 2147483648
    %v1348 = vxor.u32 %v1344, 2147483648
    %v1349 = vxor.u32 %v1345, 2147483648
    %v1350 = vmul.f32 %v1347, 1.442695
    %v1351 = vpow.pop %v1350
    %v1352 = vmul.f32 %v1348, 1.442695
    %v1353 = vpow.pop %v1352
    %v1354 = vmul.f32 %v1349, 1.442695
    %v1355 = vpow.pop %v1354
    %v1356 = vadd.f32 %v1351, 1.0
    %v1357 = vadd.f32 %v1353, 1.0
    %v1358 = vadd.f32 %v1355, 1.0
    %v1359 = vrcp.pop %v1356
    %v1360 = vmul.f32 1.0, %v1359
    %v1361 = vrcp.pop %v1357
    %v1362 = vmul.f32 1.0, %v1361
    %v1363 = vrcp.pop %v1358
    %v1364 = vmul.f32 1.0, %v1363
    %v1365 = vtanh.pop %v1346
    %v1366 = vmul.f32 %v1362, %v1129
    %v1367 = vmul.f32 %v1360, %v1365
    %v1368 = vadd.f32 %v1366, %v1367
    %v1369 = vtanh.pop %v1368
    %v1370 = vmul.f32 %v1364, %v1369
    %1371 = vst [vmem:[#allocation4] sm:$0xff] %v1368
    %1372 = vst [vmem:[#allocation3] sm:$0xff] %v1370
    %s1373 = scalar_lea.vmem %s4, 24
    %1374 = vst [vmem:[%s1373] sm:$0xff] %v1370
    %v1375 = vld [vmem:[#allocation3] sm:$0xff]
    %v1376 = vld [vmem:[#allocation4] sm:$0xff]
    %s1377 = smul.u32 4, 4
    %s1378 = smul.addr %s1377, 8
    %s1379 = scalar_lea.vmem [#allocation2], %s1378
    %v1380 = vld [vmem:[%s1379] sm:$0xff]
    %v1381 = vld [vmem:[%s1379 + $0x8] sm:$0xff]
    %v1382 = vld [vmem:[%s1379 + $0x10] sm:$0xff]
    %v1383 = vld [vmem:[%s1379 + $0x18] sm:$0xff]
    %v1384 = vld [vmem:[#allocation7] sm:$0xff]
    %v1385 = vld [vmem:[#allocation7 + $0x8] sm:$0xff]
    %v1386 = vld [vmem:[#allocation7 + $0x10] sm:$0xff]
    %v1387 = vld [vmem:[#allocation7 + $0x18] sm:$0xff]
    %v1388 = vld [vmem:[#allocation7 + $0x20] sm:$0xff]
    %v1389 = vld [vmem:[#allocation7 + $0x28] sm:$0xff]
    %v1390 = vld [vmem:[#allocation7 + $0x30] sm:$0xff]
    %v1391 = vld [vmem:[#allocation7 + $0x38] sm:$0xff]
    %v1392 = vld [vmem:[#allocation7 + $0x40] sm:$0xff]
    %v1393 = vld [vmem:[#allocation7 + $0x48] sm:$0xff]
    %v1394 = vld [vmem:[#allocation7 + $0x50] sm:$0xff]
    %v1395 = vld [vmem:[#allocation7 + $0x58] sm:$0xff]
    %v1396 = vld [vmem:[#allocation7 + $0x60] sm:$0xff]
    %v1397 = vld [vmem:[#allocation7 + $0x68] sm:$0xff]
    %v1398 = vld [vmem:[#allocation7 + $0x70] sm:$0xff]
    %v1399 = vld [vmem:[#allocation7 + $0x78] sm:$0xff]
    %v1400 = vld [vmem:[#allocation7 + $0x80] sm:$0xff]
    %v1401 = vld [vmem:[#allocation7 + $0x88] sm:$0xff]
    %v1402 = vld [vmem:[#allocation7 + $0x90] sm:$0xff]
    %v1403 = vld [vmem:[#allocation7 + $0x98] sm:$0xff]
    %v1404 = vld [vmem:[#allocation7 + $0xa0] sm:$0xff]
    %v1405 = vld [vmem:[#allocation7 + $0xa8] sm:$0xff]
    %v1406 = vld [vmem:[#allocation7 + $0xb0] sm:$0xff]
    %v1407 = vld [vmem:[#allocation7 + $0xb8] sm:$0xff]
    %v1408 = vld [vmem:[#allocation7 + $0xc0] sm:$0xff]
    %v1409 = vld [vmem:[#allocation7 + $0xc8] sm:$0xff]
    %v1410 = vld [vmem:[#allocation7 + $0xd0] sm:$0xff]
    %v1411 = vld [vmem:[#allocation7 + $0xd8] sm:$0xff]
    %v1412 = vld [vmem:[#allocation7 + $0xe0] sm:$0xff]
    %v1413 = vld [vmem:[#allocation7 + $0xe8] sm:$0xff]
    %v1414 = vld [vmem:[#allocation7 + $0xf0] sm:$0xff]
    %v1415 = vld [vmem:[#allocation7 + $0xf8] sm:$0xff]
    %v1416 = vld [vmem:[#allocation7 + $0x100] sm:$0xff]
    %v1417 = vld [vmem:[#allocation7 + $0x108] sm:$0xff]
    %v1418 = vld [vmem:[#allocation7 + $0x110] sm:$0xff]
    %v1419 = vld [vmem:[#allocation7 + $0x118] sm:$0xff]
    %v1420 = vld [vmem:[#allocation7 + $0x120] sm:$0xff]
    %v1421 = vld [vmem:[#allocation7 + $0x128] sm:$0xff]
    %v1422 = vld [vmem:[#allocation7 + $0x130] sm:$0xff]
    %v1423 = vld [vmem:[#allocation7 + $0x138] sm:$0xff]
    %v1424 = vld [vmem:[#allocation7 + $0x140] sm:$0xff]
    %v1425 = vld [vmem:[#allocation7 + $0x148] sm:$0xff]
    %v1426 = vld [vmem:[#allocation7 + $0x150] sm:$0xff]
    %v1427 = vld [vmem:[#allocation7 + $0x158] sm:$0xff]
    %v1428 = vld [vmem:[#allocation7 + $0x160] sm:$0xff]
    %v1429 = vld [vmem:[#allocation7 + $0x168] sm:$0xff]
    %v1430 = vld [vmem:[#allocation7 + $0x170] sm:$0xff]
    %v1431 = vld [vmem:[#allocation7 + $0x178] sm:$0xff]
    %v1432 = vld [vmem:[#allocation7 + $0x180] sm:$0xff]
    %v1433 = vld [vmem:[#allocation7 + $0x188] sm:$0xff]
    %v1434 = vld [vmem:[#allocation7 + $0x190] sm:$0xff]
    %v1435 = vld [vmem:[#allocation7 + $0x198] sm:$0xff]
    %v1436 = vld [vmem:[#allocation7 + $0x1a0] sm:$0xff]
    %v1437 = vld [vmem:[#allocation7 + $0x1a8] sm:$0xff]
    %v1438 = vld [vmem:[#allocation7 + $0x1b0] sm:$0xff]
    %v1439 = vld [vmem:[#allocation7 + $0x1b8] sm:$0xff]
    %v1440 = vld [vmem:[#allocation7 + $0x1c0] sm:$0xff]
    %v1441 = vld [vmem:[#allocation7 + $0x1c8] sm:$0xff]
    %v1442 = vld [vmem:[#allocation7 + $0x1d0] sm:$0xff]
    %v1443 = vld [vmem:[#allocation7 + $0x1d8] sm:$0xff]
    %v1444 = vld [vmem:[#allocation7 + $0x1e0] sm:$0xff]
    %v1445 = vld [vmem:[#allocation7 + $0x1e8] sm:$0xff]
    %v1446 = vld [vmem:[#allocation7 + $0x1f0] sm:$0xff]
    %v1447 = vld [vmem:[#allocation7 + $0x1f8] sm:$0xff]
    %1448 = vmatprep.subr.mxu0 %v1385
    %1449 = vmatpush1.msra.mxu0 %v1384
    %1450 = vmatprep.subr.mxu0 %v1389
    %1451 = vmatpush1.msra.mxu0 %v1388
    %1452 = vmatprep.subr.mxu0 %v1393
    %1453 = vmatpush1.msra.mxu0 %v1392
    %1454 = vmatprep.subr.mxu0 %v1397
    %1455 = vmatpush1.msra.mxu0 %v1396
    %1456 = vmatprep.subr.mxu0 %v1401
    %1457 = vmatpush1.msra.mxu0 %v1400
    %1458 = vmatprep.subr.mxu0 %v1405
    %1459 = vmatpush1.msra.mxu0 %v1404
    %1460 = vmatprep.subr.mxu0 %v1409
    %1461 = vmatpush1.msra.mxu0 %v1408
    %1462 = vmatprep.subr.mxu0 %v1413
    %1463 = vmatpush1.msra.mxu0 %v1412
    %1464 = vmatprep.subr.mxu0 %v1417
    %1465 = vmatpush1.msra.mxu0 %v1416
    %1466 = vmatprep.subr.mxu0 %v1421
    %1467 = vmatpush1.msra.mxu0 %v1420
    %1468 = vmatprep.subr.mxu0 %v1425
    %1469 = vmatpush1.msra.mxu0 %v1424
    %1470 = vmatprep.subr.mxu0 %v1429
    %1471 = vmatpush1.msra.mxu0 %v1428
    %1472 = vmatprep.subr.mxu0 %v1433
    %1473 = vmatpush1.msra.mxu0 %v1432
    %1474 = vmatprep.subr.mxu0 %v1437
    %1475 = vmatpush1.msra.mxu0 %v1436
    %1476 = vmatprep.subr.mxu0 %v1441
    %1477 = vmatpush1.msra.mxu0 %v1440
    %1478 = vmatprep.subr.mxu0 %v1445
    %1479 = vmatpush1.msra.mxu0 %v1444
    %1480 = vmatprep.subr.mxu0 0.0
    %1481 = vmatpush1.msra.mxu0 0.0
    %1482 = vmatprep.subr.mxu0 0.0
    %1483 = vmatpush1.msra.mxu0 0.0
    %1484 = vmatprep.subr.mxu0 0.0
    %1485 = vmatpush1.msra.mxu0 0.0
    %1486 = vmatprep.subr.mxu0 0.0
    %1487 = vmatpush1.msra.mxu0 0.0
    %1488 = vmatprep.subr.mxu0 0.0
    %1489 = vmatpush1.msra.mxu0 0.0
    %1490 = vmatprep.subr.mxu0 0.0
    %1491 = vmatpush1.msra.mxu0 0.0
    %1492 = vmatprep.subr.mxu0 0.0
    %1493 = vmatpush1.msra.mxu0 0.0
    %1494 = vmatprep.subr.mxu0 0.0
    %1495 = vmatpush1.msra.mxu0 0.0
    %1496 = vmatprep.subr.mxu0 0.0
    %1497 = vmatpush1.msra.mxu0 0.0
    %1498 = vmatprep.subr.mxu0 0.0
    %1499 = vmatpush1.msra.mxu0 0.0
    %1500 = vmatprep.subr.mxu0 0.0
    %1501 = vmatpush1.msra.mxu0 0.0
    %1502 = vmatprep.subr.mxu0 0.0
    %1503 = vmatpush1.msra.mxu0 0.0
    %1504 = vmatprep.subr.mxu0 0.0
    %1505 = vmatpush1.msra.mxu0 0.0
    %1506 = vmatprep.subr.mxu0 0.0
    %1507 = vmatpush1.msra.mxu0 0.0
    %1508 = vmatprep.subr.mxu0 0.0
    %1509 = vmatpush1.msra.mxu0 0.0
    %1510 = vmatprep.subr.mxu0 0.0
    %1511 = vmatpush1.msra.mxu0 0.0
    %1512 = vmatprep.mubr.f32.mxu0 0.0
    %1513 = vmatmul.mubr.f32.gmra.mrb[0].mxu0 %v1375
    %v1514 = vpop.f32.mrb[0].mxu0
    %v1515 = vadd.f32 0.0, %v1514
    %v1516 = vpop.f32.mrb[0].mxu0
    %v1517 = vadd.f32 0.0, %v1516
    %1518 = vdwg.mxu0
    %1519 = vmatprep.subr.mxu0 %v1387
    %1520 = vmatpush1.msra.mxu0 %v1386
    %1521 = vmatprep.subr.mxu0 %v1391
    %1522 = vmatpush1.msra.mxu0 %v1390
    %1523 = vmatprep.subr.mxu0 %v1395
    %1524 = vmatpush1.msra.mxu0 %v1394
    %1525 = vmatprep.subr.mxu0 %v1399
    %1526 = vmatpush1.msra.mxu0 %v1398
    %1527 = vmatprep.subr.mxu0 %v1403
    %1528 = vmatpush1.msra.mxu0 %v1402
    %1529 = vmatprep.subr.mxu0 %v1407
    %1530 = vmatpush1.msra.mxu0 %v1406
    %1531 = vmatprep.subr.mxu0 %v1411
    %1532 = vmatpush1.msra.mxu0 %v1410
    %1533 = vmatprep.subr.mxu0 %v1415
    %1534 = vmatpush1.msra.mxu0 %v1414
    %1535 = vmatprep.subr.mxu0 %v1419
    %1536 = vmatpush1.msra.mxu0 %v1418
    %1537 = vmatprep.subr.mxu0 %v1423
    %1538 = vmatpush1.msra.mxu0 %v1422
    %1539 = vmatprep.subr.mxu0 %v1427
    %1540 = vmatpush1.msra.mxu0 %v1426
    %1541 = vmatprep.subr.mxu0 %v1431
    %1542 = vmatpush1.msra.mxu0 %v1430
    %1543 = vmatprep.subr.mxu0 %v1435
    %1544 = vmatpush1.msra.mxu0 %v1434
    %1545 = vmatprep.subr.mxu0 %v1439
    %1546 = vmatpush1.msra.mxu0 %v1438
    %1547 = vmatprep.subr.mxu0 %v1443
    %1548 = vmatpush1.msra.mxu0 %v1442
    %1549 = vmatprep.subr.mxu0 %v1447
    %1550 = vmatpush1.msra.mxu0 %v1446
    %1551 = vmatprep.subr.mxu0 0.0
    %1552 = vmatpush1.msra.mxu0 0.0
    %1553 = vmatprep.subr.mxu0 0.0
    %1554 = vmatpush1.msra.mxu0 0.0
    %1555 = vmatprep.subr.mxu0 0.0
    %1556 = vmatpush1.msra.mxu0 0.0
    %1557 = vmatprep.subr.mxu0 0.0
    %1558 = vmatpush1.msra.mxu0 0.0
    %1559 = vmatprep.subr.mxu0 0.0
    %1560 = vmatpush1.msra.mxu0 0.0
    %1561 = vmatprep.subr.mxu0 0.0
    %1562 = vmatpush1.msra.mxu0 0.0
    %1563 = vmatprep.subr.mxu0 0.0
    %1564 = vmatpush1.msra.mxu0 0.0
    %1565 = vmatprep.subr.mxu0 0.0
    %1566 = vmatpush1.msra.mxu0 0.0
    %1567 = vmatprep.subr.mxu0 0.0
    %1568 = vmatpush1.msra.mxu0 0.0
    %1569 = vmatprep.subr.mxu0 0.0
    %1570 = vmatpush1.msra.mxu0 0.0
    %1571 = vmatprep.subr.mxu0 0.0
    %1572 = vmatpush1.msra.mxu0 0.0
    %1573 = vmatprep.subr.mxu0 0.0
    %1574 = vmatpush1.msra.mxu0 0.0
    %1575 = vmatprep.subr.mxu0 0.0
    %1576 = vmatpush1.msra.mxu0 0.0
    %1577 = vmatprep.subr.mxu0 0.0
    %1578 = vmatpush1.msra.mxu0 0.0
    %1579 = vmatprep.subr.mxu0 0.0
    %1580 = vmatpush1.msra.mxu0 0.0
    %1581 = vmatprep.subr.mxu0 0.0
    %1582 = vmatpush1.msra.mxu0 0.0
    %1583 = vmatprep.mubr.f32.mxu0 0.0
    %1584 = vmatmul.mubr.f32.gmra.mrb[0].mxu0 %v1375
    %v1585 = vpop.f32.mrb[0].mxu0
    %v1586 = vadd.f32 0.0, %v1585
    %v1587 = vpop.f32.mrb[0].mxu0
    %v1588 = vadd.f32 0.0, %v1587
    %1589 = vdwg.mxu0
    %v1590 = vadd.f32 %v1380, %v1515
    %v1591 = vadd.f32 %v1381, %v1517
    %v1592 = vadd.f32 %v1382, %v1586
    %v1593 = vadd.f32 %v1383, %v1588
    %v1594 = vxor.u32 %v1590, 2147483648
    %v1595 = vxor.u32 %v1591, 2147483648
    %v1596 = vxor.u32 %v1592, 2147483648
    %v1597 = vmul.f32 %v1594, 1.442695
    %v1598 = vpow.pop %v1597
    %v1599 = vmul.f32 %v1595, 1.442695
    %v1600 = vpow.pop %v1599
    %v1601 = vmul.f32 %v1596, 1.442695
    %v1602 = vpow.pop %v1601
    %v1603 = vadd.f32 %v1598, 1.0
    %v1604 = vadd.f32 %v1600, 1.0
    %v1605 = vadd.f32 %v1602, 1.0
    %v1606 = vrcp.pop %v1603
    %v1607 = vmul.f32 1.0, %v1606
    %v1608 = vrcp.pop %v1604
    %v1609 = vmul.f32 1.0, %v1608
    %v1610 = vrcp.pop %v1605
    %v1611 = vmul.f32 1.0, %v1610
    %v1612 = vtanh.pop %v1593
    %v1613 = vmul.f32 %v1609, %v1376
    %v1614 = vmul.f32 %v1607, %v1612
    %v1615 = vadd.f32 %v1613, %v1614
    %v1616 = vtanh.pop %v1615
    %v1617 = vmul.f32 %v1611, %v1616
    %1618 = vst [vmem:[#allocation4] sm:$0xff] %v1615
    %1619 = vst [vmem:[#allocation3] sm:$0xff] %v1617
    %s1620 = scalar_lea.vmem %s4, 32
    %1621 = vst [vmem:[%s1620] sm:$0xff] %v1617
    %v1622 = vld [vmem:[#allocation3] sm:$0xff]
    %v1623 = vld [vmem:[#allocation4] sm:$0xff]
    %s1624 = smul.u32 5, 4
    %s1625 = smul.addr %s1624, 8
    %s1626 = scalar_lea.vmem [#allocation2], %s1625
    %v1627 = vld [vmem:[%s1626] sm:$0xff]
    %v1628 = vld [vmem:[%s1626 + $0x8] sm:$0xff]
    %v1629 = vld [vmem:[%s1626 + $0x10] sm:$0xff]
    %v1630 = vld [vmem:[%s1626 + $0x18] sm:$0xff]
    %v1631 = vld [vmem:[#allocation7] sm:$0xff]
    %v1632 = vld [vmem:[#allocation7 + $0x8] sm:$0xff]
    %v1633 = vld [vmem:[#allocation7 + $0x10] sm:$0xff]
    %v1634 = vld [vmem:[#allocation7 + $0x18] sm:$0xff]
    %v1635 = vld [vmem:[#allocation7 + $0x20] sm:$0xff]
    %v1636 = vld [vmem:[#allocation7 + $0x28] sm:$0xff]
    %v1637 = vld [vmem:[#allocation7 + $0x30] sm:$0xff]
    %v1638 = vld [vmem:[#allocation7 + $0x38] sm:$0xff]
    %v1639 = vld [vmem:[#allocation7 + $0x40] sm:$0xff]
    %v1640 = vld [vmem:[#allocation7 + $0x48] sm:$0xff]
    %v1641 = vld [vmem:[#allocation7 + $0x50] sm:$0xff]
    %v1642 = vld [vmem:[#allocation7 + $0x58] sm:$0xff]
    %v1643 = vld [vmem:[#allocation7 + $0x60] sm:$0xff]
    %v1644 = vld [vmem:[#allocation7 + $0x68] sm:$0xff]
    %v1645 = vld [vmem:[#allocation7 + $0x70] sm:$0xff]
    %v1646 = vld [vmem:[#allocation7 + $0x78] sm:$0xff]
    %v1647 = vld [vmem:[#allocation7 + $0x80] sm:$0xff]
    %v1648 = vld [vmem:[#allocation7 + $0x88] sm:$0xff]
    %v1649 = vld [vmem:[#allocation7 + $0x90] sm:$0xff]
    %v1650 = vld [vmem:[#allocation7 + $0x98] sm:$0xff]
    %v1651 = vld [vmem:[#allocation7 + $0xa0] sm:$0xff]
    %v1652 = vld [vmem:[#allocation7 + $0xa8] sm:$0xff]
    %v1653 = vld [vmem:[#allocation7 + $0xb0] sm:$0xff]
    %v1654 = vld [vmem:[#allocation7 + $0xb8] sm:$0xff]
    %v1655 = vld [vmem:[#allocation7 + $0xc0] sm:$0xff]
    %v1656 = vld [vmem:[#allocation7 + $0xc8] sm:$0xff]
    %v1657 = vld [vmem:[#allocation7 + $0xd0] sm:$0xff]
    %v1658 = vld [vmem:[#allocation7 + $0xd8] sm:$0xff]
    %v1659 = vld [vmem:[#allocation7 + $0xe0] sm:$0xff]
    %v1660 = vld [vmem:[#allocation7 + $0xe8] sm:$0xff]
    %v1661 = vld [vmem:[#allocation7 + $0xf0] sm:$0xff]
    %v1662 = vld [vmem:[#allocation7 + $0xf8] sm:$0xff]
    %v1663 = vld [vmem:[#allocation7 + $0x100] sm:$0xff]
    %v1664 = vld [vmem:[#allocation7 + $0x108] sm:$0xff]
    %v1665 = vld [vmem:[#allocation7 + $0x110] sm:$0xff]
    %v1666 = vld [vmem:[#allocation7 + $0x118] sm:$0xff]
    %v1667 = vld [vmem:[#allocation7 + $0x120] sm:$0xff]
    %v1668 = vld [vmem:[#allocation7 + $0x128] sm:$0xff]
    %v1669 = vld [vmem:[#allocation7 + $0x130] sm:$0xff]
    %v1670 = vld [vmem:[#allocation7 + $0x138] sm:$0xff]
    %v1671 = vld [vmem:[#allocation7 + $0x140] sm:$0xff]
    %v1672 = vld [vmem:[#allocation7 + $0x148] sm:$0xff]
    %v1673 = vld [vmem:[#allocation7 + $0x150] sm:$0xff]
    %v1674 = vld [vmem:[#allocation7 + $0x158] sm:$0xff]
    %v1675 = vld [vmem:[#allocation7 + $0x160] sm:$0xff]
    %v1676 = vld [vmem:[#allocation7 + $0x168] sm:$0xff]
    %v1677 = vld [vmem:[#allocation7 + $0x170] sm:$0xff]
    %v1678 = vld [vmem:[#allocation7 + $0x178] sm:$0xff]
    %v1679 = vld [vmem:[#allocation7 + $0x180] sm:$0xff]
    %v1680 = vld [vmem:[#allocation7 + $0x188] sm:$0xff]
    %v1681 = vld [vmem:[#allocation7 + $0x190] sm:$0xff]
    %v1682 = vld [vmem:[#allocation7 + $0x198] sm:$0xff]
    %v1683 = vld [vmem:[#allocation7 + $0x1a0] sm:$0xff]
    %v1684 = vld [vmem:[#allocation7 + $0x1a8] sm:$0xff]
    %v1685 = vld [vmem:[#allocation7 + $0x1b0] sm:$0xff]
    %v1686 = vld [vmem:[#allocation7 + $0x1b8] sm:$0xff]
    %v1687 = vld [vmem:[#allocation7 + $0x1c0] sm:$0xff]
    %v1688 = vld [vmem:[#allocation7 + $0x1c8] sm:$0xff]
    %v1689 = vld [vmem:[#allocation7 + $0x1d0] sm:$0xff]
    %v1690 = vld [vmem:[#allocation7 + $0x1d8] sm:$0xff]
    %v1691 = vld [vmem:[#allocation7 + $0x1e0] sm:$0xff]
    %v1692 = vld [vmem:[#allocation7 + $0x1e8] sm:$0xff]
    %v1693 = vld [vmem:[#allocation7 + $0x1f0] sm:$0xff]
    %v1694 = vld [vmem:[#allocation7 + $0x1f8] sm:$0xff]
    %1695 = vmatprep.subr.mxu0 %v1632
    %1696 = vmatpush1.msra.mxu0 %v1631
    %1697 = vmatprep.subr.mxu0 %v1636
    %1698 = vmatpush1.msra.mxu0 %v1635
    %1699 = vmatprep.subr.mxu0 %v1640
    %1700 = vmatpush1.msra.mxu0 %v1639
    %1701 = vmatprep.subr.mxu0 %v1644
    %1702 = vmatpush1.msra.mxu0 %v1643
    %1703 = vmatprep.subr.mxu0 %v1648
    %1704 = vmatpush1.msra.mxu0 %v1647
    %1705 = vmatprep.subr.mxu0 %v1652
    %1706 = vmatpush1.msra.mxu0 %v1651
    %1707 = vmatprep.subr.mxu0 %v1656
    %1708 = vmatpush1.msra.mxu0 %v1655
    %1709 = vmatprep.subr.mxu0 %v1660
    %1710 = vmatpush1.msra.mxu0 %v1659
    %1711 = vmatprep.subr.mxu0 %v1664
    %1712 = vmatpush1.msra.mxu0 %v1663
    %1713 = vmatprep.subr.mxu0 %v1668
    %1714 = vmatpush1.msra.mxu0 %v1667
    %1715 = vmatprep.subr.mxu0 %v1672
    %1716 = vmatpush1.msra.mxu0 %v1671
    %1717 = vmatprep.subr.mxu0 %v1676
    %1718 = vmatpush1.msra.mxu0 %v1675
    %1719 = vmatprep.subr.mxu0 %v1680
    %1720 = vmatpush1.msra.mxu0 %v1679
    %1721 = vmatprep.subr.mxu0 %v1684
    %1722 = vmatpush1.msra.mxu0 %v1683
    %1723 = vmatprep.subr.mxu0 %v1688
    %1724 = vmatpush1.msra.mxu0 %v1687
    %1725 = vmatprep.subr.mxu0 %v1692
    %1726 = vmatpush1.msra.mxu0 %v1691
    %1727 = vmatprep.subr.mxu0 0.0
    %1728 = vmatpush1.msra.mxu0 0.0
    %1729 = vmatprep.subr.mxu0 0.0
    %1730 = vmatpush1.msra.mxu0 0.0
    %1731 = vmatprep.subr.mxu0 0.0
    %1732 = vmatpush1.msra.mxu0 0.0
    %1733 = vmatprep.subr.mxu0 0.0
    %1734 = vmatpush1.msra.mxu0 0.0
    %1735 = vmatprep.subr.mxu0 0.0
    %1736 = vmatpush1.msra.mxu0 0.0
    %1737 = vmatprep.subr.mxu0 0.0
    %1738 = vmatpush1.msra.mxu0 0.0
    %1739 = vmatprep.subr.mxu0 0.0
    %1740 = vmatpush1.msra.mxu0 0.0
    %1741 = vmatprep.subr.mxu0 0.0
    %1742 = vmatpush1.msra.mxu0 0.0
    %1743 = vmatprep.subr.mxu0 0.0
    %1744 = vmatpush1.msra.mxu0 0.0
    %1745 = vmatprep.subr.mxu0 0.0
    %1746 = vmatpush1.msra.mxu0 0.0
    %1747 = vmatprep.subr.mxu0 0.0
    %1748 = vmatpush1.msra.mxu0 0.0
    %1749 = vmatprep.subr.mxu0 0.0
    %1750 = vmatpush1.msra.mxu0 0.0
    %1751 = vmatprep.subr.mxu0 0.0
    %1752 = vmatpush1.msra.mxu0 0.0
    %1753 = vmatprep.subr.mxu0 0.0
    %1754 = vmatpush1.msra.mxu0 0.0
    %1755 = vmatprep.subr.mxu0 0.0
    %1756 = vmatpush1.msra.mxu0 0.0
    %1757 = vmatprep.subr.mxu0 0.0
    %1758 = vmatpush1.msra.mxu0 0.0
    %1759 = vmatprep.mubr.f32.mxu0 0.0
    %1760 = vmatmul.mubr.f32.gmra.mrb[0].mxu0 %v1622
    %v1761 = vpop.f32.mrb[0].mxu0
    %v1762 = vadd.f32 0.0, %v1761
    %v1763 = vpop.f32.mrb[0].mxu0
    %v1764 = vadd.f32 0.0, %v1763
    %1765 = vdwg.mxu0
    %1766 = vmatprep.subr.mxu0 %v1634
    %1767 = vmatpush1.msra.mxu0 %v1633
    %1768 = vmatprep.subr.mxu0 %v1638
    %1769 = vmatpush1.msra.mxu0 %v1637
    %1770 = vmatprep.subr.mxu0 %v1642
    %1771 = vmatpush1.msra.mxu0 %v1641
    %1772 = vmatprep.subr.mxu0 %v1646
    %1773 = vmatpush1.msra.mxu0 %v1645
    %1774 = vmatprep.subr.mxu0 %v1650
    %1775 = vmatpush1.msra.mxu0 %v1649
    %1776 = vmatprep.subr.mxu0 %v1654
    %1777 = vmatpush1.msra.mxu0 %v1653
    %1778 = vmatprep.subr.mxu0 %v1658
    %1779 = vmatpush1.msra.mxu0 %v1657
    %1780 = vmatprep.subr.mxu0 %v1662
    %1781 = vmatpush1.msra.mxu0 %v1661
    %1782 = vmatprep.subr.mxu0 %v1666
    %1783 = vmatpush1.msra.mxu0 %v1665
    %1784 = vmatprep.subr.mxu0 %v1670
    %1785 = vmatpush1.msra.mxu0 %v1669
    %1786 = vmatprep.subr.mxu0 %v1674
    %1787 = vmatpush1.msra.mxu0 %v1673
    %1788 = vmatprep.subr.mxu0 %v1678
    %1789 = vmatpush1.msra.mxu0 %v1677
    %1790 = vmatprep.subr.mxu0 %v1682
    %1791 = vmatpush1.msra.mxu0 %v1681
    %1792 = vmatprep.subr.mxu0 %v1686
    %1793 = vmatpush1.msra.mxu0 %v1685
    %1794 = vmatprep.subr.mxu0 %v1690
    %1795 = vmatpush1.msra.mxu0 %v1689
    %1796 = vmatprep.subr.mxu0 %v1694
    %1797 = vmatpush1.msra.mxu0 %v1693
    %1798 = vmatprep.subr.mxu0 0.0
    %1799 = vmatpush1.msra.mxu0 0.0
    %1800 = vmatprep.subr.mxu0 0.0
    %1801 = vmatpush1.msra.mxu0 0.0
    %1802 = vmatprep.subr.mxu0 0.0
    %1803 = vmatpush1.msra.mxu0 0.0
    %1804 = vmatprep.subr.mxu0 0.0
    %1805 = vmatpush1.msra.mxu0 0.0
    %1806 = vmatprep.subr.mxu0 0.0
    %1807 = vmatpush1.msra.mxu0 0.0
    %1808 = vmatprep.subr.mxu0 0.0
    %1809 = vmatpush1.msra.mxu0 0.0
    %1810 = vmatprep.subr.mxu0 0.0
    %1811 = vmatpush1.msra.mxu0 0.0
    %1812 = vmatprep.subr.mxu0 0.0
    %1813 = vmatpush1.msra.mxu0 0.0
    %1814 = vmatprep.subr.mxu0 0.0
    %1815 = vmatpush1.msra.mxu0 0.0
    %1816 = vmatprep.subr.mxu0 0.0
    %1817 = vmatpush1.msra.mxu0 0.0
    %1818 = vmatprep.subr.mxu0 0.0
    %1819 = vmatpush1.msra.mxu0 0.0
    %1820 = vmatprep.subr.mxu0 0.0
    %1821 = vmatpush1.msra.mxu0 0.0
    %1822 = vmatprep.subr.mxu0 0.0
    %1823 = vmatpush1.msra.mxu0 0.0
    %1824 = vmatprep.subr.mxu0 0.0
    %1825 = vmatpush1.msra.mxu0 0.0
    %1826 = vmatprep.subr.mxu0 0.0
    %1827 = vmatpush1.msra.mxu0 0.0
    %1828 = vmatprep.subr.mxu0 0.0
    %1829 = vmatpush1.msra.mxu0 0.0
    %1830 = vmatprep.mubr.f32.mxu0 0.0
    %1831 = vmatmul.mubr.f32.gmra.mrb[0].mxu0 %v1622
    %v1832 = vpop.f32.mrb[0].mxu0
    %v1833 = vadd.f32 0.0, %v1832
    %v1834 = vpop.f32.mrb[0].mxu0
    %v1835 = vadd.f32 0.0, %v1834
    %1836 = vdwg.mxu0
    %v1837 = vadd.f32 %v1627, %v1762
    %v1838 = vadd.f32 %v1628, %v1764
    %v1839 = vadd.f32 %v1629, %v1833
    %v1840 = vadd.f32 %v1630, %v1835
    %v1841 = vxor.u32 %v1837, 2147483648
    %v1842 = vxor.u32 %v1838, 2147483648
    %v1843 = vxor.u32 %v1839, 2147483648
    %v1844 = vmul.f32 %v1841, 1.442695
    %v1845 = vpow.pop %v1844
    %v1846 = vmul.f32 %v1842, 1.442695
    %v1847 = vpow.pop %v1846
    %v1848 = vmul.f32 %v1843, 1.442695
    %v1849 = vpow.pop %v1848
    %v1850 = vadd.f32 %v1845, 1.0
    %v1851 = vadd.f32 %v1847, 1.0
    %v1852 = vadd.f32 %v1849, 1.0
    %v1853 = vrcp.pop %v1850
    %v1854 = vmul.f32 1.0, %v1853
    %v1855 = vrcp.pop %v1851
    %v1856 = vmul.f32 1.0, %v1855
    %v1857 = vrcp.pop %v1852
    %v1858 = vmul.f32 1.0, %v1857
    %v1859 = vtanh.pop %v1840
    %v1860 = vmul.f32 %v1856, %v1623
    %v1861 = vmul.f32 %v1854, %v1859
    %v1862 = vadd.f32 %v1860, %v1861
    %v1863 = vtanh.pop %v1862
    %v1864 = vmul.f32 %v1858, %v1863
    %1865 = vst [vmem:[#allocation4] sm:$0xff] %v1862
    %1866 = vst [vmem:[#allocation3] sm:$0xff] %v1864
    %s1867 = scalar_lea.vmem %s4, 40
    %1868 = vst [vmem:[%s1867] sm:$0xff] %v1864
    %v1869 = vld [vmem:[#allocation3] sm:$0xff]
    %v1870 = vld [vmem:[#allocation4] sm:$0xff]
    %s1871 = smul.u32 6, 4
    %s1872 = smul.addr %s1871, 8
    %s1873 = scalar_lea.vmem [#allocation2], %s1872
    %v1874 = vld [vmem:[%s1873] sm:$0xff]
    %v1875 = vld [vmem:[%s1873 + $0x8] sm:$0xff]
    %v1876 = vld [vmem:[%s1873 + $0x10] sm:$0xff]
    %v1877 = vld [vmem:[%s1873 + $0x18] sm:$0xff]
    %v1878 = vld [vmem:[#allocation7] sm:$0xff]
    %v1879 = vld [vmem:[#allocation7 + $0x8] sm:$0xff]
    %v1880 = vld [vmem:[#allocation7 + $0x10] sm:$0xff]
    %v1881 = vld [vmem:[#allocation7 + $0x18] sm:$0xff]
    %v1882 = vld [vmem:[#allocation7 + $0x20] sm:$0xff]
    %v1883 = vld [vmem:[#allocation7 + $0x28] sm:$0xff]
    %v1884 = vld [vmem:[#allocation7 + $0x30] sm:$0xff]
    %v1885 = vld [vmem:[#allocation7 + $0x38] sm:$0xff]
    %v1886 = vld [vmem:[#allocation7 + $0x40] sm:$0xff]
    %v1887 = vld [vmem:[#allocation7 + $0x48] sm:$0xff]
    %v1888 = vld [vmem:[#allocation7 + $0x50] sm:$0xff]
    %v1889 = vld [vmem:[#allocation7 + $0x58] sm:$0xff]
    %v1890 = vld [vmem:[#allocation7 + $0x60] sm:$0xff]
    %v1891 = vld [vmem:[#allocation7 + $0x68] sm:$0xff]
    %v1892 = vld [vmem:[#allocation7 + $0x70] sm:$0xff]
    %v1893 = vld [vmem:[#allocation7 + $0x78] sm:$0xff]
    %v1894 = vld [vmem:[#allocation7 + $0x80] sm:$0xff]
    %v1895 = vld [vmem:[#allocation7 + $0x88] sm:$0xff]
    %v1896 = vld [vmem:[#allocation7 + $0x90] sm:$0xff]
    %v1897 = vld [vmem:[#allocation7 + $0x98] sm:$0xff]
    %v1898 = vld [vmem:[#allocation7 + $0xa0] sm:$0xff]
    %v1899 = vld [vmem:[#allocation7 + $0xa8] sm:$0xff]
    %v1900 = vld [vmem:[#allocation7 + $0xb0] sm:$0xff]
    %v1901 = vld [vmem:[#allocation7 + $0xb8] sm:$0xff]
    %v1902 = vld [vmem:[#allocation7 + $0xc0] sm:$0xff]
    %v1903 = vld [vmem:[#allocation7 + $0xc8] sm:$0xff]
    %v1904 = vld [vmem:[#allocation7 + $0xd0] sm:$0xff]
    %v1905 = vld [vmem:[#allocation7 + $0xd8] sm:$0xff]
    %v1906 = vld [vmem:[#allocation7 + $0xe0] sm:$0xff]
    %v1907 = vld [vmem:[#allocation7 + $0xe8] sm:$0xff]
    %v1908 = vld [vmem:[#allocation7 + $0xf0] sm:$0xff]
    %v1909 = vld [vmem:[#allocation7 + $0xf8] sm:$0xff]
    %v1910 = vld [vmem:[#allocation7 + $0x100] sm:$0xff]
    %v1911 = vld [vmem:[#allocation7 + $0x108] sm:$0xff]
    %v1912 = vld [vmem:[#allocation7 + $0x110] sm:$0xff]
    %v1913 = vld [vmem:[#allocation7 + $0x118] sm:$0xff]
    %v1914 = vld [vmem:[#allocation7 + $0x120] sm:$0xff]
    %v1915 = vld [vmem:[#allocation7 + $0x128] sm:$0xff]
    %v1916 = vld [vmem:[#allocation7 + $0x130] sm:$0xff]
    %v1917 = vld [vmem:[#allocation7 + $0x138] sm:$0xff]
    %v1918 = vld [vmem:[#allocation7 + $0x140] sm:$0xff]
    %v1919 = vld [vmem:[#allocation7 + $0x148] sm:$0xff]
    %v1920 = vld [vmem:[#allocation7 + $0x150] sm:$0xff]
    %v1921 = vld [vmem:[#allocation7 + $0x158] sm:$0xff]
    %v1922 = vld [vmem:[#allocation7 + $0x160] sm:$0xff]
    %v1923 = vld [vmem:[#allocation7 + $0x168] sm:$0xff]
    %v1924 = vld [vmem:[#allocation7 + $0x170] sm:$0xff]
    %v1925 = vld [vmem:[#allocation7 + $0x178] sm:$0xff]
    %v1926 = vld [vmem:[#allocation7 + $0x180] sm:$0xff]
    %v1927 = vld [vmem:[#allocation7 + $0x188] sm:$0xff]
    %v1928 = vld [vmem:[#allocation7 + $0x190] sm:$0xff]
    %v1929 = vld [vmem:[#allocation7 + $0x198] sm:$0xff]
    %v1930 = vld [vmem:[#allocation7 + $0x1a0] sm:$0xff]
    %v1931 = vld [vmem:[#allocation7 + $0x1a8] sm:$0xff]
    %v1932 = vld [vmem:[#allocation7 + $0x1b0] sm:$0xff]
    %v1933 = vld [vmem:[#allocation7 + $0x1b8] sm:$0xff]
    %v1934 = vld [vmem:[#allocation7 + $0x1c0] sm:$0xff]
    %v1935 = vld [vmem:[#allocation7 + $0x1c8] sm:$0xff]
    %v1936 = vld [vmem:[#allocation7 + $0x1d0] sm:$0xff]
    %v1937 = vld [vmem:[#allocation7 + $0x1d8] sm:$0xff]
    %v1938 = vld [vmem:[#allocation7 + $0x1e0] sm:$0xff]
    %v1939 = vld [vmem:[#allocation7 + $0x1e8] sm:$0xff]
    %v1940 = vld [vmem:[#allocation7 + $0x1f0] sm:$0xff]
    %v1941 = vld [vmem:[#allocation7 + $0x1f8] sm:$0xff]
    %1942 = vmatprep.subr.mxu0 %v1879
    %1943 = vmatpush1.msra.mxu0 %v1878
    %1944 = vmatprep.subr.mxu0 %v1883
    %1945 = vmatpush1.msra.mxu0 %v1882
    %1946 = vmatprep.subr.mxu0 %v1887
    %1947 = vmatpush1.msra.mxu0 %v1886
    %1948 = vmatprep.subr.mxu0 %v1891
    %1949 = vmatpush1.msra.mxu0 %v1890
    %1950 = vmatprep.subr.mxu0 %v1895
    %1951 = vmatpush1.msra.mxu0 %v1894
    %1952 = vmatprep.subr.mxu0 %v1899
    %1953 = vmatpush1.msra.mxu0 %v1898
    %1954 = vmatprep.subr.mxu0 %v1903
    %1955 = vmatpush1.msra.mxu0 %v1902
    %1956 = vmatprep.subr.mxu0 %v1907
    %1957 = vmatpush1.msra.mxu0 %v1906
    %1958 = vmatprep.subr.mxu0 %v1911
    %1959 = vmatpush1.msra.mxu0 %v1910
    %1960 = vmatprep.subr.mxu0 %v1915
    %1961 = vmatpush1.msra.mxu0 %v1914
    %1962 = vmatprep.subr.mxu0 %v1919
    %1963 = vmatpush1.msra.mxu0 %v1918
    %1964 = vmatprep.subr.mxu0 %v1923
    %1965 = vmatpush1.msra.mxu0 %v1922
    %1966 = vmatprep.subr.mxu0 %v1927
    %1967 = vmatpush1.msra.mxu0 %v1926
    %1968 = vmatprep.subr.mxu0 %v1931
    %1969 = vmatpush1.msra.mxu0 %v1930
    %1970 = vmatprep.subr.mxu0 %v1935
    %1971 = vmatpush1.msra.mxu0 %v1934
    %1972 = vmatprep.subr.mxu0 %v1939
    %1973 = vmatpush1.msra.mxu0 %v1938
    %1974 = vmatprep.subr.mxu0 0.0
    %1975 = vmatpush1.msra.mxu0 0.0
    %1976 = vmatprep.subr.mxu0 0.0
    %1977 = vmatpush1.msra.mxu0 0.0
    %1978 = vmatprep.subr.mxu0 0.0
    %1979 = vmatpush1.msra.mxu0 0.0
    %1980 = vmatprep.subr.mxu0 0.0
    %1981 = vmatpush1.msra.mxu0 0.0
    %1982 = vmatprep.subr.mxu0 0.0
    %1983 = vmatpush1.msra.mxu0 0.0
    %1984 = vmatprep.subr.mxu0 0.0
    %1985 = vmatpush1.msra.mxu0 0.0
    %1986 = vmatprep.subr.mxu0 0.0
    %1987 = vmatpush1.msra.mxu0 0.0
    %1988 = vmatprep.subr.mxu0 0.0
    %1989 = vmatpush1.msra.mxu0 0.0
    %1990 = vmatprep.subr.mxu0 0.0
    %1991 = vmatpush1.msra.mxu0 0.0
    %1992 = vmatprep.subr.mxu0 0.0
    %1993 = vmatpush1.msra.mxu0 0.0
    %1994 = vmatprep.subr.mxu0 0.0
    %1995 = vmatpush1.msra.mxu0 0.0
    %1996 = vmatprep.subr.mxu0 0.0
    %1997 = vmatpush1.msra.mxu0 0.0
    %1998 = vmatprep.subr.mxu0 0.0
    %1999 = vmatpush1.msra.mxu0 0.0
    %2000 = vmatprep.subr.mxu0 0.0
    %2001 = vmatpush1.msra.mxu0 0.0
    %2002 = vmatprep.subr.mxu0 0.0
    %2003 = vmatpush1.msra.mxu0 0.0
    %2004 = vmatprep.subr.mxu0 0.0
    %2005 = vmatpush1.msra.mxu0 0.0
    %2006 = vmatprep.mubr.f32.mxu0 0.0
    %2007 = vmatmul.mubr.f32.gmra.mrb[0].mxu0 %v1869
    %v2008 = vpop.f32.mrb[0].mxu0
    %v2009 = vadd.f32 0.0, %v2008
    %v2010 = vpop.f32.mrb[0].mxu0
    %v2011 = vadd.f32 0.0, %v2010
    %2012 = vdwg.mxu0
    %2013 = vmatprep.subr.mxu0 %v1881
    %2014 = vmatpush1.msra.mxu0 %v1880
    %2015 = vmatprep.subr.mxu0 %v1885
    %2016 = vmatpush1.msra.mxu0 %v1884
    %2017 = vmatprep.subr.mxu0 %v1889
    %2018 = vmatpush1.msra.mxu0 %v1888
    %2019 = vmatprep.subr.mxu0 %v1893
    %2020 = vmatpush1.msra.mxu0 %v1892
    %2021 = vmatprep.subr.mxu0 %v1897
    %2022 = vmatpush1.msra.mxu0 %v1896
    %2023 = vmatprep.subr.mxu0 %v1901
    %2024 = vmatpush1.msra.mxu0 %v1900
    %2025 = vmatprep.subr.mxu0 %v1905
    %2026 = vmatpush1.msra.mxu0 %v1904
    %2027 = vmatprep.subr.mxu0 %v1909
    %2028 = vmatpush1.msra.mxu0 %v1908
    %2029 = vmatprep.subr.mxu0 %v1913
    %2030 = vmatpush1.msra.mxu0 %v1912
    %2031 = vmatprep.subr.mxu0 %v1917
    %2032 = vmatpush1.msra.mxu0 %v1916
    %2033 = vmatprep.subr.mxu0 %v1921
    %2034 = vmatpush1.msra.mxu0 %v1920
    %2035 = vmatprep.subr.mxu0 %v1925
    %2036 = vmatpush1.msra.mxu0 %v1924
    %2037 = vmatprep.subr.mxu0 %v1929
    %2038 = vmatpush1.msra.mxu0 %v1928
    %2039 = vmatprep.subr.mxu0 %v1933
    %2040 = vmatpush1.msra.mxu0 %v1932
    %2041 = vmatprep.subr.mxu0 %v1937
    %2042 = vmatpush1.msra.mxu0 %v1936
    %2043 = vmatprep.subr.mxu0 %v1941
    %2044 = vmatpush1.msra.mxu0 %v1940
    %2045 = vmatprep.subr.mxu0 0.0
    %2046 = vmatpush1.msra.mxu0 0.0
    %2047 = vmatprep.subr.mxu0 0.0
    %2048 = vmatpush1.msra.mxu0 0.0
    %2049 = vmatprep.subr.mxu0 0.0
    %2050 = vmatpush1.msra.mxu0 0.0
    %2051 = vmatprep.subr.mxu0 0.0
    %2052 = vmatpush1.msra.mxu0 0.0
    %2053 = vmatprep.subr.mxu0 0.0
    %2054 = vmatpush1.msra.mxu0 0.0
    %2055 = vmatprep.subr.mxu0 0.0
    %2056 = vmatpush1.msra.mxu0 0.0
    %2057 = vmatprep.subr.mxu0 0.0
    %2058 = vmatpush1.msra.mxu0 0.0
    %2059 = vmatprep.subr.mxu0 0.0
    %2060 = vmatpush1.msra.mxu0 0.0
    %2061 = vmatprep.subr.mxu0 0.0
    %2062 = vmatpush1.msra.mxu0 0.0
    %2063 = vmatprep.subr.mxu0 0.0
    %2064 = vmatpush1.msra.mxu0 0.0
    %2065 = vmatprep.subr.mxu0 0.0
    %2066 = vmatpush1.msra.mxu0 0.0
    %2067 = vmatprep.subr.mxu0 0.0
    %2068 = vmatpush1.msra.mxu0 0.0
    %2069 = vmatprep.subr.mxu0 0.0
    %2070 = vmatpush1.msra.mxu0 0.0
    %2071 = vmatprep.subr.mxu0 0.0
    %2072 = vmatpush1.msra.mxu0 0.0
    %2073 = vmatprep.subr.mxu0 0.0
    %2074 = vmatpush1.msra.mxu0 0.0
    %2075 = vmatprep.subr.mxu0 0.0
    %2076 = vmatpush1.msra.mxu0 0.0
    %2077 = vmatprep.mubr.f32.mxu0 0.0
    %2078 = vmatmul.mubr.f32.gmra.mrb[0].mxu0 %v1869
    %v2079 = vpop.f32.mrb[0].mxu0
    %v2080 = vadd.f32 0.0, %v2079
    %v2081 = vpop.f32.mrb[0].mxu0
    %v2082 = vadd.f32 0.0, %v2081
    %2083 = vdwg.mxu0
    %v2084 = vadd.f32 %v1874, %v2009
    %v2085 = vadd.f32 %v1875, %v2011
    %v2086 = vadd.f32 %v1876, %v2080
    %v2087 = vadd.f32 %v1877, %v2082
    %v2088 = vxor.u32 %v2084, 2147483648
    %v2089 = vxor.u32 %v2085, 2147483648
    %v2090 = vxor.u32 %v2086, 2147483648
    %v2091 = vmul.f32 %v2088, 1.442695
    %v2092 = vpow.pop %v2091
    %v2093 = vmul.f32 %v2089, 1.442695
    %v2094 = vpow.pop %v2093
    %v2095 = vmul.f32 %v2090, 1.442695
    %v2096 = vpow.pop %v2095
    %v2097 = vadd.f32 %v2092, 1.0
    %v2098 = vadd.f32 %v2094, 1.0
    %v2099 = vadd.f32 %v2096, 1.0
    %v2100 = vrcp.pop %v2097
    %v2101 = vmul.f32 1.0, %v2100
    %v2102 = vrcp.pop %v2098
    %v2103 = vmul.f32 1.0, %v2102
    %v2104 = vrcp.pop %v2099
    %v2105 = vmul.f32 1.0, %v2104
    %v2106 = vtanh.pop %v2087
    %v2107 = vmul.f32 %v2103, %v1870
    %v2108 = vmul.f32 %v2101, %v2106
    %v2109 = vadd.f32 %v2107, %v2108
    %v2110 = vtanh.pop %v2109
    %v2111 = vmul.f32 %v2105, %v2110
    %2112 = vst [vmem:[#allocation4] sm:$0xff] %v2109
    %2113 = vst [vmem:[#allocation3] sm:$0xff] %v2111
    %s2114 = scalar_lea.vmem %s4, 48
    %2115 = vst [vmem:[%s2114] sm:$0xff] %v2111
    %v2116 = vld [vmem:[#allocation3] sm:$0xff]
    %v2117 = vld [vmem:[#allocation4] sm:$0xff]
    %s2118 = smul.u32 7, 4
    %s2119 = smul.addr %s2118, 8
    %s2120 = scalar_lea.vmem [#allocation2], %s2119
    %v2121 = vld [vmem:[%s2120] sm:$0xff]
    %v2122 = vld [vmem:[%s2120 + $0x8] sm:$0xff]
    %v2123 = vld [vmem:[%s2120 + $0x10] sm:$0xff]
    %v2124 = vld [vmem:[%s2120 + $0x18] sm:$0xff]
    %v2125 = vld [vmem:[#allocation7] sm:$0xff]
    %v2126 = vld [vmem:[#allocation7 + $0x8] sm:$0xff]
    %v2127 = vld [vmem:[#allocation7 + $0x10] sm:$0xff]
    %v2128 = vld [vmem:[#allocation7 + $0x18] sm:$0xff]
    %v2129 = vld [vmem:[#allocation7 + $0x20] sm:$0xff]
    %v2130 = vld [vmem:[#allocation7 + $0x28] sm:$0xff]
    %v2131 = vld [vmem:[#allocation7 + $0x30] sm:$0xff]
    %v2132 = vld [vmem:[#allocation7 + $0x38] sm:$0xff]
    %v2133 = vld [vmem:[#allocation7 + $0x40] sm:$0xff]
    %v2134 = vld [vmem:[#allocation7 + $0x48] sm:$0xff]
    %v2135 = vld [vmem:[#allocation7 + $0x50] sm:$0xff]
    %v2136 = vld [vmem:[#allocation7 + $0x58] sm:$0xff]
    %v2137 = vld [vmem:[#allocation7 + $0x60] sm:$0xff]
    %v2138 = vld [vmem:[#allocation7 + $0x68] sm:$0xff]
    %v2139 = vld [vmem:[#allocation7 + $0x70] sm:$0xff]
    %v2140 = vld [vmem:[#allocation7 + $0x78] sm:$0xff]
    %v2141 = vld [vmem:[#allocation7 + $0x80] sm:$0xff]
    %v2142 = vld [vmem:[#allocation7 + $0x88] sm:$0xff]
    %v2143 = vld [vmem:[#allocation7 + $0x90] sm:$0xff]
    %v2144 = vld [vmem:[#allocation7 + $0x98] sm:$0xff]
    %v2145 = vld [vmem:[#allocation7 + $0xa0] sm:$0xff]
    %v2146 = vld [vmem:[#allocation7 + $0xa8] sm:$0xff]
    %v2147 = vld [vmem:[#allocation7 + $0xb0] sm:$0xff]
    %v2148 = vld [vmem:[#allocation7 + $0xb8] sm:$0xff]
    %v2149 = vld [vmem:[#allocation7 + $0xc0] sm:$0xff]
    %v2150 = vld [vmem:[#allocation7 + $0xc8] sm:$0xff]
    %v2151 = vld [vmem:[#allocation7 + $0xd0] sm:$0xff]
    %v2152 = vld [vmem:[#allocation7 + $0xd8] sm:$0xff]
    %v2153 = vld [vmem:[#allocation7 + $0xe0] sm:$0xff]
    %v2154 = vld [vmem:[#allocation7 + $0xe8] sm:$0xff]
    %v2155 = vld [vmem:[#allocation7 + $0xf0] sm:$0xff]
    %v2156 = vld [vmem:[#allocation7 + $0xf8] sm:$0xff]
    %v2157 = vld [vmem:[#allocation7 + $0x100] sm:$0xff]
    %v2158 = vld [vmem:[#allocation7 + $0x108] sm:$0xff]
    %v2159 = vld [vmem:[#allocation7 + $0x110] sm:$0xff]
    %v2160 = vld [vmem:[#allocation7 + $0x118] sm:$0xff]
    %v2161 = vld [vmem:[#allocation7 + $0x120] sm:$0xff]
    %v2162 = vld [vmem:[#allocation7 + $0x128] sm:$0xff]
    %v2163 = vld [vmem:[#allocation7 + $0x130] sm:$0xff]
    %v2164 = vld [vmem:[#allocation7 + $0x138] sm:$0xff]
    %v2165 = vld [vmem:[#allocation7 + $0x140] sm:$0xff]
    %v2166 = vld [vmem:[#allocation7 + $0x148] sm:$0xff]
    %v2167 = vld [vmem:[#allocation7 + $0x150] sm:$0xff]
    %v2168 = vld [vmem:[#allocation7 + $0x158] sm:$0xff]
    %v2169 = vld [vmem:[#allocation7 + $0x160] sm:$0xff]
    %v2170 = vld [vmem:[#allocation7 + $0x168] sm:$0xff]
    %v2171 = vld [vmem:[#allocation7 + $0x170] sm:$0xff]
    %v2172 = vld [vmem:[#allocation7 + $0x178] sm:$0xff]
    %v2173 = vld [vmem:[#allocation7 + $0x180] sm:$0xff]
    %v2174 = vld [vmem:[#allocation7 + $0x188] sm:$0xff]
    %v2175 = vld [vmem:[#allocation7 + $0x190] sm:$0xff]
    %v2176 = vld [vmem:[#allocation7 + $0x198] sm:$0xff]
    %v2177 = vld [vmem:[#allocation7 + $0x1a0] sm:$0xff]
    %v2178 = vld [vmem:[#allocation7 + $0x1a8] sm:$0xff]
    %v2179 = vld [vmem:[#allocation7 + $0x1b0] sm:$0xff]
    %v2180 = vld [vmem:[#allocation7 + $0x1b8] sm:$0xff]
    %v2181 = vld [vmem:[#allocation7 + $0x1c0] sm:$0xff]
    %v2182 = vld [vmem:[#allocation7 + $0x1c8] sm:$0xff]
    %v2183 = vld [vmem:[#allocation7 + $0x1d0] sm:$0xff]
    %v2184 = vld [vmem:[#allocation7 + $0x1d8] sm:$0xff]
    %v2185 = vld [vmem:[#allocation7 + $0x1e0] sm:$0xff]
    %v2186 = vld [vmem:[#allocation7 + $0x1e8] sm:$0xff]
    %v2187 = vld [vmem:[#allocation7 + $0x1f0] sm:$0xff]
    %v2188 = vld [vmem:[#allocation7 + $0x1f8] sm:$0xff]
    %2189 = vmatprep.subr.mxu0 %v2126
    %2190 = vmatpush1.msra.mxu0 %v2125
    %2191 = vmatprep.subr.mxu0 %v2130
    %2192 = vmatpush1.msra.mxu0 %v2129
    %2193 = vmatprep.subr.mxu0 %v2134
    %2194 = vmatpush1.msra.mxu0 %v2133
    %2195 = vmatprep.subr.mxu0 %v2138
    %2196 = vmatpush1.msra.mxu0 %v2137
    %2197 = vmatprep.subr.mxu0 %v2142
    %2198 = vmatpush1.msra.mxu0 %v2141
    %2199 = vmatprep.subr.mxu0 %v2146
    %2200 = vmatpush1.msra.mxu0 %v2145
    %2201 = vmatprep.subr.mxu0 %v2150
    %2202 = vmatpush1.msra.mxu0 %v2149
    %2203 = vmatprep.subr.mxu0 %v2154
    %2204 = vmatpush1.msra.mxu0 %v2153
    %2205 = vmatprep.subr.mxu0 %v2158
    %2206 = vmatpush1.msra.mxu0 %v2157
    %2207 = vmatprep.subr.mxu0 %v2162
    %2208 = vmatpush1.msra.mxu0 %v2161
    %2209 = vmatprep.subr.mxu0 %v2166
    %2210 = vmatpush1.msra.mxu0 %v2165
    %2211 = vmatprep.subr.mxu0 %v2170
    %2212 = vmatpush1.msra.mxu0 %v2169
    %2213 = vmatprep.subr.mxu0 %v2174
    %2214 = vmatpush1.msra.mxu0 %v2173
    %2215 = vmatprep.subr.mxu0 %v2178
    %2216 = vmatpush1.msra.mxu0 %v2177
    %2217 = vmatprep.subr.mxu0 %v2182
    %2218 = vmatpush1.msra.mxu0 %v2181
    %2219 = vmatprep.subr.mxu0 %v2186
    %2220 = vmatpush1.msra.mxu0 %v2185
    %2221 = vmatprep.subr.mxu0 0.0
    %2222 = vmatpush1.msra.mxu0 0.0
    %2223 = vmatprep.subr.mxu0 0.0
    %2224 = vmatpush1.msra.mxu0 0.0
    %2225 = vmatprep.subr.mxu0 0.0
    %2226 = vmatpush1.msra.mxu0 0.0
    %2227 = vmatprep.subr.mxu0 0.0
    %2228 = vmatpush1.msra.mxu0 0.0
    %2229 = vmatprep.subr.mxu0 0.0
    %2230 = vmatpush1.msra.mxu0 0.0
    %2231 = vmatprep.subr.mxu0 0.0
    %2232 = vmatpush1.msra.mxu0 0.0
    %2233 = vmatprep.subr.mxu0 0.0
    %2234 = vmatpush1.msra.mxu0 0.0
    %2235 = vmatprep.subr.mxu0 0.0
    %2236 = vmatpush1.msra.mxu0 0.0
    %2237 = vmatprep.subr.mxu0 0.0
    %2238 = vmatpush1.msra.mxu0 0.0
    %2239 = vmatprep.subr.mxu0 0.0
    %2240 = vmatpush1.msra.mxu0 0.0
    %2241 = vmatprep.subr.mxu0 0.0
    %2242 = vmatpush1.msra.mxu0 0.0
    %2243 = vmatprep.subr.mxu0 0.0
    %2244 = vmatpush1.msra.mxu0 0.0
    %2245 = vmatprep.subr.mxu0 0.0
    %2246 = vmatpush1.msra.mxu0 0.0
    %2247 = vmatprep.subr.mxu0 0.0
    %2248 = vmatpush1.msra.mxu0 0.0
    %2249 = vmatprep.subr.mxu0 0.0
    %2250 = vmatpush1.msra.mxu0 0.0
    %2251 = vmatprep.subr.mxu0 0.0
    %2252 = vmatpush1.msra.mxu0 0.0
    %2253 = vmatprep.mubr.f32.mxu0 0.0
    %2254 = vmatmul.mubr.f32.gmra.mrb[0].mxu0 %v2116
    %v2255 = vpop.f32.mrb[0].mxu0
    %v2256 = vadd.f32 0.0, %v2255
    %v2257 = vpop.f32.mrb[0].mxu0
    %v2258 = vadd.f32 0.0, %v2257
    %2259 = vdwg.mxu0
    %2260 = vmatprep.subr.mxu0 %v2128
    %2261 = vmatpush1.msra.mxu0 %v2127
    %2262 = vmatprep.subr.mxu0 %v2132
    %2263 = vmatpush1.msra.mxu0 %v2131
    %2264 = vmatprep.subr.mxu0 %v2136
    %2265 = vmatpush1.msra.mxu0 %v2135
    %2266 = vmatprep.subr.mxu0 %v2140
    %2267 = vmatpush1.msra.mxu0 %v2139
    %2268 = vmatprep.subr.mxu0 %v2144
    %2269 = vmatpush1.msra.mxu0 %v2143
    %2270 = vmatprep.subr.mxu0 %v2148
    %2271 = vmatpush1.msra.mxu0 %v2147
    %2272 = vmatprep.subr.mxu0 %v2152
    %2273 = vmatpush1.msra.mxu0 %v2151
    %2274 = vmatprep.subr.mxu0 %v2156
    %2275 = vmatpush1.msra.mxu0 %v2155
    %2276 = vmatprep.subr.mxu0 %v2160
    %2277 = vmatpush1.msra.mxu0 %v2159
    %2278 = vmatprep.subr.mxu0 %v2164
    %2279 = vmatpush1.msra.mxu0 %v2163
    %2280 = vmatprep.subr.mxu0 %v2168
    %2281 = vmatpush1.msra.mxu0 %v2167
    %2282 = vmatprep.subr.mxu0 %v2172
    %2283 = vmatpush1.msra.mxu0 %v2171
    %2284 = vmatprep.subr.mxu0 %v2176
    %2285 = vmatpush1.msra.mxu0 %v2175
    %2286 = vmatprep.subr.mxu0 %v2180
    %2287 = vmatpush1.msra.mxu0 %v2179
    %2288 = vmatprep.subr.mxu0 %v2184
    %2289 = vmatpush1.msra.mxu0 %v2183
    %2290 = vmatprep.subr.mxu0 %v2188
    %2291 = vmatpush1.msra.mxu0 %v2187
    %2292 = vmatprep.subr.mxu0 0.0
    %2293 = vmatpush1.msra.mxu0 0.0
    %2294 = vmatprep.subr.mxu0 0.0
    %2295 = vmatpush1.msra.mxu0 0.0
    %2296 = vmatprep.subr.mxu0 0.0
    %2297 = vmatpush1.msra.mxu0 0.0
    %2298 = vmatprep.subr.mxu0 0.0
    %2299 = vmatpush1.msra.mxu0 0.0
    %2300 = vmatprep.subr.mxu0 0.0
    %2301 = vmatpush1.msra.mxu0 0.0
    %2302 = vmatprep.subr.mxu0 0.0
    %2303 = vmatpush1.msra.mxu0 0.0
    %2304 = vmatprep.subr.mxu0 0.0
    %2305 = vmatpush1.msra.mxu0 0.0
    %2306 = vmatprep.subr.mxu0 0.0
    %2307 = vmatpush1.msra.mxu0 0.0
    %2308 = vmatprep.subr.mxu0 0.0
    %2309 = vmatpush1.msra.mxu0 0.0
    %2310 = vmatprep.subr.mxu0 0.0
    %2311 = vmatpush1.msra.mxu0 0.0
    %2312 = vmatprep.subr.mxu0 0.0
    %2313 = vmatpush1.msra.mxu0 0.0
    %2314 = vmatprep.subr.mxu0 0.0
    %2315 = vmatpush1.msra.mxu0 0.0
    %2316 = vmatprep.subr.mxu0 0.0
    %2317 = vmatpush1.msra.mxu0 0.0
    %2318 = vmatprep.subr.mxu0 0.0
    %2319 = vmatpush1.msra.mxu0 0.0
    %2320 = vmatprep.subr.mxu0 0.0
    %2321 = vmatpush1.msra.mxu0 0.0
    %2322 = vmatprep.subr.mxu0 0.0
    %2323 = vmatpush1.msra.mxu0 0.0
    %2324 = vmatprep.mubr.f32.mxu0 0.0
    %2325 = vmatmul.mubr.f32.gmra.mrb[0].mxu0 %v2116
    %v2326 = vpop.f32.mrb[0].mxu0
    %v2327 = vadd.f32 0.0, %v2326
    %v2328 = vpop.f32.mrb[0].mxu0
    %v2329 = vadd.f32 0.0, %v2328
    %2330 = vdwg.mxu0
    %v2331 = vadd.f32 %v2121, %v2256
    %v2332 = vadd.f32 %v2122, %v2258
    %v2333 = vadd.f32 %v2123, %v2327
    %v2334 = vadd.f32 %v2124, %v2329
    %v2335 = vxor.u32 %v2331, 2147483648
    %v2336 = vxor.u32 %v2332, 2147483648
    %v2337 = vxor.u32 %v2333, 2147483648
    %v2338 = vmul.f32 %v2335, 1.442695
    %v2339 = vpow.pop %v2338
    %v2340 = vmul.f32 %v2336, 1.442695
    %v2341 = vpow.pop %v2340
    %v2342 = vmul.f32 %v2337, 1.442695
    %v2343 = vpow.pop %v2342
    %v2344 = vadd.f32 %v2339, 1.0
    %v2345 = vadd.f32 %v2341, 1.0
    %v2346 = vadd.f32 %v2343, 1.0
    %v2347 = vrcp.pop %v2344
    %v2348 = vmul.f32 1.0, %v2347
    %v2349 = vrcp.pop %v2345
    %v2350 = vmul.f32 1.0, %v2349
    %v2351 = vrcp.pop %v2346
    %v2352 = vmul.f32 1.0, %v2351
    %v2353 = vtanh.pop %v2334
    %v2354 = vmul.f32 %v2350, %v2117
    %v2355 = vmul.f32 %v2348, %v2353
    %v2356 = vadd.f32 %v2354, %v2355
    %v2357 = vtanh.pop %v2356
    %v2358 = vmul.f32 %v2352, %v2357
    %2359 = vst [vmem:[#allocation4] sm:$0xff] %v2356
    %2360 = vst [vmem:[#allocation3] sm:$0xff] %v2358
    %s2361 = scalar_lea.vmem %s4, 56
    %2362 = vst [vmem:[%s2361] sm:$0xff] %v2358
    // Predicated region
    $region34: #{lstm_forward.2} parent=1 // pred_check
      _
    $region35: #{lstm_forward.2} parent=1 // pred_check_branch
      %2364 = sbr.rel (0) target = $region37
    $region36: #{lstm_forward.2} parent=1 // pred_region
      _
    $region37: #{lstm_forward.2} parent=1 // pred_fallthru
      _
    // Predicated region
    $region38: #{lstm_forward.2} parent=1 // pred_check
      _
    $region39: #{lstm_forward.2} parent=1 // pred_check_branch
      %2366 = sbr.rel (0) target = $region41
    $region40: #{lstm_forward.2} parent=1 // pred_region
      _
    $region41: #{lstm_forward.2} parent=1 // pred_fallthru
      _
    %2367 = vsyncpa [#allocation6], 1
    %2368 = vsyncpa [#allocation8], 1

</llo_original>
